<compile_context>
chip_gen: v7x
topology: tpu7x:2x2x1
jax: 0.10.0
libtpu: 0.0.40
codegen_flags: <defaults>
</compile_context>

<pallas_src>
import functools

import jax
import jax.numpy as jnp
from jax import lax
from jax.experimental import pallas as pl
from jax.experimental.pallas import tpu as pltpu

EPS = 1e-5  # nn.InstanceNorm2d default eps


def _norm_relu(t):
    """InstanceNorm2d(affine=False, eps=1e-5) + ReLU on an (H, W, C) f32 tile."""
    cnt = jnp.float32(t.shape[0] * t.shape[1])
    mean = jnp.sum(jnp.sum(t, axis=1, keepdims=True), axis=0, keepdims=True) / cnt
    d = t - mean
    var = jnp.sum(jnp.sum(d * d, axis=1, keepdims=True), axis=0, keepdims=True) / cnt
    return jnp.maximum(d * lax.rsqrt(var + EPS), 0.0)


def _conv3x3_im2col(t, pad_ref, w9):
    """3x3 SAME conv (stride 1, no bias) as ONE im2col matmul on the MXU.

    t      : (H, W, Cin) f32 activation (already normalized + ReLU'd)
    pad_ref: VMEM scratch (H+2, W+2, Cin) f32 used as the zero halo buffer
    w9     : (9*Cin, Cout) bf16 weights (taps folded into K in the wrapper)
    """
    H, W, Cin = t.shape
    Cout = w9.shape[-1]
    # Zero-pad inside VMEM; the zero halo implements the conv's SAME padding.
    pad_ref[...] = jnp.zeros_like(pad_ref)
    pad_ref[1:H + 1, 1:W + 1, :] = t
    xp = pad_ref[...]
    # im2col: gather the 9 taps once, concat along K -> single (H*W, 9*Cin) matmul.
    taps = [xp[ky:ky + H, kx:kx + W, :] for ky in range(3) for kx in range(3)]
    patches = jnp.concatenate(taps, axis=-1).reshape(H * W, 9 * Cin)
    out = jnp.dot(patches.astype(jnp.bfloat16), w9,
                  preferred_element_type=jnp.float32)
    return out.reshape(H, W, Cout)


def _conv_block_kernel(x_ref, w1_ref, w2_ref, w3_ref, *rest, has_downsample):
    """Fused ConvBlock forward for one batch sample.

    x_ref : (1, H, W, Cin)
    w*_ref: (9*Cin_l, Cout_l) bf16      (per-layer im2col weights)
    wds   : (Cin, Cout) bf16            (only if has_downsample)
    o_ref : (1, H, W, Cout)             Cout = C1 + C2 + C3
    pad*  : VMEM halo scratch buffers for the three convs
    """
    if has_downsample:
        wds_ref, o_ref, pad1, pad2, pad3 = rest
    else:
        o_ref, pad1, pad2, pad3 = rest

    x = x_ref[0].astype(jnp.float32)                 # (H, W, Cin)
    H, W, Cin = x.shape

    # bn1/relu is identical to the downsample branch's InstanceNorm/relu -> reuse.
    xn = _norm_relu(x)
    out1 = _conv3x3_im2col(xn, pad1, w1_ref[...])
    out2 = _conv3x3_im2col(_norm_relu(out1), pad2, w2_ref[...])
    out3 = _conv3x3_im2col(_norm_relu(out2), pad3, w3_ref[...])

    cat = jnp.concatenate([out1, out2, out3], axis=-1)   # (H, W, Cout)

    if has_downsample:
        Cout = o_ref.shape[-1]
        res = jnp.dot(xn.reshape(H * W, Cin).astype(jnp.bfloat16), wds_ref[...],
                      preferred_element_type=jnp.float32).reshape(H, W, Cout)
    else:
        res = x

    o_ref[0] = (cat + res).astype(o_ref.dtype)


def conv_block_forward_nhwc(x_nhwc, params):
    """Fused ConvBlock on NHWC input/output (preferred when stacking blocks)."""
    B, H, W, Cin = x_nhwc.shape
    w1, w2, w3 = params["w1"], params["w2"], params["w3"]
    C1, C2, C3 = w1.shape[-1], w2.shape[-1], w3.shape[-1]
    Cout = C1 + C2 + C3
    has_ds = params.get("w_ds") is not None

    # Fold the 3x3 taps into the contraction axis once, outside the kernel, and
    # cast MXU operands to bf16 (normalization math stays f32 in-kernel).
    w1_9 = w1.reshape(9 * Cin, C1).astype(jnp.bfloat16)
    w2_9 = w2.reshape(9 * C1, C2).astype(jnp.bfloat16)
    w3_9 = w3.reshape(9 * C2, C3).astype(jnp.bfloat16)

    in_specs = [
        pl.BlockSpec((1, H, W, Cin), lambda b: (b, 0, 0, 0)),
        pl.BlockSpec((9 * Cin, C1), lambda b: (0, 0)),   # weights stay resident
        pl.BlockSpec((9 * C1, C2), lambda b: (0, 0)),
        pl.BlockSpec((9 * C2, C3), lambda b: (0, 0)),
    ]
    args = [x_nhwc.astype(jnp.float32), w1_9, w2_9, w3_9]
    if has_ds:
        in_specs.append(pl.BlockSpec((Cin, Cout), lambda b: (0, 0)))
        args.append(params["w_ds"].astype(jnp.bfloat16))

    return pl.pallas_call(
        functools.partial(_conv_block_kernel, has_downsample=has_ds),
        out_shape=jax.ShapeDtypeStruct((B, H, W, Cout), jnp.float32),
        grid_spec=pltpu.PrefetchScalarGridSpec(
            num_scalar_prefetch=0,
            grid=(B,),
            in_specs=in_specs,
            out_specs=pl.BlockSpec((1, H, W, Cout), lambda b: (b, 0, 0, 0)),
            scratch_shapes=[
                pltpu.VMEM((H + 2, W + 2, Cin), jnp.float32),
                pltpu.VMEM((H + 2, W + 2, C1), jnp.float32),
                pltpu.VMEM((H + 2, W + 2, C2), jnp.float32),
            ],
        ),
        compiler_params=pltpu.CompilerParams(
            dimension_semantics=("parallel",),
            # Raise above v5e's 16 MiB scoped default; leaves headroom on v7x (64 MiB).
            vmem_limit_bytes=48 * 1024 * 1024,
        ),
    )(*args)


def conv_block_forward(x_nchw, params):
    """PyTorch-interface wrapper (NCHW in/out).

    When stacking ConvBlocks, hoist these transposes and chain
    conv_block_forward_nhwc directly to stay NHWC end-to-end.
    """
    x = jnp.transpose(x_nchw, (0, 2, 3, 1))          # NCHW -> NHWC
    out = conv_block_forward_nhwc(x, params)
    return jnp.transpose(out, (0, 3, 1, 2))          # NHWC -> NCHW


# ---------------------------- pure-JAX reference ----------------------------
def _reference(x_nchw, params):
    x = jnp.transpose(x_nchw, (0, 2, 3, 1)).astype(jnp.float32)

    def norm_relu(t):
        m = jnp.mean(t, axis=(1, 2), keepdims=True)
        v = jnp.mean((t - m) ** 2, axis=(1, 2), keepdims=True)
        return jnp.maximum((t - m) / jnp.sqrt(v + EPS), 0.0)

    def conv3(t, w):
        return lax.conv_general_dilated(norm_relu(t), w, (1, 1), "SAME",
                                        dimension_numbers=("NHWC", "HWIO", "NHWC"))

    o1 = conv3(x, params["w1"])
    o2 = conv3(o1, params["w2"])
    o3 = conv3(o2, params["w3"])
    cat = jnp.concatenate([o1, o2, o3], axis=-1)
    if params.get("w_ds") is not None:
        res = jnp.einsum("bhwc,cd->bhwd", norm_relu(x), params["w_ds"])
    else:
        res = x
    return jnp.transpose(cat + res, (0, 3, 1, 2))


if __name__ == "__main__":
    in_planes, out_planes = 4, 8           # in_planes != out_planes -> downsample path
    B, H, W = 2, 16, 16

    key = jax.random.PRNGKey(0)
    k = jax.random.split(key, 5)
    x = jax.random.normal(k[0], (B, in_planes, H, W), jnp.float32)

    def init(kk, shape, fan_in):
        return jax.random.normal(kk, shape, jnp.float32) / jnp.sqrt(jnp.float32(fan_in))

    c_half, c_quarter = out_planes // 2, out_planes // 4
    params = {
        # conv weights stored HWIO (PyTorch OIHW -> transpose (2, 3, 1, 0))
        "w1": init(k[1], (3, 3, in_planes, c_half), 9 * in_planes),
        "w2": init(k[2], (3, 3, c_half, c_quarter), 9 * c_half),
        "w3": init(k[3], (3, 3, c_quarter, c_quarter), 9 * c_quarter),
        "w_ds": init(k[4], (in_planes, out_planes), in_planes),   # 1x1 conv
    }

    out = jax.jit(conv_block_forward)(x, params)
    out = jax.block_until_ready(out)

    ref = _reference(x, params)
    assert out.shape == (B, out_planes, H, W), out.shape
    # bf16 MXU operands -> looser tolerance than pure-f32 (per review).
    err = float(jnp.max(jnp.abs(out - ref)))
    assert jnp.allclose(out, ref, atol=5e-2, rtol=5e-2), err
    print("KERNEL_OK")
</pallas_src>

<mosaic_0001>
module attributes {stable_mosaic.version = 11 : i64} {
  func.func @_conv_block_kernel(%arg0: i32, %arg1: memref<1x16x16x4xf32, #tpu.memory_space<vmem>>, %arg2: memref<36x4xbf16, #tpu.memory_space<vmem>>, %arg3: memref<36x2xbf16, #tpu.memory_space<vmem>>, %arg4: memref<18x2xbf16, #tpu.memory_space<vmem>>, %arg5: memref<4x8xbf16, #tpu.memory_space<vmem>>, %arg6: memref<1x16x16x8xf32, #tpu.memory_space<vmem>>, %arg7: memref<18x18x4xf32, #tpu.memory_space<vmem>>, %arg8: memref<18x18x4xf32, #tpu.memory_space<vmem>>, %arg9: memref<18x18x2xf32, #tpu.memory_space<vmem>>) attributes {dimension_semantics = [#tpu.dimension_semantics<parallel>], iteration_bounds = array<i64: 2>, scalar_prefetch = 0 : i64, scratch_operands = 3 : i64, tpu.core_type = #tpu.core_type<tc>, window_params = [{transform_indices = @transform_0, window_bounds = array<i64: 1, 16, 16, 4>}, {pipeline_mode = #tpu.pipeline_mode<synchronous>, transform_indices = @transform_1, window_bounds = array<i64: 36, 4>}, {pipeline_mode = #tpu.pipeline_mode<synchronous>, transform_indices = @transform_2, window_bounds = array<i64: 36, 2>}, {pipeline_mode = #tpu.pipeline_mode<synchronous>, transform_indices = @transform_3, window_bounds = array<i64: 18, 2>}, {pipeline_mode = #tpu.pipeline_mode<synchronous>, transform_indices = @transform_4, window_bounds = array<i64: 4, 8>}, {transform_indices = @transform_5, window_bounds = array<i64: 1, 16, 16, 8>}]} {
    %c0 = arith.constant 0 : index
    %c0_0 = arith.constant 0 : index
    %c0_1 = arith.constant 0 : index
    %c0_2 = arith.constant 0 : index
    %0 = vector.load %arg1[%c0, %c0_0, %c0_1, %c0_2] : memref<1x16x16x4xf32, #tpu.memory_space<vmem>>, vector<1x16x16x4xf32>
    %1 = vector.shape_cast %0 : vector<1x16x16x4xf32> to vector<16x16x4xf32>
    %cst = arith.constant dense<0.000000e+00> : vector<16x4xf32>
    %2 = vector.multi_reduction <add>, %1, %cst [1] : vector<16x16x4xf32> to vector<16x4xf32>
    %3 = vector.shape_cast %2 : vector<16x4xf32> to vector<16x1x4xf32>
    %cst_3 = arith.constant dense<0.000000e+00> : vector<1x4xf32>
    %4 = vector.multi_reduction <add>, %3, %cst_3 [0] : vector<16x1x4xf32> to vector<1x4xf32>
    %5 = vector.shape_cast %4 : vector<1x4xf32> to vector<1x1x4xf32>
    %cst_4 = arith.constant 2.560000e+02 : f32
    %6 = vector.broadcast %cst_4 : f32 to vector<1x1x4xf32>
    %7 = arith.divf %5, %6 : vector<1x1x4xf32>
    %8 = vector.broadcast %7 : vector<1x1x4xf32> to vector<16x16x4xf32>
    %9 = arith.subf %1, %8 : vector<16x16x4xf32>
    %10 = arith.mulf %9, %9 : vector<16x16x4xf32>
    %cst_5 = arith.constant dense<0.000000e+00> : vector<16x4xf32>
    %11 = vector.multi_reduction <add>, %10, %cst_5 [1] : vector<16x16x4xf32> to vector<16x4xf32>
    %12 = vector.shape_cast %11 : vector<16x4xf32> to vector<16x1x4xf32>
    %cst_6 = arith.constant dense<0.000000e+00> : vector<1x4xf32>
    %13 = vector.multi_reduction <add>, %12, %cst_6 [0] : vector<16x1x4xf32> to vector<1x4xf32>
    %14 = vector.shape_cast %13 : vector<1x4xf32> to vector<1x1x4xf32>
    %cst_7 = arith.constant 2.560000e+02 : f32
    %15 = vector.broadcast %cst_7 : f32 to vector<1x1x4xf32>
    %16 = arith.divf %14, %15 : vector<1x1x4xf32>
    %cst_8 = arith.constant 9.99999974E-6 : f32
    %17 = vector.broadcast %cst_8 : f32 to vector<1x1x4xf32>
    %18 = arith.addf %16, %17 : vector<1x1x4xf32>
    %19 = math.rsqrt %18 : vector<1x1x4xf32>
    %20 = vector.broadcast %19 : vector<1x1x4xf32> to vector<16x16x4xf32>
    %21 = arith.mulf %9, %20 : vector<16x16x4xf32>
    %cst_9 = arith.constant 0.000000e+00 : f32
    %22 = vector.broadcast %cst_9 : f32 to vector<16x16x4xf32>
    %23 = arith.maximumf %21, %22 : vector<16x16x4xf32>
    %c0_10 = arith.constant 0 : index
    %c0_11 = arith.constant 0 : index
    %24 = vector.load %arg2[%c0_10, %c0_11] : memref<36x4xbf16, #tpu.memory_space<vmem>>, vector<36x4xbf16>
    %cst_12 = arith.constant 0.000000e+00 : f32
    %25 = vector.broadcast %cst_12 : f32 to vector<18x18x4xf32>
    %c0_13 = arith.constant 0 : index
    %c0_14 = arith.constant 0 : index
    %c0_15 = arith.constant 0 : index
    %26 = vector.load %arg7[%c0_13, %c0_14, %c0_15] : memref<18x18x4xf32, #tpu.memory_space<vmem>>, vector<18x18x4xf32>
    tpu.vector_store %arg7[%c0_13, %c0_14, %c0_15], %25 {strides = array<i32>} : memref<18x18x4xf32, #tpu.memory_space<vmem>>, vector<18x18x4xf32>,
    %c1 = arith.constant 1 : index
    %c1_16 = arith.constant 1 : index
    %c0_17 = arith.constant 0 : index
    %27 = vector.load %arg7[%c1, %c1_16, %c0_17] : memref<18x18x4xf32, #tpu.memory_space<vmem>>, vector<16x16x4xf32>
    tpu.vector_store %arg7[%c1, %c1_16, %c0_17], %23 {strides = array<i32>} : memref<18x18x4xf32, #tpu.memory_space<vmem>>, vector<16x16x4xf32>,
    %c0_18 = arith.constant 0 : index
    %c0_19 = arith.constant 0 : index
    %c0_20 = arith.constant 0 : index
    %28 = vector.load %arg7[%c0_18, %c0_19, %c0_20] : memref<18x18x4xf32, #tpu.memory_space<vmem>>, vector<18x18x4xf32>
    %29 = vector.extract_strided_slice %28 {offsets = [0, 0, 0], sizes = [16, 16, 4], strides = [1, 1, 1]} : vector<18x18x4xf32> to vector<16x16x4xf32>
    %30 = vector.extract_strided_slice %28 {offsets = [0, 1, 0], sizes = [16, 16, 4], strides = [1, 1, 1]} : vector<18x18x4xf32> to vector<16x16x4xf32>
    %31 = vector.extract_strided_slice %28 {offsets = [0, 2, 0], sizes = [16, 16, 4], strides = [1, 1, 1]} : vector<18x18x4xf32> to vector<16x16x4xf32>
    %32 = vector.extract_strided_slice %28 {offsets = [1, 0, 0], sizes = [16, 16, 4], strides = [1, 1, 1]} : vector<18x18x4xf32> to vector<16x16x4xf32>
    %33 = vector.extract_strided_slice %28 {offsets = [1, 1, 0], sizes = [16, 16, 4], strides = [1, 1, 1]} : vector<18x18x4xf32> to vector<16x16x4xf32>
    %34 = vector.extract_strided_slice %28 {offsets = [1, 2, 0], sizes = [16, 16, 4], strides = [1, 1, 1]} : vector<18x18x4xf32> to vector<16x16x4xf32>
    %35 = vector.extract_strided_slice %28 {offsets = [2, 0, 0], sizes = [16, 16, 4], strides = [1, 1, 1]} : vector<18x18x4xf32> to vector<16x16x4xf32>
    %36 = vector.extract_strided_slice %28 {offsets = [2, 1, 0], sizes = [16, 16, 4], strides = [1, 1, 1]} : vector<18x18x4xf32> to vector<16x16x4xf32>
    %37 = vector.extract_strided_slice %28 {offsets = [2, 2, 0], sizes = [16, 16, 4], strides = [1, 1, 1]} : vector<18x18x4xf32> to vector<16x16x4xf32>
    %38 = tpu.concatenate %29, %30, %31, %32, %33, %34, %35, %36, %37 in 2 : vector<16x16x4xf32>, vector<16x16x4xf32>, vector<16x16x4xf32>, vector<16x16x4xf32>, vector<16x16x4xf32>, vector<16x16x4xf32>, vector<16x16x4xf32>, vector<16x16x4xf32>, vector<16x16x4xf32> -> vector<16x16x36xf32>
    %39 = vector.shape_cast %38 : vector<16x16x36xf32> to vector<256x36xf32>
    %40 = arith.truncf %39 : vector<256x36xf32> to vector<256x36xbf16>
    %cst_21 = arith.constant dense<0.000000e+00> : vector<256x4xf32>
    %41 = tpu.matmul %40, %24, %cst_21 {dimension_numbers = #tpu.dot_dimension_numbers<[1], [0], [0], [1], [0, 0, 1, 1], [], []>} : vector<256x36xbf16>, vector<36x4xbf16>, vector<256x4xf32> -> vector<256x4xf32>
    %42 = vector.shape_cast %41 : vector<256x4xf32> to vector<16x16x4xf32>
    %cst_22 = arith.constant dense<0.000000e+00> : vector<16x4xf32>
    %43 = vector.multi_reduction <add>, %42, %cst_22 [1] : vector<16x16x4xf32> to vector<16x4xf32>
    %44 = vector.shape_cast %43 : vector<16x4xf32> to vector<16x1x4xf32>
    %cst_23 = arith.constant dense<0.000000e+00> : vector<1x4xf32>
    %45 = vector.multi_reduction <add>, %44, %cst_23 [0] : vector<16x1x4xf32> to vector<1x4xf32>
    %46 = vector.shape_cast %45 : vector<1x4xf32> to vector<1x1x4xf32>
    %cst_24 = arith.constant 2.560000e+02 : f32
    %47 = vector.broadcast %cst_24 : f32 to vector<1x1x4xf32>
    %48 = arith.divf %46, %47 : vector<1x1x4xf32>
    %49 = vector.broadcast %48 : vector<1x1x4xf32> to vector<16x16x4xf32>
    %50 = arith.subf %42, %49 : vector<16x16x4xf32>
    %51 = arith.mulf %50, %50 : vector<16x16x4xf32>
    %cst_25 = arith.constant dense<0.000000e+00> : vector<16x4xf32>
    %52 = vector.multi_reduction <add>, %51, %cst_25 [1] : vector<16x16x4xf32> to vector<16x4xf32>
    %53 = vector.shape_cast %52 : vector<16x4xf32> to vector<16x1x4xf32>
    %cst_26 = arith.constant dense<0.000000e+00> : vector<1x4xf32>
    %54 = vector.multi_reduction <add>, %53, %cst_26 [0] : vector<16x1x4xf32> to vector<1x4xf32>
    %55 = vector.shape_cast %54 : vector<1x4xf32> to vector<1x1x4xf32>
    %cst_27 = arith.constant 2.560000e+02 : f32
    %56 = vector.broadcast %cst_27 : f32 to vector<1x1x4xf32>
    %57 = arith.divf %55, %56 : vector<1x1x4xf32>
    %cst_28 = arith.constant 9.99999974E-6 : f32
    %58 = vector.broadcast %cst_28 : f32 to vector<1x1x4xf32>
    %59 = arith.addf %57, %58 : vector<1x1x4xf32>
    %60 = math.rsqrt %59 : vector<1x1x4xf32>
    %61 = vector.broadcast %60 : vector<1x1x4xf32> to vector<16x16x4xf32>
    %62 = arith.mulf %50, %61 : vector<16x16x4xf32>
    %cst_29 = arith.constant 0.000000e+00 : f32
    %63 = vector.broadcast %cst_29 : f32 to vector<16x16x4xf32>
    %64 = arith.maximumf %62, %63 : vector<16x16x4xf32>
    %c0_30 = arith.constant 0 : index
    %c0_31 = arith.constant 0 : index
    %65 = vector.load %arg3[%c0_30, %c0_31] : memref<36x2xbf16, #tpu.memory_space<vmem>>, vector<36x2xbf16>
    %cst_32 = arith.constant 0.000000e+00 : f32
    %66 = vector.broadcast %cst_32 : f32 to vector<18x18x4xf32>
    %c0_33 = arith.constant 0 : index
    %c0_34 = arith.constant 0 : index
    %c0_35 = arith.constant 0 : index
    %67 = vector.load %arg8[%c0_33, %c0_34, %c0_35] : memref<18x18x4xf32, #tpu.memory_space<vmem>>, vector<18x18x4xf32>
    tpu.vector_store %arg8[%c0_33, %c0_34, %c0_35], %66 {strides = array<i32>} : memref<18x18x4xf32, #tpu.memory_space<vmem>>, vector<18x18x4xf32>,
    %c1_36 = arith.constant 1 : index
    %c1_37 = arith.constant 1 : index
    %c0_38 = arith.constant 0 : index
    %68 = vector.load %arg8[%c1_36, %c1_37, %c0_38] : memref<18x18x4xf32, #tpu.memory_space<vmem>>, vector<16x16x4xf32>
    tpu.vector_store %arg8[%c1_36, %c1_37, %c0_38], %64 {strides = array<i32>} : memref<18x18x4xf32, #tpu.memory_space<vmem>>, vector<16x16x4xf32>,
    %c0_39 = arith.constant 0 : index
    %c0_40 = arith.constant 0 : index
    %c0_41 = arith.constant 0 : index
    %69 = vector.load %arg8[%c0_39, %c0_40, %c0_41] : memref<18x18x4xf32, #tpu.memory_space<vmem>>, vector<18x18x4xf32>
    %70 = vector.extract_strided_slice %69 {offsets = [0, 0, 0], sizes = [16, 16, 4], strides = [1, 1, 1]} : vector<18x18x4xf32> to vector<16x16x4xf32>
    %71 = vector.extract_strided_slice %69 {offsets = [0, 1, 0], sizes = [16, 16, 4], strides = [1, 1, 1]} : vector<18x18x4xf32> to vector<16x16x4xf32>
    %72 = vector.extract_strided_slice %69 {offsets = [0, 2, 0], sizes = [16, 16, 4], strides = [1, 1, 1]} : vector<18x18x4xf32> to vector<16x16x4xf32>
    %73 = vector.extract_strided_slice %69 {offsets = [1, 0, 0], sizes = [16, 16, 4], strides = [1, 1, 1]} : vector<18x18x4xf32> to vector<16x16x4xf32>
    %74 = vector.extract_strided_slice %69 {offsets = [1, 1, 0], sizes = [16, 16, 4], strides = [1, 1, 1]} : vector<18x18x4xf32> to vector<16x16x4xf32>
    %75 = vector.extract_strided_slice %69 {offsets = [1, 2, 0], sizes = [16, 16, 4], strides = [1, 1, 1]} : vector<18x18x4xf32> to vector<16x16x4xf32>
    %76 = vector.extract_strided_slice %69 {offsets = [2, 0, 0], sizes = [16, 16, 4], strides = [1, 1, 1]} : vector<18x18x4xf32> to vector<16x16x4xf32>
    %77 = vector.extract_strided_slice %69 {offsets = [2, 1, 0], sizes = [16, 16, 4], strides = [1, 1, 1]} : vector<18x18x4xf32> to vector<16x16x4xf32>
    %78 = vector.extract_strided_slice %69 {offsets = [2, 2, 0], sizes = [16, 16, 4], strides = [1, 1, 1]} : vector<18x18x4xf32> to vector<16x16x4xf32>
    %79 = tpu.concatenate %70, %71, %72, %73, %74, %75, %76, %77, %78 in 2 : vector<16x16x4xf32>, vector<16x16x4xf32>, vector<16x16x4xf32>, vector<16x16x4xf32>, vector<16x16x4xf32>, vector<16x16x4xf32>, vector<16x16x4xf32>, vector<16x16x4xf32>, vector<16x16x4xf32> -> vector<16x16x36xf32>
    %80 = vector.shape_cast %79 : vector<16x16x36xf32> to vector<256x36xf32>
    %81 = arith.truncf %80 : vector<256x36xf32> to vector<256x36xbf16>
    %cst_42 = arith.constant dense<0.000000e+00> : vector<256x2xf32>
    %82 = tpu.matmul %81, %65, %cst_42 {dimension_numbers = #tpu.dot_dimension_numbers<[1], [0], [0], [1], [0, 0, 1, 1], [], []>} : vector<256x36xbf16>, vector<36x2xbf16>, vector<256x2xf32> -> vector<256x2xf32>
    %83 = vector.shape_cast %82 : vector<256x2xf32> to vector<16x16x2xf32>
    %cst_43 = arith.constant dense<0.000000e+00> : vector<16x2xf32>
    %84 = vector.multi_reduction <add>, %83, %cst_43 [1] : vector<16x16x2xf32> to vector<16x2xf32>
    %85 = vector.shape_cast %84 : vector<16x2xf32> to vector<16x1x2xf32>
    %cst_44 = arith.constant dense<0.000000e+00> : vector<1x2xf32>
    %86 = vector.multi_reduction <add>, %85, %cst_44 [0] : vector<16x1x2xf32> to vector<1x2xf32>
    %87 = vector.shape_cast %86 : vector<1x2xf32> to vector<1x1x2xf32>
    %cst_45 = arith.constant 2.560000e+02 : f32
    %88 = vector.broadcast %cst_45 : f32 to vector<1x1x2xf32>
    %89 = arith.divf %87, %88 : vector<1x1x2xf32>
    %90 = vector.broadcast %89 : vector<1x1x2xf32> to vector<16x16x2xf32>
    %91 = arith.subf %83, %90 : vector<16x16x2xf32>
    %92 = arith.mulf %91, %91 : vector<16x16x2xf32>
    %cst_46 = arith.constant dense<0.000000e+00> : vector<16x2xf32>
    %93 = vector.multi_reduction <add>, %92, %cst_46 [1] : vector<16x16x2xf32> to vector<16x2xf32>
    %94 = vector.shape_cast %93 : vector<16x2xf32> to vector<16x1x2xf32>
    %cst_47 = arith.constant dense<0.000000e+00> : vector<1x2xf32>
    %95 = vector.multi_reduction <add>, %94, %cst_47 [0] : vector<16x1x2xf32> to vector<1x2xf32>
    %96 = vector.shape_cast %95 : vector<1x2xf32> to vector<1x1x2xf32>
    %cst_48 = arith.constant 2.560000e+02 : f32
    %97 = vector.broadcast %cst_48 : f32 to vector<1x1x2xf32>
    %98 = arith.divf %96, %97 : vector<1x1x2xf32>
    %cst_49 = arith.constant 9.99999974E-6 : f32
    %99 = vector.broadcast %cst_49 : f32 to vector<1x1x2xf32>
    %100 = arith.addf %98, %99 : vector<1x1x2xf32>
    %101 = math.rsqrt %100 : vector<1x1x2xf32>
    %102 = vector.broadcast %101 : vector<1x1x2xf32> to vector<16x16x2xf32>
    %103 = arith.mulf %91, %102 : vector<16x16x2xf32>
    %cst_50 = arith.constant 0.000000e+00 : f32
    %104 = vector.broadcast %cst_50 : f32 to vector<16x16x2xf32>
    %105 = arith.maximumf %103, %104 : vector<16x16x2xf32>
    %c0_51 = arith.constant 0 : index
    %c0_52 = arith.constant 0 : index
    %106 = vector.load %arg4[%c0_51, %c0_52] : memref<18x2xbf16, #tpu.memory_space<vmem>>, vector<18x2xbf16>
    %cst_53 = arith.constant 0.000000e+00 : f32
    %107 = vector.broadcast %cst_53 : f32 to vector<18x18x2xf32>
    %c0_54 = arith.constant 0 : index
    %c0_55 = arith.constant 0 : index
    %c0_56 = arith.constant 0 : index
    %108 = vector.load %arg9[%c0_54, %c0_55, %c0_56] : memref<18x18x2xf32, #tpu.memory_space<vmem>>, vector<18x18x2xf32>
    tpu.vector_store %arg9[%c0_54, %c0_55, %c0_56], %107 {strides = array<i32>} : memref<18x18x2xf32, #tpu.memory_space<vmem>>, vector<18x18x2xf32>,
    %c1_57 = arith.constant 1 : index
    %c1_58 = arith.constant 1 : index
    %c0_59 = arith.constant 0 : index
    %109 = vector.load %arg9[%c1_57, %c1_58, %c0_59] : memref<18x18x2xf32, #tpu.memory_space<vmem>>, vector<16x16x2xf32>
    tpu.vector_store %arg9[%c1_57, %c1_58, %c0_59], %105 {strides = array<i32>} : memref<18x18x2xf32, #tpu.memory_space<vmem>>, vector<16x16x2xf32>,
    %c0_60 = arith.constant 0 : index
    %c0_61 = arith.constant 0 : index
    %c0_62 = arith.constant 0 : index
    %110 = vector.load %arg9[%c0_60, %c0_61, %c0_62] : memref<18x18x2xf32, #tpu.memory_space<vmem>>, vector<18x18x2xf32>
    %111 = vector.extract_strided_slice %110 {offsets = [0, 0, 0], sizes = [16, 16, 2], strides = [1, 1, 1]} : vector<18x18x2xf32> to vector<16x16x2xf32>
    %112 = vector.extract_strided_slice %110 {offsets = [0, 1, 0], sizes = [16, 16, 2], strides = [1, 1, 1]} : vector<18x18x2xf32> to vector<16x16x2xf32>
    %113 = vector.extract_strided_slice %110 {offsets = [0, 2, 0], sizes = [16, 16, 2], strides = [1, 1, 1]} : vector<18x18x2xf32> to vector<16x16x2xf32>
    %114 = vector.extract_strided_slice %110 {offsets = [1, 0, 0], sizes = [16, 16, 2], strides = [1, 1, 1]} : vector<18x18x2xf32> to vector<16x16x2xf32>
    %115 = vector.extract_strided_slice %110 {offsets = [1, 1, 0], sizes = [16, 16, 2], strides = [1, 1, 1]} : vector<18x18x2xf32> to vector<16x16x2xf32>
    %116 = vector.extract_strided_slice %110 {offsets = [1, 2, 0], sizes = [16, 16, 2], strides = [1, 1, 1]} : vector<18x18x2xf32> to vector<16x16x2xf32>
    %117 = vector.extract_strided_slice %110 {offsets = [2, 0, 0], sizes = [16, 16, 2], strides = [1, 1, 1]} : vector<18x18x2xf32> to vector<16x16x2xf32>
    %118 = vector.extract_strided_slice %110 {offsets = [2, 1, 0], sizes = [16, 16, 2], strides = [1, 1, 1]} : vector<18x18x2xf32> to vector<16x16x2xf32>
    %119 = vector.extract_strided_slice %110 {offsets = [2, 2, 0], sizes = [16, 16, 2], strides = [1, 1, 1]} : vector<18x18x2xf32> to vector<16x16x2xf32>
    %120 = tpu.concatenate %111, %112, %113, %114, %115, %116, %117, %118, %119 in 2 : vector<16x16x2xf32>, vector<16x16x2xf32>, vector<16x16x2xf32>, vector<16x16x2xf32>, vector<16x16x2xf32>, vector<16x16x2xf32>, vector<16x16x2xf32>, vector<16x16x2xf32>, vector<16x16x2xf32> -> vector<16x16x18xf32>
    %121 = vector.shape_cast %120 : vector<16x16x18xf32> to vector<256x18xf32>
    %122 = arith.truncf %121 : vector<256x18xf32> to vector<256x18xbf16>
    %cst_63 = arith.constant dense<0.000000e+00> : vector<256x2xf32>
    %123 = tpu.matmul %122, %106, %cst_63 {dimension_numbers = #tpu.dot_dimension_numbers<[1], [0], [0], [1], [0, 0, 1, 1], [], []>} : vector<256x18xbf16>, vector<18x2xbf16>, vector<256x2xf32> -> vector<256x2xf32>
    %124 = vector.shape_cast %123 : vector<256x2xf32> to vector<16x16x2xf32>
    %125 = tpu.concatenate %42, %83, %124 in 2 : vector<16x16x4xf32>, vector<16x16x2xf32>, vector<16x16x2xf32> -> vector<16x16x8xf32>
    %126 = vector.shape_cast %23 : vector<16x16x4xf32> to vector<256x4xf32>
    %127 = arith.truncf %126 : vector<256x4xf32> to vector<256x4xbf16>
    %c0_64 = arith.constant 0 : index
    %c0_65 = arith.constant 0 : index
    %128 = vector.load %arg5[%c0_64, %c0_65] : memref<4x8xbf16, #tpu.memory_space<vmem>>, vector<4x8xbf16>
    %cst_66 = arith.constant dense<0.000000e+00> : vector<256x8xf32>
    %129 = tpu.matmul %127, %128, %cst_66 {dimension_numbers = #tpu.dot_dimension_numbers<[1], [0], [0], [1], [0, 0, 1, 1], [], []>} : vector<256x4xbf16>, vector<4x8xbf16>, vector<256x8xf32> -> vector<256x8xf32>
    %130 = vector.shape_cast %129 : vector<256x8xf32> to vector<16x16x8xf32>
    %131 = arith.addf %125, %130 : vector<16x16x8xf32>
    %c0_67 = arith.constant 0 : index
    %c0_68 = arith.constant 0 : index
    %c0_69 = arith.constant 0 : index
    %c0_70 = arith.constant 0 : index
    %132 = vector.load %arg6[%c0_67, %c0_68, %c0_69, %c0_70] : memref<1x16x16x8xf32, #tpu.memory_space<vmem>>, vector<1x16x16x8xf32>
    %133 = vector.shape_cast %132 : vector<1x16x16x8xf32> to vector<16x16x8xf32>
    %134 = vector.shape_cast %131 : vector<16x16x8xf32> to vector<1x16x16x8xf32>
    tpu.vector_store %arg6[%c0_67, %c0_68, %c0_69, %c0_70], %134 {strides = array<i32>} : memref<1x16x16x8xf32, #tpu.memory_space<vmem>>, vector<1x16x16x8xf32>,
    return
  }
  func.func @transform_0(%arg0: i32) -> (i32, i32, i32, i32) {
    %c0_i32 = arith.constant 0 : i32
    %c0_i32_0 = arith.constant 0 : i32
    %c0_i32_1 = arith.constant 0 : i32
    %c0_i32_2 = arith.constant 0 : i32
    return %arg0, %c0_i32, %c0_i32_0, %c0_i32_1 : i32, i32, i32, i32
  }
  func.func @transform_1(%arg0: i32) -> (i32, i32) {
    %c0_i32 = arith.constant 0 : i32
    %c0_i32_0 = arith.constant 0 : i32
    %c0_i32_1 = arith.constant 0 : i32
    return %c0_i32, %c0_i32_0 : i32, i32
  }
  func.func @transform_2(%arg0: i32) -> (i32, i32) {
    %c0_i32 = arith.constant 0 : i32
    %c0_i32_0 = arith.constant 0 : i32
    %c0_i32_1 = arith.constant 0 : i32
    return %c0_i32, %c0_i32_0 : i32, i32
  }
  func.func @transform_3(%arg0: i32) -> (i32, i32) {
    %c0_i32 = arith.constant 0 : i32
    %c0_i32_0 = arith.constant 0 : i32
    %c0_i32_1 = arith.constant 0 : i32
    return %c0_i32, %c0_i32_0 : i32, i32
  }
  func.func @transform_4(%arg0: i32) -> (i32, i32) {
    %c0_i32 = arith.constant 0 : i32
    %c0_i32_0 = arith.constant 0 : i32
    %c0_i32_1 = arith.constant 0 : i32
    return %c0_i32, %c0_i32_0 : i32, i32
  }
  func.func @transform_5(%arg0: i32) -> (i32, i32, i32, i32) {
    %c0_i32 = arith.constant 0 : i32
    %c0_i32_0 = arith.constant 0 : i32
    %c0_i32_1 = arith.constant 0 : i32
    %c0_i32_2 = arith.constant 0 : i32
    return %arg0, %c0_i32, %c0_i32_0, %c0_i32_1 : i32, i32, i32, i32
  }
}

</mosaic_0001>

<llo_original>
// kernel: conv_block_forward.1
$region0: #{conv_block_forward.1}
  #allocation0 [shape = 'u32[]', space=smem, size = 0x4, offset = 0x4, fixed_abs, tag = 'smem constant byte address 0x4 - core index']
  #allocation1 [shape = 'u32[144,128]{1,0:T(1,128)}', space=vmem, size = 0x12000, scoped, tag = 'internal scratch']
  #allocation2 [shape = 'f32[18,18,4]{2,1,0:T(8,128)}', space=vmem, size = 0x36000, scoped, tag = 'scratch operand']
  #allocation3 [shape = 'f32[18,18,4]{2,1,0:T(8,128)}', space=vmem, size = 0x36000, scoped, tag = 'scratch operand']
  #allocation4 [shape = 'f32[18,18,2]{2,1,0:T(8,128)}', space=vmem, size = 0x36000, scoped, tag = 'scratch operand']
  %s0 = inlined_call_operand.vmem [shape: f32[2,16,16,4], index: 0, kind: input, shape index: {}]
  %s1 = inlined_call_operand.vmem [shape: bf16[36,4], index: 1, kind: input, shape index: {}]
  %s2 = inlined_call_operand.vmem [shape: bf16[36,2], index: 2, kind: input, shape index: {}]
  %s3 = inlined_call_operand.vmem [shape: bf16[18,2], index: 3, kind: input, shape index: {}]
  %s4 = inlined_call_operand.vmem [shape: bf16[4,8], index: 4, kind: input, shape index: {}]
  %s5 = inlined_call_operand.vmem [shape: f32[2,16,16,8], index: 5, kind: output, shape index: {}]
  %s6 = sld [smem:[#allocation0]]
  $region53: #{conv_block_forward.1} parent=0
    _
  %s8 = ssub.s32 1, %s6
  %s9 = scalar_select 0, %s8, %s6
  loop: start=0, step=1, limit=4
  $region2: #{conv_block_forward.1} parent=0 // loop_pre_header
    _
  $region3: #{conv_block_forward.1} parent=0 // loop_header
    %s11 = sphi 0, %s15
    %p12 = scmp.ge.s32.totalorder %s11, 4
    %s21 = sphi 0, %s23
    %s24 = sphi 0, %s21
    %s25 = sphi 0, %s24
    %s41 = sphi 0, %s25
    %s45 = sphi 0, %s45
    %s47 = sphi 0, %s45
    %s48 = sphi 0, %s47
    %s62 = sphi 0, %s48
    %s66 = sphi 0, %s66
    %s68 = sphi 0, %s66
    %s69 = sphi 0, %s68
    %s83 = sphi 0, %s69
    %s87 = sphi 0, %s87
    %s89 = sphi 0, %s87
    %s90 = sphi 0, %s89
    %s104 = sphi 0, %s90
    %s108 = sphi 0, %s108
    %s110 = sphi 0, %s108
    %s111 = sphi 0, %s110
    %s125 = sphi 0, %s111
    %s131 = sphi 0, %s133
    %s134 = sphi 0, %s131
    %s135 = sphi 0, %s134
    %s151 = sphi 0, %s135
  $region4: #{conv_block_forward.1} parent=0 // loop_header_branch
    %14 = sbr.rel (%p12) target = $region8
  $region5: #{conv_block_forward.1} parent=0 // loop_body
    %s16 = ssub.s32 %s11, 1
    %s17 = ssub.s32 %s11, 2
    %s18 = sadd.s32 %s11, 1
    %s19 = ssub.s32 %s11, %s18
    %p20 = scmp.eq.s32.totalorder %s19, 0
    %s22 = sadd.s32 %s21, 1
    %s23 = scalar_select %p20, %s21, %s22
    %p26 = pneg %p20
    %p27 = scmp.eq.s32.totalorder %s11, 1
    %p28 = por %p26, %p27
    %p29 = scmp.ne.s32.totalorder %s21, %s24
    %p30 = scmp.eq.s32.totalorder %s11, 0
    %p31 = por %p29, %p30
    %p32 = scmp.ne.s32.totalorder %s21, %s24
    %p33 = scmp.eq.s32.totalorder %s16, 1
    %p34 = por %p32, %p33
    %p35 = scmp.ne.s32.totalorder %s24, %s25
    %p36 = scmp.eq.s32.totalorder %s16, 0
    %p37 = por %p35, %p36
    %p38 = scmp.ne.s32.totalorder %s24, %s25
    %p39 = scmp.eq.s32.totalorder %s17, 1
    %p40 = por %p38, %p39
    %p42 = scmp.ne.s32.totalorder %s25, %s41
    %p43 = scmp.eq.s32.totalorder %s17, 0
    %p44 = por %p42, %p43
    %s46 = sadd.s32 %s45, 1
    %p49 = scmp.eq.s32.totalorder %s11, 1
    %p50 = scmp.ne.s32.totalorder %s45, %s47
    %p51 = scmp.eq.s32.totalorder %s11, 0
    %p52 = por %p50, %p51
    %p53 = scmp.ne.s32.totalorder %s45, %s47
    %p54 = scmp.eq.s32.totalorder %s16, 1
    %p55 = por %p53, %p54
    %p56 = scmp.ne.s32.totalorder %s47, %s48
    %p57 = scmp.eq.s32.totalorder %s16, 0
    %p58 = por %p56, %p57
    %p59 = scmp.ne.s32.totalorder %s47, %s48
    %p60 = scmp.eq.s32.totalorder %s17, 1
    %p61 = por %p59, %p60
    %p63 = scmp.ne.s32.totalorder %s48, %s62
    %p64 = scmp.eq.s32.totalorder %s17, 0
    %p65 = por %p63, %p64
    %s67 = sadd.s32 %s66, 1
    %p70 = scmp.eq.s32.totalorder %s11, 1
    %p71 = scmp.ne.s32.totalorder %s66, %s68
    %p72 = scmp.eq.s32.totalorder %s11, 0
    %p73 = por %p71, %p72
    %p74 = scmp.ne.s32.totalorder %s66, %s68
    %p75 = scmp.eq.s32.totalorder %s16, 1
    %p76 = por %p74, %p75
    %p77 = scmp.ne.s32.totalorder %s68, %s69
    %p78 = scmp.eq.s32.totalorder %s16, 0
    %p79 = por %p77, %p78
    %p80 = scmp.ne.s32.totalorder %s68, %s69
    %p81 = scmp.eq.s32.totalorder %s17, 1
    %p82 = por %p80, %p81
    %p84 = scmp.ne.s32.totalorder %s69, %s83
    %p85 = scmp.eq.s32.totalorder %s17, 0
    %p86 = por %p84, %p85
    %s88 = sadd.s32 %s87, 1
    %p91 = scmp.eq.s32.totalorder %s11, 1
    %p92 = scmp.ne.s32.totalorder %s87, %s89
    %p93 = scmp.eq.s32.totalorder %s11, 0
    %p94 = por %p92, %p93
    %p95 = scmp.ne.s32.totalorder %s87, %s89
    %p96 = scmp.eq.s32.totalorder %s16, 1
    %p97 = por %p95, %p96
    %p98 = scmp.ne.s32.totalorder %s89, %s90
    %p99 = scmp.eq.s32.totalorder %s16, 0
    %p100 = por %p98, %p99
    %p101 = scmp.ne.s32.totalorder %s89, %s90
    %p102 = scmp.eq.s32.totalorder %s17, 1
    %p103 = por %p101, %p102
    %p105 = scmp.ne.s32.totalorder %s90, %s104
    %p106 = scmp.eq.s32.totalorder %s17, 0
    %p107 = por %p105, %p106
    %s109 = sadd.s32 %s108, 1
    %p112 = scmp.eq.s32.totalorder %s11, 1
    %p113 = scmp.ne.s32.totalorder %s108, %s110
    %p114 = scmp.eq.s32.totalorder %s11, 0
    %p115 = por %p113, %p114
    %p116 = scmp.ne.s32.totalorder %s108, %s110
    %p117 = scmp.eq.s32.totalorder %s16, 1
    %p118 = por %p116, %p117
    %p119 = scmp.ne.s32.totalorder %s110, %s111
    %p120 = scmp.eq.s32.totalorder %s16, 0
    %p121 = por %p119, %p120
    %p122 = scmp.ne.s32.totalorder %s110, %s111
    %p123 = scmp.eq.s32.totalorder %s17, 1
    %p124 = por %p122, %p123
    %p126 = scmp.ne.s32.totalorder %s111, %s125
    %p127 = scmp.eq.s32.totalorder %s17, 0
    %p128 = por %p126, %p127
    %s129 = ssub.s32 %s11, %s18
    %p130 = scmp.eq.s32.totalorder %s129, 0
    %s132 = sadd.s32 %s131, 1
    %s133 = scalar_select %p130, %s131, %s132
    %p136 = pneg %p130
    %p137 = scmp.eq.s32.totalorder %s11, 1
    %p138 = por %p136, %p137
    %p139 = scmp.ne.s32.totalorder %s131, %s134
    %p140 = scmp.eq.s32.totalorder %s11, 0
    %p141 = por %p139, %p140
    %p142 = scmp.ne.s32.totalorder %s131, %s134
    %p143 = scmp.eq.s32.totalorder %s16, 1
    %p144 = por %p142, %p143
    %p145 = scmp.ne.s32.totalorder %s134, %s135
    %p146 = scmp.eq.s32.totalorder %s16, 0
    %p147 = por %p145, %p146
    %p148 = scmp.ne.s32.totalorder %s134, %s135
    %p149 = scmp.eq.s32.totalorder %s17, 1
    %p150 = por %p148, %p149
    %p152 = scmp.ne.s32.totalorder %s135, %s151
    %p153 = scmp.eq.s32.totalorder %s17, 0
    %p154 = por %p152, %p153
    %p155 = scmp.le.s32.totalorder 1, %s11
    %p156 = scmp.lt.s32.totalorder %s11, 3
    %p157 = pnand %p155, %p156
    %p158 = pneg %p157
    // Predicated region
    $region9: #{conv_block_forward.1} parent=5 // pred_check
      _
    $region10: #{conv_block_forward.1} parent=5 // pred_check_branch
      %160 = sbr.rel (%p157) target = $region12
    $region11: #{conv_block_forward.1} parent=5 // pred_region
      %s161 = ssub.s32 %s11, 1
      // Predicated region
      $region13: #{conv_block_forward.1} parent=11 // pred_check
        %p162 = pneg %p58
      $region14: #{conv_block_forward.1} parent=11 // pred_check_branch
        %164 = sbr.rel (%p162) target = $region16
      $region15: #{conv_block_forward.1} parent=11 // pred_region
        _
      $region16: #{conv_block_forward.1} parent=11 // pred_fallthru
        _
      // Predicated region
      $region17: #{conv_block_forward.1} parent=11 // pred_check
        %p165 = pneg %p79
      $region18: #{conv_block_forward.1} parent=11 // pred_check_branch
        %167 = sbr.rel (%p165) target = $region20
      $region19: #{conv_block_forward.1} parent=11 // pred_region
        _
      $region20: #{conv_block_forward.1} parent=11 // pred_fallthru
        _
      // Predicated region
      $region21: #{conv_block_forward.1} parent=11 // pred_check
        %p168 = pneg %p100
      $region22: #{conv_block_forward.1} parent=11 // pred_check_branch
        %170 = sbr.rel (%p168) target = $region24
      $region23: #{conv_block_forward.1} parent=11 // pred_region
        _
      $region24: #{conv_block_forward.1} parent=11 // pred_fallthru
        _
      // Predicated region
      $region25: #{conv_block_forward.1} parent=11 // pred_check
        %p171 = pneg %p121
      $region26: #{conv_block_forward.1} parent=11 // pred_check_branch
        %173 = sbr.rel (%p171) target = $region28
      $region27: #{conv_block_forward.1} parent=11 // pred_region
        _
      $region28: #{conv_block_forward.1} parent=11 // pred_fallthru
        _
    $region12: #{conv_block_forward.1} parent=5 // pred_fallthru
      _
    %p174 = scmp.lt.s32.totalorder %s11, 2
    // Predicated region
    $region29: #{conv_block_forward.1} parent=5 // pred_check
      %p175 = pneg %p174
    $region30: #{conv_block_forward.1} parent=5 // pred_check_branch
      %177 = sbr.rel (%p175) target = $region32
    $region31: #{conv_block_forward.1} parent=5 // pred_region
      // Predicated region
      $region33: #{conv_block_forward.1} parent=31 // pred_check
        %p178 = pneg %p31
      $region34: #{conv_block_forward.1} parent=31 // pred_check_branch
        %180 = sbr.rel (%p178) target = $region36
      $region35: #{conv_block_forward.1} parent=31 // pred_region
        %p181 = scmp.lt.s32.totalorder %s11, 1
        %s182 = scalar_select %p181, %s11, 1
        %s183 = smul.addr %s182, 32
        %s184 = smul.addr %s183, 8
        %s185 = scalar_lea.vmem %s0, %s184
      $region36: #{conv_block_forward.1} parent=31 // pred_fallthru
        _
    $region32: #{conv_block_forward.1} parent=5 // pred_fallthru
      _
    %p186 = scmp.le.s32.totalorder 1, %s11
    %p187 = scmp.lt.s32.totalorder %s11, 3
    %p188 = pnand %p186, %p187
    %p189 = pneg %p188
    // Predicated region
    $region37: #{conv_block_forward.1} parent=5 // pred_check
      _
    $region38: #{conv_block_forward.1} parent=5 // pred_check_branch
      %191 = sbr.rel (%p188) target = $region40
    $region39: #{conv_block_forward.1} parent=5 // pred_region
      %s192 = ssub.s32 %s11, 1
      %p193 = scmp.lt.s32.totalorder %s16, 1
      %s194 = scalar_select %p193, %s16, 1
      %s195 = smul.addr %s194, 32
      %s196 = smul.addr %s195, 8
      %s197 = scalar_lea.vmem %s0, %s196
      %p198 = pneg %p37
      %p199 = pneg %p34
      %p200 = pneg %p58
      %p201 = pneg %p55
      %p202 = pneg %p79
      %p203 = pneg %p76
      %p204 = pneg %p100
      %p205 = pneg %p97
      %p206 = pneg %p121
      %p207 = pneg %p118
      %p208 = pneg %p147
      %p209 = pneg %p144
      %p210 = scmp.lt.s32.totalorder %s16, 1
      %s211 = scalar_select %p210, %s16, 1
      %s212 = smul.addr %s211, 32
      %s213 = smul.addr %s212, 8
      %s214 = scalar_lea.vmem %s5, %s213
      %p215 = scmp.lt.s32.totalorder %s16, 1
      %s216 = scalar_select %p215, %s16, 1
      %s217 = smul.addr %s216, 32
      %s218 = smul.addr %s217, 8
      %s219 = scalar_lea.vmem %s0, %s218
      %p220 = scmp.lt.s32.totalorder %s16, 1
      %s221 = scalar_select %p220, %s16, 1
      %s222 = smul.addr %s221, 32
      %s223 = smul.addr %s222, 8
      %s224 = scalar_lea.vmem %s5, %s223
      %v226 = vld [vmem:[%s219] sm:$0xff]
      %v227 = vld [vmem:[%s219 + $0x8] sm:$0xff]
      %v228 = vld [vmem:[%s219 + $0x10] sm:$0xff]
      %v229 = vld [vmem:[%s219 + $0x18] sm:$0xff]
      %v230 = vld [vmem:[%s219 + $0x20] sm:$0xff]
      %v231 = vld [vmem:[%s219 + $0x28] sm:$0xff]
      %v232 = vld [vmem:[%s219 + $0x30] sm:$0xff]
      %v233 = vld [vmem:[%s219 + $0x38] sm:$0xff]
      %v234 = vld [vmem:[%s219 + $0x40] sm:$0xff]
      %v235 = vld [vmem:[%s219 + $0x48] sm:$0xff]
      %v236 = vld [vmem:[%s219 + $0x50] sm:$0xff]
      %v237 = vld [vmem:[%s219 + $0x58] sm:$0xff]
      %v238 = vld [vmem:[%s219 + $0x60] sm:$0xff]
      %v239 = vld [vmem:[%s219 + $0x68] sm:$0xff]
      %v240 = vld [vmem:[%s219 + $0x70] sm:$0xff]
      %v241 = vld [vmem:[%s219 + $0x78] sm:$0xff]
      %v242 = vld [vmem:[%s219 + $0x80] sm:$0xff]
      %v243 = vld [vmem:[%s219 + $0x88] sm:$0xff]
      %v244 = vld [vmem:[%s219 + $0x90] sm:$0xff]
      %v245 = vld [vmem:[%s219 + $0x98] sm:$0xff]
      %v246 = vld [vmem:[%s219 + $0xa0] sm:$0xff]
      %v247 = vld [vmem:[%s219 + $0xa8] sm:$0xff]
      %v248 = vld [vmem:[%s219 + $0xb0] sm:$0xff]
      %v249 = vld [vmem:[%s219 + $0xb8] sm:$0xff]
      %v250 = vld [vmem:[%s219 + $0xc0] sm:$0xff]
      %v251 = vld [vmem:[%s219 + $0xc8] sm:$0xff]
      %v252 = vld [vmem:[%s219 + $0xd0] sm:$0xff]
      %v253 = vld [vmem:[%s219 + $0xd8] sm:$0xff]
      %v254 = vld [vmem:[%s219 + $0xe0] sm:$0xff]
      %v255 = vld [vmem:[%s219 + $0xe8] sm:$0xff]
      %v256 = vld [vmem:[%s219 + $0xf0] sm:$0xff]
      %v257 = vld [vmem:[%s219 + $0xf8] sm:$0xff]
      %vm258 = vcmask 31744
      %v259 = vsel %vm258, %v226, 0.0
      %v260 = vsel %vm258, %v227, 0.0
      %v261 = vadd.f32 %v259, %v260
      %v262 = vrot.slane %v261, 4
      %v263 = vadd.f32 %v261, %v262
      %v264 = vrot.slane %v263, 2
      %v265 = vadd.f32 %v263, %v264
      %v266 = vrot.slane %v265, 1
      %v267 = vadd.f32 %v265, %v266
      %v268 = vsel %vm258, %v228, 0.0
      %v269 = vsel %vm258, %v229, 0.0
      %v270 = vadd.f32 %v268, %v269
      %v271 = vrot.slane %v270, 4
      %v272 = vadd.f32 %v270, %v271
      %v273 = vrot.slane %v272, 2
      %v274 = vadd.f32 %v272, %v273
      %v275 = vrot.slane %v274, 1
      %v276 = vadd.f32 %v274, %v275
      %v277 = vsel %vm258, %v230, 0.0
      %v278 = vsel %vm258, %v231, 0.0
      %v279 = vadd.f32 %v277, %v278
      %v280 = vrot.slane %v279, 4
      %v281 = vadd.f32 %v279, %v280
      %v282 = vrot.slane %v281, 2
      %v283 = vadd.f32 %v281, %v282
      %v284 = vrot.slane %v283, 1
      %v285 = vadd.f32 %v283, %v284
      %v286 = vsel %vm258, %v232, 0.0
      %v287 = vsel %vm258, %v233, 0.0
      %v288 = vadd.f32 %v286, %v287
      %v289 = vrot.slane %v288, 4
      %v290 = vadd.f32 %v288, %v289
      %v291 = vrot.slane %v290, 2
      %v292 = vadd.f32 %v290, %v291
      %v293 = vrot.slane %v292, 1
      %v294 = vadd.f32 %v292, %v293
      %v295 = vsel %vm258, %v234, 0.0
      %v296 = vsel %vm258, %v235, 0.0
      %v297 = vadd.f32 %v295, %v296
      %v298 = vrot.slane %v297, 4
      %v299 = vadd.f32 %v297, %v298
      %v300 = vrot.slane %v299, 2
      %v301 = vadd.f32 %v299, %v300
      %v302 = vrot.slane %v301, 1
      %v303 = vadd.f32 %v301, %v302
      %v304 = vsel %vm258, %v236, 0.0
      %v305 = vsel %vm258, %v237, 0.0
      %v306 = vadd.f32 %v304, %v305
      %v307 = vrot.slane %v306, 4
      %v308 = vadd.f32 %v306, %v307
      %v309 = vrot.slane %v308, 2
      %v310 = vadd.f32 %v308, %v309
      %v311 = vrot.slane %v310, 1
      %v312 = vadd.f32 %v310, %v311
      %v313 = vsel %vm258, %v238, 0.0
      %v314 = vsel %vm258, %v239, 0.0
      %v315 = vadd.f32 %v313, %v314
      %v316 = vrot.slane %v315, 4
      %v317 = vadd.f32 %v315, %v316
      %v318 = vrot.slane %v317, 2
      %v319 = vadd.f32 %v317, %v318
      %v320 = vrot.slane %v319, 1
      %v321 = vadd.f32 %v319, %v320
      %v322 = vsel %vm258, %v240, 0.0
      %v323 = vsel %vm258, %v241, 0.0
      %v324 = vadd.f32 %v322, %v323
      %v325 = vrot.slane %v324, 4
      %v326 = vadd.f32 %v324, %v325
      %v327 = vrot.slane %v326, 2
      %v328 = vadd.f32 %v326, %v327
      %v329 = vrot.slane %v328, 1
      %v330 = vadd.f32 %v328, %v329
      %v331 = vsel %vm258, %v242, 0.0
      %v332 = vsel %vm258, %v243, 0.0
      %v333 = vadd.f32 %v331, %v332
      %v334 = vrot.slane %v333, 4
      %v335 = vadd.f32 %v333, %v334
      %v336 = vrot.slane %v335, 2
      %v337 = vadd.f32 %v335, %v336
      %v338 = vrot.slane %v337, 1
      %v339 = vadd.f32 %v337, %v338
      %v340 = vsel %vm258, %v244, 0.0
      %v341 = vsel %vm258, %v245, 0.0
      %v342 = vadd.f32 %v340, %v341
      %v343 = vrot.slane %v342, 4
      %v344 = vadd.f32 %v342, %v343
      %v345 = vrot.slane %v344, 2
      %v346 = vadd.f32 %v344, %v345
      %v347 = vrot.slane %v346, 1
      %v348 = vadd.f32 %v346, %v347
      %v349 = vsel %vm258, %v246, 0.0
      %v350 = vsel %vm258, %v247, 0.0
      %v351 = vadd.f32 %v349, %v350
      %v352 = vrot.slane %v351, 4
      %v353 = vadd.f32 %v351, %v352
      %v354 = vrot.slane %v353, 2
      %v355 = vadd.f32 %v353, %v354
      %v356 = vrot.slane %v355, 1
      %v357 = vadd.f32 %v355, %v356
      %v358 = vsel %vm258, %v248, 0.0
      %v359 = vsel %vm258, %v249, 0.0
      %v360 = vadd.f32 %v358, %v359
      %v361 = vrot.slane %v360, 4
      %v362 = vadd.f32 %v360, %v361
      %v363 = vrot.slane %v362, 2
      %v364 = vadd.f32 %v362, %v363
      %v365 = vrot.slane %v364, 1
      %v366 = vadd.f32 %v364, %v365
      %v367 = vsel %vm258, %v250, 0.0
      %v368 = vsel %vm258, %v251, 0.0
      %v369 = vadd.f32 %v367, %v368
      %v370 = vrot.slane %v369, 4
      %v371 = vadd.f32 %v369, %v370
      %v372 = vrot.slane %v371, 2
      %v373 = vadd.f32 %v371, %v372
      %v374 = vrot.slane %v373, 1
      %v375 = vadd.f32 %v373, %v374
      %v376 = vsel %vm258, %v252, 0.0
      %v377 = vsel %vm258, %v253, 0.0
      %v378 = vadd.f32 %v376, %v377
      %v379 = vrot.slane %v378, 4
      %v380 = vadd.f32 %v378, %v379
      %v381 = vrot.slane %v380, 2
      %v382 = vadd.f32 %v380, %v381
      %v383 = vrot.slane %v382, 1
      %v384 = vadd.f32 %v382, %v383
      %v385 = vsel %vm258, %v254, 0.0
      %v386 = vsel %vm258, %v255, 0.0
      %v387 = vadd.f32 %v385, %v386
      %v388 = vrot.slane %v387, 4
      %v389 = vadd.f32 %v387, %v388
      %v390 = vrot.slane %v389, 2
      %v391 = vadd.f32 %v389, %v390
      %v392 = vrot.slane %v391, 1
      %v393 = vadd.f32 %v391, %v392
      %v394 = vsel %vm258, %v256, 0.0
      %v395 = vsel %vm258, %v257, 0.0
      %v396 = vadd.f32 %v394, %v395
      %v397 = vrot.slane %v396, 4
      %v398 = vadd.f32 %v396, %v397
      %v399 = vrot.slane %v398, 2
      %v400 = vadd.f32 %v398, %v399
      %v401 = vrot.slane %v400, 1
      %v402 = vadd.f32 %v400, %v401
      %v403 = vsel %vm258, %v267, 0.0
      %v404 = vsel %vm258, %v276, 0.0
      %v405 = vadd.f32 %v403, %v404
      %v406 = vsel %vm258, %v285, 0.0
      %v407 = vadd.f32 %v405, %v406
      %v408 = vsel %vm258, %v294, 0.0
      %v409 = vadd.f32 %v407, %v408
      %v410 = vsel %vm258, %v303, 0.0
      %v411 = vadd.f32 %v409, %v410
      %v412 = vsel %vm258, %v312, 0.0
      %v413 = vadd.f32 %v411, %v412
      %v414 = vsel %vm258, %v321, 0.0
      %v415 = vadd.f32 %v413, %v414
      %v416 = vsel %vm258, %v330, 0.0
      %v417 = vadd.f32 %v415, %v416
      %v418 = vsel %vm258, %v339, 0.0
      %v419 = vadd.f32 %v417, %v418
      %v420 = vsel %vm258, %v348, 0.0
      %v421 = vadd.f32 %v419, %v420
      %v422 = vsel %vm258, %v357, 0.0
      %v423 = vadd.f32 %v421, %v422
      %v424 = vsel %vm258, %v366, 0.0
      %v425 = vadd.f32 %v423, %v424
      %v426 = vsel %vm258, %v375, 0.0
      %v427 = vadd.f32 %v425, %v426
      %v428 = vsel %vm258, %v384, 0.0
      %v429 = vadd.f32 %v427, %v428
      %v430 = vsel %vm258, %v393, 0.0
      %v431 = vadd.f32 %v429, %v430
      %v432 = vsel %vm258, %v402, 0.0
      %v433 = vadd.f32 %v431, %v432
      %v434 = vrcp.pop 256.0
      %v435 = vmul.f32 %v433, %v434
      %v436 = vsub.f32 %v226, %v435
      %v437 = vsub.f32 %v227, %v435
      %v438 = vsub.f32 %v228, %v435
      %v439 = vsub.f32 %v229, %v435
      %v440 = vsub.f32 %v230, %v435
      %v441 = vsub.f32 %v231, %v435
      %v442 = vsub.f32 %v232, %v435
      %v443 = vsub.f32 %v233, %v435
      %v444 = vsub.f32 %v234, %v435
      %v445 = vsub.f32 %v235, %v435
      %v446 = vsub.f32 %v236, %v435
      %v447 = vsub.f32 %v237, %v435
      %v448 = vsub.f32 %v238, %v435
      %v449 = vsub.f32 %v239, %v435
      %v450 = vsub.f32 %v240, %v435
      %v451 = vsub.f32 %v241, %v435
      %v452 = vsub.f32 %v242, %v435
      %v453 = vsub.f32 %v243, %v435
      %v454 = vsub.f32 %v244, %v435
      %v455 = vsub.f32 %v245, %v435
      %v456 = vsub.f32 %v246, %v435
      %v457 = vsub.f32 %v247, %v435
      %v458 = vsub.f32 %v248, %v435
      %v459 = vsub.f32 %v249, %v435
      %v460 = vsub.f32 %v250, %v435
      %v461 = vsub.f32 %v251, %v435
      %v462 = vsub.f32 %v252, %v435
      %v463 = vsub.f32 %v253, %v435
      %v464 = vsub.f32 %v254, %v435
      %v465 = vsub.f32 %v255, %v435
      %v466 = vsub.f32 %v256, %v435
      %v467 = vsub.f32 %v257, %v435
      %v468 = vmul.f32 %v436, %v436
      %v469 = vmul.f32 %v437, %v437
      %v470 = vmul.f32 %v438, %v438
      %v471 = vmul.f32 %v439, %v439
      %v472 = vmul.f32 %v440, %v440
      %v473 = vmul.f32 %v441, %v441
      %v474 = vmul.f32 %v442, %v442
      %v475 = vmul.f32 %v443, %v443
      %v476 = vmul.f32 %v444, %v444
      %v477 = vmul.f32 %v445, %v445
      %v478 = vmul.f32 %v446, %v446
      %v479 = vmul.f32 %v447, %v447
      %v480 = vmul.f32 %v448, %v448
      %v481 = vmul.f32 %v449, %v449
      %v482 = vmul.f32 %v450, %v450
      %v483 = vmul.f32 %v451, %v451
      %v484 = vmul.f32 %v452, %v452
      %v485 = vmul.f32 %v453, %v453
      %v486 = vmul.f32 %v454, %v454
      %v487 = vmul.f32 %v455, %v455
      %v488 = vmul.f32 %v456, %v456
      %v489 = vmul.f32 %v457, %v457
      %v490 = vmul.f32 %v458, %v458
      %v491 = vmul.f32 %v459, %v459
      %v492 = vmul.f32 %v460, %v460
      %v493 = vmul.f32 %v461, %v461
      %v494 = vmul.f32 %v462, %v462
      %v495 = vmul.f32 %v463, %v463
      %v496 = vmul.f32 %v464, %v464
      %v497 = vmul.f32 %v465, %v465
      %v498 = vmul.f32 %v466, %v466
      %v499 = vmul.f32 %v467, %v467
      %v500 = vsel %vm258, %v468, 0.0
      %v501 = vsel %vm258, %v469, 0.0
      %v502 = vadd.f32 %v500, %v501
      %v503 = vrot.slane %v502, 4
      %v504 = vadd.f32 %v502, %v503
      %v505 = vrot.slane %v504, 2
      %v506 = vadd.f32 %v504, %v505
      %v507 = vrot.slane %v506, 1
      %v508 = vadd.f32 %v506, %v507
      %v509 = vsel %vm258, %v470, 0.0
      %v510 = vsel %vm258, %v471, 0.0
      %v511 = vadd.f32 %v509, %v510
      %v512 = vrot.slane %v511, 4
      %v513 = vadd.f32 %v511, %v512
      %v514 = vrot.slane %v513, 2
      %v515 = vadd.f32 %v513, %v514
      %v516 = vrot.slane %v515, 1
      %v517 = vadd.f32 %v515, %v516
      %v518 = vsel %vm258, %v472, 0.0
      %v519 = vsel %vm258, %v473, 0.0
      %v520 = vadd.f32 %v518, %v519
      %v521 = vrot.slane %v520, 4
      %v522 = vadd.f32 %v520, %v521
      %v523 = vrot.slane %v522, 2
      %v524 = vadd.f32 %v522, %v523
      %v525 = vrot.slane %v524, 1
      %v526 = vadd.f32 %v524, %v525
      %v527 = vsel %vm258, %v474, 0.0
      %v528 = vsel %vm258, %v475, 0.0
      %v529 = vadd.f32 %v527, %v528
      %v530 = vrot.slane %v529, 4
      %v531 = vadd.f32 %v529, %v530
      %v532 = vrot.slane %v531, 2
      %v533 = vadd.f32 %v531, %v532
      %v534 = vrot.slane %v533, 1
      %v535 = vadd.f32 %v533, %v534
      %v536 = vsel %vm258, %v476, 0.0
      %v537 = vsel %vm258, %v477, 0.0
      %v538 = vadd.f32 %v536, %v537
      %v539 = vrot.slane %v538, 4
      %v540 = vadd.f32 %v538, %v539
      %v541 = vrot.slane %v540, 2
      %v542 = vadd.f32 %v540, %v541
      %v543 = vrot.slane %v542, 1
      %v544 = vadd.f32 %v542, %v543
      %v545 = vsel %vm258, %v478, 0.0
      %v546 = vsel %vm258, %v479, 0.0
      %v547 = vadd.f32 %v545, %v546
      %v548 = vrot.slane %v547, 4
      %v549 = vadd.f32 %v547, %v548
      %v550 = vrot.slane %v549, 2
      %v551 = vadd.f32 %v549, %v550
      %v552 = vrot.slane %v551, 1
      %v553 = vadd.f32 %v551, %v552
      %v554 = vsel %vm258, %v480, 0.0
      %v555 = vsel %vm258, %v481, 0.0
      %v556 = vadd.f32 %v554, %v555
      %v557 = vrot.slane %v556, 4
      %v558 = vadd.f32 %v556, %v557
      %v559 = vrot.slane %v558, 2
      %v560 = vadd.f32 %v558, %v559
      %v561 = vrot.slane %v560, 1
      %v562 = vadd.f32 %v560, %v561
      %v563 = vsel %vm258, %v482, 0.0
      %v564 = vsel %vm258, %v483, 0.0
      %v565 = vadd.f32 %v563, %v564
      %v566 = vrot.slane %v565, 4
      %v567 = vadd.f32 %v565, %v566
      %v568 = vrot.slane %v567, 2
      %v569 = vadd.f32 %v567, %v568
      %v570 = vrot.slane %v569, 1
      %v571 = vadd.f32 %v569, %v570
      %v572 = vsel %vm258, %v484, 0.0
      %v573 = vsel %vm258, %v485, 0.0
      %v574 = vadd.f32 %v572, %v573
      %v575 = vrot.slane %v574, 4
      %v576 = vadd.f32 %v574, %v575
      %v577 = vrot.slane %v576, 2
      %v578 = vadd.f32 %v576, %v577
      %v579 = vrot.slane %v578, 1
      %v580 = vadd.f32 %v578, %v579
      %v581 = vsel %vm258, %v486, 0.0
      %v582 = vsel %vm258, %v487, 0.0
      %v583 = vadd.f32 %v581, %v582
      %v584 = vrot.slane %v583, 4
      %v585 = vadd.f32 %v583, %v584
      %v586 = vrot.slane %v585, 2
      %v587 = vadd.f32 %v585, %v586
      %v588 = vrot.slane %v587, 1
      %v589 = vadd.f32 %v587, %v588
      %v590 = vsel %vm258, %v488, 0.0
      %v591 = vsel %vm258, %v489, 0.0
      %v592 = vadd.f32 %v590, %v591
      %v593 = vrot.slane %v592, 4
      %v594 = vadd.f32 %v592, %v593
      %v595 = vrot.slane %v594, 2
      %v596 = vadd.f32 %v594, %v595
      %v597 = vrot.slane %v596, 1
      %v598 = vadd.f32 %v596, %v597
      %v599 = vsel %vm258, %v490, 0.0
      %v600 = vsel %vm258, %v491, 0.0
      %v601 = vadd.f32 %v599, %v600
      %v602 = vrot.slane %v601, 4
      %v603 = vadd.f32 %v601, %v602
      %v604 = vrot.slane %v603, 2
      %v605 = vadd.f32 %v603, %v604
      %v606 = vrot.slane %v605, 1
      %v607 = vadd.f32 %v605, %v606
      %v608 = vsel %vm258, %v492, 0.0
      %v609 = vsel %vm258, %v493, 0.0
      %v610 = vadd.f32 %v608, %v609
      %v611 = vrot.slane %v610, 4
      %v612 = vadd.f32 %v610, %v611
      %v613 = vrot.slane %v612, 2
      %v614 = vadd.f32 %v612, %v613
      %v615 = vrot.slane %v614, 1
      %v616 = vadd.f32 %v614, %v615
      %v617 = vsel %vm258, %v494, 0.0
      %v618 = vsel %vm258, %v495, 0.0
      %v619 = vadd.f32 %v617, %v618
      %v620 = vrot.slane %v619, 4
      %v621 = vadd.f32 %v619, %v620
      %v622 = vrot.slane %v621, 2
      %v623 = vadd.f32 %v621, %v622
      %v624 = vrot.slane %v623, 1
      %v625 = vadd.f32 %v623, %v624
      %v626 = vsel %vm258, %v496, 0.0
      %v627 = vsel %vm258, %v497, 0.0
      %v628 = vadd.f32 %v626, %v627
      %v629 = vrot.slane %v628, 4
      %v630 = vadd.f32 %v628, %v629
      %v631 = vrot.slane %v630, 2
      %v632 = vadd.f32 %v630, %v631
      %v633 = vrot.slane %v632, 1
      %v634 = vadd.f32 %v632, %v633
      %v635 = vsel %vm258, %v498, 0.0
      %v636 = vsel %vm258, %v499, 0.0
      %v637 = vadd.f32 %v635, %v636
      %v638 = vrot.slane %v637, 4
      %v639 = vadd.f32 %v637, %v638
      %v640 = vrot.slane %v639, 2
      %v641 = vadd.f32 %v639, %v640
      %v642 = vrot.slane %v641, 1
      %v643 = vadd.f32 %v641, %v642
      %v644 = vsel %vm258, %v508, 0.0
      %v645 = vsel %vm258, %v517, 0.0
      %v646 = vadd.f32 %v644, %v645
      %v647 = vsel %vm258, %v526, 0.0
      %v648 = vadd.f32 %v646, %v647
      %v649 = vsel %vm258, %v535, 0.0
      %v650 = vadd.f32 %v648, %v649
      %v651 = vsel %vm258, %v544, 0.0
      %v652 = vadd.f32 %v650, %v651
      %v653 = vsel %vm258, %v553, 0.0
      %v654 = vadd.f32 %v652, %v653
      %v655 = vsel %vm258, %v562, 0.0
      %v656 = vadd.f32 %v654, %v655
      %v657 = vsel %vm258, %v571, 0.0
      %v658 = vadd.f32 %v656, %v657
      %v659 = vsel %vm258, %v580, 0.0
      %v660 = vadd.f32 %v658, %v659
      %v661 = vsel %vm258, %v589, 0.0
      %v662 = vadd.f32 %v660, %v661
      %v663 = vsel %vm258, %v598, 0.0
      %v664 = vadd.f32 %v662, %v663
      %v665 = vsel %vm258, %v607, 0.0
      %v666 = vadd.f32 %v664, %v665
      %v667 = vsel %vm258, %v616, 0.0
      %v668 = vadd.f32 %v666, %v667
      %v669 = vsel %vm258, %v625, 0.0
      %v670 = vadd.f32 %v668, %v669
      %v671 = vsel %vm258, %v634, 0.0
      %v672 = vadd.f32 %v670, %v671
      %v673 = vsel %vm258, %v643, 0.0
      %v674 = vadd.f32 %v672, %v673
      %v675 = vmul.f32 %v674, %v434
      %v676 = vadd.f32 %v675, 1e-05
      %v677 = vrsqrt.pop %v676
      %v678 = vmul.f32 %v436, %v677
      %v679 = vmul.f32 %v437, %v677
      %v680 = vmul.f32 %v438, %v677
      %v681 = vmul.f32 %v439, %v677
      %v682 = vmul.f32 %v440, %v677
      %v683 = vmul.f32 %v441, %v677
      %v684 = vmul.f32 %v442, %v677
      %v685 = vmul.f32 %v443, %v677
      %v686 = vmul.f32 %v444, %v677
      %v687 = vmul.f32 %v445, %v677
      %v688 = vmul.f32 %v446, %v677
      %v689 = vmul.f32 %v447, %v677
      %v690 = vmul.f32 %v448, %v677
      %v691 = vmul.f32 %v449, %v677
      %v692 = vmul.f32 %v450, %v677
      %v693 = vmul.f32 %v451, %v677
      %v694 = vmul.f32 %v452, %v677
      %v695 = vmul.f32 %v453, %v677
      %v696 = vmul.f32 %v454, %v677
      %v697 = vmul.f32 %v455, %v677
      %v698 = vmul.f32 %v456, %v677
      %v699 = vmul.f32 %v457, %v677
      %v700 = vmul.f32 %v458, %v677
      %v701 = vmul.f32 %v459, %v677
      %v702 = vmul.f32 %v460, %v677
      %v703 = vmul.f32 %v461, %v677
      %v704 = vmul.f32 %v462, %v677
      %v705 = vmul.f32 %v463, %v677
      %v706 = vmul.f32 %v464, %v677
      %v707 = vmul.f32 %v465, %v677
      %v708 = vmul.f32 %v466, %v677
      %v709 = vmul.f32 %v467, %v677
      %v710 = vmax.f32 %v678, 0.0
      %v711 = vmax.f32 %v679, 0.0
      %v712 = vmax.f32 %v680, 0.0
      %v713 = vmax.f32 %v681, 0.0
      %v714 = vmax.f32 %v682, 0.0
      %v715 = vmax.f32 %v683, 0.0
      %v716 = vmax.f32 %v684, 0.0
      %v717 = vmax.f32 %v685, 0.0
      %v718 = vmax.f32 %v686, 0.0
      %v719 = vmax.f32 %v687, 0.0
      %v720 = vmax.f32 %v688, 0.0
      %v721 = vmax.f32 %v689, 0.0
      %v722 = vmax.f32 %v690, 0.0
      %v723 = vmax.f32 %v691, 0.0
      %v724 = vmax.f32 %v692, 0.0
      %v725 = vmax.f32 %v693, 0.0
      %v726 = vmax.f32 %v694, 0.0
      %v727 = vmax.f32 %v695, 0.0
      %v728 = vmax.f32 %v696, 0.0
      %v729 = vmax.f32 %v697, 0.0
      %v730 = vmax.f32 %v698, 0.0
      %v731 = vmax.f32 %v699, 0.0
      %v732 = vmax.f32 %v700, 0.0
      %v733 = vmax.f32 %v701, 0.0
      %v734 = vmax.f32 %v702, 0.0
      %v735 = vmax.f32 %v703, 0.0
      %v736 = vmax.f32 %v704, 0.0
      %v737 = vmax.f32 %v705, 0.0
      %v738 = vmax.f32 %v706, 0.0
      %v739 = vmax.f32 %v707, 0.0
      %v740 = vmax.f32 %v708, 0.0
      %v741 = vmax.f32 %v709, 0.0
      %v742 = vld [vmem:[%s1] sm:$0xf]
      %v743 = vld [vmem:[%s1 + $0x4] sm:$0xf]
      %v744 = vld [vmem:[%s1 + $0x8] sm:$0xf]
      %v745 = vld [vmem:[%s1 + $0xc] sm:$0xf]
      %v746 = vld [vmem:[%s1 + $0x10] sm:$0x3]
      %747 = vst.msk [vmem:[#allocation2] sm:$0xff] %vm258, 0.0
      %748 = vst.msk [vmem:[#allocation2 + $0x8] sm:$0xff] %vm258, 0.0
      %vm749 = vcmask 25600
      %750 = vst.msk [vmem:[#allocation2 + $0x10] sm:$0x3] %vm749, 0.0
      %751 = vst.msk [vmem:[#allocation2 + $0x18] sm:$0xff] %vm258, 0.0
      %752 = vst.msk [vmem:[#allocation2 + $0x20] sm:$0xff] %vm258, 0.0
      %753 = vst.msk [vmem:[#allocation2 + $0x28] sm:$0x3] %vm749, 0.0
      %754 = vst.msk [vmem:[#allocation2 + $0x30] sm:$0xff] %vm258, 0.0
      %755 = vst.msk [vmem:[#allocation2 + $0x38] sm:$0xff] %vm258, 0.0
      %756 = vst.msk [vmem:[#allocation2 + $0x40] sm:$0x3] %vm749, 0.0
      %757 = vst.msk [vmem:[#allocation2 + $0x48] sm:$0xff] %vm258, 0.0
      %758 = vst.msk [vmem:[#allocation2 + $0x50] sm:$0xff] %vm258, 0.0
      %759 = vst.msk [vmem:[#allocation2 + $0x58] sm:$0x3] %vm749, 0.0
      %760 = vst.msk [vmem:[#allocation2 + $0x60] sm:$0xff] %vm258, 0.0
      %761 = vst.msk [vmem:[#allocation2 + $0x68] sm:$0xff] %vm258, 0.0
      %762 = vst.msk [vmem:[#allocation2 + $0x70] sm:$0x3] %vm749, 0.0
      %763 = vst.msk [vmem:[#allocation2 + $0x78] sm:$0xff] %vm258, 0.0
      %764 = vst.msk [vmem:[#allocation2 + $0x80] sm:$0xff] %vm258, 0.0
      %765 = vst.msk [vmem:[#allocation2 + $0x88] sm:$0x3] %vm749, 0.0
      %766 = vst.msk [vmem:[#allocation2 + $0x90] sm:$0xff] %vm258, 0.0
      %767 = vst.msk [vmem:[#allocation2 + $0x98] sm:$0xff] %vm258, 0.0
      %768 = vst.msk [vmem:[#allocation2 + $0xa0] sm:$0x3] %vm749, 0.0
      %769 = vst.msk [vmem:[#allocation2 + $0xa8] sm:$0xff] %vm258, 0.0
      %770 = vst.msk [vmem:[#allocation2 + $0xb0] sm:$0xff] %vm258, 0.0
      %771 = vst.msk [vmem:[#allocation2 + $0xb8] sm:$0x3] %vm749, 0.0
      %772 = vst.msk [vmem:[#allocation2 + $0xc0] sm:$0xff] %vm258, 0.0
      %773 = vst.msk [vmem:[#allocation2 + $0xc8] sm:$0xff] %vm258, 0.0
      %774 = vst.msk [vmem:[#allocation2 + $0xd0] sm:$0x3] %vm749, 0.0
      %775 = vst.msk [vmem:[#allocation2 + $0xd8] sm:$0xff] %vm258, 0.0
      %776 = vst.msk [vmem:[#allocation2 + $0xe0] sm:$0xff] %vm258, 0.0
      %777 = vst.msk [vmem:[#allocation2 + $0xe8] sm:$0x3] %vm749, 0.0
      %778 = vst.msk [vmem:[#allocation2 + $0xf0] sm:$0xff] %vm258, 0.0
      %779 = vst.msk [vmem:[#allocation2 + $0xf8] sm:$0xff] %vm258, 0.0
      %780 = vst.msk [vmem:[#allocation2 + $0x100] sm:$0x3] %vm749, 0.0
      %781 = vst.msk [vmem:[#allocation2 + $0x108] sm:$0xff] %vm258, 0.0
      %782 = vst.msk [vmem:[#allocation2 + $0x110] sm:$0xff] %vm258, 0.0
      %783 = vst.msk [vmem:[#allocation2 + $0x118] sm:$0x3] %vm749, 0.0
      %784 = vst.msk [vmem:[#allocation2 + $0x120] sm:$0xff] %vm258, 0.0
      %785 = vst.msk [vmem:[#allocation2 + $0x128] sm:$0xff] %vm258, 0.0
      %786 = vst.msk [vmem:[#allocation2 + $0x130] sm:$0x3] %vm749, 0.0
      %787 = vst.msk [vmem:[#allocation2 + $0x138] sm:$0xff] %vm258, 0.0
      %788 = vst.msk [vmem:[#allocation2 + $0x140] sm:$0xff] %vm258, 0.0
      %789 = vst.msk [vmem:[#allocation2 + $0x148] sm:$0x3] %vm749, 0.0
      %790 = vst.msk [vmem:[#allocation2 + $0x150] sm:$0xff] %vm258, 0.0
      %791 = vst.msk [vmem:[#allocation2 + $0x158] sm:$0xff] %vm258, 0.0
      %792 = vst.msk [vmem:[#allocation2 + $0x160] sm:$0x3] %vm749, 0.0
      %793 = vst.msk [vmem:[#allocation2 + $0x168] sm:$0xff] %vm258, 0.0
      %794 = vst.msk [vmem:[#allocation2 + $0x170] sm:$0xff] %vm258, 0.0
      %795 = vst.msk [vmem:[#allocation2 + $0x178] sm:$0x3] %vm749, 0.0
      %796 = vst.msk [vmem:[#allocation2 + $0x180] sm:$0xff] %vm258, 0.0
      %797 = vst.msk [vmem:[#allocation2 + $0x188] sm:$0xff] %vm258, 0.0
      %798 = vst.msk [vmem:[#allocation2 + $0x190] sm:$0x3] %vm749, 0.0
      %799 = vst.msk [vmem:[#allocation2 + $0x198] sm:$0xff] %vm258, 0.0
      %800 = vst.msk [vmem:[#allocation2 + $0x1a0] sm:$0xff] %vm258, 0.0
      %801 = vst.msk [vmem:[#allocation2 + $0x1a8] sm:$0x3] %vm749, 0.0
      %s802 = scalar_lea.vmem [#allocation2], 24
      %803 = vst.msk [vmem:[%s802 + $0x1] sm:$0xff] %vm258, %v710
      %804 = vst.msk [vmem:[%s802 + $0x9] sm:$0xff] %vm258, %v711
      %805 = vst.msk [vmem:[%s802 + $0x19] sm:$0xff] %vm258, %v712
      %806 = vst.msk [vmem:[%s802 + $0x21] sm:$0xff] %vm258, %v713
      %807 = vst.msk [vmem:[%s802 + $0x31] sm:$0xff] %vm258, %v714
      %808 = vst.msk [vmem:[%s802 + $0x39] sm:$0xff] %vm258, %v715
      %809 = vst.msk [vmem:[%s802 + $0x49] sm:$0xff] %vm258, %v716
      %810 = vst.msk [vmem:[%s802 + $0x51] sm:$0xff] %vm258, %v717
      %811 = vst.msk [vmem:[%s802 + $0x61] sm:$0xff] %vm258, %v718
      %812 = vst.msk [vmem:[%s802 + $0x69] sm:$0xff] %vm258, %v719
      %813 = vst.msk [vmem:[%s802 + $0x79] sm:$0xff] %vm258, %v720
      %814 = vst.msk [vmem:[%s802 + $0x81] sm:$0xff] %vm258, %v721
      %815 = vst.msk [vmem:[%s802 + $0x91] sm:$0xff] %vm258, %v722
      %816 = vst.msk [vmem:[%s802 + $0x99] sm:$0xff] %vm258, %v723
      %817 = vst.msk [vmem:[%s802 + $0xa9] sm:$0xff] %vm258, %v724
      %818 = vst.msk [vmem:[%s802 + $0xb1] sm:$0xff] %vm258, %v725
      %819 = vst.msk [vmem:[%s802 + $0xc1] sm:$0xff] %vm258, %v726
      %820 = vst.msk [vmem:[%s802 + $0xc9] sm:$0xff] %vm258, %v727
      %821 = vst.msk [vmem:[%s802 + $0xd9] sm:$0xff] %vm258, %v728
      %822 = vst.msk [vmem:[%s802 + $0xe1] sm:$0xff] %vm258, %v729
      %823 = vst.msk [vmem:[%s802 + $0xf1] sm:$0xff] %vm258, %v730
      %824 = vst.msk [vmem:[%s802 + $0xf9] sm:$0xff] %vm258, %v731
      %825 = vst.msk [vmem:[%s802 + $0x109] sm:$0xff] %vm258, %v732
      %826 = vst.msk [vmem:[%s802 + $0x111] sm:$0xff] %vm258, %v733
      %827 = vst.msk [vmem:[%s802 + $0x121] sm:$0xff] %vm258, %v734
      %828 = vst.msk [vmem:[%s802 + $0x129] sm:$0xff] %vm258, %v735
      %829 = vst.msk [vmem:[%s802 + $0x139] sm:$0xff] %vm258, %v736
      %830 = vst.msk [vmem:[%s802 + $0x141] sm:$0xff] %vm258, %v737
      %831 = vst.msk [vmem:[%s802 + $0x151] sm:$0xff] %vm258, %v738
      %832 = vst.msk [vmem:[%s802 + $0x159] sm:$0xff] %vm258, %v739
      %833 = vst.msk [vmem:[%s802 + $0x169] sm:$0xff] %vm258, %v740
      %834 = vst.msk [vmem:[%s802 + $0x171] sm:$0xff] %vm258, %v741
      %v835 = vld [vmem:[#allocation2] sm:$0xff]
      %v836 = vld [vmem:[#allocation2 + $0x8] sm:$0xff]
      %v837 = vld [vmem:[#allocation2 + $0x10] sm:$0x3]
      %v838 = vld [vmem:[#allocation2 + $0x18] sm:$0xff]
      %v839 = vld [vmem:[#allocation2 + $0x20] sm:$0xff]
      %v840 = vld [vmem:[#allocation2 + $0x28] sm:$0x3]
      %v841 = vld [vmem:[#allocation2 + $0x30] sm:$0xff]
      %v842 = vld [vmem:[#allocation2 + $0x38] sm:$0xff]
      %v843 = vld [vmem:[#allocation2 + $0x40] sm:$0x3]
      %v844 = vld [vmem:[#allocation2 + $0x48] sm:$0xff]
      %v845 = vld [vmem:[#allocation2 + $0x50] sm:$0xff]
      %v846 = vld [vmem:[#allocation2 + $0x58] sm:$0x3]
      %v847 = vld [vmem:[#allocation2 + $0x60] sm:$0xff]
      %v848 = vld [vmem:[#allocation2 + $0x68] sm:$0xff]
      %v849 = vld [vmem:[#allocation2 + $0x70] sm:$0x3]
      %v850 = vld [vmem:[#allocation2 + $0x78] sm:$0xff]
      %v851 = vld [vmem:[#allocation2 + $0x80] sm:$0xff]
      %v852 = vld [vmem:[#allocation2 + $0x88] sm:$0x3]
      %v853 = vld [vmem:[#allocation2 + $0x90] sm:$0xff]
      %v854 = vld [vmem:[#allocation2 + $0x98] sm:$0xff]
      %v855 = vld [vmem:[#allocation2 + $0xa0] sm:$0x3]
      %v856 = vld [vmem:[#allocation2 + $0xa8] sm:$0xff]
      %v857 = vld [vmem:[#allocation2 + $0xb0] sm:$0xff]
      %v858 = vld [vmem:[#allocation2 + $0xb8] sm:$0x3]
      %v859 = vld [vmem:[#allocation2 + $0xc0] sm:$0xff]
      %v860 = vld [vmem:[#allocation2 + $0xc8] sm:$0xff]
      %v861 = vld [vmem:[#allocation2 + $0xd0] sm:$0x3]
      %v862 = vld [vmem:[#allocation2 + $0xd8] sm:$0xff]
      %v863 = vld [vmem:[#allocation2 + $0xe0] sm:$0xff]
      %v864 = vld [vmem:[#allocation2 + $0xe8] sm:$0x3]
      %v865 = vld [vmem:[#allocation2 + $0xf0] sm:$0xff]
      %v866 = vld [vmem:[#allocation2 + $0xf8] sm:$0xff]
      %v867 = vld [vmem:[#allocation2 + $0x100] sm:$0x3]
      %v868 = vld [vmem:[#allocation2 + $0x108] sm:$0xff]
      %v869 = vld [vmem:[#allocation2 + $0x110] sm:$0xff]
      %v870 = vld [vmem:[#allocation2 + $0x118] sm:$0x3]
      %v871 = vld [vmem:[#allocation2 + $0x120] sm:$0xff]
      %v872 = vld [vmem:[#allocation2 + $0x128] sm:$0xff]
      %v873 = vld [vmem:[#allocation2 + $0x130] sm:$0x3]
      %v874 = vld [vmem:[#allocation2 + $0x138] sm:$0xff]
      %v875 = vld [vmem:[#allocation2 + $0x140] sm:$0xff]
      %v876 = vld [vmem:[#allocation2 + $0x148] sm:$0x3]
      %v877 = vld [vmem:[#allocation2 + $0x150] sm:$0xff]
      %v878 = vld [vmem:[#allocation2 + $0x158] sm:$0xff]
      %v879 = vld [vmem:[#allocation2 + $0x160] sm:$0x3]
      %v880 = vld [vmem:[#allocation2 + $0x168] sm:$0xff]
      %v881 = vld [vmem:[#allocation2 + $0x170] sm:$0xff]
      %v882 = vld [vmem:[#allocation2 + $0x178] sm:$0x3]
      %v883 = vld [vmem:[#allocation2 + $0x180] sm:$0xff]
      %v884 = vld [vmem:[#allocation2 + $0x188] sm:$0xff]
      %v885 = vld [vmem:[#allocation2 + $0x190] sm:$0x3]
      %v886 = vld [vmem:[#allocation2 + $0x198] sm:$0xff]
      %v887 = vld [vmem:[#allocation2 + $0x1a0] sm:$0xff]
      %v888 = vld [vmem:[#allocation2 + $0x1a8] sm:$0x3]
      %vm937 = vcmask 1046528
      %v938 = vrot.slane %v835, 1
      %v939 = vrot.slane %v836, 1
      %v940 = vsel %vm937, %v938, %v939
      %v941 = vrot.slane %v837, 1
      %v942 = vsel %vm937, %v939, %v941
      %v943 = vrot.slane %v838, 1
      %v944 = vrot.slane %v839, 1
      %v945 = vsel %vm937, %v943, %v944
      %v946 = vrot.slane %v840, 1
      %v947 = vsel %vm937, %v944, %v946
      %v948 = vrot.slane %v841, 1
      %v949 = vrot.slane %v842, 1
      %v950 = vsel %vm937, %v948, %v949
      %v951 = vrot.slane %v843, 1
      %v952 = vsel %vm937, %v949, %v951
      %v953 = vrot.slane %v844, 1
      %v954 = vrot.slane %v845, 1
      %v955 = vsel %vm937, %v953, %v954
      %v956 = vrot.slane %v846, 1
      %v957 = vsel %vm937, %v954, %v956
      %v958 = vrot.slane %v847, 1
      %v959 = vrot.slane %v848, 1
      %v960 = vsel %vm937, %v958, %v959
      %v961 = vrot.slane %v849, 1
      %v962 = vsel %vm937, %v959, %v961
      %v963 = vrot.slane %v850, 1
      %v964 = vrot.slane %v851, 1
      %v965 = vsel %vm937, %v963, %v964
      %v966 = vrot.slane %v852, 1
      %v967 = vsel %vm937, %v964, %v966
      %v968 = vrot.slane %v853, 1
      %v969 = vrot.slane %v854, 1
      %v970 = vsel %vm937, %v968, %v969
      %v971 = vrot.slane %v855, 1
      %v972 = vsel %vm937, %v969, %v971
      %v973 = vrot.slane %v856, 1
      %v974 = vrot.slane %v857, 1
      %v975 = vsel %vm937, %v973, %v974
      %v976 = vrot.slane %v858, 1
      %v977 = vsel %vm937, %v974, %v976
      %v978 = vrot.slane %v859, 1
      %v979 = vrot.slane %v860, 1
      %v980 = vsel %vm937, %v978, %v979
      %v981 = vrot.slane %v861, 1
      %v982 = vsel %vm937, %v979, %v981
      %v983 = vrot.slane %v862, 1
      %v984 = vrot.slane %v863, 1
      %v985 = vsel %vm937, %v983, %v984
      %v986 = vrot.slane %v864, 1
      %v987 = vsel %vm937, %v984, %v986
      %v988 = vrot.slane %v865, 1
      %v989 = vrot.slane %v866, 1
      %v990 = vsel %vm937, %v988, %v989
      %v991 = vrot.slane %v867, 1
      %v992 = vsel %vm937, %v989, %v991
      %v993 = vrot.slane %v868, 1
      %v994 = vrot.slane %v869, 1
      %v995 = vsel %vm937, %v993, %v994
      %v996 = vrot.slane %v870, 1
      %v997 = vsel %vm937, %v994, %v996
      %v998 = vrot.slane %v871, 1
      %v999 = vrot.slane %v872, 1
      %v1000 = vsel %vm937, %v998, %v999
      %v1001 = vrot.slane %v873, 1
      %v1002 = vsel %vm937, %v999, %v1001
      %v1003 = vrot.slane %v874, 1
      %v1004 = vrot.slane %v875, 1
      %v1005 = vsel %vm937, %v1003, %v1004
      %v1006 = vrot.slane %v876, 1
      %v1007 = vsel %vm937, %v1004, %v1006
      %v1008 = vrot.slane %v877, 1
      %v1009 = vrot.slane %v878, 1
      %v1010 = vsel %vm937, %v1008, %v1009
      %v1011 = vrot.slane %v879, 1
      %v1012 = vsel %vm937, %v1009, %v1011
      %v1013 = vrot.slane %v880, 1
      %v1014 = vrot.slane %v881, 1
      %v1015 = vsel %vm937, %v1013, %v1014
      %v1016 = vrot.slane %v882, 1
      %v1017 = vsel %vm937, %v1014, %v1016
      %1018 = vrot.lane.b32.xlu0 %v940, 4
      %v1019 = vpop.permute.xlu0 %1018
      %1020 = vrot.lane.b32.xlu0 %v942, 4
      %v1021 = vpop.permute.xlu0 %1020
      %1022 = vrot.lane.b32.xlu0 %v945, 4
      %v1023 = vpop.permute.xlu0 %1022
      %1024 = vrot.lane.b32.xlu0 %v947, 4
      %v1025 = vpop.permute.xlu0 %1024
      %1026 = vrot.lane.b32.xlu0 %v950, 4
      %v1027 = vpop.permute.xlu0 %1026
      %1028 = vrot.lane.b32.xlu0 %v952, 4
      %v1029 = vpop.permute.xlu0 %1028
      %1030 = vrot.lane.b32.xlu0 %v955, 4
      %v1031 = vpop.permute.xlu0 %1030
      %1032 = vrot.lane.b32.xlu0 %v957, 4
      %v1033 = vpop.permute.xlu0 %1032
      %1034 = vrot.lane.b32.xlu0 %v960, 4
      %v1035 = vpop.permute.xlu0 %1034
      %1036 = vrot.lane.b32.xlu0 %v962, 4
      %v1037 = vpop.permute.xlu0 %1036
      %1038 = vrot.lane.b32.xlu0 %v965, 4
      %v1039 = vpop.permute.xlu0 %1038
      %1040 = vrot.lane.b32.xlu0 %v967, 4
      %v1041 = vpop.permute.xlu0 %1040
      %1042 = vrot.lane.b32.xlu0 %v970, 4
      %v1043 = vpop.permute.xlu0 %1042
      %1044 = vrot.lane.b32.xlu0 %v972, 4
      %v1045 = vpop.permute.xlu0 %1044
      %1046 = vrot.lane.b32.xlu0 %v975, 4
      %v1047 = vpop.permute.xlu0 %1046
      %1048 = vrot.lane.b32.xlu0 %v977, 4
      %v1049 = vpop.permute.xlu0 %1048
      %1050 = vrot.lane.b32.xlu0 %v980, 4
      %v1051 = vpop.permute.xlu0 %1050
      %1052 = vrot.lane.b32.xlu0 %v982, 4
      %v1053 = vpop.permute.xlu0 %1052
      %1054 = vrot.lane.b32.xlu0 %v985, 4
      %v1055 = vpop.permute.xlu0 %1054
      %1056 = vrot.lane.b32.xlu0 %v987, 4
      %v1057 = vpop.permute.xlu0 %1056
      %1058 = vrot.lane.b32.xlu0 %v990, 4
      %v1059 = vpop.permute.xlu0 %1058
      %1060 = vrot.lane.b32.xlu0 %v992, 4
      %v1061 = vpop.permute.xlu0 %1060
      %1062 = vrot.lane.b32.xlu0 %v995, 4
      %v1063 = vpop.permute.xlu0 %1062
      %1064 = vrot.lane.b32.xlu0 %v997, 4
      %v1065 = vpop.permute.xlu0 %1064
      %1066 = vrot.lane.b32.xlu0 %v1000, 4
      %v1067 = vpop.permute.xlu0 %1066
      %1068 = vrot.lane.b32.xlu0 %v1002, 4
      %v1069 = vpop.permute.xlu0 %1068
      %1070 = vrot.lane.b32.xlu0 %v1005, 4
      %v1071 = vpop.permute.xlu0 %1070
      %1072 = vrot.lane.b32.xlu0 %v1007, 4
      %v1073 = vpop.permute.xlu0 %1072
      %1074 = vrot.lane.b32.xlu0 %v1010, 4
      %v1075 = vpop.permute.xlu0 %1074
      %1076 = vrot.lane.b32.xlu0 %v1012, 4
      %v1077 = vpop.permute.xlu0 %1076
      %1078 = vrot.lane.b32.xlu0 %v1015, 4
      %v1079 = vpop.permute.xlu0 %1078
      %1080 = vrot.lane.b32.xlu0 %v1017, 4
      %v1081 = vpop.permute.xlu0 %1080
      %vm1114 = vcmask 1045504
      %v1115 = vrot.slane %v835, 2
      %v1116 = vrot.slane %v836, 2
      %v1117 = vsel %vm1114, %v1115, %v1116
      %v1118 = vrot.slane %v837, 2
      %v1119 = vsel %vm1114, %v1116, %v1118
      %v1120 = vrot.slane %v838, 2
      %v1121 = vrot.slane %v839, 2
      %v1122 = vsel %vm1114, %v1120, %v1121
      %v1123 = vrot.slane %v840, 2
      %v1124 = vsel %vm1114, %v1121, %v1123
      %v1125 = vrot.slane %v841, 2
      %v1126 = vrot.slane %v842, 2
      %v1127 = vsel %vm1114, %v1125, %v1126
      %v1128 = vrot.slane %v843, 2
      %v1129 = vsel %vm1114, %v1126, %v1128
      %v1130 = vrot.slane %v844, 2
      %v1131 = vrot.slane %v845, 2
      %v1132 = vsel %vm1114, %v1130, %v1131
      %v1133 = vrot.slane %v846, 2
      %v1134 = vsel %vm1114, %v1131, %v1133
      %v1135 = vrot.slane %v847, 2
      %v1136 = vrot.slane %v848, 2
      %v1137 = vsel %vm1114, %v1135, %v1136
      %v1138 = vrot.slane %v849, 2
      %v1139 = vsel %vm1114, %v1136, %v1138
      %v1140 = vrot.slane %v850, 2
      %v1141 = vrot.slane %v851, 2
      %v1142 = vsel %vm1114, %v1140, %v1141
      %v1143 = vrot.slane %v852, 2
      %v1144 = vsel %vm1114, %v1141, %v1143
      %v1145 = vrot.slane %v853, 2
      %v1146 = vrot.slane %v854, 2
      %v1147 = vsel %vm1114, %v1145, %v1146
      %v1148 = vrot.slane %v855, 2
      %v1149 = vsel %vm1114, %v1146, %v1148
      %v1150 = vrot.slane %v856, 2
      %v1151 = vrot.slane %v857, 2
      %v1152 = vsel %vm1114, %v1150, %v1151
      %v1153 = vrot.slane %v858, 2
      %v1154 = vsel %vm1114, %v1151, %v1153
      %v1155 = vrot.slane %v859, 2
      %v1156 = vrot.slane %v860, 2
      %v1157 = vsel %vm1114, %v1155, %v1156
      %v1158 = vrot.slane %v861, 2
      %v1159 = vsel %vm1114, %v1156, %v1158
      %v1160 = vrot.slane %v862, 2
      %v1161 = vrot.slane %v863, 2
      %v1162 = vsel %vm1114, %v1160, %v1161
      %v1163 = vrot.slane %v864, 2
      %v1164 = vsel %vm1114, %v1161, %v1163
      %v1165 = vrot.slane %v865, 2
      %v1166 = vrot.slane %v866, 2
      %v1167 = vsel %vm1114, %v1165, %v1166
      %v1168 = vrot.slane %v867, 2
      %v1169 = vsel %vm1114, %v1166, %v1168
      %v1170 = vrot.slane %v868, 2
      %v1171 = vrot.slane %v869, 2
      %v1172 = vsel %vm1114, %v1170, %v1171
      %v1173 = vrot.slane %v870, 2
      %v1174 = vsel %vm1114, %v1171, %v1173
      %v1175 = vrot.slane %v871, 2
      %v1176 = vrot.slane %v872, 2
      %v1177 = vsel %vm1114, %v1175, %v1176
      %v1178 = vrot.slane %v873, 2
      %v1179 = vsel %vm1114, %v1176, %v1178
      %v1180 = vrot.slane %v874, 2
      %v1181 = vrot.slane %v875, 2
      %v1182 = vsel %vm1114, %v1180, %v1181
      %v1183 = vrot.slane %v876, 2
      %v1184 = vsel %vm1114, %v1181, %v1183
      %v1185 = vrot.slane %v877, 2
      %v1186 = vrot.slane %v878, 2
      %v1187 = vsel %vm1114, %v1185, %v1186
      %v1188 = vrot.slane %v879, 2
      %v1189 = vsel %vm1114, %v1186, %v1188
      %v1190 = vrot.slane %v880, 2
      %v1191 = vrot.slane %v881, 2
      %v1192 = vsel %vm1114, %v1190, %v1191
      %v1193 = vrot.slane %v882, 2
      %v1194 = vsel %vm1114, %v1191, %v1193
      %1195 = vrot.lane.b32.xlu0 %v1117, 8
      %v1196 = vpop.permute.xlu0 %1195
      %1197 = vrot.lane.b32.xlu0 %v1119, 8
      %v1198 = vpop.permute.xlu0 %1197
      %1199 = vrot.lane.b32.xlu0 %v1122, 8
      %v1200 = vpop.permute.xlu0 %1199
      %1201 = vrot.lane.b32.xlu0 %v1124, 8
      %v1202 = vpop.permute.xlu0 %1201
      %1203 = vrot.lane.b32.xlu0 %v1127, 8
      %v1204 = vpop.permute.xlu0 %1203
      %1205 = vrot.lane.b32.xlu0 %v1129, 8
      %v1206 = vpop.permute.xlu0 %1205
      %1207 = vrot.lane.b32.xlu0 %v1132, 8
      %v1208 = vpop.permute.xlu0 %1207
      %1209 = vrot.lane.b32.xlu0 %v1134, 8
      %v1210 = vpop.permute.xlu0 %1209
      %1211 = vrot.lane.b32.xlu0 %v1137, 8
      %v1212 = vpop.permute.xlu0 %1211
      %1213 = vrot.lane.b32.xlu0 %v1139, 8
      %v1214 = vpop.permute.xlu0 %1213
      %1215 = vrot.lane.b32.xlu0 %v1142, 8
      %v1216 = vpop.permute.xlu0 %1215
      %1217 = vrot.lane.b32.xlu0 %v1144, 8
      %v1218 = vpop.permute.xlu0 %1217
      %1219 = vrot.lane.b32.xlu0 %v1147, 8
      %v1220 = vpop.permute.xlu0 %1219
      %1221 = vrot.lane.b32.xlu0 %v1149, 8
      %v1222 = vpop.permute.xlu0 %1221
      %1223 = vrot.lane.b32.xlu0 %v1152, 8
      %v1224 = vpop.permute.xlu0 %1223
      %1225 = vrot.lane.b32.xlu0 %v1154, 8
      %v1226 = vpop.permute.xlu0 %1225
      %1227 = vrot.lane.b32.xlu0 %v1157, 8
      %v1228 = vpop.permute.xlu0 %1227
      %1229 = vrot.lane.b32.xlu0 %v1159, 8
      %v1230 = vpop.permute.xlu0 %1229
      %1231 = vrot.lane.b32.xlu0 %v1162, 8
      %v1232 = vpop.permute.xlu0 %1231
      %1233 = vrot.lane.b32.xlu0 %v1164, 8
      %v1234 = vpop.permute.xlu0 %1233
      %1235 = vrot.lane.b32.xlu0 %v1167, 8
      %v1236 = vpop.permute.xlu0 %1235
      %1237 = vrot.lane.b32.xlu0 %v1169, 8
      %v1238 = vpop.permute.xlu0 %1237
      %1239 = vrot.lane.b32.xlu0 %v1172, 8
      %v1240 = vpop.permute.xlu0 %1239
      %1241 = vrot.lane.b32.xlu0 %v1174, 8
      %v1242 = vpop.permute.xlu0 %1241
      %1243 = vrot.lane.b32.xlu0 %v1177, 8
      %v1244 = vpop.permute.xlu0 %1243
      %1245 = vrot.lane.b32.xlu0 %v1179, 8
      %v1246 = vpop.permute.xlu0 %1245
      %1247 = vrot.lane.b32.xlu0 %v1182, 8
      %v1248 = vpop.permute.xlu0 %1247
      %1249 = vrot.lane.b32.xlu0 %v1184, 8
      %v1250 = vpop.permute.xlu0 %1249
      %1251 = vrot.lane.b32.xlu0 %v1187, 8
      %v1252 = vpop.permute.xlu0 %1251
      %1253 = vrot.lane.b32.xlu0 %v1189, 8
      %v1254 = vpop.permute.xlu0 %1253
      %1255 = vrot.lane.b32.xlu0 %v1192, 8
      %v1256 = vpop.permute.xlu0 %1255
      %1257 = vrot.lane.b32.xlu0 %v1194, 8
      %v1258 = vpop.permute.xlu0 %1257
      %1293 = vrot.lane.b32.xlu0 %v838, 12
      %v1294 = vpop.permute.xlu0 %1293
      %1295 = vrot.lane.b32.xlu0 %v839, 12
      %v1296 = vpop.permute.xlu0 %1295
      %1297 = vrot.lane.b32.xlu0 %v841, 12
      %v1298 = vpop.permute.xlu0 %1297
      %1299 = vrot.lane.b32.xlu0 %v842, 12
      %v1300 = vpop.permute.xlu0 %1299
      %1301 = vrot.lane.b32.xlu0 %v844, 12
      %v1302 = vpop.permute.xlu0 %1301
      %1303 = vrot.lane.b32.xlu0 %v845, 12
      %v1304 = vpop.permute.xlu0 %1303
      %1305 = vrot.lane.b32.xlu0 %v847, 12
      %v1306 = vpop.permute.xlu0 %1305
      %1307 = vrot.lane.b32.xlu0 %v848, 12
      %v1308 = vpop.permute.xlu0 %1307
      %1309 = vrot.lane.b32.xlu0 %v850, 12
      %v1310 = vpop.permute.xlu0 %1309
      %1311 = vrot.lane.b32.xlu0 %v851, 12
      %v1312 = vpop.permute.xlu0 %1311
      %1313 = vrot.lane.b32.xlu0 %v853, 12
      %v1314 = vpop.permute.xlu0 %1313
      %1315 = vrot.lane.b32.xlu0 %v854, 12
      %v1316 = vpop.permute.xlu0 %1315
      %1317 = vrot.lane.b32.xlu0 %v856, 12
      %v1318 = vpop.permute.xlu0 %1317
      %1319 = vrot.lane.b32.xlu0 %v857, 12
      %v1320 = vpop.permute.xlu0 %1319
      %1321 = vrot.lane.b32.xlu0 %v859, 12
      %v1322 = vpop.permute.xlu0 %1321
      %1323 = vrot.lane.b32.xlu0 %v860, 12
      %v1324 = vpop.permute.xlu0 %1323
      %1325 = vrot.lane.b32.xlu0 %v862, 12
      %v1326 = vpop.permute.xlu0 %1325
      %1327 = vrot.lane.b32.xlu0 %v863, 12
      %v1328 = vpop.permute.xlu0 %1327
      %1329 = vrot.lane.b32.xlu0 %v865, 12
      %v1330 = vpop.permute.xlu0 %1329
      %1331 = vrot.lane.b32.xlu0 %v866, 12
      %v1332 = vpop.permute.xlu0 %1331
      %1333 = vrot.lane.b32.xlu0 %v868, 12
      %v1334 = vpop.permute.xlu0 %1333
      %1335 = vrot.lane.b32.xlu0 %v869, 12
      %v1336 = vpop.permute.xlu0 %1335
      %1337 = vrot.lane.b32.xlu0 %v871, 12
      %v1338 = vpop.permute.xlu0 %1337
      %1339 = vrot.lane.b32.xlu0 %v872, 12
      %v1340 = vpop.permute.xlu0 %1339
      %1341 = vrot.lane.b32.xlu0 %v874, 12
      %v1342 = vpop.permute.xlu0 %1341
      %1343 = vrot.lane.b32.xlu0 %v875, 12
      %v1344 = vpop.permute.xlu0 %1343
      %1345 = vrot.lane.b32.xlu0 %v877, 12
      %v1346 = vpop.permute.xlu0 %1345
      %1347 = vrot.lane.b32.xlu0 %v878, 12
      %v1348 = vpop.permute.xlu0 %1347
      %1349 = vrot.lane.b32.xlu0 %v880, 12
      %v1350 = vpop.permute.xlu0 %1349
      %1351 = vrot.lane.b32.xlu0 %v881, 12
      %v1352 = vpop.permute.xlu0 %1351
      %1353 = vrot.lane.b32.xlu0 %v883, 12
      %v1354 = vpop.permute.xlu0 %1353
      %1355 = vrot.lane.b32.xlu0 %v884, 12
      %v1356 = vpop.permute.xlu0 %1355
      %v1390 = vrot.slane %v883, 1
      %v1391 = vrot.slane %v884, 1
      %v1392 = vsel %vm937, %v1390, %v1391
      %v1393 = vrot.slane %v885, 1
      %v1394 = vsel %vm937, %v1391, %v1393
      %1395 = vrot.lane.b32.xlu0 %v945, 16
      %v1396 = vpop.permute.xlu0 %1395
      %1397 = vrot.lane.b32.xlu0 %v947, 16
      %v1398 = vpop.permute.xlu0 %1397
      %1399 = vrot.lane.b32.xlu0 %v950, 16
      %v1400 = vpop.permute.xlu0 %1399
      %1401 = vrot.lane.b32.xlu0 %v952, 16
      %v1402 = vpop.permute.xlu0 %1401
      %1403 = vrot.lane.b32.xlu0 %v955, 16
      %v1404 = vpop.permute.xlu0 %1403
      %1405 = vrot.lane.b32.xlu0 %v957, 16
      %v1406 = vpop.permute.xlu0 %1405
      %1407 = vrot.lane.b32.xlu0 %v960, 16
      %v1408 = vpop.permute.xlu0 %1407
      %1409 = vrot.lane.b32.xlu0 %v962, 16
      %v1410 = vpop.permute.xlu0 %1409
      %1411 = vrot.lane.b32.xlu0 %v965, 16
      %v1412 = vpop.permute.xlu0 %1411
      %1413 = vrot.lane.b32.xlu0 %v967, 16
      %v1414 = vpop.permute.xlu0 %1413
      %1415 = vrot.lane.b32.xlu0 %v970, 16
      %v1416 = vpop.permute.xlu0 %1415
      %1417 = vrot.lane.b32.xlu0 %v972, 16
      %v1418 = vpop.permute.xlu0 %1417
      %1419 = vrot.lane.b32.xlu0 %v975, 16
      %v1420 = vpop.permute.xlu0 %1419
      %1421 = vrot.lane.b32.xlu0 %v977, 16
      %v1422 = vpop.permute.xlu0 %1421
      %1423 = vrot.lane.b32.xlu0 %v980, 16
      %v1424 = vpop.permute.xlu0 %1423
      %1425 = vrot.lane.b32.xlu0 %v982, 16
      %v1426 = vpop.permute.xlu0 %1425
      %1427 = vrot.lane.b32.xlu0 %v985, 16
      %v1428 = vpop.permute.xlu0 %1427
      %1429 = vrot.lane.b32.xlu0 %v987, 16
      %v1430 = vpop.permute.xlu0 %1429
      %1431 = vrot.lane.b32.xlu0 %v990, 16
      %v1432 = vpop.permute.xlu0 %1431
      %1433 = vrot.lane.b32.xlu0 %v992, 16
      %v1434 = vpop.permute.xlu0 %1433
      %1435 = vrot.lane.b32.xlu0 %v995, 16
      %v1436 = vpop.permute.xlu0 %1435
      %1437 = vrot.lane.b32.xlu0 %v997, 16
      %v1438 = vpop.permute.xlu0 %1437
      %1439 = vrot.lane.b32.xlu0 %v1000, 16
      %v1440 = vpop.permute.xlu0 %1439
      %1441 = vrot.lane.b32.xlu0 %v1002, 16
      %v1442 = vpop.permute.xlu0 %1441
      %1443 = vrot.lane.b32.xlu0 %v1005, 16
      %v1444 = vpop.permute.xlu0 %1443
      %1445 = vrot.lane.b32.xlu0 %v1007, 16
      %v1446 = vpop.permute.xlu0 %1445
      %1447 = vrot.lane.b32.xlu0 %v1010, 16
      %v1448 = vpop.permute.xlu0 %1447
      %1449 = vrot.lane.b32.xlu0 %v1012, 16
      %v1450 = vpop.permute.xlu0 %1449
      %1451 = vrot.lane.b32.xlu0 %v1015, 16
      %v1452 = vpop.permute.xlu0 %1451
      %1453 = vrot.lane.b32.xlu0 %v1017, 16
      %v1454 = vpop.permute.xlu0 %1453
      %1455 = vrot.lane.b32.xlu0 %v1392, 16
      %v1456 = vpop.permute.xlu0 %1455
      %1457 = vrot.lane.b32.xlu0 %v1394, 16
      %v1458 = vpop.permute.xlu0 %1457
      %v1491 = vrot.slane %v883, 2
      %v1492 = vrot.slane %v884, 2
      %v1493 = vsel %vm1114, %v1491, %v1492
      %v1494 = vrot.slane %v885, 2
      %v1495 = vsel %vm1114, %v1492, %v1494
      %1496 = vrot.lane.b32.xlu0 %v1122, 20
      %v1497 = vpop.permute.xlu0 %1496
      %1498 = vrot.lane.b32.xlu0 %v1124, 20
      %v1499 = vpop.permute.xlu0 %1498
      %1500 = vrot.lane.b32.xlu0 %v1127, 20
      %v1501 = vpop.permute.xlu0 %1500
      %1502 = vrot.lane.b32.xlu0 %v1129, 20
      %v1503 = vpop.permute.xlu0 %1502
      %1504 = vrot.lane.b32.xlu0 %v1132, 20
      %v1505 = vpop.permute.xlu0 %1504
      %1506 = vrot.lane.b32.xlu0 %v1134, 20
      %v1507 = vpop.permute.xlu0 %1506
      %1508 = vrot.lane.b32.xlu0 %v1137, 20
      %v1509 = vpop.permute.xlu0 %1508
      %1510 = vrot.lane.b32.xlu0 %v1139, 20
      %v1511 = vpop.permute.xlu0 %1510
      %1512 = vrot.lane.b32.xlu0 %v1142, 20
      %v1513 = vpop.permute.xlu0 %1512
      %1514 = vrot.lane.b32.xlu0 %v1144, 20
      %v1515 = vpop.permute.xlu0 %1514
      %1516 = vrot.lane.b32.xlu0 %v1147, 20
      %v1517 = vpop.permute.xlu0 %1516
      %1518 = vrot.lane.b32.xlu0 %v1149, 20
      %v1519 = vpop.permute.xlu0 %1518
      %1520 = vrot.lane.b32.xlu0 %v1152, 20
      %v1521 = vpop.permute.xlu0 %1520
      %1522 = vrot.lane.b32.xlu0 %v1154, 20
      %v1523 = vpop.permute.xlu0 %1522
      %1524 = vrot.lane.b32.xlu0 %v1157, 20
      %v1525 = vpop.permute.xlu0 %1524
      %1526 = vrot.lane.b32.xlu0 %v1159, 20
      %v1527 = vpop.permute.xlu0 %1526
      %1528 = vrot.lane.b32.xlu0 %v1162, 20
      %v1529 = vpop.permute.xlu0 %1528
      %1530 = vrot.lane.b32.xlu0 %v1164, 20
      %v1531 = vpop.permute.xlu0 %1530
      %1532 = vrot.lane.b32.xlu0 %v1167, 20
      %v1533 = vpop.permute.xlu0 %1532
      %1534 = vrot.lane.b32.xlu0 %v1169, 20
      %v1535 = vpop.permute.xlu0 %1534
      %1536 = vrot.lane.b32.xlu0 %v1172, 20
      %v1537 = vpop.permute.xlu0 %1536
      %1538 = vrot.lane.b32.xlu0 %v1174, 20
      %v1539 = vpop.permute.xlu0 %1538
      %1540 = vrot.lane.b32.xlu0 %v1177, 20
      %v1541 = vpop.permute.xlu0 %1540
      %1542 = vrot.lane.b32.xlu0 %v1179, 20
      %v1543 = vpop.permute.xlu0 %1542
      %1544 = vrot.lane.b32.xlu0 %v1182, 20
      %v1545 = vpop.permute.xlu0 %1544
      %1546 = vrot.lane.b32.xlu0 %v1184, 20
      %v1547 = vpop.permute.xlu0 %1546
      %1548 = vrot.lane.b32.xlu0 %v1187, 20
      %v1549 = vpop.permute.xlu0 %1548
      %1550 = vrot.lane.b32.xlu0 %v1189, 20
      %v1551 = vpop.permute.xlu0 %1550
      %1552 = vrot.lane.b32.xlu0 %v1192, 20
      %v1553 = vpop.permute.xlu0 %1552
      %1554 = vrot.lane.b32.xlu0 %v1194, 20
      %v1555 = vpop.permute.xlu0 %1554
      %1556 = vrot.lane.b32.xlu0 %v1493, 20
      %v1557 = vpop.permute.xlu0 %1556
      %1558 = vrot.lane.b32.xlu0 %v1495, 20
      %v1559 = vpop.permute.xlu0 %1558
      %1594 = vrot.lane.b32.xlu0 %v841, 24
      %v1595 = vpop.permute.xlu0 %1594
      %1596 = vrot.lane.b32.xlu0 %v842, 24
      %v1597 = vpop.permute.xlu0 %1596
      %1598 = vrot.lane.b32.xlu0 %v844, 24
      %v1599 = vpop.permute.xlu0 %1598
      %1600 = vrot.lane.b32.xlu0 %v845, 24
      %v1601 = vpop.permute.xlu0 %1600
      %1602 = vrot.lane.b32.xlu0 %v847, 24
      %v1603 = vpop.permute.xlu0 %1602
      %1604 = vrot.lane.b32.xlu0 %v848, 24
      %v1605 = vpop.permute.xlu0 %1604
      %1606 = vrot.lane.b32.xlu0 %v850, 24
      %v1607 = vpop.permute.xlu0 %1606
      %1608 = vrot.lane.b32.xlu0 %v851, 24
      %v1609 = vpop.permute.xlu0 %1608
      %1610 = vrot.lane.b32.xlu0 %v853, 24
      %v1611 = vpop.permute.xlu0 %1610
      %1612 = vrot.lane.b32.xlu0 %v854, 24
      %v1613 = vpop.permute.xlu0 %1612
      %1614 = vrot.lane.b32.xlu0 %v856, 24
      %v1615 = vpop.permute.xlu0 %1614
      %1616 = vrot.lane.b32.xlu0 %v857, 24
      %v1617 = vpop.permute.xlu0 %1616
      %1618 = vrot.lane.b32.xlu0 %v859, 24
      %v1619 = vpop.permute.xlu0 %1618
      %1620 = vrot.lane.b32.xlu0 %v860, 24
      %v1621 = vpop.permute.xlu0 %1620
      %1622 = vrot.lane.b32.xlu0 %v862, 24
      %v1623 = vpop.permute.xlu0 %1622
      %1624 = vrot.lane.b32.xlu0 %v863, 24
      %v1625 = vpop.permute.xlu0 %1624
      %1626 = vrot.lane.b32.xlu0 %v865, 24
      %v1627 = vpop.permute.xlu0 %1626
      %1628 = vrot.lane.b32.xlu0 %v866, 24
      %v1629 = vpop.permute.xlu0 %1628
      %1630 = vrot.lane.b32.xlu0 %v868, 24
      %v1631 = vpop.permute.xlu0 %1630
      %1632 = vrot.lane.b32.xlu0 %v869, 24
      %v1633 = vpop.permute.xlu0 %1632
      %1634 = vrot.lane.b32.xlu0 %v871, 24
      %v1635 = vpop.permute.xlu0 %1634
      %1636 = vrot.lane.b32.xlu0 %v872, 24
      %v1637 = vpop.permute.xlu0 %1636
      %1638 = vrot.lane.b32.xlu0 %v874, 24
      %v1639 = vpop.permute.xlu0 %1638
      %1640 = vrot.lane.b32.xlu0 %v875, 24
      %v1641 = vpop.permute.xlu0 %1640
      %1642 = vrot.lane.b32.xlu0 %v877, 24
      %v1643 = vpop.permute.xlu0 %1642
      %1644 = vrot.lane.b32.xlu0 %v878, 24
      %v1645 = vpop.permute.xlu0 %1644
      %1646 = vrot.lane.b32.xlu0 %v880, 24
      %v1647 = vpop.permute.xlu0 %1646
      %1648 = vrot.lane.b32.xlu0 %v881, 24
      %v1649 = vpop.permute.xlu0 %1648
      %1650 = vrot.lane.b32.xlu0 %v883, 24
      %v1651 = vpop.permute.xlu0 %1650
      %1652 = vrot.lane.b32.xlu0 %v884, 24
      %v1653 = vpop.permute.xlu0 %1652
      %1654 = vrot.lane.b32.xlu0 %v886, 24
      %v1655 = vpop.permute.xlu0 %1654
      %1656 = vrot.lane.b32.xlu0 %v887, 24
      %v1657 = vpop.permute.xlu0 %1656
      %v1691 = vrot.slane %v886, 1
      %v1692 = vrot.slane %v887, 1
      %v1693 = vsel %vm937, %v1691, %v1692
      %v1694 = vrot.slane %v888, 1
      %v1695 = vsel %vm937, %v1692, %v1694
      %1696 = vrot.lane.b32.xlu0 %v950, 28
      %v1697 = vpop.permute.xlu0 %1696
      %1698 = vrot.lane.b32.xlu0 %v952, 28
      %v1699 = vpop.permute.xlu0 %1698
      %1700 = vrot.lane.b32.xlu0 %v955, 28
      %v1701 = vpop.permute.xlu0 %1700
      %1702 = vrot.lane.b32.xlu0 %v957, 28
      %v1703 = vpop.permute.xlu0 %1702
      %1704 = vrot.lane.b32.xlu0 %v960, 28
      %v1705 = vpop.permute.xlu0 %1704
      %1706 = vrot.lane.b32.xlu0 %v962, 28
      %v1707 = vpop.permute.xlu0 %1706
      %1708 = vrot.lane.b32.xlu0 %v965, 28
      %v1709 = vpop.permute.xlu0 %1708
      %1710 = vrot.lane.b32.xlu0 %v967, 28
      %v1711 = vpop.permute.xlu0 %1710
      %1712 = vrot.lane.b32.xlu0 %v970, 28
      %v1713 = vpop.permute.xlu0 %1712
      %1714 = vrot.lane.b32.xlu0 %v972, 28
      %v1715 = vpop.permute.xlu0 %1714
      %1716 = vrot.lane.b32.xlu0 %v975, 28
      %v1717 = vpop.permute.xlu0 %1716
      %1718 = vrot.lane.b32.xlu0 %v977, 28
      %v1719 = vpop.permute.xlu0 %1718
      %1720 = vrot.lane.b32.xlu0 %v980, 28
      %v1721 = vpop.permute.xlu0 %1720
      %1722 = vrot.lane.b32.xlu0 %v982, 28
      %v1723 = vpop.permute.xlu0 %1722
      %1724 = vrot.lane.b32.xlu0 %v985, 28
      %v1725 = vpop.permute.xlu0 %1724
      %1726 = vrot.lane.b32.xlu0 %v987, 28
      %v1727 = vpop.permute.xlu0 %1726
      %1728 = vrot.lane.b32.xlu0 %v990, 28
      %v1729 = vpop.permute.xlu0 %1728
      %1730 = vrot.lane.b32.xlu0 %v992, 28
      %v1731 = vpop.permute.xlu0 %1730
      %1732 = vrot.lane.b32.xlu0 %v995, 28
      %v1733 = vpop.permute.xlu0 %1732
      %1734 = vrot.lane.b32.xlu0 %v997, 28
      %v1735 = vpop.permute.xlu0 %1734
      %1736 = vrot.lane.b32.xlu0 %v1000, 28
      %v1737 = vpop.permute.xlu0 %1736
      %1738 = vrot.lane.b32.xlu0 %v1002, 28
      %v1739 = vpop.permute.xlu0 %1738
      %1740 = vrot.lane.b32.xlu0 %v1005, 28
      %v1741 = vpop.permute.xlu0 %1740
      %1742 = vrot.lane.b32.xlu0 %v1007, 28
      %v1743 = vpop.permute.xlu0 %1742
      %1744 = vrot.lane.b32.xlu0 %v1010, 28
      %v1745 = vpop.permute.xlu0 %1744
      %1746 = vrot.lane.b32.xlu0 %v1012, 28
      %v1747 = vpop.permute.xlu0 %1746
      %1748 = vrot.lane.b32.xlu0 %v1015, 28
      %v1749 = vpop.permute.xlu0 %1748
      %1750 = vrot.lane.b32.xlu0 %v1017, 28
      %v1751 = vpop.permute.xlu0 %1750
      %1752 = vrot.lane.b32.xlu0 %v1392, 28
      %v1753 = vpop.permute.xlu0 %1752
      %1754 = vrot.lane.b32.xlu0 %v1394, 28
      %v1755 = vpop.permute.xlu0 %1754
      %1756 = vrot.lane.b32.xlu0 %v1693, 28
      %v1757 = vpop.permute.xlu0 %1756
      %1758 = vrot.lane.b32.xlu0 %v1695, 28
      %v1759 = vpop.permute.xlu0 %1758
      %v1792 = vrot.slane %v886, 2
      %v1793 = vrot.slane %v887, 2
      %v1794 = vsel %vm1114, %v1792, %v1793
      %v1795 = vrot.slane %v888, 2
      %v1796 = vsel %vm1114, %v1793, %v1795
      %1797 = vrot.lane.b32.xlu0 %v1127, 32
      %v1798 = vpop.permute.xlu0 %1797
      %1799 = vrot.lane.b32.xlu0 %v1129, 32
      %v1800 = vpop.permute.xlu0 %1799
      %1801 = vrot.lane.b32.xlu0 %v1132, 32
      %v1802 = vpop.permute.xlu0 %1801
      %1803 = vrot.lane.b32.xlu0 %v1134, 32
      %v1804 = vpop.permute.xlu0 %1803
      %1805 = vrot.lane.b32.xlu0 %v1137, 32
      %v1806 = vpop.permute.xlu0 %1805
      %1807 = vrot.lane.b32.xlu0 %v1139, 32
      %v1808 = vpop.permute.xlu0 %1807
      %1809 = vrot.lane.b32.xlu0 %v1142, 32
      %v1810 = vpop.permute.xlu0 %1809
      %1811 = vrot.lane.b32.xlu0 %v1144, 32
      %v1812 = vpop.permute.xlu0 %1811
      %1813 = vrot.lane.b32.xlu0 %v1147, 32
      %v1814 = vpop.permute.xlu0 %1813
      %1815 = vrot.lane.b32.xlu0 %v1149, 32
      %v1816 = vpop.permute.xlu0 %1815
      %1817 = vrot.lane.b32.xlu0 %v1152, 32
      %v1818 = vpop.permute.xlu0 %1817
      %1819 = vrot.lane.b32.xlu0 %v1154, 32
      %v1820 = vpop.permute.xlu0 %1819
      %1821 = vrot.lane.b32.xlu0 %v1157, 32
      %v1822 = vpop.permute.xlu0 %1821
      %1823 = vrot.lane.b32.xlu0 %v1159, 32
      %v1824 = vpop.permute.xlu0 %1823
      %1825 = vrot.lane.b32.xlu0 %v1162, 32
      %v1826 = vpop.permute.xlu0 %1825
      %1827 = vrot.lane.b32.xlu0 %v1164, 32
      %v1828 = vpop.permute.xlu0 %1827
      %1829 = vrot.lane.b32.xlu0 %v1167, 32
      %v1830 = vpop.permute.xlu0 %1829
      %1831 = vrot.lane.b32.xlu0 %v1169, 32
      %v1832 = vpop.permute.xlu0 %1831
      %1833 = vrot.lane.b32.xlu0 %v1172, 32
      %v1834 = vpop.permute.xlu0 %1833
      %1835 = vrot.lane.b32.xlu0 %v1174, 32
      %v1836 = vpop.permute.xlu0 %1835
      %1837 = vrot.lane.b32.xlu0 %v1177, 32
      %v1838 = vpop.permute.xlu0 %1837
      %1839 = vrot.lane.b32.xlu0 %v1179, 32
      %v1840 = vpop.permute.xlu0 %1839
      %1841 = vrot.lane.b32.xlu0 %v1182, 32
      %v1842 = vpop.permute.xlu0 %1841
      %1843 = vrot.lane.b32.xlu0 %v1184, 32
      %v1844 = vpop.permute.xlu0 %1843
      %1845 = vrot.lane.b32.xlu0 %v1187, 32
      %v1846 = vpop.permute.xlu0 %1845
      %1847 = vrot.lane.b32.xlu0 %v1189, 32
      %v1848 = vpop.permute.xlu0 %1847
      %1849 = vrot.lane.b32.xlu0 %v1192, 32
      %v1850 = vpop.permute.xlu0 %1849
      %1851 = vrot.lane.b32.xlu0 %v1194, 32
      %v1852 = vpop.permute.xlu0 %1851
      %1853 = vrot.lane.b32.xlu0 %v1493, 32
      %v1854 = vpop.permute.xlu0 %1853
      %1855 = vrot.lane.b32.xlu0 %v1495, 32
      %v1856 = vpop.permute.xlu0 %1855
      %1857 = vrot.lane.b32.xlu0 %v1794, 32
      %v1858 = vpop.permute.xlu0 %1857
      %1859 = vrot.lane.b32.xlu0 %v1796, 32
      %v1860 = vpop.permute.xlu0 %1859
      %v1893 = vsel %vm258, %v835, %v1019
      %v1894 = vsel %vm258, %v836, %v1021
      %v1895 = vsel %vm258, %v838, %v1023
      %v1896 = vsel %vm258, %v839, %v1025
      %v1897 = vsel %vm258, %v841, %v1027
      %v1898 = vsel %vm258, %v842, %v1029
      %v1899 = vsel %vm258, %v844, %v1031
      %v1900 = vsel %vm258, %v845, %v1033
      %v1901 = vsel %vm258, %v847, %v1035
      %v1902 = vsel %vm258, %v848, %v1037
      %v1903 = vsel %vm258, %v850, %v1039
      %v1904 = vsel %vm258, %v851, %v1041
      %v1905 = vsel %vm258, %v853, %v1043
      %v1906 = vsel %vm258, %v854, %v1045
      %v1907 = vsel %vm258, %v856, %v1047
      %v1908 = vsel %vm258, %v857, %v1049
      %v1909 = vsel %vm258, %v859, %v1051
      %v1910 = vsel %vm258, %v860, %v1053
      %v1911 = vsel %vm258, %v862, %v1055
      %v1912 = vsel %vm258, %v863, %v1057
      %v1913 = vsel %vm258, %v865, %v1059
      %v1914 = vsel %vm258, %v866, %v1061
      %v1915 = vsel %vm258, %v868, %v1063
      %v1916 = vsel %vm258, %v869, %v1065
      %v1917 = vsel %vm258, %v871, %v1067
      %v1918 = vsel %vm258, %v872, %v1069
      %v1919 = vsel %vm258, %v874, %v1071
      %v1920 = vsel %vm258, %v875, %v1073
      %v1921 = vsel %vm258, %v877, %v1075
      %v1922 = vsel %vm258, %v878, %v1077
      %v1923 = vsel %vm258, %v880, %v1079
      %v1924 = vsel %vm258, %v881, %v1081
      %vm1925 = vcmask 64512
      %v1926 = vsel %vm1925, %v1893, %v1196
      %v1927 = vsel %vm1925, %v1894, %v1198
      %v1928 = vsel %vm1925, %v1895, %v1200
      %v1929 = vsel %vm1925, %v1896, %v1202
      %v1930 = vsel %vm1925, %v1897, %v1204
      %v1931 = vsel %vm1925, %v1898, %v1206
      %v1932 = vsel %vm1925, %v1899, %v1208
      %v1933 = vsel %vm1925, %v1900, %v1210
      %v1934 = vsel %vm1925, %v1901, %v1212
      %v1935 = vsel %vm1925, %v1902, %v1214
      %v1936 = vsel %vm1925, %v1903, %v1216
      %v1937 = vsel %vm1925, %v1904, %v1218
      %v1938 = vsel %vm1925, %v1905, %v1220
      %v1939 = vsel %vm1925, %v1906, %v1222
      %v1940 = vsel %vm1925, %v1907, %v1224
      %v1941 = vsel %vm1925, %v1908, %v1226
      %v1942 = vsel %vm1925, %v1909, %v1228
      %v1943 = vsel %vm1925, %v1910, %v1230
      %v1944 = vsel %vm1925, %v1911, %v1232
      %v1945 = vsel %vm1925, %v1912, %v1234
      %v1946 = vsel %vm1925, %v1913, %v1236
      %v1947 = vsel %vm1925, %v1914, %v1238
      %v1948 = vsel %vm1925, %v1915, %v1240
      %v1949 = vsel %vm1925, %v1916, %v1242
      %v1950 = vsel %vm1925, %v1917, %v1244
      %v1951 = vsel %vm1925, %v1918, %v1246
      %v1952 = vsel %vm1925, %v1919, %v1248
      %v1953 = vsel %vm1925, %v1920, %v1250
      %v1954 = vsel %vm1925, %v1921, %v1252
      %v1955 = vsel %vm1925, %v1922, %v1254
      %v1956 = vsel %vm1925, %v1923, %v1256
      %v1957 = vsel %vm1925, %v1924, %v1258
      %vm1958 = vcmask 97280
      %v1959 = vsel %vm1958, %v1926, %v1294
      %v1960 = vsel %vm1958, %v1927, %v1296
      %v1961 = vsel %vm1958, %v1928, %v1298
      %v1962 = vsel %vm1958, %v1929, %v1300
      %v1963 = vsel %vm1958, %v1930, %v1302
      %v1964 = vsel %vm1958, %v1931, %v1304
      %v1965 = vsel %vm1958, %v1932, %v1306
      %v1966 = vsel %vm1958, %v1933, %v1308
      %v1967 = vsel %vm1958, %v1934, %v1310
      %v1968 = vsel %vm1958, %v1935, %v1312
      %v1969 = vsel %vm1958, %v1936, %v1314
      %v1970 = vsel %vm1958, %v1937, %v1316
      %v1971 = vsel %vm1958, %v1938, %v1318
      %v1972 = vsel %vm1958, %v1939, %v1320
      %v1973 = vsel %vm1958, %v1940, %v1322
      %v1974 = vsel %vm1958, %v1941, %v1324
      %v1975 = vsel %vm1958, %v1942, %v1326
      %v1976 = vsel %vm1958, %v1943, %v1328
      %v1977 = vsel %vm1958, %v1944, %v1330
      %v1978 = vsel %vm1958, %v1945, %v1332
      %v1979 = vsel %vm1958, %v1946, %v1334
      %v1980 = vsel %vm1958, %v1947, %v1336
      %v1981 = vsel %vm1958, %v1948, %v1338
      %v1982 = vsel %vm1958, %v1949, %v1340
      %v1983 = vsel %vm1958, %v1950, %v1342
      %v1984 = vsel %vm1958, %v1951, %v1344
      %v1985 = vsel %vm1958, %v1952, %v1346
      %v1986 = vsel %vm1958, %v1953, %v1348
      %v1987 = vsel %vm1958, %v1954, %v1350
      %v1988 = vsel %vm1958, %v1955, %v1352
      %v1989 = vsel %vm1958, %v1956, %v1354
      %v1990 = vsel %vm1958, %v1957, %v1356
      %vm1991 = vcmask 130048
      %v1992 = vsel %vm1991, %v1959, %v1396
      %v1993 = vsel %vm1991, %v1960, %v1398
      %v1994 = vsel %vm1991, %v1961, %v1400
      %v1995 = vsel %vm1991, %v1962, %v1402
      %v1996 = vsel %vm1991, %v1963, %v1404
      %v1997 = vsel %vm1991, %v1964, %v1406
      %v1998 = vsel %vm1991, %v1965, %v1408
      %v1999 = vsel %vm1991, %v1966, %v1410
      %v2000 = vsel %vm1991, %v1967, %v1412
      %v2001 = vsel %vm1991, %v1968, %v1414
      %v2002 = vsel %vm1991, %v1969, %v1416
      %v2003 = vsel %vm1991, %v1970, %v1418
      %v2004 = vsel %vm1991, %v1971, %v1420
      %v2005 = vsel %vm1991, %v1972, %v1422
      %v2006 = vsel %vm1991, %v1973, %v1424
      %v2007 = vsel %vm1991, %v1974, %v1426
      %v2008 = vsel %vm1991, %v1975, %v1428
      %v2009 = vsel %vm1991, %v1976, %v1430
      %v2010 = vsel %vm1991, %v1977, %v1432
      %v2011 = vsel %vm1991, %v1978, %v1434
      %v2012 = vsel %vm1991, %v1979, %v1436
      %v2013 = vsel %vm1991, %v1980, %v1438
      %v2014 = vsel %vm1991, %v1981, %v1440
      %v2015 = vsel %vm1991, %v1982, %v1442
      %v2016 = vsel %vm1991, %v1983, %v1444
      %v2017 = vsel %vm1991, %v1984, %v1446
      %v2018 = vsel %vm1991, %v1985, %v1448
      %v2019 = vsel %vm1991, %v1986, %v1450
      %v2020 = vsel %vm1991, %v1987, %v1452
      %v2021 = vsel %vm1991, %v1988, %v1454
      %v2022 = vsel %vm1991, %v1989, %v1456
      %v2023 = vsel %vm1991, %v1990, %v1458
      %vm2024 = vcmask 162816
      %v2025 = vsel %vm2024, %v1992, %v1497
      %v2026 = vsel %vm2024, %v1993, %v1499
      %v2027 = vsel %vm2024, %v1994, %v1501
      %v2028 = vsel %vm2024, %v1995, %v1503
      %v2029 = vsel %vm2024, %v1996, %v1505
      %v2030 = vsel %vm2024, %v1997, %v1507
      %v2031 = vsel %vm2024, %v1998, %v1509
      %v2032 = vsel %vm2024, %v1999, %v1511
      %v2033 = vsel %vm2024, %v2000, %v1513
      %v2034 = vsel %vm2024, %v2001, %v1515
      %v2035 = vsel %vm2024, %v2002, %v1517
      %v2036 = vsel %vm2024, %v2003, %v1519
      %v2037 = vsel %vm2024, %v2004, %v1521
      %v2038 = vsel %vm2024, %v2005, %v1523
      %v2039 = vsel %vm2024, %v2006, %v1525
      %v2040 = vsel %vm2024, %v2007, %v1527
      %v2041 = vsel %vm2024, %v2008, %v1529
      %v2042 = vsel %vm2024, %v2009, %v1531
      %v2043 = vsel %vm2024, %v2010, %v1533
      %v2044 = vsel %vm2024, %v2011, %v1535
      %v2045 = vsel %vm2024, %v2012, %v1537
      %v2046 = vsel %vm2024, %v2013, %v1539
      %v2047 = vsel %vm2024, %v2014, %v1541
      %v2048 = vsel %vm2024, %v2015, %v1543
      %v2049 = vsel %vm2024, %v2016, %v1545
      %v2050 = vsel %vm2024, %v2017, %v1547
      %v2051 = vsel %vm2024, %v2018, %v1549
      %v2052 = vsel %vm2024, %v2019, %v1551
      %v2053 = vsel %vm2024, %v2020, %v1553
      %v2054 = vsel %vm2024, %v2021, %v1555
      %v2055 = vsel %vm2024, %v2022, %v1557
      %v2056 = vsel %vm2024, %v2023, %v1559
      %vm2057 = vcmask 195584
      %v2058 = vsel %vm2057, %v2025, %v1595
      %v2059 = vsel %vm2057, %v2026, %v1597
      %v2060 = vsel %vm2057, %v2027, %v1599
      %v2061 = vsel %vm2057, %v2028, %v1601
      %v2062 = vsel %vm2057, %v2029, %v1603
      %v2063 = vsel %vm2057, %v2030, %v1605
      %v2064 = vsel %vm2057, %v2031, %v1607
      %v2065 = vsel %vm2057, %v2032, %v1609
      %v2066 = vsel %vm2057, %v2033, %v1611
      %v2067 = vsel %vm2057, %v2034, %v1613
      %v2068 = vsel %vm2057, %v2035, %v1615
      %v2069 = vsel %vm2057, %v2036, %v1617
      %v2070 = vsel %vm2057, %v2037, %v1619
      %v2071 = vsel %vm2057, %v2038, %v1621
      %v2072 = vsel %vm2057, %v2039, %v1623
      %v2073 = vsel %vm2057, %v2040, %v1625
      %v2074 = vsel %vm2057, %v2041, %v1627
      %v2075 = vsel %vm2057, %v2042, %v1629
      %v2076 = vsel %vm2057, %v2043, %v1631
      %v2077 = vsel %vm2057, %v2044, %v1633
      %v2078 = vsel %vm2057, %v2045, %v1635
      %v2079 = vsel %vm2057, %v2046, %v1637
      %v2080 = vsel %vm2057, %v2047, %v1639
      %v2081 = vsel %vm2057, %v2048, %v1641
      %v2082 = vsel %vm2057, %v2049, %v1643
      %v2083 = vsel %vm2057, %v2050, %v1645
      %v2084 = vsel %vm2057, %v2051, %v1647
      %v2085 = vsel %vm2057, %v2052, %v1649
      %v2086 = vsel %vm2057, %v2053, %v1651
      %v2087 = vsel %vm2057, %v2054, %v1653
      %v2088 = vsel %vm2057, %v2055, %v1655
      %v2089 = vsel %vm2057, %v2056, %v1657
      %vm2090 = vcmask 228352
      %v2091 = vsel %vm2090, %v2058, %v1697
      %v2092 = vsel %vm2090, %v2059, %v1699
      %v2093 = vsel %vm2090, %v2060, %v1701
      %v2094 = vsel %vm2090, %v2061, %v1703
      %v2095 = vsel %vm2090, %v2062, %v1705
      %v2096 = vsel %vm2090, %v2063, %v1707
      %v2097 = vsel %vm2090, %v2064, %v1709
      %v2098 = vsel %vm2090, %v2065, %v1711
      %v2099 = vsel %vm2090, %v2066, %v1713
      %v2100 = vsel %vm2090, %v2067, %v1715
      %v2101 = vsel %vm2090, %v2068, %v1717
      %v2102 = vsel %vm2090, %v2069, %v1719
      %v2103 = vsel %vm2090, %v2070, %v1721
      %v2104 = vsel %vm2090, %v2071, %v1723
      %v2105 = vsel %vm2090, %v2072, %v1725
      %v2106 = vsel %vm2090, %v2073, %v1727
      %v2107 = vsel %vm2090, %v2074, %v1729
      %v2108 = vsel %vm2090, %v2075, %v1731
      %v2109 = vsel %vm2090, %v2076, %v1733
      %v2110 = vsel %vm2090, %v2077, %v1735
      %v2111 = vsel %vm2090, %v2078, %v1737
      %v2112 = vsel %vm2090, %v2079, %v1739
      %v2113 = vsel %vm2090, %v2080, %v1741
      %v2114 = vsel %vm2090, %v2081, %v1743
      %v2115 = vsel %vm2090, %v2082, %v1745
      %v2116 = vsel %vm2090, %v2083, %v1747
      %v2117 = vsel %vm2090, %v2084, %v1749
      %v2118 = vsel %vm2090, %v2085, %v1751
      %v2119 = vsel %vm2090, %v2086, %v1753
      %v2120 = vsel %vm2090, %v2087, %v1755
      %v2121 = vsel %vm2090, %v2088, %v1757
      %v2122 = vsel %vm2090, %v2089, %v1759
      %vm2123 = vcmask 261120
      %v2124 = vsel %vm2123, %v2091, %v1798
      %v2125 = vsel %vm2123, %v2092, %v1800
      %v2126 = vsel %vm2123, %v2093, %v1802
      %v2127 = vsel %vm2123, %v2094, %v1804
      %v2128 = vsel %vm2123, %v2095, %v1806
      %v2129 = vsel %vm2123, %v2096, %v1808
      %v2130 = vsel %vm2123, %v2097, %v1810
      %v2131 = vsel %vm2123, %v2098, %v1812
      %v2132 = vsel %vm2123, %v2099, %v1814
      %v2133 = vsel %vm2123, %v2100, %v1816
      %v2134 = vsel %vm2123, %v2101, %v1818
      %v2135 = vsel %vm2123, %v2102, %v1820
      %v2136 = vsel %vm2123, %v2103, %v1822
      %v2137 = vsel %vm2123, %v2104, %v1824
      %v2138 = vsel %vm2123, %v2105, %v1826
      %v2139 = vsel %vm2123, %v2106, %v1828
      %v2140 = vsel %vm2123, %v2107, %v1830
      %v2141 = vsel %vm2123, %v2108, %v1832
      %v2142 = vsel %vm2123, %v2109, %v1834
      %v2143 = vsel %vm2123, %v2110, %v1836
      %v2144 = vsel %vm2123, %v2111, %v1838
      %v2145 = vsel %vm2123, %v2112, %v1840
      %v2146 = vsel %vm2123, %v2113, %v1842
      %v2147 = vsel %vm2123, %v2114, %v1844
      %v2148 = vsel %vm2123, %v2115, %v1846
      %v2149 = vsel %vm2123, %v2116, %v1848
      %v2150 = vsel %vm2123, %v2117, %v1850
      %v2151 = vsel %vm2123, %v2118, %v1852
      %v2152 = vsel %vm2123, %v2119, %v1854
      %v2153 = vsel %vm2123, %v2120, %v1856
      %v2154 = vsel %vm2123, %v2121, %v1858
      %v2155 = vsel %vm2123, %v2122, %v1860
      %v2156 = vpack.c.bf16 %v2125, %v2124
      %v2157 = vpack.c.bf16 %v2127, %v2126
      %v2158 = vpack.c.bf16 %v2129, %v2128
      %v2159 = vpack.c.bf16 %v2131, %v2130
      %v2160 = vpack.c.bf16 %v2133, %v2132
      %v2161 = vpack.c.bf16 %v2135, %v2134
      %v2162 = vpack.c.bf16 %v2137, %v2136
      %v2163 = vpack.c.bf16 %v2139, %v2138
      %v2164 = vpack.c.bf16 %v2141, %v2140
      %v2165 = vpack.c.bf16 %v2143, %v2142
      %v2166 = vpack.c.bf16 %v2145, %v2144
      %v2167 = vpack.c.bf16 %v2147, %v2146
      %v2168 = vpack.c.bf16 %v2149, %v2148
      %v2169 = vpack.c.bf16 %v2151, %v2150
      %v2170 = vpack.c.bf16 %v2153, %v2152
      %v2171 = vpack.c.bf16 %v2155, %v2154
      %v2177 = vunpack.c.l.b16 %v742
      %v2178 = vunpack.c.l.b16 %v743
      %v2179 = vunpack.c.l.b16 %v744
      %v2180 = vunpack.c.l.b16 %v745
      %v2181 = vunpack.c.l.b16 %v746
      %v2182 = vpack.c.b16 %v2178, %v2177
      %v2183 = vpack.c.b16 %v2180, %v2179
      %v2184 = vpack.c.b16 %v2181, %v2181
      %vm2187 = vcmask 293888
      %v2189 = vsel %vm2187, %v2156, 0
      %v2192 = vsel %vm2187, %v2157, 0
      %v2195 = vsel %vm2187, %v2158, 0
      %v2198 = vsel %vm2187, %v2159, 0
      %v2201 = vsel %vm2187, %v2160, 0
      %v2204 = vsel %vm2187, %v2161, 0
      %v2207 = vsel %vm2187, %v2162, 0
      %v2210 = vsel %vm2187, %v2163, 0
      %v2213 = vsel %vm2187, %v2164, 0
      %v2216 = vsel %vm2187, %v2165, 0
      %v2219 = vsel %vm2187, %v2166, 0
      %v2222 = vsel %vm2187, %v2167, 0
      %v2225 = vsel %vm2187, %v2168, 0
      %v2228 = vsel %vm2187, %v2169, 0
      %v2231 = vsel %vm2187, %v2170, 0
      %v2234 = vsel %vm2187, %v2171, 0
      %vm2236 = vcmask 1041408
      %v2238 = vsel %vm2236, %v2184, 0
      %2240 = vmatprep.subr.bf16.mxu0 0
      %2241 = vmatpush1.bf16.msra.mxu0 %v2182
      %2242 = vmatprep.subr.bf16.mxu0 0
      %2243 = vmatpush1.bf16.msra.mxu0 %v2183
      %2244 = vmatprep.subr.bf16.mxu0 0
      %2245 = vmatpush1.bf16.msra.mxu0 %v2238
      %2246 = vmatprep.subr.bf16.mxu0 0
      %2247 = vmatpush1.bf16.msra.mxu0 0
      %2248 = vmatprep.subr.bf16.mxu0 0
      %2249 = vmatpush1.bf16.msra.mxu0 0
      %2250 = vmatprep.subr.bf16.mxu0 0
      %2251 = vmatpush1.bf16.msra.mxu0 0
      %2252 = vmatprep.subr.bf16.mxu0 0
      %2253 = vmatpush1.bf16.msra.mxu0 0
      %2254 = vmatprep.subr.bf16.mxu0 0
      %2255 = vmatpush1.bf16.msra.mxu0 0
      %2256 = vmatprep.subr.bf16.mxu0 0
      %2257 = vmatpush1.bf16.msra.mxu0 0
      %2258 = vmatprep.subr.bf16.mxu0 0
      %2259 = vmatpush1.bf16.msra.mxu0 0
      %2260 = vmatprep.subr.bf16.mxu0 0
      %2261 = vmatpush1.bf16.msra.mxu0 0
      %2262 = vmatprep.subr.bf16.mxu0 0
      %2263 = vmatpush1.bf16.msra.mxu0 0
      %2264 = vmatprep.subr.bf16.mxu0 0
      %2265 = vmatpush1.bf16.msra.mxu0 0
      %2266 = vmatprep.subr.bf16.mxu0 0
      %2267 = vmatpush1.bf16.msra.mxu0 0
      %2268 = vmatprep.subr.bf16.mxu0 0
      %2269 = vmatpush1.bf16.msra.mxu0 0
      %2270 = vmatprep.subr.bf16.mxu0 0
      %2271 = vmatpush1.bf16.msra.mxu0 0
      %2272 = vmatprep.mubr.bf16.mxu0 0
      %2273 = vmatmul.mubr.bf16.gmra.mrb[0].mxu0 %v2189
      %v2274 = vpop.f32.mrb[0].mxu0
      %v2275 = vadd.f32 0.0, %v2274
      %v2276 = vpop.f32.mrb[0].mxu0
      %v2277 = vpop.f32.mrb[0].mxu0
      %v2278 = vadd.f32 0.0, %v2277
      %v2279 = vpop.f32.mrb[0].mxu0
      %2280 = vmatprep.mubr.bf16.mxu0 0
      %2281 = vmatmul.mubr.bf16.gmra.mrb[0].mxu0 %v2192
      %v2282 = vpop.f32.mrb[0].mxu0
      %v2283 = vadd.f32 0.0, %v2282
      %v2284 = vpop.f32.mrb[0].mxu0
      %v2285 = vpop.f32.mrb[0].mxu0
      %v2286 = vadd.f32 0.0, %v2285
      %v2287 = vpop.f32.mrb[0].mxu0
      %2288 = vmatprep.mubr.bf16.mxu0 0
      %2289 = vmatmul.mubr.bf16.gmra.mrb[0].mxu0 %v2195
      %v2290 = vpop.f32.mrb[0].mxu0
      %v2291 = vadd.f32 0.0, %v2290
      %v2292 = vpop.f32.mrb[0].mxu0
      %v2293 = vpop.f32.mrb[0].mxu0
      %v2294 = vadd.f32 0.0, %v2293
      %v2295 = vpop.f32.mrb[0].mxu0
      %2296 = vmatprep.mubr.bf16.mxu0 0
      %2297 = vmatmul.mubr.bf16.gmra.mrb[0].mxu0 %v2198
      %v2298 = vpop.f32.mrb[0].mxu0
      %v2299 = vadd.f32 0.0, %v2298
      %v2300 = vpop.f32.mrb[0].mxu0
      %v2301 = vpop.f32.mrb[0].mxu0
      %v2302 = vadd.f32 0.0, %v2301
      %v2303 = vpop.f32.mrb[0].mxu0
      %2304 = vmatprep.mubr.bf16.mxu0 0
      %2305 = vmatmul.mubr.bf16.gmra.mrb[0].mxu0 %v2201
      %v2306 = vpop.f32.mrb[0].mxu0
      %v2307 = vadd.f32 0.0, %v2306
      %v2308 = vpop.f32.mrb[0].mxu0
      %v2309 = vpop.f32.mrb[0].mxu0
      %v2310 = vadd.f32 0.0, %v2309
      %v2311 = vpop.f32.mrb[0].mxu0
      %2312 = vmatprep.mubr.bf16.mxu0 0
      %2313 = vmatmul.mubr.bf16.gmra.mrb[0].mxu0 %v2204
      %v2314 = vpop.f32.mrb[0].mxu0
      %v2315 = vadd.f32 0.0, %v2314
      %v2316 = vpop.f32.mrb[0].mxu0
      %v2317 = vpop.f32.mrb[0].mxu0
      %v2318 = vadd.f32 0.0, %v2317
      %v2319 = vpop.f32.mrb[0].mxu0
      %2320 = vmatprep.mubr.bf16.mxu0 0
      %2321 = vmatmul.mubr.bf16.gmra.mrb[0].mxu0 %v2207
      %v2322 = vpop.f32.mrb[0].mxu0
      %v2323 = vadd.f32 0.0, %v2322
      %v2324 = vpop.f32.mrb[0].mxu0
      %v2325 = vpop.f32.mrb[0].mxu0
      %v2326 = vadd.f32 0.0, %v2325
      %v2327 = vpop.f32.mrb[0].mxu0
      %2328 = vmatprep.mubr.bf16.mxu0 0
      %2329 = vmatmul.mubr.bf16.gmra.mrb[0].mxu0 %v2210
      %v2330 = vpop.f32.mrb[0].mxu0
      %v2331 = vadd.f32 0.0, %v2330
      %v2332 = vpop.f32.mrb[0].mxu0
      %v2333 = vpop.f32.mrb[0].mxu0
      %v2334 = vadd.f32 0.0, %v2333
      %v2335 = vpop.f32.mrb[0].mxu0
      %2336 = vmatprep.mubr.bf16.mxu0 0
      %2337 = vmatmul.mubr.bf16.gmra.mrb[0].mxu0 %v2213
      %v2338 = vpop.f32.mrb[0].mxu0
      %v2339 = vadd.f32 0.0, %v2338
      %v2340 = vpop.f32.mrb[0].mxu0
      %v2341 = vpop.f32.mrb[0].mxu0
      %v2342 = vadd.f32 0.0, %v2341
      %v2343 = vpop.f32.mrb[0].mxu0
      %2344 = vmatprep.mubr.bf16.mxu0 0
      %2345 = vmatmul.mubr.bf16.gmra.mrb[0].mxu0 %v2216
      %v2346 = vpop.f32.mrb[0].mxu0
      %v2347 = vadd.f32 0.0, %v2346
      %v2348 = vpop.f32.mrb[0].mxu0
      %v2349 = vpop.f32.mrb[0].mxu0
      %v2350 = vadd.f32 0.0, %v2349
      %v2351 = vpop.f32.mrb[0].mxu0
      %2352 = vmatprep.mubr.bf16.mxu0 0
      %2353 = vmatmul.mubr.bf16.gmra.mrb[0].mxu0 %v2219
      %v2354 = vpop.f32.mrb[0].mxu0
      %v2355 = vadd.f32 0.0, %v2354
      %v2356 = vpop.f32.mrb[0].mxu0
      %v2357 = vpop.f32.mrb[0].mxu0
      %v2358 = vadd.f32 0.0, %v2357
      %v2359 = vpop.f32.mrb[0].mxu0
      %2360 = vmatprep.mubr.bf16.mxu0 0
      %2361 = vmatmul.mubr.bf16.gmra.mrb[0].mxu0 %v2222
      %v2362 = vpop.f32.mrb[0].mxu0
      %v2363 = vadd.f32 0.0, %v2362
      %v2364 = vpop.f32.mrb[0].mxu0
      %v2365 = vpop.f32.mrb[0].mxu0
      %v2366 = vadd.f32 0.0, %v2365
      %v2367 = vpop.f32.mrb[0].mxu0
      %2368 = vmatprep.mubr.bf16.mxu0 0
      %2369 = vmatmul.mubr.bf16.gmra.mrb[0].mxu0 %v2225
      %v2370 = vpop.f32.mrb[0].mxu0
      %v2371 = vadd.f32 0.0, %v2370
      %v2372 = vpop.f32.mrb[0].mxu0
      %v2373 = vpop.f32.mrb[0].mxu0
      %v2374 = vadd.f32 0.0, %v2373
      %v2375 = vpop.f32.mrb[0].mxu0
      %2376 = vmatprep.mubr.bf16.mxu0 0
      %2377 = vmatmul.mubr.bf16.gmra.mrb[0].mxu0 %v2228
      %v2378 = vpop.f32.mrb[0].mxu0
      %v2379 = vadd.f32 0.0, %v2378
      %v2380 = vpop.f32.mrb[0].mxu0
      %v2381 = vpop.f32.mrb[0].mxu0
      %v2382 = vadd.f32 0.0, %v2381
      %v2383 = vpop.f32.mrb[0].mxu0
      %2384 = vmatprep.mubr.bf16.mxu0 0
      %2385 = vmatmul.mubr.bf16.gmra.mrb[0].mxu0 %v2231
      %v2386 = vpop.f32.mrb[0].mxu0
      %v2387 = vadd.f32 0.0, %v2386
      %v2388 = vpop.f32.mrb[0].mxu0
      %v2389 = vpop.f32.mrb[0].mxu0
      %v2390 = vadd.f32 0.0, %v2389
      %v2391 = vpop.f32.mrb[0].mxu0
      %2392 = vmatprep.mubr.bf16.mxu0 0
      %2393 = vmatmul.mubr.bf16.gmra.mrb[0].mxu0 %v2234
      %v2394 = vpop.f32.mrb[0].mxu0
      %v2395 = vadd.f32 0.0, %v2394
      %v2396 = vpop.f32.mrb[0].mxu0
      %v2397 = vpop.f32.mrb[0].mxu0
      %v2398 = vadd.f32 0.0, %v2397
      %v2399 = vpop.f32.mrb[0].mxu0
      %2400 = vdwg.mxu0
      %v2401 = vsel %vm258, %v2275, 0.0
      %v2402 = vsel %vm258, %v2278, 0.0
      %v2403 = vadd.f32 %v2401, %v2402
      %v2404 = vrot.slane %v2403, 4
      %v2405 = vadd.f32 %v2403, %v2404
      %v2406 = vrot.slane %v2405, 2
      %v2407 = vadd.f32 %v2405, %v2406
      %v2408 = vrot.slane %v2407, 1
      %v2409 = vadd.f32 %v2407, %v2408
      %v2410 = vsel %vm258, %v2283, 0.0
      %v2411 = vsel %vm258, %v2286, 0.0
      %v2412 = vadd.f32 %v2410, %v2411
      %v2413 = vrot.slane %v2412, 4
      %v2414 = vadd.f32 %v2412, %v2413
      %v2415 = vrot.slane %v2414, 2
      %v2416 = vadd.f32 %v2414, %v2415
      %v2417 = vrot.slane %v2416, 1
      %v2418 = vadd.f32 %v2416, %v2417
      %v2419 = vsel %vm258, %v2291, 0.0
      %v2420 = vsel %vm258, %v2294, 0.0
      %v2421 = vadd.f32 %v2419, %v2420
      %v2422 = vrot.slane %v2421, 4
      %v2423 = vadd.f32 %v2421, %v2422
      %v2424 = vrot.slane %v2423, 2
      %v2425 = vadd.f32 %v2423, %v2424
      %v2426 = vrot.slane %v2425, 1
      %v2427 = vadd.f32 %v2425, %v2426
      %v2428 = vsel %vm258, %v2299, 0.0
      %v2429 = vsel %vm258, %v2302, 0.0
      %v2430 = vadd.f32 %v2428, %v2429
      %v2431 = vrot.slane %v2430, 4
      %v2432 = vadd.f32 %v2430, %v2431
      %v2433 = vrot.slane %v2432, 2
      %v2434 = vadd.f32 %v2432, %v2433
      %v2435 = vrot.slane %v2434, 1
      %v2436 = vadd.f32 %v2434, %v2435
      %v2437 = vsel %vm258, %v2307, 0.0
      %v2438 = vsel %vm258, %v2310, 0.0
      %v2439 = vadd.f32 %v2437, %v2438
      %v2440 = vrot.slane %v2439, 4
      %v2441 = vadd.f32 %v2439, %v2440
      %v2442 = vrot.slane %v2441, 2
      %v2443 = vadd.f32 %v2441, %v2442
      %v2444 = vrot.slane %v2443, 1
      %v2445 = vadd.f32 %v2443, %v2444
      %v2446 = vsel %vm258, %v2315, 0.0
      %v2447 = vsel %vm258, %v2318, 0.0
      %v2448 = vadd.f32 %v2446, %v2447
      %v2449 = vrot.slane %v2448, 4
      %v2450 = vadd.f32 %v2448, %v2449
      %v2451 = vrot.slane %v2450, 2
      %v2452 = vadd.f32 %v2450, %v2451
      %v2453 = vrot.slane %v2452, 1
      %v2454 = vadd.f32 %v2452, %v2453
      %v2455 = vsel %vm258, %v2323, 0.0
      %v2456 = vsel %vm258, %v2326, 0.0
      %v2457 = vadd.f32 %v2455, %v2456
      %v2458 = vrot.slane %v2457, 4
      %v2459 = vadd.f32 %v2457, %v2458
      %v2460 = vrot.slane %v2459, 2
      %v2461 = vadd.f32 %v2459, %v2460
      %v2462 = vrot.slane %v2461, 1
      %v2463 = vadd.f32 %v2461, %v2462
      %v2464 = vsel %vm258, %v2331, 0.0
      %v2465 = vsel %vm258, %v2334, 0.0
      %v2466 = vadd.f32 %v2464, %v2465
      %v2467 = vrot.slane %v2466, 4
      %v2468 = vadd.f32 %v2466, %v2467
      %v2469 = vrot.slane %v2468, 2
      %v2470 = vadd.f32 %v2468, %v2469
      %v2471 = vrot.slane %v2470, 1
      %v2472 = vadd.f32 %v2470, %v2471
      %v2473 = vsel %vm258, %v2339, 0.0
      %v2474 = vsel %vm258, %v2342, 0.0
      %v2475 = vadd.f32 %v2473, %v2474
      %v2476 = vrot.slane %v2475, 4
      %v2477 = vadd.f32 %v2475, %v2476
      %v2478 = vrot.slane %v2477, 2
      %v2479 = vadd.f32 %v2477, %v2478
      %v2480 = vrot.slane %v2479, 1
      %v2481 = vadd.f32 %v2479, %v2480
      %v2482 = vsel %vm258, %v2347, 0.0
      %v2483 = vsel %vm258, %v2350, 0.0
      %v2484 = vadd.f32 %v2482, %v2483
      %v2485 = vrot.slane %v2484, 4
      %v2486 = vadd.f32 %v2484, %v2485
      %v2487 = vrot.slane %v2486, 2
      %v2488 = vadd.f32 %v2486, %v2487
      %v2489 = vrot.slane %v2488, 1
      %v2490 = vadd.f32 %v2488, %v2489
      %v2491 = vsel %vm258, %v2355, 0.0
      %v2492 = vsel %vm258, %v2358, 0.0
      %v2493 = vadd.f32 %v2491, %v2492
      %v2494 = vrot.slane %v2493, 4
      %v2495 = vadd.f32 %v2493, %v2494
      %v2496 = vrot.slane %v2495, 2
      %v2497 = vadd.f32 %v2495, %v2496
      %v2498 = vrot.slane %v2497, 1
      %v2499 = vadd.f32 %v2497, %v2498
      %v2500 = vsel %vm258, %v2363, 0.0
      %v2501 = vsel %vm258, %v2366, 0.0
      %v2502 = vadd.f32 %v2500, %v2501
      %v2503 = vrot.slane %v2502, 4
      %v2504 = vadd.f32 %v2502, %v2503
      %v2505 = vrot.slane %v2504, 2
      %v2506 = vadd.f32 %v2504, %v2505
      %v2507 = vrot.slane %v2506, 1
      %v2508 = vadd.f32 %v2506, %v2507
      %v2509 = vsel %vm258, %v2371, 0.0
      %v2510 = vsel %vm258, %v2374, 0.0
      %v2511 = vadd.f32 %v2509, %v2510
      %v2512 = vrot.slane %v2511, 4
      %v2513 = vadd.f32 %v2511, %v2512
      %v2514 = vrot.slane %v2513, 2
      %v2515 = vadd.f32 %v2513, %v2514
      %v2516 = vrot.slane %v2515, 1
      %v2517 = vadd.f32 %v2515, %v2516
      %v2518 = vsel %vm258, %v2379, 0.0
      %v2519 = vsel %vm258, %v2382, 0.0
      %v2520 = vadd.f32 %v2518, %v2519
      %v2521 = vrot.slane %v2520, 4
      %v2522 = vadd.f32 %v2520, %v2521
      %v2523 = vrot.slane %v2522, 2
      %v2524 = vadd.f32 %v2522, %v2523
      %v2525 = vrot.slane %v2524, 1
      %v2526 = vadd.f32 %v2524, %v2525
      %v2527 = vsel %vm258, %v2387, 0.0
      %v2528 = vsel %vm258, %v2390, 0.0
      %v2529 = vadd.f32 %v2527, %v2528
      %v2530 = vrot.slane %v2529, 4
      %v2531 = vadd.f32 %v2529, %v2530
      %v2532 = vrot.slane %v2531, 2
      %v2533 = vadd.f32 %v2531, %v2532
      %v2534 = vrot.slane %v2533, 1
      %v2535 = vadd.f32 %v2533, %v2534
      %v2536 = vsel %vm258, %v2395, 0.0
      %v2537 = vsel %vm258, %v2398, 0.0
      %v2538 = vadd.f32 %v2536, %v2537
      %v2539 = vrot.slane %v2538, 4
      %v2540 = vadd.f32 %v2538, %v2539
      %v2541 = vrot.slane %v2540, 2
      %v2542 = vadd.f32 %v2540, %v2541
      %v2543 = vrot.slane %v2542, 1
      %v2544 = vadd.f32 %v2542, %v2543
      %v2545 = vsel %vm258, %v2409, 0.0
      %v2546 = vsel %vm258, %v2418, 0.0
      %v2547 = vadd.f32 %v2545, %v2546
      %v2548 = vsel %vm258, %v2427, 0.0
      %v2549 = vadd.f32 %v2547, %v2548
      %v2550 = vsel %vm258, %v2436, 0.0
      %v2551 = vadd.f32 %v2549, %v2550
      %v2552 = vsel %vm258, %v2445, 0.0
      %v2553 = vadd.f32 %v2551, %v2552
      %v2554 = vsel %vm258, %v2454, 0.0
      %v2555 = vadd.f32 %v2553, %v2554
      %v2556 = vsel %vm258, %v2463, 0.0
      %v2557 = vadd.f32 %v2555, %v2556
      %v2558 = vsel %vm258, %v2472, 0.0
      %v2559 = vadd.f32 %v2557, %v2558
      %v2560 = vsel %vm258, %v2481, 0.0
      %v2561 = vadd.f32 %v2559, %v2560
      %v2562 = vsel %vm258, %v2490, 0.0
      %v2563 = vadd.f32 %v2561, %v2562
      %v2564 = vsel %vm258, %v2499, 0.0
      %v2565 = vadd.f32 %v2563, %v2564
      %v2566 = vsel %vm258, %v2508, 0.0
      %v2567 = vadd.f32 %v2565, %v2566
      %v2568 = vsel %vm258, %v2517, 0.0
      %v2569 = vadd.f32 %v2567, %v2568
      %v2570 = vsel %vm258, %v2526, 0.0
      %v2571 = vadd.f32 %v2569, %v2570
      %v2572 = vsel %vm258, %v2535, 0.0
      %v2573 = vadd.f32 %v2571, %v2572
      %v2574 = vsel %vm258, %v2544, 0.0
      %v2575 = vadd.f32 %v2573, %v2574
      %v2576 = vmul.f32 %v2575, %v434
      %v2577 = vsub.f32 %v2275, %v2576
      %v2578 = vsub.f32 %v2278, %v2576
      %v2579 = vsub.f32 %v2283, %v2576
      %v2580 = vsub.f32 %v2286, %v2576
      %v2581 = vsub.f32 %v2291, %v2576
      %v2582 = vsub.f32 %v2294, %v2576
      %v2583 = vsub.f32 %v2299, %v2576
      %v2584 = vsub.f32 %v2302, %v2576
      %v2585 = vsub.f32 %v2307, %v2576
      %v2586 = vsub.f32 %v2310, %v2576
      %v2587 = vsub.f32 %v2315, %v2576
      %v2588 = vsub.f32 %v2318, %v2576
      %v2589 = vsub.f32 %v2323, %v2576
      %v2590 = vsub.f32 %v2326, %v2576
      %v2591 = vsub.f32 %v2331, %v2576
      %v2592 = vsub.f32 %v2334, %v2576
      %v2593 = vsub.f32 %v2339, %v2576
      %v2594 = vsub.f32 %v2342, %v2576
      %v2595 = vsub.f32 %v2347, %v2576
      %v2596 = vsub.f32 %v2350, %v2576
      %v2597 = vsub.f32 %v2355, %v2576
      %v2598 = vsub.f32 %v2358, %v2576
      %v2599 = vsub.f32 %v2363, %v2576
      %v2600 = vsub.f32 %v2366, %v2576
      %v2601 = vsub.f32 %v2371, %v2576
      %v2602 = vsub.f32 %v2374, %v2576
      %v2603 = vsub.f32 %v2379, %v2576
      %v2604 = vsub.f32 %v2382, %v2576
      %v2605 = vsub.f32 %v2387, %v2576
      %v2606 = vsub.f32 %v2390, %v2576
      %v2607 = vsub.f32 %v2395, %v2576
      %v2608 = vsub.f32 %v2398, %v2576
      %v2609 = vmul.f32 %v2577, %v2577
      %v2610 = vmul.f32 %v2578, %v2578
      %v2611 = vmul.f32 %v2579, %v2579
      %v2612 = vmul.f32 %v2580, %v2580
      %v2613 = vmul.f32 %v2581, %v2581
      %v2614 = vmul.f32 %v2582, %v2582
      %v2615 = vmul.f32 %v2583, %v2583
      %v2616 = vmul.f32 %v2584, %v2584
      %v2617 = vmul.f32 %v2585, %v2585
      %v2618 = vmul.f32 %v2586, %v2586
      %v2619 = vmul.f32 %v2587, %v2587
      %v2620 = vmul.f32 %v2588, %v2588
      %v2621 = vmul.f32 %v2589, %v2589
      %v2622 = vmul.f32 %v2590, %v2590
      %v2623 = vmul.f32 %v2591, %v2591
      %v2624 = vmul.f32 %v2592, %v2592
      %v2625 = vmul.f32 %v2593, %v2593
      %v2626 = vmul.f32 %v2594, %v2594
      %v2627 = vmul.f32 %v2595, %v2595
      %v2628 = vmul.f32 %v2596, %v2596
      %v2629 = vmul.f32 %v2597, %v2597
      %v2630 = vmul.f32 %v2598, %v2598
      %v2631 = vmul.f32 %v2599, %v2599
      %v2632 = vmul.f32 %v2600, %v2600
      %v2633 = vmul.f32 %v2601, %v2601
      %v2634 = vmul.f32 %v2602, %v2602
      %v2635 = vmul.f32 %v2603, %v2603
      %v2636 = vmul.f32 %v2604, %v2604
      %v2637 = vmul.f32 %v2605, %v2605
      %v2638 = vmul.f32 %v2606, %v2606
      %v2639 = vmul.f32 %v2607, %v2607
      %v2640 = vmul.f32 %v2608, %v2608
      %v2641 = vsel %vm258, %v2609, 0.0
      %v2642 = vsel %vm258, %v2610, 0.0
      %v2643 = vadd.f32 %v2641, %v2642
      %v2644 = vrot.slane %v2643, 4
      %v2645 = vadd.f32 %v2643, %v2644
      %v2646 = vrot.slane %v2645, 2
      %v2647 = vadd.f32 %v2645, %v2646
      %v2648 = vrot.slane %v2647, 1
      %v2649 = vadd.f32 %v2647, %v2648
      %v2650 = vsel %vm258, %v2611, 0.0
      %v2651 = vsel %vm258, %v2612, 0.0
      %v2652 = vadd.f32 %v2650, %v2651
      %v2653 = vrot.slane %v2652, 4
      %v2654 = vadd.f32 %v2652, %v2653
      %v2655 = vrot.slane %v2654, 2
      %v2656 = vadd.f32 %v2654, %v2655
      %v2657 = vrot.slane %v2656, 1
      %v2658 = vadd.f32 %v2656, %v2657
      %v2659 = vsel %vm258, %v2613, 0.0
      %v2660 = vsel %vm258, %v2614, 0.0
      %v2661 = vadd.f32 %v2659, %v2660
      %v2662 = vrot.slane %v2661, 4
      %v2663 = vadd.f32 %v2661, %v2662
      %v2664 = vrot.slane %v2663, 2
      %v2665 = vadd.f32 %v2663, %v2664
      %v2666 = vrot.slane %v2665, 1
      %v2667 = vadd.f32 %v2665, %v2666
      %v2668 = vsel %vm258, %v2615, 0.0
      %v2669 = vsel %vm258, %v2616, 0.0
      %v2670 = vadd.f32 %v2668, %v2669
      %v2671 = vrot.slane %v2670, 4
      %v2672 = vadd.f32 %v2670, %v2671
      %v2673 = vrot.slane %v2672, 2
      %v2674 = vadd.f32 %v2672, %v2673
      %v2675 = vrot.slane %v2674, 1
      %v2676 = vadd.f32 %v2674, %v2675
      %v2677 = vsel %vm258, %v2617, 0.0
      %v2678 = vsel %vm258, %v2618, 0.0
      %v2679 = vadd.f32 %v2677, %v2678
      %v2680 = vrot.slane %v2679, 4
      %v2681 = vadd.f32 %v2679, %v2680
      %v2682 = vrot.slane %v2681, 2
      %v2683 = vadd.f32 %v2681, %v2682
      %v2684 = vrot.slane %v2683, 1
      %v2685 = vadd.f32 %v2683, %v2684
      %v2686 = vsel %vm258, %v2619, 0.0
      %v2687 = vsel %vm258, %v2620, 0.0
      %v2688 = vadd.f32 %v2686, %v2687
      %v2689 = vrot.slane %v2688, 4
      %v2690 = vadd.f32 %v2688, %v2689
      %v2691 = vrot.slane %v2690, 2
      %v2692 = vadd.f32 %v2690, %v2691
      %v2693 = vrot.slane %v2692, 1
      %v2694 = vadd.f32 %v2692, %v2693
      %v2695 = vsel %vm258, %v2621, 0.0
      %v2696 = vsel %vm258, %v2622, 0.0
      %v2697 = vadd.f32 %v2695, %v2696
      %v2698 = vrot.slane %v2697, 4
      %v2699 = vadd.f32 %v2697, %v2698
      %v2700 = vrot.slane %v2699, 2
      %v2701 = vadd.f32 %v2699, %v2700
      %v2702 = vrot.slane %v2701, 1
      %v2703 = vadd.f32 %v2701, %v2702
      %v2704 = vsel %vm258, %v2623, 0.0
      %v2705 = vsel %vm258, %v2624, 0.0
      %v2706 = vadd.f32 %v2704, %v2705
      %v2707 = vrot.slane %v2706, 4
      %v2708 = vadd.f32 %v2706, %v2707
      %v2709 = vrot.slane %v2708, 2
      %v2710 = vadd.f32 %v2708, %v2709
      %v2711 = vrot.slane %v2710, 1
      %v2712 = vadd.f32 %v2710, %v2711
      %v2713 = vsel %vm258, %v2625, 0.0
      %v2714 = vsel %vm258, %v2626, 0.0
      %v2715 = vadd.f32 %v2713, %v2714
      %v2716 = vrot.slane %v2715, 4
      %v2717 = vadd.f32 %v2715, %v2716
      %v2718 = vrot.slane %v2717, 2
      %v2719 = vadd.f32 %v2717, %v2718
      %v2720 = vrot.slane %v2719, 1
      %v2721 = vadd.f32 %v2719, %v2720
      %v2722 = vsel %vm258, %v2627, 0.0
      %v2723 = vsel %vm258, %v2628, 0.0
      %v2724 = vadd.f32 %v2722, %v2723
      %v2725 = vrot.slane %v2724, 4
      %v2726 = vadd.f32 %v2724, %v2725
      %v2727 = vrot.slane %v2726, 2
      %v2728 = vadd.f32 %v2726, %v2727
      %v2729 = vrot.slane %v2728, 1
      %v2730 = vadd.f32 %v2728, %v2729
      %v2731 = vsel %vm258, %v2629, 0.0
      %v2732 = vsel %vm258, %v2630, 0.0
      %v2733 = vadd.f32 %v2731, %v2732
      %v2734 = vrot.slane %v2733, 4
      %v2735 = vadd.f32 %v2733, %v2734
      %v2736 = vrot.slane %v2735, 2
      %v2737 = vadd.f32 %v2735, %v2736
      %v2738 = vrot.slane %v2737, 1
      %v2739 = vadd.f32 %v2737, %v2738
      %v2740 = vsel %vm258, %v2631, 0.0
      %v2741 = vsel %vm258, %v2632, 0.0
      %v2742 = vadd.f32 %v2740, %v2741
      %v2743 = vrot.slane %v2742, 4
      %v2744 = vadd.f32 %v2742, %v2743
      %v2745 = vrot.slane %v2744, 2
      %v2746 = vadd.f32 %v2744, %v2745
      %v2747 = vrot.slane %v2746, 1
      %v2748 = vadd.f32 %v2746, %v2747
      %v2749 = vsel %vm258, %v2633, 0.0
      %v2750 = vsel %vm258, %v2634, 0.0
      %v2751 = vadd.f32 %v2749, %v2750
      %v2752 = vrot.slane %v2751, 4
      %v2753 = vadd.f32 %v2751, %v2752
      %v2754 = vrot.slane %v2753, 2
      %v2755 = vadd.f32 %v2753, %v2754
      %v2756 = vrot.slane %v2755, 1
      %v2757 = vadd.f32 %v2755, %v2756
      %v2758 = vsel %vm258, %v2635, 0.0
      %v2759 = vsel %vm258, %v2636, 0.0
      %v2760 = vadd.f32 %v2758, %v2759
      %v2761 = vrot.slane %v2760, 4
      %v2762 = vadd.f32 %v2760, %v2761
      %v2763 = vrot.slane %v2762, 2
      %v2764 = vadd.f32 %v2762, %v2763
      %v2765 = vrot.slane %v2764, 1
      %v2766 = vadd.f32 %v2764, %v2765
      %v2767 = vsel %vm258, %v2637, 0.0
      %v2768 = vsel %vm258, %v2638, 0.0
      %v2769 = vadd.f32 %v2767, %v2768
      %v2770 = vrot.slane %v2769, 4
      %v2771 = vadd.f32 %v2769, %v2770
      %v2772 = vrot.slane %v2771, 2
      %v2773 = vadd.f32 %v2771, %v2772
      %v2774 = vrot.slane %v2773, 1
      %v2775 = vadd.f32 %v2773, %v2774
      %v2776 = vsel %vm258, %v2639, 0.0
      %v2777 = vsel %vm258, %v2640, 0.0
      %v2778 = vadd.f32 %v2776, %v2777
      %v2779 = vrot.slane %v2778, 4
      %v2780 = vadd.f32 %v2778, %v2779
      %v2781 = vrot.slane %v2780, 2
      %v2782 = vadd.f32 %v2780, %v2781
      %v2783 = vrot.slane %v2782, 1
      %v2784 = vadd.f32 %v2782, %v2783
      %v2785 = vsel %vm258, %v2649, 0.0
      %v2786 = vsel %vm258, %v2658, 0.0
      %v2787 = vadd.f32 %v2785, %v2786
      %v2788 = vsel %vm258, %v2667, 0.0
      %v2789 = vadd.f32 %v2787, %v2788
      %v2790 = vsel %vm258, %v2676, 0.0
      %v2791 = vadd.f32 %v2789, %v2790
      %v2792 = vsel %vm258, %v2685, 0.0
      %v2793 = vadd.f32 %v2791, %v2792
      %v2794 = vsel %vm258, %v2694, 0.0
      %v2795 = vadd.f32 %v2793, %v2794
      %v2796 = vsel %vm258, %v2703, 0.0
      %v2797 = vadd.f32 %v2795, %v2796
      %v2798 = vsel %vm258, %v2712, 0.0
      %v2799 = vadd.f32 %v2797, %v2798
      %v2800 = vsel %vm258, %v2721, 0.0
      %v2801 = vadd.f32 %v2799, %v2800
      %v2802 = vsel %vm258, %v2730, 0.0
      %v2803 = vadd.f32 %v2801, %v2802
      %v2804 = vsel %vm258, %v2739, 0.0
      %v2805 = vadd.f32 %v2803, %v2804
      %v2806 = vsel %vm258, %v2748, 0.0
      %v2807 = vadd.f32 %v2805, %v2806
      %v2808 = vsel %vm258, %v2757, 0.0
      %v2809 = vadd.f32 %v2807, %v2808
      %v2810 = vsel %vm258, %v2766, 0.0
      %v2811 = vadd.f32 %v2809, %v2810
      %v2812 = vsel %vm258, %v2775, 0.0
      %v2813 = vadd.f32 %v2811, %v2812
      %v2814 = vsel %vm258, %v2784, 0.0
      %v2815 = vadd.f32 %v2813, %v2814
      %v2816 = vmul.f32 %v2815, %v434
      %v2817 = vadd.f32 %v2816, 1e-05
      %v2818 = vrsqrt.pop %v2817
      %v2819 = vmul.f32 %v2577, %v2818
      %v2820 = vmul.f32 %v2578, %v2818
      %v2821 = vmul.f32 %v2579, %v2818
      %v2822 = vmul.f32 %v2580, %v2818
      %v2823 = vmul.f32 %v2581, %v2818
      %v2824 = vmul.f32 %v2582, %v2818
      %v2825 = vmul.f32 %v2583, %v2818
      %v2826 = vmul.f32 %v2584, %v2818
      %v2827 = vmul.f32 %v2585, %v2818
      %v2828 = vmul.f32 %v2586, %v2818
      %v2829 = vmul.f32 %v2587, %v2818
      %v2830 = vmul.f32 %v2588, %v2818
      %v2831 = vmul.f32 %v2589, %v2818
      %v2832 = vmul.f32 %v2590, %v2818
      %v2833 = vmul.f32 %v2591, %v2818
      %v2834 = vmul.f32 %v2592, %v2818
      %v2835 = vmul.f32 %v2593, %v2818
      %v2836 = vmul.f32 %v2594, %v2818
      %v2837 = vmul.f32 %v2595, %v2818
      %v2838 = vmul.f32 %v2596, %v2818
      %v2839 = vmul.f32 %v2597, %v2818
      %v2840 = vmul.f32 %v2598, %v2818
      %v2841 = vmul.f32 %v2599, %v2818
      %v2842 = vmul.f32 %v2600, %v2818
      %v2843 = vmul.f32 %v2601, %v2818
      %v2844 = vmul.f32 %v2602, %v2818
      %v2845 = vmul.f32 %v2603, %v2818
      %v2846 = vmul.f32 %v2604, %v2818
      %v2847 = vmul.f32 %v2605, %v2818
      %v2848 = vmul.f32 %v2606, %v2818
      %v2849 = vmul.f32 %v2607, %v2818
      %v2850 = vmul.f32 %v2608, %v2818
      %v2851 = vmax.f32 %v2819, 0.0
      %v2852 = vmax.f32 %v2820, 0.0
      %v2853 = vmax.f32 %v2821, 0.0
      %v2854 = vmax.f32 %v2822, 0.0
      %v2855 = vmax.f32 %v2823, 0.0
      %v2856 = vmax.f32 %v2824, 0.0
      %v2857 = vmax.f32 %v2825, 0.0
      %v2858 = vmax.f32 %v2826, 0.0
      %v2859 = vmax.f32 %v2827, 0.0
      %v2860 = vmax.f32 %v2828, 0.0
      %v2861 = vmax.f32 %v2829, 0.0
      %v2862 = vmax.f32 %v2830, 0.0
      %v2863 = vmax.f32 %v2831, 0.0
      %v2864 = vmax.f32 %v2832, 0.0
      %v2865 = vmax.f32 %v2833, 0.0
      %v2866 = vmax.f32 %v2834, 0.0
      %v2867 = vmax.f32 %v2835, 0.0
      %v2868 = vmax.f32 %v2836, 0.0
      %v2869 = vmax.f32 %v2837, 0.0
      %v2870 = vmax.f32 %v2838, 0.0
      %v2871 = vmax.f32 %v2839, 0.0
      %v2872 = vmax.f32 %v2840, 0.0
      %v2873 = vmax.f32 %v2841, 0.0
      %v2874 = vmax.f32 %v2842, 0.0
      %v2875 = vmax.f32 %v2843, 0.0
      %v2876 = vmax.f32 %v2844, 0.0
      %v2877 = vmax.f32 %v2845, 0.0
      %v2878 = vmax.f32 %v2846, 0.0
      %v2879 = vmax.f32 %v2847, 0.0
      %v2880 = vmax.f32 %v2848, 0.0
      %v2881 = vmax.f32 %v2849, 0.0
      %v2882 = vmax.f32 %v2850, 0.0
      %v2883 = vld [vmem:[%s2] sm:$0xf]
      %v2884 = vld [vmem:[%s2 + $0x4] sm:$0xf]
      %v2885 = vld [vmem:[%s2 + $0x8] sm:$0xf]
      %v2886 = vld [vmem:[%s2 + $0xc] sm:$0xf]
      %v2887 = vld [vmem:[%s2 + $0x10] sm:$0x3]
      %2888 = vst.msk [vmem:[#allocation3] sm:$0xff] %vm258, 0.0
      %2889 = vst.msk [vmem:[#allocation3 + $0x8] sm:$0xff] %vm258, 0.0
      %2890 = vst.msk [vmem:[#allocation3 + $0x10] sm:$0x3] %vm749, 0.0
      %2891 = vst.msk [vmem:[#allocation3 + $0x18] sm:$0xff] %vm258, 0.0
      %2892 = vst.msk [vmem:[#allocation3 + $0x20] sm:$0xff] %vm258, 0.0
      %2893 = vst.msk [vmem:[#allocation3 + $0x28] sm:$0x3] %vm749, 0.0
      %2894 = vst.msk [vmem:[#allocation3 + $0x30] sm:$0xff] %vm258, 0.0
      %2895 = vst.msk [vmem:[#allocation3 + $0x38] sm:$0xff] %vm258, 0.0
      %2896 = vst.msk [vmem:[#allocation3 + $0x40] sm:$0x3] %vm749, 0.0
      %2897 = vst.msk [vmem:[#allocation3 + $0x48] sm:$0xff] %vm258, 0.0
      %2898 = vst.msk [vmem:[#allocation3 + $0x50] sm:$0xff] %vm258, 0.0
      %2899 = vst.msk [vmem:[#allocation3 + $0x58] sm:$0x3] %vm749, 0.0
      %2900 = vst.msk [vmem:[#allocation3 + $0x60] sm:$0xff] %vm258, 0.0
      %2901 = vst.msk [vmem:[#allocation3 + $0x68] sm:$0xff] %vm258, 0.0
      %2902 = vst.msk [vmem:[#allocation3 + $0x70] sm:$0x3] %vm749, 0.0
      %2903 = vst.msk [vmem:[#allocation3 + $0x78] sm:$0xff] %vm258, 0.0
      %2904 = vst.msk [vmem:[#allocation3 + $0x80] sm:$0xff] %vm258, 0.0
      %2905 = vst.msk [vmem:[#allocation3 + $0x88] sm:$0x3] %vm749, 0.0
      %2906 = vst.msk [vmem:[#allocation3 + $0x90] sm:$0xff] %vm258, 0.0
      %2907 = vst.msk [vmem:[#allocation3 + $0x98] sm:$0xff] %vm258, 0.0
      %2908 = vst.msk [vmem:[#allocation3 + $0xa0] sm:$0x3] %vm749, 0.0
      %2909 = vst.msk [vmem:[#allocation3 + $0xa8] sm:$0xff] %vm258, 0.0
      %2910 = vst.msk [vmem:[#allocation3 + $0xb0] sm:$0xff] %vm258, 0.0
      %2911 = vst.msk [vmem:[#allocation3 + $0xb8] sm:$0x3] %vm749, 0.0
      %2912 = vst.msk [vmem:[#allocation3 + $0xc0] sm:$0xff] %vm258, 0.0
      %2913 = vst.msk [vmem:[#allocation3 + $0xc8] sm:$0xff] %vm258, 0.0
      %2914 = vst.msk [vmem:[#allocation3 + $0xd0] sm:$0x3] %vm749, 0.0
      %2915 = vst.msk [vmem:[#allocation3 + $0xd8] sm:$0xff] %vm258, 0.0
      %2916 = vst.msk [vmem:[#allocation3 + $0xe0] sm:$0xff] %vm258, 0.0
      %2917 = vst.msk [vmem:[#allocation3 + $0xe8] sm:$0x3] %vm749, 0.0
      %2918 = vst.msk [vmem:[#allocation3 + $0xf0] sm:$0xff] %vm258, 0.0
      %2919 = vst.msk [vmem:[#allocation3 + $0xf8] sm:$0xff] %vm258, 0.0
      %2920 = vst.msk [vmem:[#allocation3 + $0x100] sm:$0x3] %vm749, 0.0
      %2921 = vst.msk [vmem:[#allocation3 + $0x108] sm:$0xff] %vm258, 0.0
      %2922 = vst.msk [vmem:[#allocation3 + $0x110] sm:$0xff] %vm258, 0.0
      %2923 = vst.msk [vmem:[#allocation3 + $0x118] sm:$0x3] %vm749, 0.0
      %2924 = vst.msk [vmem:[#allocation3 + $0x120] sm:$0xff] %vm258, 0.0
      %2925 = vst.msk [vmem:[#allocation3 + $0x128] sm:$0xff] %vm258, 0.0
      %2926 = vst.msk [vmem:[#allocation3 + $0x130] sm:$0x3] %vm749, 0.0
      %2927 = vst.msk [vmem:[#allocation3 + $0x138] sm:$0xff] %vm258, 0.0
      %2928 = vst.msk [vmem:[#allocation3 + $0x140] sm:$0xff] %vm258, 0.0
      %2929 = vst.msk [vmem:[#allocation3 + $0x148] sm:$0x3] %vm749, 0.0
      %2930 = vst.msk [vmem:[#allocation3 + $0x150] sm:$0xff] %vm258, 0.0
      %2931 = vst.msk [vmem:[#allocation3 + $0x158] sm:$0xff] %vm258, 0.0
      %2932 = vst.msk [vmem:[#allocation3 + $0x160] sm:$0x3] %vm749, 0.0
      %2933 = vst.msk [vmem:[#allocation3 + $0x168] sm:$0xff] %vm258, 0.0
      %2934 = vst.msk [vmem:[#allocation3 + $0x170] sm:$0xff] %vm258, 0.0
      %2935 = vst.msk [vmem:[#allocation3 + $0x178] sm:$0x3] %vm749, 0.0
      %2936 = vst.msk [vmem:[#allocation3 + $0x180] sm:$0xff] %vm258, 0.0
      %2937 = vst.msk [vmem:[#allocation3 + $0x188] sm:$0xff] %vm258, 0.0
      %2938 = vst.msk [vmem:[#allocation3 + $0x190] sm:$0x3] %vm749, 0.0
      %2939 = vst.msk [vmem:[#allocation3 + $0x198] sm:$0xff] %vm258, 0.0
      %2940 = vst.msk [vmem:[#allocation3 + $0x1a0] sm:$0xff] %vm258, 0.0
      %2941 = vst.msk [vmem:[#allocation3 + $0x1a8] sm:$0x3] %vm749, 0.0
      %s2942 = scalar_lea.vmem [#allocation3], 24
      %2943 = vst.msk [vmem:[%s2942 + $0x1] sm:$0xff] %vm258, %v2851
      %2944 = vst.msk [vmem:[%s2942 + $0x9] sm:$0xff] %vm258, %v2852
      %2945 = vst.msk [vmem:[%s2942 + $0x19] sm:$0xff] %vm258, %v2853
      %2946 = vst.msk [vmem:[%s2942 + $0x21] sm:$0xff] %vm258, %v2854
      %2947 = vst.msk [vmem:[%s2942 + $0x31] sm:$0xff] %vm258, %v2855
      %2948 = vst.msk [vmem:[%s2942 + $0x39] sm:$0xff] %vm258, %v2856
      %2949 = vst.msk [vmem:[%s2942 + $0x49] sm:$0xff] %vm258, %v2857
      %2950 = vst.msk [vmem:[%s2942 + $0x51] sm:$0xff] %vm258, %v2858
      %2951 = vst.msk [vmem:[%s2942 + $0x61] sm:$0xff] %vm258, %v2859
      %2952 = vst.msk [vmem:[%s2942 + $0x69] sm:$0xff] %vm258, %v2860
      %2953 = vst.msk [vmem:[%s2942 + $0x79] sm:$0xff] %vm258, %v2861
      %2954 = vst.msk [vmem:[%s2942 + $0x81] sm:$0xff] %vm258, %v2862
      %2955 = vst.msk [vmem:[%s2942 + $0x91] sm:$0xff] %vm258, %v2863
      %2956 = vst.msk [vmem:[%s2942 + $0x99] sm:$0xff] %vm258, %v2864
      %2957 = vst.msk [vmem:[%s2942 + $0xa9] sm:$0xff] %vm258, %v2865
      %2958 = vst.msk [vmem:[%s2942 + $0xb1] sm:$0xff] %vm258, %v2866
      %2959 = vst.msk [vmem:[%s2942 + $0xc1] sm:$0xff] %vm258, %v2867
      %2960 = vst.msk [vmem:[%s2942 + $0xc9] sm:$0xff] %vm258, %v2868
      %2961 = vst.msk [vmem:[%s2942 + $0xd9] sm:$0xff] %vm258, %v2869
      %2962 = vst.msk [vmem:[%s2942 + $0xe1] sm:$0xff] %vm258, %v2870
      %2963 = vst.msk [vmem:[%s2942 + $0xf1] sm:$0xff] %vm258, %v2871
      %2964 = vst.msk [vmem:[%s2942 + $0xf9] sm:$0xff] %vm258, %v2872
      %2965 = vst.msk [vmem:[%s2942 + $0x109] sm:$0xff] %vm258, %v2873
      %2966 = vst.msk [vmem:[%s2942 + $0x111] sm:$0xff] %vm258, %v2874
      %2967 = vst.msk [vmem:[%s2942 + $0x121] sm:$0xff] %vm258, %v2875
      %2968 = vst.msk [vmem:[%s2942 + $0x129] sm:$0xff] %vm258, %v2876
      %2969 = vst.msk [vmem:[%s2942 + $0x139] sm:$0xff] %vm258, %v2877
      %2970 = vst.msk [vmem:[%s2942 + $0x141] sm:$0xff] %vm258, %v2878
      %2971 = vst.msk [vmem:[%s2942 + $0x151] sm:$0xff] %vm258, %v2879
      %2972 = vst.msk [vmem:[%s2942 + $0x159] sm:$0xff] %vm258, %v2880
      %2973 = vst.msk [vmem:[%s2942 + $0x169] sm:$0xff] %vm258, %v2881
      %2974 = vst.msk [vmem:[%s2942 + $0x171] sm:$0xff] %vm258, %v2882
      %v2975 = vld [vmem:[#allocation3] sm:$0xff]
      %v2976 = vld [vmem:[#allocation3 + $0x8] sm:$0xff]
      %v2977 = vld [vmem:[#allocation3 + $0x10] sm:$0x3]
      %v2978 = vld [vmem:[#allocation3 + $0x18] sm:$0xff]
      %v2979 = vld [vmem:[#allocation3 + $0x20] sm:$0xff]
      %v2980 = vld [vmem:[#allocation3 + $0x28] sm:$0x3]
      %v2981 = vld [vmem:[#allocation3 + $0x30] sm:$0xff]
      %v2982 = vld [vmem:[#allocation3 + $0x38] sm:$0xff]
      %v2983 = vld [vmem:[#allocation3 + $0x40] sm:$0x3]
      %v2984 = vld [vmem:[#allocation3 + $0x48] sm:$0xff]
      %v2985 = vld [vmem:[#allocation3 + $0x50] sm:$0xff]
      %v2986 = vld [vmem:[#allocation3 + $0x58] sm:$0x3]
      %v2987 = vld [vmem:[#allocation3 + $0x60] sm:$0xff]
      %v2988 = vld [vmem:[#allocation3 + $0x68] sm:$0xff]
      %v2989 = vld [vmem:[#allocation3 + $0x70] sm:$0x3]
      %v2990 = vld [vmem:[#allocation3 + $0x78] sm:$0xff]
      %v2991 = vld [vmem:[#allocation3 + $0x80] sm:$0xff]
      %v2992 = vld [vmem:[#allocation3 + $0x88] sm:$0x3]
      %v2993 = vld [vmem:[#allocation3 + $0x90] sm:$0xff]
      %v2994 = vld [vmem:[#allocation3 + $0x98] sm:$0xff]
      %v2995 = vld [vmem:[#allocation3 + $0xa0] sm:$0x3]
      %v2996 = vld [vmem:[#allocation3 + $0xa8] sm:$0xff]
      %v2997 = vld [vmem:[#allocation3 + $0xb0] sm:$0xff]
      %v2998 = vld [vmem:[#allocation3 + $0xb8] sm:$0x3]
      %v2999 = vld [vmem:[#allocation3 + $0xc0] sm:$0xff]
      %v3000 = vld [vmem:[#allocation3 + $0xc8] sm:$0xff]
      %v3001 = vld [vmem:[#allocation3 + $0xd0] sm:$0x3]
      %v3002 = vld [vmem:[#allocation3 + $0xd8] sm:$0xff]
      %v3003 = vld [vmem:[#allocation3 + $0xe0] sm:$0xff]
      %v3004 = vld [vmem:[#allocation3 + $0xe8] sm:$0x3]
      %v3005 = vld [vmem:[#allocation3 + $0xf0] sm:$0xff]
      %v3006 = vld [vmem:[#allocation3 + $0xf8] sm:$0xff]
      %v3007 = vld [vmem:[#allocation3 + $0x100] sm:$0x3]
      %v3008 = vld [vmem:[#allocation3 + $0x108] sm:$0xff]
      %v3009 = vld [vmem:[#allocation3 + $0x110] sm:$0xff]
      %v3010 = vld [vmem:[#allocation3 + $0x118] sm:$0x3]
      %v3011 = vld [vmem:[#allocation3 + $0x120] sm:$0xff]
      %v3012 = vld [vmem:[#allocation3 + $0x128] sm:$0xff]
      %v3013 = vld [vmem:[#allocation3 + $0x130] sm:$0x3]
      %v3014 = vld [vmem:[#allocation3 + $0x138] sm:$0xff]
      %v3015 = vld [vmem:[#allocation3 + $0x140] sm:$0xff]
      %v3016 = vld [vmem:[#allocation3 + $0x148] sm:$0x3]
      %v3017 = vld [vmem:[#allocation3 + $0x150] sm:$0xff]
      %v3018 = vld [vmem:[#allocation3 + $0x158] sm:$0xff]
      %v3019 = vld [vmem:[#allocation3 + $0x160] sm:$0x3]
      %v3020 = vld [vmem:[#allocation3 + $0x168] sm:$0xff]
      %v3021 = vld [vmem:[#allocation3 + $0x170] sm:$0xff]
      %v3022 = vld [vmem:[#allocation3 + $0x178] sm:$0x3]
      %v3023 = vld [vmem:[#allocation3 + $0x180] sm:$0xff]
      %v3024 = vld [vmem:[#allocation3 + $0x188] sm:$0xff]
      %v3025 = vld [vmem:[#allocation3 + $0x190] sm:$0x3]
      %v3026 = vld [vmem:[#allocation3 + $0x198] sm:$0xff]
      %v3027 = vld [vmem:[#allocation3 + $0x1a0] sm:$0xff]
      %v3028 = vld [vmem:[#allocation3 + $0x1a8] sm:$0x3]
      %v3077 = vrot.slane %v2975, 1
      %v3078 = vrot.slane %v2976, 1
      %v3079 = vsel %vm937, %v3077, %v3078
      %v3080 = vrot.slane %v2977, 1
      %v3081 = vsel %vm937, %v3078, %v3080
      %v3082 = vrot.slane %v2978, 1
      %v3083 = vrot.slane %v2979, 1
      %v3084 = vsel %vm937, %v3082, %v3083
      %v3085 = vrot.slane %v2980, 1
      %v3086 = vsel %vm937, %v3083, %v3085
      %v3087 = vrot.slane %v2981, 1
      %v3088 = vrot.slane %v2982, 1
      %v3089 = vsel %vm937, %v3087, %v3088
      %v3090 = vrot.slane %v2983, 1
      %v3091 = vsel %vm937, %v3088, %v3090
      %v3092 = vrot.slane %v2984, 1
      %v3093 = vrot.slane %v2985, 1
      %v3094 = vsel %vm937, %v3092, %v3093
      %v3095 = vrot.slane %v2986, 1
      %v3096 = vsel %vm937, %v3093, %v3095
      %v3097 = vrot.slane %v2987, 1
      %v3098 = vrot.slane %v2988, 1
      %v3099 = vsel %vm937, %v3097, %v3098
      %v3100 = vrot.slane %v2989, 1
      %v3101 = vsel %vm937, %v3098, %v3100
      %v3102 = vrot.slane %v2990, 1
      %v3103 = vrot.slane %v2991, 1
      %v3104 = vsel %vm937, %v3102, %v3103
      %v3105 = vrot.slane %v2992, 1
      %v3106 = vsel %vm937, %v3103, %v3105
      %v3107 = vrot.slane %v2993, 1
      %v3108 = vrot.slane %v2994, 1
      %v3109 = vsel %vm937, %v3107, %v3108
      %v3110 = vrot.slane %v2995, 1
      %v3111 = vsel %vm937, %v3108, %v3110
      %v3112 = vrot.slane %v2996, 1
      %v3113 = vrot.slane %v2997, 1
      %v3114 = vsel %vm937, %v3112, %v3113
      %v3115 = vrot.slane %v2998, 1
      %v3116 = vsel %vm937, %v3113, %v3115
      %v3117 = vrot.slane %v2999, 1
      %v3118 = vrot.slane %v3000, 1
      %v3119 = vsel %vm937, %v3117, %v3118
      %v3120 = vrot.slane %v3001, 1
      %v3121 = vsel %vm937, %v3118, %v3120
      %v3122 = vrot.slane %v3002, 1
      %v3123 = vrot.slane %v3003, 1
      %v3124 = vsel %vm937, %v3122, %v3123
      %v3125 = vrot.slane %v3004, 1
      %v3126 = vsel %vm937, %v3123, %v3125
      %v3127 = vrot.slane %v3005, 1
      %v3128 = vrot.slane %v3006, 1
      %v3129 = vsel %vm937, %v3127, %v3128
      %v3130 = vrot.slane %v3007, 1
      %v3131 = vsel %vm937, %v3128, %v3130
      %v3132 = vrot.slane %v3008, 1
      %v3133 = vrot.slane %v3009, 1
      %v3134 = vsel %vm937, %v3132, %v3133
      %v3135 = vrot.slane %v3010, 1
      %v3136 = vsel %vm937, %v3133, %v3135
      %v3137 = vrot.slane %v3011, 1
      %v3138 = vrot.slane %v3012, 1
      %v3139 = vsel %vm937, %v3137, %v3138
      %v3140 = vrot.slane %v3013, 1
      %v3141 = vsel %vm937, %v3138, %v3140
      %v3142 = vrot.slane %v3014, 1
      %v3143 = vrot.slane %v3015, 1
      %v3144 = vsel %vm937, %v3142, %v3143
      %v3145 = vrot.slane %v3016, 1
      %v3146 = vsel %vm937, %v3143, %v3145
      %v3147 = vrot.slane %v3017, 1
      %v3148 = vrot.slane %v3018, 1
      %v3149 = vsel %vm937, %v3147, %v3148
      %v3150 = vrot.slane %v3019, 1
      %v3151 = vsel %vm937, %v3148, %v3150
      %v3152 = vrot.slane %v3020, 1
      %v3153 = vrot.slane %v3021, 1
      %v3154 = vsel %vm937, %v3152, %v3153
      %v3155 = vrot.slane %v3022, 1
      %v3156 = vsel %vm937, %v3153, %v3155
      %3157 = vrot.lane.b32.xlu0 %v3079, 4
      %v3158 = vpop.permute.xlu0 %3157
      %3159 = vrot.lane.b32.xlu0 %v3081, 4
      %v3160 = vpop.permute.xlu0 %3159
      %3161 = vrot.lane.b32.xlu0 %v3084, 4
      %v3162 = vpop.permute.xlu0 %3161
      %3163 = vrot.lane.b32.xlu0 %v3086, 4
      %v3164 = vpop.permute.xlu0 %3163
      %3165 = vrot.lane.b32.xlu0 %v3089, 4
      %v3166 = vpop.permute.xlu0 %3165
      %3167 = vrot.lane.b32.xlu0 %v3091, 4
      %v3168 = vpop.permute.xlu0 %3167
      %3169 = vrot.lane.b32.xlu0 %v3094, 4
      %v3170 = vpop.permute.xlu0 %3169
      %3171 = vrot.lane.b32.xlu0 %v3096, 4
      %v3172 = vpop.permute.xlu0 %3171
      %3173 = vrot.lane.b32.xlu0 %v3099, 4
      %v3174 = vpop.permute.xlu0 %3173
      %3175 = vrot.lane.b32.xlu0 %v3101, 4
      %v3176 = vpop.permute.xlu0 %3175
      %3177 = vrot.lane.b32.xlu0 %v3104, 4
      %v3178 = vpop.permute.xlu0 %3177
      %3179 = vrot.lane.b32.xlu0 %v3106, 4
      %v3180 = vpop.permute.xlu0 %3179
      %3181 = vrot.lane.b32.xlu0 %v3109, 4
      %v3182 = vpop.permute.xlu0 %3181
      %3183 = vrot.lane.b32.xlu0 %v3111, 4
      %v3184 = vpop.permute.xlu0 %3183
      %3185 = vrot.lane.b32.xlu0 %v3114, 4
      %v3186 = vpop.permute.xlu0 %3185
      %3187 = vrot.lane.b32.xlu0 %v3116, 4
      %v3188 = vpop.permute.xlu0 %3187
      %3189 = vrot.lane.b32.xlu0 %v3119, 4
      %v3190 = vpop.permute.xlu0 %3189
      %3191 = vrot.lane.b32.xlu0 %v3121, 4
      %v3192 = vpop.permute.xlu0 %3191
      %3193 = vrot.lane.b32.xlu0 %v3124, 4
      %v3194 = vpop.permute.xlu0 %3193
      %3195 = vrot.lane.b32.xlu0 %v3126, 4
      %v3196 = vpop.permute.xlu0 %3195
      %3197 = vrot.lane.b32.xlu0 %v3129, 4
      %v3198 = vpop.permute.xlu0 %3197
      %3199 = vrot.lane.b32.xlu0 %v3131, 4
      %v3200 = vpop.permute.xlu0 %3199
      %3201 = vrot.lane.b32.xlu0 %v3134, 4
      %v3202 = vpop.permute.xlu0 %3201
      %3203 = vrot.lane.b32.xlu0 %v3136, 4
      %v3204 = vpop.permute.xlu0 %3203
      %3205 = vrot.lane.b32.xlu0 %v3139, 4
      %v3206 = vpop.permute.xlu0 %3205
      %3207 = vrot.lane.b32.xlu0 %v3141, 4
      %v3208 = vpop.permute.xlu0 %3207
      %3209 = vrot.lane.b32.xlu0 %v3144, 4
      %v3210 = vpop.permute.xlu0 %3209
      %3211 = vrot.lane.b32.xlu0 %v3146, 4
      %v3212 = vpop.permute.xlu0 %3211
      %3213 = vrot.lane.b32.xlu0 %v3149, 4
      %v3214 = vpop.permute.xlu0 %3213
      %3215 = vrot.lane.b32.xlu0 %v3151, 4
      %v3216 = vpop.permute.xlu0 %3215
      %3217 = vrot.lane.b32.xlu0 %v3154, 4
      %v3218 = vpop.permute.xlu0 %3217
      %3219 = vrot.lane.b32.xlu0 %v3156, 4
      %v3220 = vpop.permute.xlu0 %3219
      %v3253 = vrot.slane %v2975, 2
      %v3254 = vrot.slane %v2976, 2
      %v3255 = vsel %vm1114, %v3253, %v3254
      %v3256 = vrot.slane %v2977, 2
      %v3257 = vsel %vm1114, %v3254, %v3256
      %v3258 = vrot.slane %v2978, 2
      %v3259 = vrot.slane %v2979, 2
      %v3260 = vsel %vm1114, %v3258, %v3259
      %v3261 = vrot.slane %v2980, 2
      %v3262 = vsel %vm1114, %v3259, %v3261
      %v3263 = vrot.slane %v2981, 2
      %v3264 = vrot.slane %v2982, 2
      %v3265 = vsel %vm1114, %v3263, %v3264
      %v3266 = vrot.slane %v2983, 2
      %v3267 = vsel %vm1114, %v3264, %v3266
      %v3268 = vrot.slane %v2984, 2
      %v3269 = vrot.slane %v2985, 2
      %v3270 = vsel %vm1114, %v3268, %v3269
      %v3271 = vrot.slane %v2986, 2
      %v3272 = vsel %vm1114, %v3269, %v3271
      %v3273 = vrot.slane %v2987, 2
      %v3274 = vrot.slane %v2988, 2
      %v3275 = vsel %vm1114, %v3273, %v3274
      %v3276 = vrot.slane %v2989, 2
      %v3277 = vsel %vm1114, %v3274, %v3276
      %v3278 = vrot.slane %v2990, 2
      %v3279 = vrot.slane %v2991, 2
      %v3280 = vsel %vm1114, %v3278, %v3279
      %v3281 = vrot.slane %v2992, 2
      %v3282 = vsel %vm1114, %v3279, %v3281
      %v3283 = vrot.slane %v2993, 2
      %v3284 = vrot.slane %v2994, 2
      %v3285 = vsel %vm1114, %v3283, %v3284
      %v3286 = vrot.slane %v2995, 2
      %v3287 = vsel %vm1114, %v3284, %v3286
      %v3288 = vrot.slane %v2996, 2
      %v3289 = vrot.slane %v2997, 2
      %v3290 = vsel %vm1114, %v3288, %v3289
      %v3291 = vrot.slane %v2998, 2
      %v3292 = vsel %vm1114, %v3289, %v3291
      %v3293 = vrot.slane %v2999, 2
      %v3294 = vrot.slane %v3000, 2
      %v3295 = vsel %vm1114, %v3293, %v3294
      %v3296 = vrot.slane %v3001, 2
      %v3297 = vsel %vm1114, %v3294, %v3296
      %v3298 = vrot.slane %v3002, 2
      %v3299 = vrot.slane %v3003, 2
      %v3300 = vsel %vm1114, %v3298, %v3299
      %v3301 = vrot.slane %v3004, 2
      %v3302 = vsel %vm1114, %v3299, %v3301
      %v3303 = vrot.slane %v3005, 2
      %v3304 = vrot.slane %v3006, 2
      %v3305 = vsel %vm1114, %v3303, %v3304
      %v3306 = vrot.slane %v3007, 2
      %v3307 = vsel %vm1114, %v3304, %v3306
      %v3308 = vrot.slane %v3008, 2
      %v3309 = vrot.slane %v3009, 2
      %v3310 = vsel %vm1114, %v3308, %v3309
      %v3311 = vrot.slane %v3010, 2
      %v3312 = vsel %vm1114, %v3309, %v3311
      %v3313 = vrot.slane %v3011, 2
      %v3314 = vrot.slane %v3012, 2
      %v3315 = vsel %vm1114, %v3313, %v3314
      %v3316 = vrot.slane %v3013, 2
      %v3317 = vsel %vm1114, %v3314, %v3316
      %v3318 = vrot.slane %v3014, 2
      %v3319 = vrot.slane %v3015, 2
      %v3320 = vsel %vm1114, %v3318, %v3319
      %v3321 = vrot.slane %v3016, 2
      %v3322 = vsel %vm1114, %v3319, %v3321
      %v3323 = vrot.slane %v3017, 2
      %v3324 = vrot.slane %v3018, 2
      %v3325 = vsel %vm1114, %v3323, %v3324
      %v3326 = vrot.slane %v3019, 2
      %v3327 = vsel %vm1114, %v3324, %v3326
      %v3328 = vrot.slane %v3020, 2
      %v3329 = vrot.slane %v3021, 2
      %v3330 = vsel %vm1114, %v3328, %v3329
      %v3331 = vrot.slane %v3022, 2
      %v3332 = vsel %vm1114, %v3329, %v3331
      %3333 = vrot.lane.b32.xlu0 %v3255, 8
      %v3334 = vpop.permute.xlu0 %3333
      %3335 = vrot.lane.b32.xlu0 %v3257, 8
      %v3336 = vpop.permute.xlu0 %3335
      %3337 = vrot.lane.b32.xlu0 %v3260, 8
      %v3338 = vpop.permute.xlu0 %3337
      %3339 = vrot.lane.b32.xlu0 %v3262, 8
      %v3340 = vpop.permute.xlu0 %3339
      %3341 = vrot.lane.b32.xlu0 %v3265, 8
      %v3342 = vpop.permute.xlu0 %3341
      %3343 = vrot.lane.b32.xlu0 %v3267, 8
      %v3344 = vpop.permute.xlu0 %3343
      %3345 = vrot.lane.b32.xlu0 %v3270, 8
      %v3346 = vpop.permute.xlu0 %3345
      %3347 = vrot.lane.b32.xlu0 %v3272, 8
      %v3348 = vpop.permute.xlu0 %3347
      %3349 = vrot.lane.b32.xlu0 %v3275, 8
      %v3350 = vpop.permute.xlu0 %3349
      %3351 = vrot.lane.b32.xlu0 %v3277, 8
      %v3352 = vpop.permute.xlu0 %3351
      %3353 = vrot.lane.b32.xlu0 %v3280, 8
      %v3354 = vpop.permute.xlu0 %3353
      %3355 = vrot.lane.b32.xlu0 %v3282, 8
      %v3356 = vpop.permute.xlu0 %3355
      %3357 = vrot.lane.b32.xlu0 %v3285, 8
      %v3358 = vpop.permute.xlu0 %3357
      %3359 = vrot.lane.b32.xlu0 %v3287, 8
      %v3360 = vpop.permute.xlu0 %3359
      %3361 = vrot.lane.b32.xlu0 %v3290, 8
      %v3362 = vpop.permute.xlu0 %3361
      %3363 = vrot.lane.b32.xlu0 %v3292, 8
      %v3364 = vpop.permute.xlu0 %3363
      %3365 = vrot.lane.b32.xlu0 %v3295, 8
      %v3366 = vpop.permute.xlu0 %3365
      %3367 = vrot.lane.b32.xlu0 %v3297, 8
      %v3368 = vpop.permute.xlu0 %3367
      %3369 = vrot.lane.b32.xlu0 %v3300, 8
      %v3370 = vpop.permute.xlu0 %3369
      %3371 = vrot.lane.b32.xlu0 %v3302, 8
      %v3372 = vpop.permute.xlu0 %3371
      %3373 = vrot.lane.b32.xlu0 %v3305, 8
      %v3374 = vpop.permute.xlu0 %3373
      %3375 = vrot.lane.b32.xlu0 %v3307, 8
      %v3376 = vpop.permute.xlu0 %3375
      %3377 = vrot.lane.b32.xlu0 %v3310, 8
      %v3378 = vpop.permute.xlu0 %3377
      %3379 = vrot.lane.b32.xlu0 %v3312, 8
      %v3380 = vpop.permute.xlu0 %3379
      %3381 = vrot.lane.b32.xlu0 %v3315, 8
      %v3382 = vpop.permute.xlu0 %3381
      %3383 = vrot.lane.b32.xlu0 %v3317, 8
      %v3384 = vpop.permute.xlu0 %3383
      %3385 = vrot.lane.b32.xlu0 %v3320, 8
      %v3386 = vpop.permute.xlu0 %3385
      %3387 = vrot.lane.b32.xlu0 %v3322, 8
      %v3388 = vpop.permute.xlu0 %3387
      %3389 = vrot.lane.b32.xlu0 %v3325, 8
      %v3390 = vpop.permute.xlu0 %3389
      %3391 = vrot.lane.b32.xlu0 %v3327, 8
      %v3392 = vpop.permute.xlu0 %3391
      %3393 = vrot.lane.b32.xlu0 %v3330, 8
      %v3394 = vpop.permute.xlu0 %3393
      %3395 = vrot.lane.b32.xlu0 %v3332, 8
      %v3396 = vpop.permute.xlu0 %3395
      %3431 = vrot.lane.b32.xlu0 %v2978, 12
      %v3432 = vpop.permute.xlu0 %3431
      %3433 = vrot.lane.b32.xlu0 %v2979, 12
      %v3434 = vpop.permute.xlu0 %3433
      %3435 = vrot.lane.b32.xlu0 %v2981, 12
      %v3436 = vpop.permute.xlu0 %3435
      %3437 = vrot.lane.b32.xlu0 %v2982, 12
      %v3438 = vpop.permute.xlu0 %3437
      %3439 = vrot.lane.b32.xlu0 %v2984, 12
      %v3440 = vpop.permute.xlu0 %3439
      %3441 = vrot.lane.b32.xlu0 %v2985, 12
      %v3442 = vpop.permute.xlu0 %3441
      %3443 = vrot.lane.b32.xlu0 %v2987, 12
      %v3444 = vpop.permute.xlu0 %3443
      %3445 = vrot.lane.b32.xlu0 %v2988, 12
      %v3446 = vpop.permute.xlu0 %3445
      %3447 = vrot.lane.b32.xlu0 %v2990, 12
      %v3448 = vpop.permute.xlu0 %3447
      %3449 = vrot.lane.b32.xlu0 %v2991, 12
      %v3450 = vpop.permute.xlu0 %3449
      %3451 = vrot.lane.b32.xlu0 %v2993, 12
      %v3452 = vpop.permute.xlu0 %3451
      %3453 = vrot.lane.b32.xlu0 %v2994, 12
      %v3454 = vpop.permute.xlu0 %3453
      %3455 = vrot.lane.b32.xlu0 %v2996, 12
      %v3456 = vpop.permute.xlu0 %3455
      %3457 = vrot.lane.b32.xlu0 %v2997, 12
      %v3458 = vpop.permute.xlu0 %3457
      %3459 = vrot.lane.b32.xlu0 %v2999, 12
      %v3460 = vpop.permute.xlu0 %3459
      %3461 = vrot.lane.b32.xlu0 %v3000, 12
      %v3462 = vpop.permute.xlu0 %3461
      %3463 = vrot.lane.b32.xlu0 %v3002, 12
      %v3464 = vpop.permute.xlu0 %3463
      %3465 = vrot.lane.b32.xlu0 %v3003, 12
      %v3466 = vpop.permute.xlu0 %3465
      %3467 = vrot.lane.b32.xlu0 %v3005, 12
      %v3468 = vpop.permute.xlu0 %3467
      %3469 = vrot.lane.b32.xlu0 %v3006, 12
      %v3470 = vpop.permute.xlu0 %3469
      %3471 = vrot.lane.b32.xlu0 %v3008, 12
      %v3472 = vpop.permute.xlu0 %3471
      %3473 = vrot.lane.b32.xlu0 %v3009, 12
      %v3474 = vpop.permute.xlu0 %3473
      %3475 = vrot.lane.b32.xlu0 %v3011, 12
      %v3476 = vpop.permute.xlu0 %3475
      %3477 = vrot.lane.b32.xlu0 %v3012, 12
      %v3478 = vpop.permute.xlu0 %3477
      %3479 = vrot.lane.b32.xlu0 %v3014, 12
      %v3480 = vpop.permute.xlu0 %3479
      %3481 = vrot.lane.b32.xlu0 %v3015, 12
      %v3482 = vpop.permute.xlu0 %3481
      %3483 = vrot.lane.b32.xlu0 %v3017, 12
      %v3484 = vpop.permute.xlu0 %3483
      %3485 = vrot.lane.b32.xlu0 %v3018, 12
      %v3486 = vpop.permute.xlu0 %3485
      %3487 = vrot.lane.b32.xlu0 %v3020, 12
      %v3488 = vpop.permute.xlu0 %3487
      %3489 = vrot.lane.b32.xlu0 %v3021, 12
      %v3490 = vpop.permute.xlu0 %3489
      %3491 = vrot.lane.b32.xlu0 %v3023, 12
      %v3492 = vpop.permute.xlu0 %3491
      %3493 = vrot.lane.b32.xlu0 %v3024, 12
      %v3494 = vpop.permute.xlu0 %3493
      %v3528 = vrot.slane %v3023, 1
      %v3529 = vrot.slane %v3024, 1
      %v3530 = vsel %vm937, %v3528, %v3529
      %v3531 = vrot.slane %v3025, 1
      %v3532 = vsel %vm937, %v3529, %v3531
      %3533 = vrot.lane.b32.xlu0 %v3084, 16
      %v3534 = vpop.permute.xlu0 %3533
      %3535 = vrot.lane.b32.xlu0 %v3086, 16
      %v3536 = vpop.permute.xlu0 %3535
      %3537 = vrot.lane.b32.xlu0 %v3089, 16
      %v3538 = vpop.permute.xlu0 %3537
      %3539 = vrot.lane.b32.xlu0 %v3091, 16
      %v3540 = vpop.permute.xlu0 %3539
      %3541 = vrot.lane.b32.xlu0 %v3094, 16
      %v3542 = vpop.permute.xlu0 %3541
      %3543 = vrot.lane.b32.xlu0 %v3096, 16
      %v3544 = vpop.permute.xlu0 %3543
      %3545 = vrot.lane.b32.xlu0 %v3099, 16
      %v3546 = vpop.permute.xlu0 %3545
      %3547 = vrot.lane.b32.xlu0 %v3101, 16
      %v3548 = vpop.permute.xlu0 %3547
      %3549 = vrot.lane.b32.xlu0 %v3104, 16
      %v3550 = vpop.permute.xlu0 %3549
      %3551 = vrot.lane.b32.xlu0 %v3106, 16
      %v3552 = vpop.permute.xlu0 %3551
      %3553 = vrot.lane.b32.xlu0 %v3109, 16
      %v3554 = vpop.permute.xlu0 %3553
      %3555 = vrot.lane.b32.xlu0 %v3111, 16
      %v3556 = vpop.permute.xlu0 %3555
      %3557 = vrot.lane.b32.xlu0 %v3114, 16
      %v3558 = vpop.permute.xlu0 %3557
      %3559 = vrot.lane.b32.xlu0 %v3116, 16
      %v3560 = vpop.permute.xlu0 %3559
      %3561 = vrot.lane.b32.xlu0 %v3119, 16
      %v3562 = vpop.permute.xlu0 %3561
      %3563 = vrot.lane.b32.xlu0 %v3121, 16
      %v3564 = vpop.permute.xlu0 %3563
      %3565 = vrot.lane.b32.xlu0 %v3124, 16
      %v3566 = vpop.permute.xlu0 %3565
      %3567 = vrot.lane.b32.xlu0 %v3126, 16
      %v3568 = vpop.permute.xlu0 %3567
      %3569 = vrot.lane.b32.xlu0 %v3129, 16
      %v3570 = vpop.permute.xlu0 %3569
      %3571 = vrot.lane.b32.xlu0 %v3131, 16
      %v3572 = vpop.permute.xlu0 %3571
      %3573 = vrot.lane.b32.xlu0 %v3134, 16
      %v3574 = vpop.permute.xlu0 %3573
      %3575 = vrot.lane.b32.xlu0 %v3136, 16
      %v3576 = vpop.permute.xlu0 %3575
      %3577 = vrot.lane.b32.xlu0 %v3139, 16
      %v3578 = vpop.permute.xlu0 %3577
      %3579 = vrot.lane.b32.xlu0 %v3141, 16
      %v3580 = vpop.permute.xlu0 %3579
      %3581 = vrot.lane.b32.xlu0 %v3144, 16
      %v3582 = vpop.permute.xlu0 %3581
      %3583 = vrot.lane.b32.xlu0 %v3146, 16
      %v3584 = vpop.permute.xlu0 %3583
      %3585 = vrot.lane.b32.xlu0 %v3149, 16
      %v3586 = vpop.permute.xlu0 %3585
      %3587 = vrot.lane.b32.xlu0 %v3151, 16
      %v3588 = vpop.permute.xlu0 %3587
      %3589 = vrot.lane.b32.xlu0 %v3154, 16
      %v3590 = vpop.permute.xlu0 %3589
      %3591 = vrot.lane.b32.xlu0 %v3156, 16
      %v3592 = vpop.permute.xlu0 %3591
      %3593 = vrot.lane.b32.xlu0 %v3530, 16
      %v3594 = vpop.permute.xlu0 %3593
      %3595 = vrot.lane.b32.xlu0 %v3532, 16
      %v3596 = vpop.permute.xlu0 %3595
      %v3629 = vrot.slane %v3023, 2
      %v3630 = vrot.slane %v3024, 2
      %v3631 = vsel %vm1114, %v3629, %v3630
      %v3632 = vrot.slane %v3025, 2
      %v3633 = vsel %vm1114, %v3630, %v3632
      %3634 = vrot.lane.b32.xlu0 %v3260, 20
      %v3635 = vpop.permute.xlu0 %3634
      %3636 = vrot.lane.b32.xlu0 %v3262, 20
      %v3637 = vpop.permute.xlu0 %3636
      %3638 = vrot.lane.b32.xlu0 %v3265, 20
      %v3639 = vpop.permute.xlu0 %3638
      %3640 = vrot.lane.b32.xlu0 %v3267, 20
      %v3641 = vpop.permute.xlu0 %3640
      %3642 = vrot.lane.b32.xlu0 %v3270, 20
      %v3643 = vpop.permute.xlu0 %3642
      %3644 = vrot.lane.b32.xlu0 %v3272, 20
      %v3645 = vpop.permute.xlu0 %3644
      %3646 = vrot.lane.b32.xlu0 %v3275, 20
      %v3647 = vpop.permute.xlu0 %3646
      %3648 = vrot.lane.b32.xlu0 %v3277, 20
      %v3649 = vpop.permute.xlu0 %3648
      %3650 = vrot.lane.b32.xlu0 %v3280, 20
      %v3651 = vpop.permute.xlu0 %3650
      %3652 = vrot.lane.b32.xlu0 %v3282, 20
      %v3653 = vpop.permute.xlu0 %3652
      %3654 = vrot.lane.b32.xlu0 %v3285, 20
      %v3655 = vpop.permute.xlu0 %3654
      %3656 = vrot.lane.b32.xlu0 %v3287, 20
      %v3657 = vpop.permute.xlu0 %3656
      %3658 = vrot.lane.b32.xlu0 %v3290, 20
      %v3659 = vpop.permute.xlu0 %3658
      %3660 = vrot.lane.b32.xlu0 %v3292, 20
      %v3661 = vpop.permute.xlu0 %3660
      %3662 = vrot.lane.b32.xlu0 %v3295, 20
      %v3663 = vpop.permute.xlu0 %3662
      %3664 = vrot.lane.b32.xlu0 %v3297, 20
      %v3665 = vpop.permute.xlu0 %3664
      %3666 = vrot.lane.b32.xlu0 %v3300, 20
      %v3667 = vpop.permute.xlu0 %3666
      %3668 = vrot.lane.b32.xlu0 %v3302, 20
      %v3669 = vpop.permute.xlu0 %3668
      %3670 = vrot.lane.b32.xlu0 %v3305, 20
      %v3671 = vpop.permute.xlu0 %3670
      %3672 = vrot.lane.b32.xlu0 %v3307, 20
      %v3673 = vpop.permute.xlu0 %3672
      %3674 = vrot.lane.b32.xlu0 %v3310, 20
      %v3675 = vpop.permute.xlu0 %3674
      %3676 = vrot.lane.b32.xlu0 %v3312, 20
      %v3677 = vpop.permute.xlu0 %3676
      %3678 = vrot.lane.b32.xlu0 %v3315, 20
      %v3679 = vpop.permute.xlu0 %3678
      %3680 = vrot.lane.b32.xlu0 %v3317, 20
      %v3681 = vpop.permute.xlu0 %3680
      %3682 = vrot.lane.b32.xlu0 %v3320, 20
      %v3683 = vpop.permute.xlu0 %3682
      %3684 = vrot.lane.b32.xlu0 %v3322, 20
      %v3685 = vpop.permute.xlu0 %3684
      %3686 = vrot.lane.b32.xlu0 %v3325, 20
      %v3687 = vpop.permute.xlu0 %3686
      %3688 = vrot.lane.b32.xlu0 %v3327, 20
      %v3689 = vpop.permute.xlu0 %3688
      %3690 = vrot.lane.b32.xlu0 %v3330, 20
      %v3691 = vpop.permute.xlu0 %3690
      %3692 = vrot.lane.b32.xlu0 %v3332, 20
      %v3693 = vpop.permute.xlu0 %3692
      %3694 = vrot.lane.b32.xlu0 %v3631, 20
      %v3695 = vpop.permute.xlu0 %3694
      %3696 = vrot.lane.b32.xlu0 %v3633, 20
      %v3697 = vpop.permute.xlu0 %3696
      %3732 = vrot.lane.b32.xlu0 %v2981, 24
      %v3733 = vpop.permute.xlu0 %3732
      %3734 = vrot.lane.b32.xlu0 %v2982, 24
      %v3735 = vpop.permute.xlu0 %3734
      %3736 = vrot.lane.b32.xlu0 %v2984, 24
      %v3737 = vpop.permute.xlu0 %3736
      %3738 = vrot.lane.b32.xlu0 %v2985, 24
      %v3739 = vpop.permute.xlu0 %3738
      %3740 = vrot.lane.b32.xlu0 %v2987, 24
      %v3741 = vpop.permute.xlu0 %3740
      %3742 = vrot.lane.b32.xlu0 %v2988, 24
      %v3743 = vpop.permute.xlu0 %3742
      %3744 = vrot.lane.b32.xlu0 %v2990, 24
      %v3745 = vpop.permute.xlu0 %3744
      %3746 = vrot.lane.b32.xlu0 %v2991, 24
      %v3747 = vpop.permute.xlu0 %3746
      %3748 = vrot.lane.b32.xlu0 %v2993, 24
      %v3749 = vpop.permute.xlu0 %3748
      %3750 = vrot.lane.b32.xlu0 %v2994, 24
      %v3751 = vpop.permute.xlu0 %3750
      %3752 = vrot.lane.b32.xlu0 %v2996, 24
      %v3753 = vpop.permute.xlu0 %3752
      %3754 = vrot.lane.b32.xlu0 %v2997, 24
      %v3755 = vpop.permute.xlu0 %3754
      %3756 = vrot.lane.b32.xlu0 %v2999, 24
      %v3757 = vpop.permute.xlu0 %3756
      %3758 = vrot.lane.b32.xlu0 %v3000, 24
      %v3759 = vpop.permute.xlu0 %3758
      %3760 = vrot.lane.b32.xlu0 %v3002, 24
      %v3761 = vpop.permute.xlu0 %3760
      %3762 = vrot.lane.b32.xlu0 %v3003, 24
      %v3763 = vpop.permute.xlu0 %3762
      %3764 = vrot.lane.b32.xlu0 %v3005, 24
      %v3765 = vpop.permute.xlu0 %3764
      %3766 = vrot.lane.b32.xlu0 %v3006, 24
      %v3767 = vpop.permute.xlu0 %3766
      %3768 = vrot.lane.b32.xlu0 %v3008, 24
      %v3769 = vpop.permute.xlu0 %3768
      %3770 = vrot.lane.b32.xlu0 %v3009, 24
      %v3771 = vpop.permute.xlu0 %3770
      %3772 = vrot.lane.b32.xlu0 %v3011, 24
      %v3773 = vpop.permute.xlu0 %3772
      %3774 = vrot.lane.b32.xlu0 %v3012, 24
      %v3775 = vpop.permute.xlu0 %3774
      %3776 = vrot.lane.b32.xlu0 %v3014, 24
      %v3777 = vpop.permute.xlu0 %3776
      %3778 = vrot.lane.b32.xlu0 %v3015, 24
      %v3779 = vpop.permute.xlu0 %3778
      %3780 = vrot.lane.b32.xlu0 %v3017, 24
      %v3781 = vpop.permute.xlu0 %3780
      %3782 = vrot.lane.b32.xlu0 %v3018, 24
      %v3783 = vpop.permute.xlu0 %3782
      %3784 = vrot.lane.b32.xlu0 %v3020, 24
      %v3785 = vpop.permute.xlu0 %3784
      %3786 = vrot.lane.b32.xlu0 %v3021, 24
      %v3787 = vpop.permute.xlu0 %3786
      %3788 = vrot.lane.b32.xlu0 %v3023, 24
      %v3789 = vpop.permute.xlu0 %3788
      %3790 = vrot.lane.b32.xlu0 %v3024, 24
      %v3791 = vpop.permute.xlu0 %3790
      %3792 = vrot.lane.b32.xlu0 %v3026, 24
      %v3793 = vpop.permute.xlu0 %3792
      %3794 = vrot.lane.b32.xlu0 %v3027, 24
      %v3795 = vpop.permute.xlu0 %3794
      %v3829 = vrot.slane %v3026, 1
      %v3830 = vrot.slane %v3027, 1
      %v3831 = vsel %vm937, %v3829, %v3830
      %v3832 = vrot.slane %v3028, 1
      %v3833 = vsel %vm937, %v3830, %v3832
      %3834 = vrot.lane.b32.xlu0 %v3089, 28
      %v3835 = vpop.permute.xlu0 %3834
      %3836 = vrot.lane.b32.xlu0 %v3091, 28
      %v3837 = vpop.permute.xlu0 %3836
      %3838 = vrot.lane.b32.xlu0 %v3094, 28
      %v3839 = vpop.permute.xlu0 %3838
      %3840 = vrot.lane.b32.xlu0 %v3096, 28
      %v3841 = vpop.permute.xlu0 %3840
      %3842 = vrot.lane.b32.xlu0 %v3099, 28
      %v3843 = vpop.permute.xlu0 %3842
      %3844 = vrot.lane.b32.xlu0 %v3101, 28
      %v3845 = vpop.permute.xlu0 %3844
      %3846 = vrot.lane.b32.xlu0 %v3104, 28
      %v3847 = vpop.permute.xlu0 %3846
      %3848 = vrot.lane.b32.xlu0 %v3106, 28
      %v3849 = vpop.permute.xlu0 %3848
      %3850 = vrot.lane.b32.xlu0 %v3109, 28
      %v3851 = vpop.permute.xlu0 %3850
      %3852 = vrot.lane.b32.xlu0 %v3111, 28
      %v3853 = vpop.permute.xlu0 %3852
      %3854 = vrot.lane.b32.xlu0 %v3114, 28
      %v3855 = vpop.permute.xlu0 %3854
      %3856 = vrot.lane.b32.xlu0 %v3116, 28
      %v3857 = vpop.permute.xlu0 %3856
      %3858 = vrot.lane.b32.xlu0 %v3119, 28
      %v3859 = vpop.permute.xlu0 %3858
      %3860 = vrot.lane.b32.xlu0 %v3121, 28
      %v3861 = vpop.permute.xlu0 %3860
      %3862 = vrot.lane.b32.xlu0 %v3124, 28
      %v3863 = vpop.permute.xlu0 %3862
      %3864 = vrot.lane.b32.xlu0 %v3126, 28
      %v3865 = vpop.permute.xlu0 %3864
      %3866 = vrot.lane.b32.xlu0 %v3129, 28
      %v3867 = vpop.permute.xlu0 %3866
      %3868 = vrot.lane.b32.xlu0 %v3131, 28
      %v3869 = vpop.permute.xlu0 %3868
      %3870 = vrot.lane.b32.xlu0 %v3134, 28
      %v3871 = vpop.permute.xlu0 %3870
      %3872 = vrot.lane.b32.xlu0 %v3136, 28
      %v3873 = vpop.permute.xlu0 %3872
      %3874 = vrot.lane.b32.xlu0 %v3139, 28
      %v3875 = vpop.permute.xlu0 %3874
      %3876 = vrot.lane.b32.xlu0 %v3141, 28
      %v3877 = vpop.permute.xlu0 %3876
      %3878 = vrot.lane.b32.xlu0 %v3144, 28
      %v3879 = vpop.permute.xlu0 %3878
      %3880 = vrot.lane.b32.xlu0 %v3146, 28
      %v3881 = vpop.permute.xlu0 %3880
      %3882 = vrot.lane.b32.xlu0 %v3149, 28
      %v3883 = vpop.permute.xlu0 %3882
      %3884 = vrot.lane.b32.xlu0 %v3151, 28
      %v3885 = vpop.permute.xlu0 %3884
      %3886 = vrot.lane.b32.xlu0 %v3154, 28
      %v3887 = vpop.permute.xlu0 %3886
      %3888 = vrot.lane.b32.xlu0 %v3156, 28
      %v3889 = vpop.permute.xlu0 %3888
      %3890 = vrot.lane.b32.xlu0 %v3530, 28
      %v3891 = vpop.permute.xlu0 %3890
      %3892 = vrot.lane.b32.xlu0 %v3532, 28
      %v3893 = vpop.permute.xlu0 %3892
      %3894 = vrot.lane.b32.xlu0 %v3831, 28
      %v3895 = vpop.permute.xlu0 %3894
      %3896 = vrot.lane.b32.xlu0 %v3833, 28
      %v3897 = vpop.permute.xlu0 %3896
      %v3930 = vrot.slane %v3026, 2
      %v3931 = vrot.slane %v3027, 2
      %v3932 = vsel %vm1114, %v3930, %v3931
      %v3933 = vrot.slane %v3028, 2
      %v3934 = vsel %vm1114, %v3931, %v3933
      %3935 = vrot.lane.b32.xlu0 %v3265, 32
      %v3936 = vpop.permute.xlu0 %3935
      %3937 = vrot.lane.b32.xlu0 %v3267, 32
      %v3938 = vpop.permute.xlu0 %3937
      %3939 = vrot.lane.b32.xlu0 %v3270, 32
      %v3940 = vpop.permute.xlu0 %3939
      %3941 = vrot.lane.b32.xlu0 %v3272, 32
      %v3942 = vpop.permute.xlu0 %3941
      %3943 = vrot.lane.b32.xlu0 %v3275, 32
      %v3944 = vpop.permute.xlu0 %3943
      %3945 = vrot.lane.b32.xlu0 %v3277, 32
      %v3946 = vpop.permute.xlu0 %3945
      %3947 = vrot.lane.b32.xlu0 %v3280, 32
      %v3948 = vpop.permute.xlu0 %3947
      %3949 = vrot.lane.b32.xlu0 %v3282, 32
      %v3950 = vpop.permute.xlu0 %3949
      %3951 = vrot.lane.b32.xlu0 %v3285, 32
      %v3952 = vpop.permute.xlu0 %3951
      %3953 = vrot.lane.b32.xlu0 %v3287, 32
      %v3954 = vpop.permute.xlu0 %3953
      %3955 = vrot.lane.b32.xlu0 %v3290, 32
      %v3956 = vpop.permute.xlu0 %3955
      %3957 = vrot.lane.b32.xlu0 %v3292, 32
      %v3958 = vpop.permute.xlu0 %3957
      %3959 = vrot.lane.b32.xlu0 %v3295, 32
      %v3960 = vpop.permute.xlu0 %3959
      %3961 = vrot.lane.b32.xlu0 %v3297, 32
      %v3962 = vpop.permute.xlu0 %3961
      %3963 = vrot.lane.b32.xlu0 %v3300, 32
      %v3964 = vpop.permute.xlu0 %3963
      %3965 = vrot.lane.b32.xlu0 %v3302, 32
      %v3966 = vpop.permute.xlu0 %3965
      %3967 = vrot.lane.b32.xlu0 %v3305, 32
      %v3968 = vpop.permute.xlu0 %3967
      %3969 = vrot.lane.b32.xlu0 %v3307, 32
      %v3970 = vpop.permute.xlu0 %3969
      %3971 = vrot.lane.b32.xlu0 %v3310, 32
      %v3972 = vpop.permute.xlu0 %3971
      %3973 = vrot.lane.b32.xlu0 %v3312, 32
      %v3974 = vpop.permute.xlu0 %3973
      %3975 = vrot.lane.b32.xlu0 %v3315, 32
      %v3976 = vpop.permute.xlu0 %3975
      %3977 = vrot.lane.b32.xlu0 %v3317, 32
      %v3978 = vpop.permute.xlu0 %3977
      %3979 = vrot.lane.b32.xlu0 %v3320, 32
      %v3980 = vpop.permute.xlu0 %3979
      %3981 = vrot.lane.b32.xlu0 %v3322, 32
      %v3982 = vpop.permute.xlu0 %3981
      %3983 = vrot.lane.b32.xlu0 %v3325, 32
      %v3984 = vpop.permute.xlu0 %3983
      %3985 = vrot.lane.b32.xlu0 %v3327, 32
      %v3986 = vpop.permute.xlu0 %3985
      %3987 = vrot.lane.b32.xlu0 %v3330, 32
      %v3988 = vpop.permute.xlu0 %3987
      %3989 = vrot.lane.b32.xlu0 %v3332, 32
      %v3990 = vpop.permute.xlu0 %3989
      %3991 = vrot.lane.b32.xlu0 %v3631, 32
      %v3992 = vpop.permute.xlu0 %3991
      %3993 = vrot.lane.b32.xlu0 %v3633, 32
      %v3994 = vpop.permute.xlu0 %3993
      %3995 = vrot.lane.b32.xlu0 %v3932, 32
      %v3996 = vpop.permute.xlu0 %3995
      %3997 = vrot.lane.b32.xlu0 %v3934, 32
      %v3998 = vpop.permute.xlu0 %3997
      %v4031 = vsel %vm258, %v2975, %v3158
      %v4032 = vsel %vm258, %v2976, %v3160
      %v4033 = vsel %vm258, %v2978, %v3162
      %v4034 = vsel %vm258, %v2979, %v3164
      %v4035 = vsel %vm258, %v2981, %v3166
      %v4036 = vsel %vm258, %v2982, %v3168
      %v4037 = vsel %vm258, %v2984, %v3170
      %v4038 = vsel %vm258, %v2985, %v3172
      %v4039 = vsel %vm258, %v2987, %v3174
      %v4040 = vsel %vm258, %v2988, %v3176
      %v4041 = vsel %vm258, %v2990, %v3178
      %v4042 = vsel %vm258, %v2991, %v3180
      %v4043 = vsel %vm258, %v2993, %v3182
      %v4044 = vsel %vm258, %v2994, %v3184
      %v4045 = vsel %vm258, %v2996, %v3186
      %v4046 = vsel %vm258, %v2997, %v3188
      %v4047 = vsel %vm258, %v2999, %v3190
      %v4048 = vsel %vm258, %v3000, %v3192
      %v4049 = vsel %vm258, %v3002, %v3194
      %v4050 = vsel %vm258, %v3003, %v3196
      %v4051 = vsel %vm258, %v3005, %v3198
      %v4052 = vsel %vm258, %v3006, %v3200
      %v4053 = vsel %vm258, %v3008, %v3202
      %v4054 = vsel %vm258, %v3009, %v3204
      %v4055 = vsel %vm258, %v3011, %v3206
      %v4056 = vsel %vm258, %v3012, %v3208
      %v4057 = vsel %vm258, %v3014, %v3210
      %v4058 = vsel %vm258, %v3015, %v3212
      %v4059 = vsel %vm258, %v3017, %v3214
      %v4060 = vsel %vm258, %v3018, %v3216
      %v4061 = vsel %vm258, %v3020, %v3218
      %v4062 = vsel %vm258, %v3021, %v3220
      %v4063 = vsel %vm1925, %v4031, %v3334
      %v4064 = vsel %vm1925, %v4032, %v3336
      %v4065 = vsel %vm1925, %v4033, %v3338
      %v4066 = vsel %vm1925, %v4034, %v3340
      %v4067 = vsel %vm1925, %v4035, %v3342
      %v4068 = vsel %vm1925, %v4036, %v3344
      %v4069 = vsel %vm1925, %v4037, %v3346
      %v4070 = vsel %vm1925, %v4038, %v3348
      %v4071 = vsel %vm1925, %v4039, %v3350
      %v4072 = vsel %vm1925, %v4040, %v3352
      %v4073 = vsel %vm1925, %v4041, %v3354
      %v4074 = vsel %vm1925, %v4042, %v3356
      %v4075 = vsel %vm1925, %v4043, %v3358
      %v4076 = vsel %vm1925, %v4044, %v3360
      %v4077 = vsel %vm1925, %v4045, %v3362
      %v4078 = vsel %vm1925, %v4046, %v3364
      %v4079 = vsel %vm1925, %v4047, %v3366
      %v4080 = vsel %vm1925, %v4048, %v3368
      %v4081 = vsel %vm1925, %v4049, %v3370
      %v4082 = vsel %vm1925, %v4050, %v3372
      %v4083 = vsel %vm1925, %v4051, %v3374
      %v4084 = vsel %vm1925, %v4052, %v3376
      %v4085 = vsel %vm1925, %v4053, %v3378
      %v4086 = vsel %vm1925, %v4054, %v3380
      %v4087 = vsel %vm1925, %v4055, %v3382
      %v4088 = vsel %vm1925, %v4056, %v3384
      %v4089 = vsel %vm1925, %v4057, %v3386
      %v4090 = vsel %vm1925, %v4058, %v3388
      %v4091 = vsel %vm1925, %v4059, %v3390
      %v4092 = vsel %vm1925, %v4060, %v3392
      %v4093 = vsel %vm1925, %v4061, %v3394
      %v4094 = vsel %vm1925, %v4062, %v3396
      %v4095 = vsel %vm1958, %v4063, %v3432
      %v4096 = vsel %vm1958, %v4064, %v3434
      %v4097 = vsel %vm1958, %v4065, %v3436
      %v4098 = vsel %vm1958, %v4066, %v3438
      %v4099 = vsel %vm1958, %v4067, %v3440
      %v4100 = vsel %vm1958, %v4068, %v3442
      %v4101 = vsel %vm1958, %v4069, %v3444
      %v4102 = vsel %vm1958, %v4070, %v3446
      %v4103 = vsel %vm1958, %v4071, %v3448
      %v4104 = vsel %vm1958, %v4072, %v3450
      %v4105 = vsel %vm1958, %v4073, %v3452
      %v4106 = vsel %vm1958, %v4074, %v3454
      %v4107 = vsel %vm1958, %v4075, %v3456
      %v4108 = vsel %vm1958, %v4076, %v3458
      %v4109 = vsel %vm1958, %v4077, %v3460
      %v4110 = vsel %vm1958, %v4078, %v3462
      %v4111 = vsel %vm1958, %v4079, %v3464
      %v4112 = vsel %vm1958, %v4080, %v3466
      %v4113 = vsel %vm1958, %v4081, %v3468
      %v4114 = vsel %vm1958, %v4082, %v3470
      %v4115 = vsel %vm1958, %v4083, %v3472
      %v4116 = vsel %vm1958, %v4084, %v3474
      %v4117 = vsel %vm1958, %v4085, %v3476
      %v4118 = vsel %vm1958, %v4086, %v3478
      %v4119 = vsel %vm1958, %v4087, %v3480
      %v4120 = vsel %vm1958, %v4088, %v3482
      %v4121 = vsel %vm1958, %v4089, %v3484
      %v4122 = vsel %vm1958, %v4090, %v3486
      %v4123 = vsel %vm1958, %v4091, %v3488
      %v4124 = vsel %vm1958, %v4092, %v3490
      %v4125 = vsel %vm1958, %v4093, %v3492
      %v4126 = vsel %vm1958, %v4094, %v3494
      %v4127 = vsel %vm1991, %v4095, %v3534
      %v4128 = vsel %vm1991, %v4096, %v3536
      %v4129 = vsel %vm1991, %v4097, %v3538
      %v4130 = vsel %vm1991, %v4098, %v3540
      %v4131 = vsel %vm1991, %v4099, %v3542
      %v4132 = vsel %vm1991, %v4100, %v3544
      %v4133 = vsel %vm1991, %v4101, %v3546
      %v4134 = vsel %vm1991, %v4102, %v3548
      %v4135 = vsel %vm1991, %v4103, %v3550
      %v4136 = vsel %vm1991, %v4104, %v3552
      %v4137 = vsel %vm1991, %v4105, %v3554
      %v4138 = vsel %vm1991, %v4106, %v3556
      %v4139 = vsel %vm1991, %v4107, %v3558
      %v4140 = vsel %vm1991, %v4108, %v3560
      %v4141 = vsel %vm1991, %v4109, %v3562
      %v4142 = vsel %vm1991, %v4110, %v3564
      %v4143 = vsel %vm1991, %v4111, %v3566
      %v4144 = vsel %vm1991, %v4112, %v3568
      %v4145 = vsel %vm1991, %v4113, %v3570
      %v4146 = vsel %vm1991, %v4114, %v3572
      %v4147 = vsel %vm1991, %v4115, %v3574
      %v4148 = vsel %vm1991, %v4116, %v3576
      %v4149 = vsel %vm1991, %v4117, %v3578
      %v4150 = vsel %vm1991, %v4118, %v3580
      %v4151 = vsel %vm1991, %v4119, %v3582
      %v4152 = vsel %vm1991, %v4120, %v3584
      %v4153 = vsel %vm1991, %v4121, %v3586
      %v4154 = vsel %vm1991, %v4122, %v3588
      %v4155 = vsel %vm1991, %v4123, %v3590
      %v4156 = vsel %vm1991, %v4124, %v3592
      %v4157 = vsel %vm1991, %v4125, %v3594
      %v4158 = vsel %vm1991, %v4126, %v3596
      %v4159 = vsel %vm2024, %v4127, %v3635
      %v4160 = vsel %vm2024, %v4128, %v3637
      %v4161 = vsel %vm2024, %v4129, %v3639
      %v4162 = vsel %vm2024, %v4130, %v3641
      %v4163 = vsel %vm2024, %v4131, %v3643
      %v4164 = vsel %vm2024, %v4132, %v3645
      %v4165 = vsel %vm2024, %v4133, %v3647
      %v4166 = vsel %vm2024, %v4134, %v3649
      %v4167 = vsel %vm2024, %v4135, %v3651
      %v4168 = vsel %vm2024, %v4136, %v3653
      %v4169 = vsel %vm2024, %v4137, %v3655
      %v4170 = vsel %vm2024, %v4138, %v3657
      %v4171 = vsel %vm2024, %v4139, %v3659
      %v4172 = vsel %vm2024, %v4140, %v3661
      %v4173 = vsel %vm2024, %v4141, %v3663
      %v4174 = vsel %vm2024, %v4142, %v3665
      %v4175 = vsel %vm2024, %v4143, %v3667
      %v4176 = vsel %vm2024, %v4144, %v3669
      %v4177 = vsel %vm2024, %v4145, %v3671
      %v4178 = vsel %vm2024, %v4146, %v3673
      %v4179 = vsel %vm2024, %v4147, %v3675
      %v4180 = vsel %vm2024, %v4148, %v3677
      %v4181 = vsel %vm2024, %v4149, %v3679
      %v4182 = vsel %vm2024, %v4150, %v3681
      %v4183 = vsel %vm2024, %v4151, %v3683
      %v4184 = vsel %vm2024, %v4152, %v3685
      %v4185 = vsel %vm2024, %v4153, %v3687
      %v4186 = vsel %vm2024, %v4154, %v3689
      %v4187 = vsel %vm2024, %v4155, %v3691
      %v4188 = vsel %vm2024, %v4156, %v3693
      %v4189 = vsel %vm2024, %v4157, %v3695
      %v4190 = vsel %vm2024, %v4158, %v3697
      %v4191 = vsel %vm2057, %v4159, %v3733
      %v4192 = vsel %vm2057, %v4160, %v3735
      %v4193 = vsel %vm2057, %v4161, %v3737
      %v4194 = vsel %vm2057, %v4162, %v3739
      %v4195 = vsel %vm2057, %v4163, %v3741
      %v4196 = vsel %vm2057, %v4164, %v3743
      %v4197 = vsel %vm2057, %v4165, %v3745
      %v4198 = vsel %vm2057, %v4166, %v3747
      %v4199 = vsel %vm2057, %v4167, %v3749
      %v4200 = vsel %vm2057, %v4168, %v3751
      %v4201 = vsel %vm2057, %v4169, %v3753
      %v4202 = vsel %vm2057, %v4170, %v3755
      %v4203 = vsel %vm2057, %v4171, %v3757
      %v4204 = vsel %vm2057, %v4172, %v3759
      %v4205 = vsel %vm2057, %v4173, %v3761
      %v4206 = vsel %vm2057, %v4174, %v3763
      %v4207 = vsel %vm2057, %v4175, %v3765
      %v4208 = vsel %vm2057, %v4176, %v3767
      %v4209 = vsel %vm2057, %v4177, %v3769
      %v4210 = vsel %vm2057, %v4178, %v3771
      %v4211 = vsel %vm2057, %v4179, %v3773
      %v4212 = vsel %vm2057, %v4180, %v3775
      %v4213 = vsel %vm2057, %v4181, %v3777
      %v4214 = vsel %vm2057, %v4182, %v3779
      %v4215 = vsel %vm2057, %v4183, %v3781
      %v4216 = vsel %vm2057, %v4184, %v3783
      %v4217 = vsel %vm2057, %v4185, %v3785
      %v4218 = vsel %vm2057, %v4186, %v3787
      %v4219 = vsel %vm2057, %v4187, %v3789
      %v4220 = vsel %vm2057, %v4188, %v3791
      %v4221 = vsel %vm2057, %v4189, %v3793
      %v4222 = vsel %vm2057, %v4190, %v3795
      %v4223 = vsel %vm2090, %v4191, %v3835
      %v4224 = vsel %vm2090, %v4192, %v3837
      %v4225 = vsel %vm2090, %v4193, %v3839
      %v4226 = vsel %vm2090, %v4194, %v3841
      %v4227 = vsel %vm2090, %v4195, %v3843
      %v4228 = vsel %vm2090, %v4196, %v3845
      %v4229 = vsel %vm2090, %v4197, %v3847
      %v4230 = vsel %vm2090, %v4198, %v3849
      %v4231 = vsel %vm2090, %v4199, %v3851
      %v4232 = vsel %vm2090, %v4200, %v3853
      %v4233 = vsel %vm2090, %v4201, %v3855
      %v4234 = vsel %vm2090, %v4202, %v3857
      %v4235 = vsel %vm2090, %v4203, %v3859
      %v4236 = vsel %vm2090, %v4204, %v3861
      %v4237 = vsel %vm2090, %v4205, %v3863
      %v4238 = vsel %vm2090, %v4206, %v3865
      %v4239 = vsel %vm2090, %v4207, %v3867
      %v4240 = vsel %vm2090, %v4208, %v3869
      %v4241 = vsel %vm2090, %v4209, %v3871
      %v4242 = vsel %vm2090, %v4210, %v3873
      %v4243 = vsel %vm2090, %v4211, %v3875
      %v4244 = vsel %vm2090, %v4212, %v3877
      %v4245 = vsel %vm2090, %v4213, %v3879
      %v4246 = vsel %vm2090, %v4214, %v3881
      %v4247 = vsel %vm2090, %v4215, %v3883
      %v4248 = vsel %vm2090, %v4216, %v3885
      %v4249 = vsel %vm2090, %v4217, %v3887
      %v4250 = vsel %vm2090, %v4218, %v3889
      %v4251 = vsel %vm2090, %v4219, %v3891
      %v4252 = vsel %vm2090, %v4220, %v3893
      %v4253 = vsel %vm2090, %v4221, %v3895
      %v4254 = vsel %vm2090, %v4222, %v3897
      %v4255 = vsel %vm2123, %v4223, %v3936
      %v4256 = vsel %vm2123, %v4224, %v3938
      %v4257 = vsel %vm2123, %v4225, %v3940
      %v4258 = vsel %vm2123, %v4226, %v3942
      %v4259 = vsel %vm2123, %v4227, %v3944
      %v4260 = vsel %vm2123, %v4228, %v3946
      %v4261 = vsel %vm2123, %v4229, %v3948
      %v4262 = vsel %vm2123, %v4230, %v3950
      %v4263 = vsel %vm2123, %v4231, %v3952
      %v4264 = vsel %vm2123, %v4232, %v3954
      %v4265 = vsel %vm2123, %v4233, %v3956
      %v4266 = vsel %vm2123, %v4234, %v3958
      %v4267 = vsel %vm2123, %v4235, %v3960
      %v4268 = vsel %vm2123, %v4236, %v3962
      %v4269 = vsel %vm2123, %v4237, %v3964
      %v4270 = vsel %vm2123, %v4238, %v3966
      %v4271 = vsel %vm2123, %v4239, %v3968
      %v4272 = vsel %vm2123, %v4240, %v3970
      %v4273 = vsel %vm2123, %v4241, %v3972
      %v4274 = vsel %vm2123, %v4242, %v3974
      %v4275 = vsel %vm2123, %v4243, %v3976
      %v4276 = vsel %vm2123, %v4244, %v3978
      %v4277 = vsel %vm2123, %v4245, %v3980
      %v4278 = vsel %vm2123, %v4246, %v3982
      %v4279 = vsel %vm2123, %v4247, %v3984
      %v4280 = vsel %vm2123, %v4248, %v3986
      %v4281 = vsel %vm2123, %v4249, %v3988
      %v4282 = vsel %vm2123, %v4250, %v3990
      %v4283 = vsel %vm2123, %v4251, %v3992
      %v4284 = vsel %vm2123, %v4252, %v3994
      %v4285 = vsel %vm2123, %v4253, %v3996
      %v4286 = vsel %vm2123, %v4254, %v3998
      %v4287 = vpack.c.bf16 %v4256, %v4255
      %v4288 = vpack.c.bf16 %v4258, %v4257
      %v4289 = vpack.c.bf16 %v4260, %v4259
      %v4290 = vpack.c.bf16 %v4262, %v4261
      %v4291 = vpack.c.bf16 %v4264, %v4263
      %v4292 = vpack.c.bf16 %v4266, %v4265
      %v4293 = vpack.c.bf16 %v4268, %v4267
      %v4294 = vpack.c.bf16 %v4270, %v4269
      %v4295 = vpack.c.bf16 %v4272, %v4271
      %v4296 = vpack.c.bf16 %v4274, %v4273
      %v4297 = vpack.c.bf16 %v4276, %v4275
      %v4298 = vpack.c.bf16 %v4278, %v4277
      %v4299 = vpack.c.bf16 %v4280, %v4279
      %v4300 = vpack.c.bf16 %v4282, %v4281
      %v4301 = vpack.c.bf16 %v4284, %v4283
      %v4302 = vpack.c.bf16 %v4286, %v4285
      %v4308 = vunpack.c.l.b16 %v2883
      %v4309 = vunpack.c.l.b16 %v2884
      %v4310 = vunpack.c.l.b16 %v2885
      %v4311 = vunpack.c.l.b16 %v2886
      %v4312 = vunpack.c.l.b16 %v2887
      %v4313 = vpack.c.b16 %v4309, %v4308
      %v4314 = vpack.c.b16 %v4311, %v4310
      %v4315 = vpack.c.b16 %v4312, %v4312
      %v4319 = vsel %vm2187, %v4287, 0
      %v4322 = vsel %vm2187, %v4288, 0
      %v4325 = vsel %vm2187, %v4289, 0
      %v4328 = vsel %vm2187, %v4290, 0
      %v4331 = vsel %vm2187, %v4291, 0
      %v4334 = vsel %vm2187, %v4292, 0
      %v4337 = vsel %vm2187, %v4293, 0
      %v4340 = vsel %vm2187, %v4294, 0
      %v4343 = vsel %vm2187, %v4295, 0
      %v4346 = vsel %vm2187, %v4296, 0
      %v4349 = vsel %vm2187, %v4297, 0
      %v4352 = vsel %vm2187, %v4298, 0
      %v4355 = vsel %vm2187, %v4299, 0
      %v4358 = vsel %vm2187, %v4300, 0
      %v4361 = vsel %vm2187, %v4301, 0
      %v4364 = vsel %vm2187, %v4302, 0
      %v4367 = vsel %vm2236, %v4315, 0
      %4369 = vmatprep.subr.bf16.mxu0 0
      %4370 = vmatpush1.bf16.msra.mxu0 %v4313
      %4371 = vmatprep.subr.bf16.mxu0 0
      %4372 = vmatpush1.bf16.msra.mxu0 %v4314
      %4373 = vmatprep.subr.bf16.mxu0 0
      %4374 = vmatpush1.bf16.msra.mxu0 %v4367
      %4375 = vmatprep.subr.bf16.mxu0 0
      %4376 = vmatpush1.bf16.msra.mxu0 0
      %4377 = vmatprep.subr.bf16.mxu0 0
      %4378 = vmatpush1.bf16.msra.mxu0 0
      %4379 = vmatprep.subr.bf16.mxu0 0
      %4380 = vmatpush1.bf16.msra.mxu0 0
      %4381 = vmatprep.subr.bf16.mxu0 0
      %4382 = vmatpush1.bf16.msra.mxu0 0
      %4383 = vmatprep.subr.bf16.mxu0 0
      %4384 = vmatpush1.bf16.msra.mxu0 0
      %4385 = vmatprep.subr.bf16.mxu0 0
      %4386 = vmatpush1.bf16.msra.mxu0 0
      %4387 = vmatprep.subr.bf16.mxu0 0
      %4388 = vmatpush1.bf16.msra.mxu0 0
      %4389 = vmatprep.subr.bf16.mxu0 0
      %4390 = vmatpush1.bf16.msra.mxu0 0
      %4391 = vmatprep.subr.bf16.mxu0 0
      %4392 = vmatpush1.bf16.msra.mxu0 0
      %4393 = vmatprep.subr.bf16.mxu0 0
      %4394 = vmatpush1.bf16.msra.mxu0 0
      %4395 = vmatprep.subr.bf16.mxu0 0
      %4396 = vmatpush1.bf16.msra.mxu0 0
      %4397 = vmatprep.subr.bf16.mxu0 0
      %4398 = vmatpush1.bf16.msra.mxu0 0
      %4399 = vmatprep.subr.bf16.mxu0 0
      %4400 = vmatpush1.bf16.msra.mxu0 0
      %4401 = vmatprep.mubr.bf16.mxu0 0
      %4402 = vmatmul.mubr.bf16.gmra.mrb[0].mxu0 %v4319
      %v4403 = vpop.f32.mrb[0].mxu0
      %v4404 = vadd.f32 0.0, %v4403
      %v4405 = vpop.f32.mrb[0].mxu0
      %v4406 = vpop.f32.mrb[0].mxu0
      %v4407 = vadd.f32 0.0, %v4406
      %v4408 = vpop.f32.mrb[0].mxu0
      %4409 = vmatprep.mubr.bf16.mxu0 0
      %4410 = vmatmul.mubr.bf16.gmra.mrb[0].mxu0 %v4322
      %v4411 = vpop.f32.mrb[0].mxu0
      %v4412 = vadd.f32 0.0, %v4411
      %v4413 = vpop.f32.mrb[0].mxu0
      %v4414 = vpop.f32.mrb[0].mxu0
      %v4415 = vadd.f32 0.0, %v4414
      %v4416 = vpop.f32.mrb[0].mxu0
      %4417 = vmatprep.mubr.bf16.mxu0 0
      %4418 = vmatmul.mubr.bf16.gmra.mrb[0].mxu0 %v4325
      %v4419 = vpop.f32.mrb[0].mxu0
      %v4420 = vadd.f32 0.0, %v4419
      %v4421 = vpop.f32.mrb[0].mxu0
      %v4422 = vpop.f32.mrb[0].mxu0
      %v4423 = vadd.f32 0.0, %v4422
      %v4424 = vpop.f32.mrb[0].mxu0
      %4425 = vmatprep.mubr.bf16.mxu0 0
      %4426 = vmatmul.mubr.bf16.gmra.mrb[0].mxu0 %v4328
      %v4427 = vpop.f32.mrb[0].mxu0
      %v4428 = vadd.f32 0.0, %v4427
      %v4429 = vpop.f32.mrb[0].mxu0
      %v4430 = vpop.f32.mrb[0].mxu0
      %v4431 = vadd.f32 0.0, %v4430
      %v4432 = vpop.f32.mrb[0].mxu0
      %4433 = vmatprep.mubr.bf16.mxu0 0
      %4434 = vmatmul.mubr.bf16.gmra.mrb[0].mxu0 %v4331
      %v4435 = vpop.f32.mrb[0].mxu0
      %v4436 = vadd.f32 0.0, %v4435
      %v4437 = vpop.f32.mrb[0].mxu0
      %v4438 = vpop.f32.mrb[0].mxu0
      %v4439 = vadd.f32 0.0, %v4438
      %v4440 = vpop.f32.mrb[0].mxu0
      %4441 = vmatprep.mubr.bf16.mxu0 0
      %4442 = vmatmul.mubr.bf16.gmra.mrb[0].mxu0 %v4334
      %v4443 = vpop.f32.mrb[0].mxu0
      %v4444 = vadd.f32 0.0, %v4443
      %v4445 = vpop.f32.mrb[0].mxu0
      %v4446 = vpop.f32.mrb[0].mxu0
      %v4447 = vadd.f32 0.0, %v4446
      %v4448 = vpop.f32.mrb[0].mxu0
      %4449 = vmatprep.mubr.bf16.mxu0 0
      %4450 = vmatmul.mubr.bf16.gmra.mrb[0].mxu0 %v4337
      %v4451 = vpop.f32.mrb[0].mxu0
      %v4452 = vadd.f32 0.0, %v4451
      %v4453 = vpop.f32.mrb[0].mxu0
      %v4454 = vpop.f32.mrb[0].mxu0
      %v4455 = vadd.f32 0.0, %v4454
      %v4456 = vpop.f32.mrb[0].mxu0
      %4457 = vmatprep.mubr.bf16.mxu0 0
      %4458 = vmatmul.mubr.bf16.gmra.mrb[0].mxu0 %v4340
      %v4459 = vpop.f32.mrb[0].mxu0
      %v4460 = vadd.f32 0.0, %v4459
      %v4461 = vpop.f32.mrb[0].mxu0
      %v4462 = vpop.f32.mrb[0].mxu0
      %v4463 = vadd.f32 0.0, %v4462
      %v4464 = vpop.f32.mrb[0].mxu0
      %4465 = vmatprep.mubr.bf16.mxu0 0
      %4466 = vmatmul.mubr.bf16.gmra.mrb[0].mxu0 %v4343
      %v4467 = vpop.f32.mrb[0].mxu0
      %v4468 = vadd.f32 0.0, %v4467
      %v4469 = vpop.f32.mrb[0].mxu0
      %v4470 = vpop.f32.mrb[0].mxu0
      %v4471 = vadd.f32 0.0, %v4470
      %v4472 = vpop.f32.mrb[0].mxu0
      %4473 = vmatprep.mubr.bf16.mxu0 0
      %4474 = vmatmul.mubr.bf16.gmra.mrb[0].mxu0 %v4346
      %v4475 = vpop.f32.mrb[0].mxu0
      %v4476 = vadd.f32 0.0, %v4475
      %v4477 = vpop.f32.mrb[0].mxu0
      %v4478 = vpop.f32.mrb[0].mxu0
      %v4479 = vadd.f32 0.0, %v4478
      %v4480 = vpop.f32.mrb[0].mxu0
      %4481 = vmatprep.mubr.bf16.mxu0 0
      %4482 = vmatmul.mubr.bf16.gmra.mrb[0].mxu0 %v4349
      %v4483 = vpop.f32.mrb[0].mxu0
      %v4484 = vadd.f32 0.0, %v4483
      %v4485 = vpop.f32.mrb[0].mxu0
      %v4486 = vpop.f32.mrb[0].mxu0
      %v4487 = vadd.f32 0.0, %v4486
      %v4488 = vpop.f32.mrb[0].mxu0
      %4489 = vmatprep.mubr.bf16.mxu0 0
      %4490 = vmatmul.mubr.bf16.gmra.mrb[0].mxu0 %v4352
      %v4491 = vpop.f32.mrb[0].mxu0
      %v4492 = vadd.f32 0.0, %v4491
      %v4493 = vpop.f32.mrb[0].mxu0
      %v4494 = vpop.f32.mrb[0].mxu0
      %v4495 = vadd.f32 0.0, %v4494
      %v4496 = vpop.f32.mrb[0].mxu0
      %4497 = vmatprep.mubr.bf16.mxu0 0
      %4498 = vmatmul.mubr.bf16.gmra.mrb[0].mxu0 %v4355
      %v4499 = vpop.f32.mrb[0].mxu0
      %v4500 = vadd.f32 0.0, %v4499
      %v4501 = vpop.f32.mrb[0].mxu0
      %v4502 = vpop.f32.mrb[0].mxu0
      %v4503 = vadd.f32 0.0, %v4502
      %v4504 = vpop.f32.mrb[0].mxu0
      %4505 = vmatprep.mubr.bf16.mxu0 0
      %4506 = vmatmul.mubr.bf16.gmra.mrb[0].mxu0 %v4358
      %v4507 = vpop.f32.mrb[0].mxu0
      %v4508 = vadd.f32 0.0, %v4507
      %v4509 = vpop.f32.mrb[0].mxu0
      %v4510 = vpop.f32.mrb[0].mxu0
      %v4511 = vadd.f32 0.0, %v4510
      %v4512 = vpop.f32.mrb[0].mxu0
      %4513 = vmatprep.mubr.bf16.mxu0 0
      %4514 = vmatmul.mubr.bf16.gmra.mrb[0].mxu0 %v4361
      %v4515 = vpop.f32.mrb[0].mxu0
      %v4516 = vadd.f32 0.0, %v4515
      %v4517 = vpop.f32.mrb[0].mxu0
      %v4518 = vpop.f32.mrb[0].mxu0
      %v4519 = vadd.f32 0.0, %v4518
      %v4520 = vpop.f32.mrb[0].mxu0
      %4521 = vmatprep.mubr.bf16.mxu0 0
      %4522 = vmatmul.mubr.bf16.gmra.mrb[0].mxu0 %v4364
      %v4523 = vpop.f32.mrb[0].mxu0
      %v4524 = vadd.f32 0.0, %v4523
      %v4525 = vpop.f32.mrb[0].mxu0
      %v4526 = vpop.f32.mrb[0].mxu0
      %v4527 = vadd.f32 0.0, %v4526
      %v4528 = vpop.f32.mrb[0].mxu0
      %4529 = vdwg.mxu0
      %vm4530 = vcmask 15360
      %v4531 = vsel %vm4530, %v4404, 0.0
      %v4532 = vsel %vm4530, %v4407, 0.0
      %v4533 = vadd.f32 %v4531, %v4532
      %v4534 = vrot.slane %v4533, 4
      %v4535 = vadd.f32 %v4533, %v4534
      %v4536 = vrot.slane %v4535, 2
      %v4537 = vadd.f32 %v4535, %v4536
      %v4538 = vrot.slane %v4537, 1
      %v4539 = vadd.f32 %v4537, %v4538
      %v4540 = vsel %vm4530, %v4412, 0.0
      %v4541 = vsel %vm4530, %v4415, 0.0
      %v4542 = vadd.f32 %v4540, %v4541
      %v4543 = vrot.slane %v4542, 4
      %v4544 = vadd.f32 %v4542, %v4543
      %v4545 = vrot.slane %v4544, 2
      %v4546 = vadd.f32 %v4544, %v4545
      %v4547 = vrot.slane %v4546, 1
      %v4548 = vadd.f32 %v4546, %v4547
      %v4549 = vsel %vm4530, %v4420, 0.0
      %v4550 = vsel %vm4530, %v4423, 0.0
      %v4551 = vadd.f32 %v4549, %v4550
      %v4552 = vrot.slane %v4551, 4
      %v4553 = vadd.f32 %v4551, %v4552
      %v4554 = vrot.slane %v4553, 2
      %v4555 = vadd.f32 %v4553, %v4554
      %v4556 = vrot.slane %v4555, 1
      %v4557 = vadd.f32 %v4555, %v4556
      %v4558 = vsel %vm4530, %v4428, 0.0
      %v4559 = vsel %vm4530, %v4431, 0.0
      %v4560 = vadd.f32 %v4558, %v4559
      %v4561 = vrot.slane %v4560, 4
      %v4562 = vadd.f32 %v4560, %v4561
      %v4563 = vrot.slane %v4562, 2
      %v4564 = vadd.f32 %v4562, %v4563
      %v4565 = vrot.slane %v4564, 1
      %v4566 = vadd.f32 %v4564, %v4565
      %v4567 = vsel %vm4530, %v4436, 0.0
      %v4568 = vsel %vm4530, %v4439, 0.0
      %v4569 = vadd.f32 %v4567, %v4568
      %v4570 = vrot.slane %v4569, 4
      %v4571 = vadd.f32 %v4569, %v4570
      %v4572 = vrot.slane %v4571, 2
      %v4573 = vadd.f32 %v4571, %v4572
      %v4574 = vrot.slane %v4573, 1
      %v4575 = vadd.f32 %v4573, %v4574
      %v4576 = vsel %vm4530, %v4444, 0.0
      %v4577 = vsel %vm4530, %v4447, 0.0
      %v4578 = vadd.f32 %v4576, %v4577
      %v4579 = vrot.slane %v4578, 4
      %v4580 = vadd.f32 %v4578, %v4579
      %v4581 = vrot.slane %v4580, 2
      %v4582 = vadd.f32 %v4580, %v4581
      %v4583 = vrot.slane %v4582, 1
      %v4584 = vadd.f32 %v4582, %v4583
      %v4585 = vsel %vm4530, %v4452, 0.0
      %v4586 = vsel %vm4530, %v4455, 0.0
      %v4587 = vadd.f32 %v4585, %v4586
      %v4588 = vrot.slane %v4587, 4
      %v4589 = vadd.f32 %v4587, %v4588
      %v4590 = vrot.slane %v4589, 2
      %v4591 = vadd.f32 %v4589, %v4590
      %v4592 = vrot.slane %v4591, 1
      %v4593 = vadd.f32 %v4591, %v4592
      %v4594 = vsel %vm4530, %v4460, 0.0
      %v4595 = vsel %vm4530, %v4463, 0.0
      %v4596 = vadd.f32 %v4594, %v4595
      %v4597 = vrot.slane %v4596, 4
      %v4598 = vadd.f32 %v4596, %v4597
      %v4599 = vrot.slane %v4598, 2
      %v4600 = vadd.f32 %v4598, %v4599
      %v4601 = vrot.slane %v4600, 1
      %v4602 = vadd.f32 %v4600, %v4601
      %v4603 = vsel %vm4530, %v4468, 0.0
      %v4604 = vsel %vm4530, %v4471, 0.0
      %v4605 = vadd.f32 %v4603, %v4604
      %v4606 = vrot.slane %v4605, 4
      %v4607 = vadd.f32 %v4605, %v4606
      %v4608 = vrot.slane %v4607, 2
      %v4609 = vadd.f32 %v4607, %v4608
      %v4610 = vrot.slane %v4609, 1
      %v4611 = vadd.f32 %v4609, %v4610
      %v4612 = vsel %vm4530, %v4476, 0.0
      %v4613 = vsel %vm4530, %v4479, 0.0
      %v4614 = vadd.f32 %v4612, %v4613
      %v4615 = vrot.slane %v4614, 4
      %v4616 = vadd.f32 %v4614, %v4615
      %v4617 = vrot.slane %v4616, 2
      %v4618 = vadd.f32 %v4616, %v4617
      %v4619 = vrot.slane %v4618, 1
      %v4620 = vadd.f32 %v4618, %v4619
      %v4621 = vsel %vm4530, %v4484, 0.0
      %v4622 = vsel %vm4530, %v4487, 0.0
      %v4623 = vadd.f32 %v4621, %v4622
      %v4624 = vrot.slane %v4623, 4
      %v4625 = vadd.f32 %v4623, %v4624
      %v4626 = vrot.slane %v4625, 2
      %v4627 = vadd.f32 %v4625, %v4626
      %v4628 = vrot.slane %v4627, 1
      %v4629 = vadd.f32 %v4627, %v4628
      %v4630 = vsel %vm4530, %v4492, 0.0
      %v4631 = vsel %vm4530, %v4495, 0.0
      %v4632 = vadd.f32 %v4630, %v4631
      %v4633 = vrot.slane %v4632, 4
      %v4634 = vadd.f32 %v4632, %v4633
      %v4635 = vrot.slane %v4634, 2
      %v4636 = vadd.f32 %v4634, %v4635
      %v4637 = vrot.slane %v4636, 1
      %v4638 = vadd.f32 %v4636, %v4637
      %v4639 = vsel %vm4530, %v4500, 0.0
      %v4640 = vsel %vm4530, %v4503, 0.0
      %v4641 = vadd.f32 %v4639, %v4640
      %v4642 = vrot.slane %v4641, 4
      %v4643 = vadd.f32 %v4641, %v4642
      %v4644 = vrot.slane %v4643, 2
      %v4645 = vadd.f32 %v4643, %v4644
      %v4646 = vrot.slane %v4645, 1
      %v4647 = vadd.f32 %v4645, %v4646
      %v4648 = vsel %vm4530, %v4508, 0.0
      %v4649 = vsel %vm4530, %v4511, 0.0
      %v4650 = vadd.f32 %v4648, %v4649
      %v4651 = vrot.slane %v4650, 4
      %v4652 = vadd.f32 %v4650, %v4651
      %v4653 = vrot.slane %v4652, 2
      %v4654 = vadd.f32 %v4652, %v4653
      %v4655 = vrot.slane %v4654, 1
      %v4656 = vadd.f32 %v4654, %v4655
      %v4657 = vsel %vm4530, %v4516, 0.0
      %v4658 = vsel %vm4530, %v4519, 0.0
      %v4659 = vadd.f32 %v4657, %v4658
      %v4660 = vrot.slane %v4659, 4
      %v4661 = vadd.f32 %v4659, %v4660
      %v4662 = vrot.slane %v4661, 2
      %v4663 = vadd.f32 %v4661, %v4662
      %v4664 = vrot.slane %v4663, 1
      %v4665 = vadd.f32 %v4663, %v4664
      %v4666 = vsel %vm4530, %v4524, 0.0
      %v4667 = vsel %vm4530, %v4527, 0.0
      %v4668 = vadd.f32 %v4666, %v4667
      %v4669 = vrot.slane %v4668, 4
      %v4670 = vadd.f32 %v4668, %v4669
      %v4671 = vrot.slane %v4670, 2
      %v4672 = vadd.f32 %v4670, %v4671
      %v4673 = vrot.slane %v4672, 1
      %v4674 = vadd.f32 %v4672, %v4673
      %v4675 = vsel %vm4530, %v4539, 0.0
      %v4676 = vsel %vm4530, %v4548, 0.0
      %v4677 = vadd.f32 %v4675, %v4676
      %v4678 = vsel %vm4530, %v4557, 0.0
      %v4679 = vadd.f32 %v4677, %v4678
      %v4680 = vsel %vm4530, %v4566, 0.0
      %v4681 = vadd.f32 %v4679, %v4680
      %v4682 = vsel %vm4530, %v4575, 0.0
      %v4683 = vadd.f32 %v4681, %v4682
      %v4684 = vsel %vm4530, %v4584, 0.0
      %v4685 = vadd.f32 %v4683, %v4684
      %v4686 = vsel %vm4530, %v4593, 0.0
      %v4687 = vadd.f32 %v4685, %v4686
      %v4688 = vsel %vm4530, %v4602, 0.0
      %v4689 = vadd.f32 %v4687, %v4688
      %v4690 = vsel %vm4530, %v4611, 0.0
      %v4691 = vadd.f32 %v4689, %v4690
      %v4692 = vsel %vm4530, %v4620, 0.0
      %v4693 = vadd.f32 %v4691, %v4692
      %v4694 = vsel %vm4530, %v4629, 0.0
      %v4695 = vadd.f32 %v4693, %v4694
      %v4696 = vsel %vm4530, %v4638, 0.0
      %v4697 = vadd.f32 %v4695, %v4696
      %v4698 = vsel %vm4530, %v4647, 0.0
      %v4699 = vadd.f32 %v4697, %v4698
      %v4700 = vsel %vm4530, %v4656, 0.0
      %v4701 = vadd.f32 %v4699, %v4700
      %v4702 = vsel %vm4530, %v4665, 0.0
      %v4703 = vadd.f32 %v4701, %v4702
      %v4704 = vsel %vm4530, %v4674, 0.0
      %v4705 = vadd.f32 %v4703, %v4704
      %v4706 = vmul.f32 %v4705, %v434
      %v4707 = vsub.f32 %v4404, %v4706
      %v4708 = vsub.f32 %v4407, %v4706
      %v4709 = vsub.f32 %v4412, %v4706
      %v4710 = vsub.f32 %v4415, %v4706
      %v4711 = vsub.f32 %v4420, %v4706
      %v4712 = vsub.f32 %v4423, %v4706
      %v4713 = vsub.f32 %v4428, %v4706
      %v4714 = vsub.f32 %v4431, %v4706
      %v4715 = vsub.f32 %v4436, %v4706
      %v4716 = vsub.f32 %v4439, %v4706
      %v4717 = vsub.f32 %v4444, %v4706
      %v4718 = vsub.f32 %v4447, %v4706
      %v4719 = vsub.f32 %v4452, %v4706
      %v4720 = vsub.f32 %v4455, %v4706
      %v4721 = vsub.f32 %v4460, %v4706
      %v4722 = vsub.f32 %v4463, %v4706
      %v4723 = vsub.f32 %v4468, %v4706
      %v4724 = vsub.f32 %v4471, %v4706
      %v4725 = vsub.f32 %v4476, %v4706
      %v4726 = vsub.f32 %v4479, %v4706
      %v4727 = vsub.f32 %v4484, %v4706
      %v4728 = vsub.f32 %v4487, %v4706
      %v4729 = vsub.f32 %v4492, %v4706
      %v4730 = vsub.f32 %v4495, %v4706
      %v4731 = vsub.f32 %v4500, %v4706
      %v4732 = vsub.f32 %v4503, %v4706
      %v4733 = vsub.f32 %v4508, %v4706
      %v4734 = vsub.f32 %v4511, %v4706
      %v4735 = vsub.f32 %v4516, %v4706
      %v4736 = vsub.f32 %v4519, %v4706
      %v4737 = vsub.f32 %v4524, %v4706
      %v4738 = vsub.f32 %v4527, %v4706
      %v4739 = vmul.f32 %v4707, %v4707
      %v4740 = vmul.f32 %v4708, %v4708
      %v4741 = vmul.f32 %v4709, %v4709
      %v4742 = vmul.f32 %v4710, %v4710
      %v4743 = vmul.f32 %v4711, %v4711
      %v4744 = vmul.f32 %v4712, %v4712
      %v4745 = vmul.f32 %v4713, %v4713
      %v4746 = vmul.f32 %v4714, %v4714
      %v4747 = vmul.f32 %v4715, %v4715
      %v4748 = vmul.f32 %v4716, %v4716
      %v4749 = vmul.f32 %v4717, %v4717
      %v4750 = vmul.f32 %v4718, %v4718
      %v4751 = vmul.f32 %v4719, %v4719
      %v4752 = vmul.f32 %v4720, %v4720
      %v4753 = vmul.f32 %v4721, %v4721
      %v4754 = vmul.f32 %v4722, %v4722
      %v4755 = vmul.f32 %v4723, %v4723
      %v4756 = vmul.f32 %v4724, %v4724
      %v4757 = vmul.f32 %v4725, %v4725
      %v4758 = vmul.f32 %v4726, %v4726
      %v4759 = vmul.f32 %v4727, %v4727
      %v4760 = vmul.f32 %v4728, %v4728
      %v4761 = vmul.f32 %v4729, %v4729
      %v4762 = vmul.f32 %v4730, %v4730
      %v4763 = vmul.f32 %v4731, %v4731
      %v4764 = vmul.f32 %v4732, %v4732
      %v4765 = vmul.f32 %v4733, %v4733
      %v4766 = vmul.f32 %v4734, %v4734
      %v4767 = vmul.f32 %v4735, %v4735
      %v4768 = vmul.f32 %v4736, %v4736
      %v4769 = vmul.f32 %v4737, %v4737
      %v4770 = vmul.f32 %v4738, %v4738
      %v4771 = vsel %vm4530, %v4739, 0.0
      %v4772 = vsel %vm4530, %v4740, 0.0
      %v4773 = vadd.f32 %v4771, %v4772
      %v4774 = vrot.slane %v4773, 4
      %v4775 = vadd.f32 %v4773, %v4774
      %v4776 = vrot.slane %v4775, 2
      %v4777 = vadd.f32 %v4775, %v4776
      %v4778 = vrot.slane %v4777, 1
      %v4779 = vadd.f32 %v4777, %v4778
      %v4780 = vsel %vm4530, %v4741, 0.0
      %v4781 = vsel %vm4530, %v4742, 0.0
      %v4782 = vadd.f32 %v4780, %v4781
      %v4783 = vrot.slane %v4782, 4
      %v4784 = vadd.f32 %v4782, %v4783
      %v4785 = vrot.slane %v4784, 2
      %v4786 = vadd.f32 %v4784, %v4785
      %v4787 = vrot.slane %v4786, 1
      %v4788 = vadd.f32 %v4786, %v4787
      %v4789 = vsel %vm4530, %v4743, 0.0
      %v4790 = vsel %vm4530, %v4744, 0.0
      %v4791 = vadd.f32 %v4789, %v4790
      %v4792 = vrot.slane %v4791, 4
      %v4793 = vadd.f32 %v4791, %v4792
      %v4794 = vrot.slane %v4793, 2
      %v4795 = vadd.f32 %v4793, %v4794
      %v4796 = vrot.slane %v4795, 1
      %v4797 = vadd.f32 %v4795, %v4796
      %v4798 = vsel %vm4530, %v4745, 0.0
      %v4799 = vsel %vm4530, %v4746, 0.0
      %v4800 = vadd.f32 %v4798, %v4799
      %v4801 = vrot.slane %v4800, 4
      %v4802 = vadd.f32 %v4800, %v4801
      %v4803 = vrot.slane %v4802, 2
      %v4804 = vadd.f32 %v4802, %v4803
      %v4805 = vrot.slane %v4804, 1
      %v4806 = vadd.f32 %v4804, %v4805
      %v4807 = vsel %vm4530, %v4747, 0.0
      %v4808 = vsel %vm4530, %v4748, 0.0
      %v4809 = vadd.f32 %v4807, %v4808
      %v4810 = vrot.slane %v4809, 4
      %v4811 = vadd.f32 %v4809, %v4810
      %v4812 = vrot.slane %v4811, 2
      %v4813 = vadd.f32 %v4811, %v4812
      %v4814 = vrot.slane %v4813, 1
      %v4815 = vadd.f32 %v4813, %v4814
      %v4816 = vsel %vm4530, %v4749, 0.0
      %v4817 = vsel %vm4530, %v4750, 0.0
      %v4818 = vadd.f32 %v4816, %v4817
      %v4819 = vrot.slane %v4818, 4
      %v4820 = vadd.f32 %v4818, %v4819
      %v4821 = vrot.slane %v4820, 2
      %v4822 = vadd.f32 %v4820, %v4821
      %v4823 = vrot.slane %v4822, 1
      %v4824 = vadd.f32 %v4822, %v4823
      %v4825 = vsel %vm4530, %v4751, 0.0
      %v4826 = vsel %vm4530, %v4752, 0.0
      %v4827 = vadd.f32 %v4825, %v4826
      %v4828 = vrot.slane %v4827, 4
      %v4829 = vadd.f32 %v4827, %v4828
      %v4830 = vrot.slane %v4829, 2
      %v4831 = vadd.f32 %v4829, %v4830
      %v4832 = vrot.slane %v4831, 1
      %v4833 = vadd.f32 %v4831, %v4832
      %v4834 = vsel %vm4530, %v4753, 0.0
      %v4835 = vsel %vm4530, %v4754, 0.0
      %v4836 = vadd.f32 %v4834, %v4835
      %v4837 = vrot.slane %v4836, 4
      %v4838 = vadd.f32 %v4836, %v4837
      %v4839 = vrot.slane %v4838, 2
      %v4840 = vadd.f32 %v4838, %v4839
      %v4841 = vrot.slane %v4840, 1
      %v4842 = vadd.f32 %v4840, %v4841
      %v4843 = vsel %vm4530, %v4755, 0.0
      %v4844 = vsel %vm4530, %v4756, 0.0
      %v4845 = vadd.f32 %v4843, %v4844
      %v4846 = vrot.slane %v4845, 4
      %v4847 = vadd.f32 %v4845, %v4846
      %v4848 = vrot.slane %v4847, 2
      %v4849 = vadd.f32 %v4847, %v4848
      %v4850 = vrot.slane %v4849, 1
      %v4851 = vadd.f32 %v4849, %v4850
      %v4852 = vsel %vm4530, %v4757, 0.0
      %v4853 = vsel %vm4530, %v4758, 0.0
      %v4854 = vadd.f32 %v4852, %v4853
      %v4855 = vrot.slane %v4854, 4
      %v4856 = vadd.f32 %v4854, %v4855
      %v4857 = vrot.slane %v4856, 2
      %v4858 = vadd.f32 %v4856, %v4857
      %v4859 = vrot.slane %v4858, 1
      %v4860 = vadd.f32 %v4858, %v4859
      %v4861 = vsel %vm4530, %v4759, 0.0
      %v4862 = vsel %vm4530, %v4760, 0.0
      %v4863 = vadd.f32 %v4861, %v4862
      %v4864 = vrot.slane %v4863, 4
      %v4865 = vadd.f32 %v4863, %v4864
      %v4866 = vrot.slane %v4865, 2
      %v4867 = vadd.f32 %v4865, %v4866
      %v4868 = vrot.slane %v4867, 1
      %v4869 = vadd.f32 %v4867, %v4868
      %v4870 = vsel %vm4530, %v4761, 0.0
      %v4871 = vsel %vm4530, %v4762, 0.0
      %v4872 = vadd.f32 %v4870, %v4871
      %v4873 = vrot.slane %v4872, 4
      %v4874 = vadd.f32 %v4872, %v4873
      %v4875 = vrot.slane %v4874, 2
      %v4876 = vadd.f32 %v4874, %v4875
      %v4877 = vrot.slane %v4876, 1
      %v4878 = vadd.f32 %v4876, %v4877
      %v4879 = vsel %vm4530, %v4763, 0.0
      %v4880 = vsel %vm4530, %v4764, 0.0
      %v4881 = vadd.f32 %v4879, %v4880
      %v4882 = vrot.slane %v4881, 4
      %v4883 = vadd.f32 %v4881, %v4882
      %v4884 = vrot.slane %v4883, 2
      %v4885 = vadd.f32 %v4883, %v4884
      %v4886 = vrot.slane %v4885, 1
      %v4887 = vadd.f32 %v4885, %v4886
      %v4888 = vsel %vm4530, %v4765, 0.0
      %v4889 = vsel %vm4530, %v4766, 0.0
      %v4890 = vadd.f32 %v4888, %v4889
      %v4891 = vrot.slane %v4890, 4
      %v4892 = vadd.f32 %v4890, %v4891
      %v4893 = vrot.slane %v4892, 2
      %v4894 = vadd.f32 %v4892, %v4893
      %v4895 = vrot.slane %v4894, 1
      %v4896 = vadd.f32 %v4894, %v4895
      %v4897 = vsel %vm4530, %v4767, 0.0
      %v4898 = vsel %vm4530, %v4768, 0.0
      %v4899 = vadd.f32 %v4897, %v4898
      %v4900 = vrot.slane %v4899, 4
      %v4901 = vadd.f32 %v4899, %v4900
      %v4902 = vrot.slane %v4901, 2
      %v4903 = vadd.f32 %v4901, %v4902
      %v4904 = vrot.slane %v4903, 1
      %v4905 = vadd.f32 %v4903, %v4904
      %v4906 = vsel %vm4530, %v4769, 0.0
      %v4907 = vsel %vm4530, %v4770, 0.0
      %v4908 = vadd.f32 %v4906, %v4907
      %v4909 = vrot.slane %v4908, 4
      %v4910 = vadd.f32 %v4908, %v4909
      %v4911 = vrot.slane %v4910, 2
      %v4912 = vadd.f32 %v4910, %v4911
      %v4913 = vrot.slane %v4912, 1
      %v4914 = vadd.f32 %v4912, %v4913
      %v4915 = vsel %vm4530, %v4779, 0.0
      %v4916 = vsel %vm4530, %v4788, 0.0
      %v4917 = vadd.f32 %v4915, %v4916
      %v4918 = vsel %vm4530, %v4797, 0.0
      %v4919 = vadd.f32 %v4917, %v4918
      %v4920 = vsel %vm4530, %v4806, 0.0
      %v4921 = vadd.f32 %v4919, %v4920
      %v4922 = vsel %vm4530, %v4815, 0.0
      %v4923 = vadd.f32 %v4921, %v4922
      %v4924 = vsel %vm4530, %v4824, 0.0
      %v4925 = vadd.f32 %v4923, %v4924
      %v4926 = vsel %vm4530, %v4833, 0.0
      %v4927 = vadd.f32 %v4925, %v4926
      %v4928 = vsel %vm4530, %v4842, 0.0
      %v4929 = vadd.f32 %v4927, %v4928
      %v4930 = vsel %vm4530, %v4851, 0.0
      %v4931 = vadd.f32 %v4929, %v4930
      %v4932 = vsel %vm4530, %v4860, 0.0
      %v4933 = vadd.f32 %v4931, %v4932
      %v4934 = vsel %vm4530, %v4869, 0.0
      %v4935 = vadd.f32 %v4933, %v4934
      %v4936 = vsel %vm4530, %v4878, 0.0
      %v4937 = vadd.f32 %v4935, %v4936
      %v4938 = vsel %vm4530, %v4887, 0.0
      %v4939 = vadd.f32 %v4937, %v4938
      %v4940 = vsel %vm4530, %v4896, 0.0
      %v4941 = vadd.f32 %v4939, %v4940
      %v4942 = vsel %vm4530, %v4905, 0.0
      %v4943 = vadd.f32 %v4941, %v4942
      %v4944 = vsel %vm4530, %v4914, 0.0
      %v4945 = vadd.f32 %v4943, %v4944
      %v4946 = vmul.f32 %v4945, %v434
      %v4947 = vadd.f32 %v4946, 1e-05
      %v4948 = vrsqrt.pop %v4947
      %v4949 = vmul.f32 %v4707, %v4948
      %v4950 = vmul.f32 %v4708, %v4948
      %v4951 = vmul.f32 %v4709, %v4948
      %v4952 = vmul.f32 %v4710, %v4948
      %v4953 = vmul.f32 %v4711, %v4948
      %v4954 = vmul.f32 %v4712, %v4948
      %v4955 = vmul.f32 %v4713, %v4948
      %v4956 = vmul.f32 %v4714, %v4948
      %v4957 = vmul.f32 %v4715, %v4948
      %v4958 = vmul.f32 %v4716, %v4948
      %v4959 = vmul.f32 %v4717, %v4948
      %v4960 = vmul.f32 %v4718, %v4948
      %v4961 = vmul.f32 %v4719, %v4948
      %v4962 = vmul.f32 %v4720, %v4948
      %v4963 = vmul.f32 %v4721, %v4948
      %v4964 = vmul.f32 %v4722, %v4948
      %v4965 = vmul.f32 %v4723, %v4948
      %v4966 = vmul.f32 %v4724, %v4948
      %v4967 = vmul.f32 %v4725, %v4948
      %v4968 = vmul.f32 %v4726, %v4948
      %v4969 = vmul.f32 %v4727, %v4948
      %v4970 = vmul.f32 %v4728, %v4948
      %v4971 = vmul.f32 %v4729, %v4948
      %v4972 = vmul.f32 %v4730, %v4948
      %v4973 = vmul.f32 %v4731, %v4948
      %v4974 = vmul.f32 %v4732, %v4948
      %v4975 = vmul.f32 %v4733, %v4948
      %v4976 = vmul.f32 %v4734, %v4948
      %v4977 = vmul.f32 %v4735, %v4948
      %v4978 = vmul.f32 %v4736, %v4948
      %v4979 = vmul.f32 %v4737, %v4948
      %v4980 = vmul.f32 %v4738, %v4948
      %v4981 = vmax.f32 %v4949, 0.0
      %v4982 = vmax.f32 %v4950, 0.0
      %v4983 = vmax.f32 %v4951, 0.0
      %v4984 = vmax.f32 %v4952, 0.0
      %v4985 = vmax.f32 %v4953, 0.0
      %v4986 = vmax.f32 %v4954, 0.0
      %v4987 = vmax.f32 %v4955, 0.0
      %v4988 = vmax.f32 %v4956, 0.0
      %v4989 = vmax.f32 %v4957, 0.0
      %v4990 = vmax.f32 %v4958, 0.0
      %v4991 = vmax.f32 %v4959, 0.0
      %v4992 = vmax.f32 %v4960, 0.0
      %v4993 = vmax.f32 %v4961, 0.0
      %v4994 = vmax.f32 %v4962, 0.0
      %v4995 = vmax.f32 %v4963, 0.0
      %v4996 = vmax.f32 %v4964, 0.0
      %v4997 = vmax.f32 %v4965, 0.0
      %v4998 = vmax.f32 %v4966, 0.0
      %v4999 = vmax.f32 %v4967, 0.0
      %v5000 = vmax.f32 %v4968, 0.0
      %v5001 = vmax.f32 %v4969, 0.0
      %v5002 = vmax.f32 %v4970, 0.0
      %v5003 = vmax.f32 %v4971, 0.0
      %v5004 = vmax.f32 %v4972, 0.0
      %v5005 = vmax.f32 %v4973, 0.0
      %v5006 = vmax.f32 %v4974, 0.0
      %v5007 = vmax.f32 %v4975, 0.0
      %v5008 = vmax.f32 %v4976, 0.0
      %v5009 = vmax.f32 %v4977, 0.0
      %v5010 = vmax.f32 %v4978, 0.0
      %v5011 = vmax.f32 %v4979, 0.0
      %v5012 = vmax.f32 %v4980, 0.0
      %v5013 = vld [vmem:[%s3] sm:$0xf]
      %v5014 = vld [vmem:[%s3 + $0x4] sm:$0xf]
      %v5015 = vld [vmem:[%s3 + $0x8] sm:$0x1]
      %5016 = vst.msk [vmem:[#allocation4] sm:$0xff] %vm4530, 0.0
      %5017 = vst.msk [vmem:[#allocation4 + $0x8] sm:$0xff] %vm4530, 0.0
      %vm5018 = vcmask 9216
      %5019 = vst.msk [vmem:[#allocation4 + $0x10] sm:$0x3] %vm5018, 0.0
      %5020 = vst.msk [vmem:[#allocation4 + $0x18] sm:$0xff] %vm4530, 0.0
      %5021 = vst.msk [vmem:[#allocation4 + $0x20] sm:$0xff] %vm4530, 0.0
      %5022 = vst.msk [vmem:[#allocation4 + $0x28] sm:$0x3] %vm5018, 0.0
      %5023 = vst.msk [vmem:[#allocation4 + $0x30] sm:$0xff] %vm4530, 0.0
      %5024 = vst.msk [vmem:[#allocation4 + $0x38] sm:$0xff] %vm4530, 0.0
      %5025 = vst.msk [vmem:[#allocation4 + $0x40] sm:$0x3] %vm5018, 0.0
      %5026 = vst.msk [vmem:[#allocation4 + $0x48] sm:$0xff] %vm4530, 0.0
      %5027 = vst.msk [vmem:[#allocation4 + $0x50] sm:$0xff] %vm4530, 0.0
      %5028 = vst.msk [vmem:[#allocation4 + $0x58] sm:$0x3] %vm5018, 0.0
      %5029 = vst.msk [vmem:[#allocation4 + $0x60] sm:$0xff] %vm4530, 0.0
      %5030 = vst.msk [vmem:[#allocation4 + $0x68] sm:$0xff] %vm4530, 0.0
      %5031 = vst.msk [vmem:[#allocation4 + $0x70] sm:$0x3] %vm5018, 0.0
      %5032 = vst.msk [vmem:[#allocation4 + $0x78] sm:$0xff] %vm4530, 0.0
      %5033 = vst.msk [vmem:[#allocation4 + $0x80] sm:$0xff] %vm4530, 0.0
      %5034 = vst.msk [vmem:[#allocation4 + $0x88] sm:$0x3] %vm5018, 0.0
      %5035 = vst.msk [vmem:[#allocation4 + $0x90] sm:$0xff] %vm4530, 0.0
      %5036 = vst.msk [vmem:[#allocation4 + $0x98] sm:$0xff] %vm4530, 0.0
      %5037 = vst.msk [vmem:[#allocation4 + $0xa0] sm:$0x3] %vm5018, 0.0
      %5038 = vst.msk [vmem:[#allocation4 + $0xa8] sm:$0xff] %vm4530, 0.0
      %5039 = vst.msk [vmem:[#allocation4 + $0xb0] sm:$0xff] %vm4530, 0.0
      %5040 = vst.msk [vmem:[#allocation4 + $0xb8] sm:$0x3] %vm5018, 0.0
      %5041 = vst.msk [vmem:[#allocation4 + $0xc0] sm:$0xff] %vm4530, 0.0
      %5042 = vst.msk [vmem:[#allocation4 + $0xc8] sm:$0xff] %vm4530, 0.0
      %5043 = vst.msk [vmem:[#allocation4 + $0xd0] sm:$0x3] %vm5018, 0.0
      %5044 = vst.msk [vmem:[#allocation4 + $0xd8] sm:$0xff] %vm4530, 0.0
      %5045 = vst.msk [vmem:[#allocation4 + $0xe0] sm:$0xff] %vm4530, 0.0
      %5046 = vst.msk [vmem:[#allocation4 + $0xe8] sm:$0x3] %vm5018, 0.0
      %5047 = vst.msk [vmem:[#allocation4 + $0xf0] sm:$0xff] %vm4530, 0.0
      %5048 = vst.msk [vmem:[#allocation4 + $0xf8] sm:$0xff] %vm4530, 0.0
      %5049 = vst.msk [vmem:[#allocation4 + $0x100] sm:$0x3] %vm5018, 0.0
      %5050 = vst.msk [vmem:[#allocation4 + $0x108] sm:$0xff] %vm4530, 0.0
      %5051 = vst.msk [vmem:[#allocation4 + $0x110] sm:$0xff] %vm4530, 0.0
      %5052 = vst.msk [vmem:[#allocation4 + $0x118] sm:$0x3] %vm5018, 0.0
      %5053 = vst.msk [vmem:[#allocation4 + $0x120] sm:$0xff] %vm4530, 0.0
      %5054 = vst.msk [vmem:[#allocation4 + $0x128] sm:$0xff] %vm4530, 0.0
      %5055 = vst.msk [vmem:[#allocation4 + $0x130] sm:$0x3] %vm5018, 0.0
      %5056 = vst.msk [vmem:[#allocation4 + $0x138] sm:$0xff] %vm4530, 0.0
      %5057 = vst.msk [vmem:[#allocation4 + $0x140] sm:$0xff] %vm4530, 0.0
      %5058 = vst.msk [vmem:[#allocation4 + $0x148] sm:$0x3] %vm5018, 0.0
      %5059 = vst.msk [vmem:[#allocation4 + $0x150] sm:$0xff] %vm4530, 0.0
      %5060 = vst.msk [vmem:[#allocation4 + $0x158] sm:$0xff] %vm4530, 0.0
      %5061 = vst.msk [vmem:[#allocation4 + $0x160] sm:$0x3] %vm5018, 0.0
      %5062 = vst.msk [vmem:[#allocation4 + $0x168] sm:$0xff] %vm4530, 0.0
      %5063 = vst.msk [vmem:[#allocation4 + $0x170] sm:$0xff] %vm4530, 0.0
      %5064 = vst.msk [vmem:[#allocation4 + $0x178] sm:$0x3] %vm5018, 0.0
      %5065 = vst.msk [vmem:[#allocation4 + $0x180] sm:$0xff] %vm4530, 0.0
      %5066 = vst.msk [vmem:[#allocation4 + $0x188] sm:$0xff] %vm4530, 0.0
      %5067 = vst.msk [vmem:[#allocation4 + $0x190] sm:$0x3] %vm5018, 0.0
      %5068 = vst.msk [vmem:[#allocation4 + $0x198] sm:$0xff] %vm4530, 0.0
      %5069 = vst.msk [vmem:[#allocation4 + $0x1a0] sm:$0xff] %vm4530, 0.0
      %5070 = vst.msk [vmem:[#allocation4 + $0x1a8] sm:$0x3] %vm5018, 0.0
      %s5071 = scalar_lea.vmem [#allocation4], 24
      %5072 = vst.msk [vmem:[%s5071 + $0x1] sm:$0xff] %vm4530, %v4981
      %5073 = vst.msk [vmem:[%s5071 + $0x9] sm:$0xff] %vm4530, %v4982
      %5074 = vst.msk [vmem:[%s5071 + $0x19] sm:$0xff] %vm4530, %v4983
      %5075 = vst.msk [vmem:[%s5071 + $0x21] sm:$0xff] %vm4530, %v4984
      %5076 = vst.msk [vmem:[%s5071 + $0x31] sm:$0xff] %vm4530, %v4985
      %5077 = vst.msk [vmem:[%s5071 + $0x39] sm:$0xff] %vm4530, %v4986
      %5078 = vst.msk [vmem:[%s5071 + $0x49] sm:$0xff] %vm4530, %v4987
      %5079 = vst.msk [vmem:[%s5071 + $0x51] sm:$0xff] %vm4530, %v4988
      %5080 = vst.msk [vmem:[%s5071 + $0x61] sm:$0xff] %vm4530, %v4989
      %5081 = vst.msk [vmem:[%s5071 + $0x69] sm:$0xff] %vm4530, %v4990
      %5082 = vst.msk [vmem:[%s5071 + $0x79] sm:$0xff] %vm4530, %v4991
      %5083 = vst.msk [vmem:[%s5071 + $0x81] sm:$0xff] %vm4530, %v4992
      %5084 = vst.msk [vmem:[%s5071 + $0x91] sm:$0xff] %vm4530, %v4993
      %5085 = vst.msk [vmem:[%s5071 + $0x99] sm:$0xff] %vm4530, %v4994
      %5086 = vst.msk [vmem:[%s5071 + $0xa9] sm:$0xff] %vm4530, %v4995
      %5087 = vst.msk [vmem:[%s5071 + $0xb1] sm:$0xff] %vm4530, %v4996
      %5088 = vst.msk [vmem:[%s5071 + $0xc1] sm:$0xff] %vm4530, %v4997
      %5089 = vst.msk [vmem:[%s5071 + $0xc9] sm:$0xff] %vm4530, %v4998
      %5090 = vst.msk [vmem:[%s5071 + $0xd9] sm:$0xff] %vm4530, %v4999
      %5091 = vst.msk [vmem:[%s5071 + $0xe1] sm:$0xff] %vm4530, %v5000
      %5092 = vst.msk [vmem:[%s5071 + $0xf1] sm:$0xff] %vm4530, %v5001
      %5093 = vst.msk [vmem:[%s5071 + $0xf9] sm:$0xff] %vm4530, %v5002
      %5094 = vst.msk [vmem:[%s5071 + $0x109] sm:$0xff] %vm4530, %v5003
      %5095 = vst.msk [vmem:[%s5071 + $0x111] sm:$0xff] %vm4530, %v5004
      %5096 = vst.msk [vmem:[%s5071 + $0x121] sm:$0xff] %vm4530, %v5005
      %5097 = vst.msk [vmem:[%s5071 + $0x129] sm:$0xff] %vm4530, %v5006
      %5098 = vst.msk [vmem:[%s5071 + $0x139] sm:$0xff] %vm4530, %v5007
      %5099 = vst.msk [vmem:[%s5071 + $0x141] sm:$0xff] %vm4530, %v5008
      %5100 = vst.msk [vmem:[%s5071 + $0x151] sm:$0xff] %vm4530, %v5009
      %5101 = vst.msk [vmem:[%s5071 + $0x159] sm:$0xff] %vm4530, %v5010
      %5102 = vst.msk [vmem:[%s5071 + $0x169] sm:$0xff] %vm4530, %v5011
      %5103 = vst.msk [vmem:[%s5071 + $0x171] sm:$0xff] %vm4530, %v5012
      %v5104 = vld [vmem:[#allocation4] sm:$0xff]
      %v5105 = vld [vmem:[#allocation4 + $0x8] sm:$0xff]
      %v5106 = vld [vmem:[#allocation4 + $0x10] sm:$0x3]
      %v5107 = vld [vmem:[#allocation4 + $0x18] sm:$0xff]
      %v5108 = vld [vmem:[#allocation4 + $0x20] sm:$0xff]
      %v5109 = vld [vmem:[#allocation4 + $0x28] sm:$0x3]
      %v5110 = vld [vmem:[#allocation4 + $0x30] sm:$0xff]
      %v5111 = vld [vmem:[#allocation4 + $0x38] sm:$0xff]
      %v5112 = vld [vmem:[#allocation4 + $0x40] sm:$0x3]
      %v5113 = vld [vmem:[#allocation4 + $0x48] sm:$0xff]
      %v5114 = vld [vmem:[#allocation4 + $0x50] sm:$0xff]
      %v5115 = vld [vmem:[#allocation4 + $0x58] sm:$0x3]
      %v5116 = vld [vmem:[#allocation4 + $0x60] sm:$0xff]
      %v5117 = vld [vmem:[#allocation4 + $0x68] sm:$0xff]
      %v5118 = vld [vmem:[#allocation4 + $0x70] sm:$0x3]
      %v5119 = vld [vmem:[#allocation4 + $0x78] sm:$0xff]
      %v5120 = vld [vmem:[#allocation4 + $0x80] sm:$0xff]
      %v5121 = vld [vmem:[#allocation4 + $0x88] sm:$0x3]
      %v5122 = vld [vmem:[#allocation4 + $0x90] sm:$0xff]
      %v5123 = vld [vmem:[#allocation4 + $0x98] sm:$0xff]
      %v5124 = vld [vmem:[#allocation4 + $0xa0] sm:$0x3]
      %v5125 = vld [vmem:[#allocation4 + $0xa8] sm:$0xff]
      %v5126 = vld [vmem:[#allocation4 + $0xb0] sm:$0xff]
      %v5127 = vld [vmem:[#allocation4 + $0xb8] sm:$0x3]
      %v5128 = vld [vmem:[#allocation4 + $0xc0] sm:$0xff]
      %v5129 = vld [vmem:[#allocation4 + $0xc8] sm:$0xff]
      %v5130 = vld [vmem:[#allocation4 + $0xd0] sm:$0x3]
      %v5131 = vld [vmem:[#allocation4 + $0xd8] sm:$0xff]
      %v5132 = vld [vmem:[#allocation4 + $0xe0] sm:$0xff]
      %v5133 = vld [vmem:[#allocation4 + $0xe8] sm:$0x3]
      %v5134 = vld [vmem:[#allocation4 + $0xf0] sm:$0xff]
      %v5135 = vld [vmem:[#allocation4 + $0xf8] sm:$0xff]
      %v5136 = vld [vmem:[#allocation4 + $0x100] sm:$0x3]
      %v5137 = vld [vmem:[#allocation4 + $0x108] sm:$0xff]
      %v5138 = vld [vmem:[#allocation4 + $0x110] sm:$0xff]
      %v5139 = vld [vmem:[#allocation4 + $0x118] sm:$0x3]
      %v5140 = vld [vmem:[#allocation4 + $0x120] sm:$0xff]
      %v5141 = vld [vmem:[#allocation4 + $0x128] sm:$0xff]
      %v5142 = vld [vmem:[#allocation4 + $0x130] sm:$0x3]
      %v5143 = vld [vmem:[#allocation4 + $0x138] sm:$0xff]
      %v5144 = vld [vmem:[#allocation4 + $0x140] sm:$0xff]
      %v5145 = vld [vmem:[#allocation4 + $0x148] sm:$0x3]
      %v5146 = vld [vmem:[#allocation4 + $0x150] sm:$0xff]
      %v5147 = vld [vmem:[#allocation4 + $0x158] sm:$0xff]
      %v5148 = vld [vmem:[#allocation4 + $0x160] sm:$0x3]
      %v5149 = vld [vmem:[#allocation4 + $0x168] sm:$0xff]
      %v5150 = vld [vmem:[#allocation4 + $0x170] sm:$0xff]
      %v5151 = vld [vmem:[#allocation4 + $0x178] sm:$0x3]
      %v5152 = vld [vmem:[#allocation4 + $0x180] sm:$0xff]
      %v5153 = vld [vmem:[#allocation4 + $0x188] sm:$0xff]
      %v5154 = vld [vmem:[#allocation4 + $0x190] sm:$0x3]
      %v5155 = vld [vmem:[#allocation4 + $0x198] sm:$0xff]
      %v5156 = vld [vmem:[#allocation4 + $0x1a0] sm:$0xff]
      %v5157 = vld [vmem:[#allocation4 + $0x1a8] sm:$0x3]
      %v5206 = vrot.slane %v5104, 1
      %v5207 = vrot.slane %v5105, 1
      %v5208 = vsel %vm937, %v5206, %v5207
      %v5209 = vrot.slane %v5106, 1
      %v5210 = vsel %vm937, %v5207, %v5209
      %v5211 = vrot.slane %v5107, 1
      %v5212 = vrot.slane %v5108, 1
      %v5213 = vsel %vm937, %v5211, %v5212
      %v5214 = vrot.slane %v5109, 1
      %v5215 = vsel %vm937, %v5212, %v5214
      %v5216 = vrot.slane %v5110, 1
      %v5217 = vrot.slane %v5111, 1
      %v5218 = vsel %vm937, %v5216, %v5217
      %v5219 = vrot.slane %v5112, 1
      %v5220 = vsel %vm937, %v5217, %v5219
      %v5221 = vrot.slane %v5113, 1
      %v5222 = vrot.slane %v5114, 1
      %v5223 = vsel %vm937, %v5221, %v5222
      %v5224 = vrot.slane %v5115, 1
      %v5225 = vsel %vm937, %v5222, %v5224
      %v5226 = vrot.slane %v5116, 1
      %v5227 = vrot.slane %v5117, 1
      %v5228 = vsel %vm937, %v5226, %v5227
      %v5229 = vrot.slane %v5118, 1
      %v5230 = vsel %vm937, %v5227, %v5229
      %v5231 = vrot.slane %v5119, 1
      %v5232 = vrot.slane %v5120, 1
      %v5233 = vsel %vm937, %v5231, %v5232
      %v5234 = vrot.slane %v5121, 1
      %v5235 = vsel %vm937, %v5232, %v5234
      %v5236 = vrot.slane %v5122, 1
      %v5237 = vrot.slane %v5123, 1
      %v5238 = vsel %vm937, %v5236, %v5237
      %v5239 = vrot.slane %v5124, 1
      %v5240 = vsel %vm937, %v5237, %v5239
      %v5241 = vrot.slane %v5125, 1
      %v5242 = vrot.slane %v5126, 1
      %v5243 = vsel %vm937, %v5241, %v5242
      %v5244 = vrot.slane %v5127, 1
      %v5245 = vsel %vm937, %v5242, %v5244
      %v5246 = vrot.slane %v5128, 1
      %v5247 = vrot.slane %v5129, 1
      %v5248 = vsel %vm937, %v5246, %v5247
      %v5249 = vrot.slane %v5130, 1
      %v5250 = vsel %vm937, %v5247, %v5249
      %v5251 = vrot.slane %v5131, 1
      %v5252 = vrot.slane %v5132, 1
      %v5253 = vsel %vm937, %v5251, %v5252
      %v5254 = vrot.slane %v5133, 1
      %v5255 = vsel %vm937, %v5252, %v5254
      %v5256 = vrot.slane %v5134, 1
      %v5257 = vrot.slane %v5135, 1
      %v5258 = vsel %vm937, %v5256, %v5257
      %v5259 = vrot.slane %v5136, 1
      %v5260 = vsel %vm937, %v5257, %v5259
      %v5261 = vrot.slane %v5137, 1
      %v5262 = vrot.slane %v5138, 1
      %v5263 = vsel %vm937, %v5261, %v5262
      %v5264 = vrot.slane %v5139, 1
      %v5265 = vsel %vm937, %v5262, %v5264
      %v5266 = vrot.slane %v5140, 1
      %v5267 = vrot.slane %v5141, 1
      %v5268 = vsel %vm937, %v5266, %v5267
      %v5269 = vrot.slane %v5142, 1
      %v5270 = vsel %vm937, %v5267, %v5269
      %v5271 = vrot.slane %v5143, 1
      %v5272 = vrot.slane %v5144, 1
      %v5273 = vsel %vm937, %v5271, %v5272
      %v5274 = vrot.slane %v5145, 1
      %v5275 = vsel %vm937, %v5272, %v5274
      %v5276 = vrot.slane %v5146, 1
      %v5277 = vrot.slane %v5147, 1
      %v5278 = vsel %vm937, %v5276, %v5277
      %v5279 = vrot.slane %v5148, 1
      %v5280 = vsel %vm937, %v5277, %v5279
      %v5281 = vrot.slane %v5149, 1
      %v5282 = vrot.slane %v5150, 1
      %v5283 = vsel %vm937, %v5281, %v5282
      %v5284 = vrot.slane %v5151, 1
      %v5285 = vsel %vm937, %v5282, %v5284
      %5286 = vrot.lane.b32.xlu0 %v5208, 2
      %v5287 = vpop.permute.xlu0 %5286
      %5288 = vrot.lane.b32.xlu0 %v5210, 2
      %v5289 = vpop.permute.xlu0 %5288
      %5290 = vrot.lane.b32.xlu0 %v5213, 2
      %v5291 = vpop.permute.xlu0 %5290
      %5292 = vrot.lane.b32.xlu0 %v5215, 2
      %v5293 = vpop.permute.xlu0 %5292
      %5294 = vrot.lane.b32.xlu0 %v5218, 2
      %v5295 = vpop.permute.xlu0 %5294
      %5296 = vrot.lane.b32.xlu0 %v5220, 2
      %v5297 = vpop.permute.xlu0 %5296
      %5298 = vrot.lane.b32.xlu0 %v5223, 2
      %v5299 = vpop.permute.xlu0 %5298
      %5300 = vrot.lane.b32.xlu0 %v5225, 2
      %v5301 = vpop.permute.xlu0 %5300
      %5302 = vrot.lane.b32.xlu0 %v5228, 2
      %v5303 = vpop.permute.xlu0 %5302
      %5304 = vrot.lane.b32.xlu0 %v5230, 2
      %v5305 = vpop.permute.xlu0 %5304
      %5306 = vrot.lane.b32.xlu0 %v5233, 2
      %v5307 = vpop.permute.xlu0 %5306
      %5308 = vrot.lane.b32.xlu0 %v5235, 2
      %v5309 = vpop.permute.xlu0 %5308
      %5310 = vrot.lane.b32.xlu0 %v5238, 2
      %v5311 = vpop.permute.xlu0 %5310
      %5312 = vrot.lane.b32.xlu0 %v5240, 2
      %v5313 = vpop.permute.xlu0 %5312
      %5314 = vrot.lane.b32.xlu0 %v5243, 2
      %v5315 = vpop.permute.xlu0 %5314
      %5316 = vrot.lane.b32.xlu0 %v5245, 2
      %v5317 = vpop.permute.xlu0 %5316
      %5318 = vrot.lane.b32.xlu0 %v5248, 2
      %v5319 = vpop.permute.xlu0 %5318
      %5320 = vrot.lane.b32.xlu0 %v5250, 2
      %v5321 = vpop.permute.xlu0 %5320
      %5322 = vrot.lane.b32.xlu0 %v5253, 2
      %v5323 = vpop.permute.xlu0 %5322
      %5324 = vrot.lane.b32.xlu0 %v5255, 2
      %v5325 = vpop.permute.xlu0 %5324
      %5326 = vrot.lane.b32.xlu0 %v5258, 2
      %v5327 = vpop.permute.xlu0 %5326
      %5328 = vrot.lane.b32.xlu0 %v5260, 2
      %v5329 = vpop.permute.xlu0 %5328
      %5330 = vrot.lane.b32.xlu0 %v5263, 2
      %v5331 = vpop.permute.xlu0 %5330
      %5332 = vrot.lane.b32.xlu0 %v5265, 2
      %v5333 = vpop.permute.xlu0 %5332
      %5334 = vrot.lane.b32.xlu0 %v5268, 2
      %v5335 = vpop.permute.xlu0 %5334
      %5336 = vrot.lane.b32.xlu0 %v5270, 2
      %v5337 = vpop.permute.xlu0 %5336
      %5338 = vrot.lane.b32.xlu0 %v5273, 2
      %v5339 = vpop.permute.xlu0 %5338
      %5340 = vrot.lane.b32.xlu0 %v5275, 2
      %v5341 = vpop.permute.xlu0 %5340
      %5342 = vrot.lane.b32.xlu0 %v5278, 2
      %v5343 = vpop.permute.xlu0 %5342
      %5344 = vrot.lane.b32.xlu0 %v5280, 2
      %v5345 = vpop.permute.xlu0 %5344
      %5346 = vrot.lane.b32.xlu0 %v5283, 2
      %v5347 = vpop.permute.xlu0 %5346
      %5348 = vrot.lane.b32.xlu0 %v5285, 2
      %v5349 = vpop.permute.xlu0 %5348
      %v5382 = vrot.slane %v5104, 2
      %v5383 = vrot.slane %v5105, 2
      %v5384 = vsel %vm1114, %v5382, %v5383
      %v5385 = vrot.slane %v5106, 2
      %v5386 = vsel %vm1114, %v5383, %v5385
      %v5387 = vrot.slane %v5107, 2
      %v5388 = vrot.slane %v5108, 2
      %v5389 = vsel %vm1114, %v5387, %v5388
      %v5390 = vrot.slane %v5109, 2
      %v5391 = vsel %vm1114, %v5388, %v5390
      %v5392 = vrot.slane %v5110, 2
      %v5393 = vrot.slane %v5111, 2
      %v5394 = vsel %vm1114, %v5392, %v5393
      %v5395 = vrot.slane %v5112, 2
      %v5396 = vsel %vm1114, %v5393, %v5395
      %v5397 = vrot.slane %v5113, 2
      %v5398 = vrot.slane %v5114, 2
      %v5399 = vsel %vm1114, %v5397, %v5398
      %v5400 = vrot.slane %v5115, 2
      %v5401 = vsel %vm1114, %v5398, %v5400
      %v5402 = vrot.slane %v5116, 2
      %v5403 = vrot.slane %v5117, 2
      %v5404 = vsel %vm1114, %v5402, %v5403
      %v5405 = vrot.slane %v5118, 2
      %v5406 = vsel %vm1114, %v5403, %v5405
      %v5407 = vrot.slane %v5119, 2
      %v5408 = vrot.slane %v5120, 2
      %v5409 = vsel %vm1114, %v5407, %v5408
      %v5410 = vrot.slane %v5121, 2
      %v5411 = vsel %vm1114, %v5408, %v5410
      %v5412 = vrot.slane %v5122, 2
      %v5413 = vrot.slane %v5123, 2
      %v5414 = vsel %vm1114, %v5412, %v5413
      %v5415 = vrot.slane %v5124, 2
      %v5416 = vsel %vm1114, %v5413, %v5415
      %v5417 = vrot.slane %v5125, 2
      %v5418 = vrot.slane %v5126, 2
      %v5419 = vsel %vm1114, %v5417, %v5418
      %v5420 = vrot.slane %v5127, 2
      %v5421 = vsel %vm1114, %v5418, %v5420
      %v5422 = vrot.slane %v5128, 2
      %v5423 = vrot.slane %v5129, 2
      %v5424 = vsel %vm1114, %v5422, %v5423
      %v5425 = vrot.slane %v5130, 2
      %v5426 = vsel %vm1114, %v5423, %v5425
      %v5427 = vrot.slane %v5131, 2
      %v5428 = vrot.slane %v5132, 2
      %v5429 = vsel %vm1114, %v5427, %v5428
      %v5430 = vrot.slane %v5133, 2
      %v5431 = vsel %vm1114, %v5428, %v5430
      %v5432 = vrot.slane %v5134, 2
      %v5433 = vrot.slane %v5135, 2
      %v5434 = vsel %vm1114, %v5432, %v5433
      %v5435 = vrot.slane %v5136, 2
      %v5436 = vsel %vm1114, %v5433, %v5435
      %v5437 = vrot.slane %v5137, 2
      %v5438 = vrot.slane %v5138, 2
      %v5439 = vsel %vm1114, %v5437, %v5438
      %v5440 = vrot.slane %v5139, 2
      %v5441 = vsel %vm1114, %v5438, %v5440
      %v5442 = vrot.slane %v5140, 2
      %v5443 = vrot.slane %v5141, 2
      %v5444 = vsel %vm1114, %v5442, %v5443
      %v5445 = vrot.slane %v5142, 2
      %v5446 = vsel %vm1114, %v5443, %v5445
      %v5447 = vrot.slane %v5143, 2
      %v5448 = vrot.slane %v5144, 2
      %v5449 = vsel %vm1114, %v5447, %v5448
      %v5450 = vrot.slane %v5145, 2
      %v5451 = vsel %vm1114, %v5448, %v5450
      %v5452 = vrot.slane %v5146, 2
      %v5453 = vrot.slane %v5147, 2
      %v5454 = vsel %vm1114, %v5452, %v5453
      %v5455 = vrot.slane %v5148, 2
      %v5456 = vsel %vm1114, %v5453, %v5455
      %v5457 = vrot.slane %v5149, 2
      %v5458 = vrot.slane %v5150, 2
      %v5459 = vsel %vm1114, %v5457, %v5458
      %v5460 = vrot.slane %v5151, 2
      %v5461 = vsel %vm1114, %v5458, %v5460
      %5462 = vrot.lane.b32.xlu0 %v5384, 4
      %v5463 = vpop.permute.xlu0 %5462
      %5464 = vrot.lane.b32.xlu0 %v5386, 4
      %v5465 = vpop.permute.xlu0 %5464
      %5466 = vrot.lane.b32.xlu0 %v5389, 4
      %v5467 = vpop.permute.xlu0 %5466
      %5468 = vrot.lane.b32.xlu0 %v5391, 4
      %v5469 = vpop.permute.xlu0 %5468
      %5470 = vrot.lane.b32.xlu0 %v5394, 4
      %v5471 = vpop.permute.xlu0 %5470
      %5472 = vrot.lane.b32.xlu0 %v5396, 4
      %v5473 = vpop.permute.xlu0 %5472
      %5474 = vrot.lane.b32.xlu0 %v5399, 4
      %v5475 = vpop.permute.xlu0 %5474
      %5476 = vrot.lane.b32.xlu0 %v5401, 4
      %v5477 = vpop.permute.xlu0 %5476
      %5478 = vrot.lane.b32.xlu0 %v5404, 4
      %v5479 = vpop.permute.xlu0 %5478
      %5480 = vrot.lane.b32.xlu0 %v5406, 4
      %v5481 = vpop.permute.xlu0 %5480
      %5482 = vrot.lane.b32.xlu0 %v5409, 4
      %v5483 = vpop.permute.xlu0 %5482
      %5484 = vrot.lane.b32.xlu0 %v5411, 4
      %v5485 = vpop.permute.xlu0 %5484
      %5486 = vrot.lane.b32.xlu0 %v5414, 4
      %v5487 = vpop.permute.xlu0 %5486
      %5488 = vrot.lane.b32.xlu0 %v5416, 4
      %v5489 = vpop.permute.xlu0 %5488
      %5490 = vrot.lane.b32.xlu0 %v5419, 4
      %v5491 = vpop.permute.xlu0 %5490
      %5492 = vrot.lane.b32.xlu0 %v5421, 4
      %v5493 = vpop.permute.xlu0 %5492
      %5494 = vrot.lane.b32.xlu0 %v5424, 4
      %v5495 = vpop.permute.xlu0 %5494
      %5496 = vrot.lane.b32.xlu0 %v5426, 4
      %v5497 = vpop.permute.xlu0 %5496
      %5498 = vrot.lane.b32.xlu0 %v5429, 4
      %v5499 = vpop.permute.xlu0 %5498
      %5500 = vrot.lane.b32.xlu0 %v5431, 4
      %v5501 = vpop.permute.xlu0 %5500
      %5502 = vrot.lane.b32.xlu0 %v5434, 4
      %v5503 = vpop.permute.xlu0 %5502
      %5504 = vrot.lane.b32.xlu0 %v5436, 4
      %v5505 = vpop.permute.xlu0 %5504
      %5506 = vrot.lane.b32.xlu0 %v5439, 4
      %v5507 = vpop.permute.xlu0 %5506
      %5508 = vrot.lane.b32.xlu0 %v5441, 4
      %v5509 = vpop.permute.xlu0 %5508
      %5510 = vrot.lane.b32.xlu0 %v5444, 4
      %v5511 = vpop.permute.xlu0 %5510
      %5512 = vrot.lane.b32.xlu0 %v5446, 4
      %v5513 = vpop.permute.xlu0 %5512
      %5514 = vrot.lane.b32.xlu0 %v5449, 4
      %v5515 = vpop.permute.xlu0 %5514
      %5516 = vrot.lane.b32.xlu0 %v5451, 4
      %v5517 = vpop.permute.xlu0 %5516
      %5518 = vrot.lane.b32.xlu0 %v5454, 4
      %v5519 = vpop.permute.xlu0 %5518
      %5520 = vrot.lane.b32.xlu0 %v5456, 4
      %v5521 = vpop.permute.xlu0 %5520
      %5522 = vrot.lane.b32.xlu0 %v5459, 4
      %v5523 = vpop.permute.xlu0 %5522
      %5524 = vrot.lane.b32.xlu0 %v5461, 4
      %v5525 = vpop.permute.xlu0 %5524
      %5560 = vrot.lane.b32.xlu0 %v5107, 6
      %v5561 = vpop.permute.xlu0 %5560
      %5562 = vrot.lane.b32.xlu0 %v5108, 6
      %v5563 = vpop.permute.xlu0 %5562
      %5564 = vrot.lane.b32.xlu0 %v5110, 6
      %v5565 = vpop.permute.xlu0 %5564
      %5566 = vrot.lane.b32.xlu0 %v5111, 6
      %v5567 = vpop.permute.xlu0 %5566
      %5568 = vrot.lane.b32.xlu0 %v5113, 6
      %v5569 = vpop.permute.xlu0 %5568
      %5570 = vrot.lane.b32.xlu0 %v5114, 6
      %v5571 = vpop.permute.xlu0 %5570
      %5572 = vrot.lane.b32.xlu0 %v5116, 6
      %v5573 = vpop.permute.xlu0 %5572
      %5574 = vrot.lane.b32.xlu0 %v5117, 6
      %v5575 = vpop.permute.xlu0 %5574
      %5576 = vrot.lane.b32.xlu0 %v5119, 6
      %v5577 = vpop.permute.xlu0 %5576
      %5578 = vrot.lane.b32.xlu0 %v5120, 6
      %v5579 = vpop.permute.xlu0 %5578
      %5580 = vrot.lane.b32.xlu0 %v5122, 6
      %v5581 = vpop.permute.xlu0 %5580
      %5582 = vrot.lane.b32.xlu0 %v5123, 6
      %v5583 = vpop.permute.xlu0 %5582
      %5584 = vrot.lane.b32.xlu0 %v5125, 6
      %v5585 = vpop.permute.xlu0 %5584
      %5586 = vrot.lane.b32.xlu0 %v5126, 6
      %v5587 = vpop.permute.xlu0 %5586
      %5588 = vrot.lane.b32.xlu0 %v5128, 6
      %v5589 = vpop.permute.xlu0 %5588
      %5590 = vrot.lane.b32.xlu0 %v5129, 6
      %v5591 = vpop.permute.xlu0 %5590
      %5592 = vrot.lane.b32.xlu0 %v5131, 6
      %v5593 = vpop.permute.xlu0 %5592
      %5594 = vrot.lane.b32.xlu0 %v5132, 6
      %v5595 = vpop.permute.xlu0 %5594
      %5596 = vrot.lane.b32.xlu0 %v5134, 6
      %v5597 = vpop.permute.xlu0 %5596
      %5598 = vrot.lane.b32.xlu0 %v5135, 6
      %v5599 = vpop.permute.xlu0 %5598
      %5600 = vrot.lane.b32.xlu0 %v5137, 6
      %v5601 = vpop.permute.xlu0 %5600
      %5602 = vrot.lane.b32.xlu0 %v5138, 6
      %v5603 = vpop.permute.xlu0 %5602
      %5604 = vrot.lane.b32.xlu0 %v5140, 6
      %v5605 = vpop.permute.xlu0 %5604
      %5606 = vrot.lane.b32.xlu0 %v5141, 6
      %v5607 = vpop.permute.xlu0 %5606
      %5608 = vrot.lane.b32.xlu0 %v5143, 6
      %v5609 = vpop.permute.xlu0 %5608
      %5610 = vrot.lane.b32.xlu0 %v5144, 6
      %v5611 = vpop.permute.xlu0 %5610
      %5612 = vrot.lane.b32.xlu0 %v5146, 6
      %v5613 = vpop.permute.xlu0 %5612
      %5614 = vrot.lane.b32.xlu0 %v5147, 6
      %v5615 = vpop.permute.xlu0 %5614
      %5616 = vrot.lane.b32.xlu0 %v5149, 6
      %v5617 = vpop.permute.xlu0 %5616
      %5618 = vrot.lane.b32.xlu0 %v5150, 6
      %v5619 = vpop.permute.xlu0 %5618
      %5620 = vrot.lane.b32.xlu0 %v5152, 6
      %v5621 = vpop.permute.xlu0 %5620
      %5622 = vrot.lane.b32.xlu0 %v5153, 6
      %v5623 = vpop.permute.xlu0 %5622
      %v5657 = vrot.slane %v5152, 1
      %v5658 = vrot.slane %v5153, 1
      %v5659 = vsel %vm937, %v5657, %v5658
      %v5660 = vrot.slane %v5154, 1
      %v5661 = vsel %vm937, %v5658, %v5660
      %5662 = vrot.lane.b32.xlu0 %v5213, 8
      %v5663 = vpop.permute.xlu0 %5662
      %5664 = vrot.lane.b32.xlu0 %v5215, 8
      %v5665 = vpop.permute.xlu0 %5664
      %5666 = vrot.lane.b32.xlu0 %v5218, 8
      %v5667 = vpop.permute.xlu0 %5666
      %5668 = vrot.lane.b32.xlu0 %v5220, 8
      %v5669 = vpop.permute.xlu0 %5668
      %5670 = vrot.lane.b32.xlu0 %v5223, 8
      %v5671 = vpop.permute.xlu0 %5670
      %5672 = vrot.lane.b32.xlu0 %v5225, 8
      %v5673 = vpop.permute.xlu0 %5672
      %5674 = vrot.lane.b32.xlu0 %v5228, 8
      %v5675 = vpop.permute.xlu0 %5674
      %5676 = vrot.lane.b32.xlu0 %v5230, 8
      %v5677 = vpop.permute.xlu0 %5676
      %5678 = vrot.lane.b32.xlu0 %v5233, 8
      %v5679 = vpop.permute.xlu0 %5678
      %5680 = vrot.lane.b32.xlu0 %v5235, 8
      %v5681 = vpop.permute.xlu0 %5680
      %5682 = vrot.lane.b32.xlu0 %v5238, 8
      %v5683 = vpop.permute.xlu0 %5682
      %5684 = vrot.lane.b32.xlu0 %v5240, 8
      %v5685 = vpop.permute.xlu0 %5684
      %5686 = vrot.lane.b32.xlu0 %v5243, 8
      %v5687 = vpop.permute.xlu0 %5686
      %5688 = vrot.lane.b32.xlu0 %v5245, 8
      %v5689 = vpop.permute.xlu0 %5688
      %5690 = vrot.lane.b32.xlu0 %v5248, 8
      %v5691 = vpop.permute.xlu0 %5690
      %5692 = vrot.lane.b32.xlu0 %v5250, 8
      %v5693 = vpop.permute.xlu0 %5692
      %5694 = vrot.lane.b32.xlu0 %v5253, 8
      %v5695 = vpop.permute.xlu0 %5694
      %5696 = vrot.lane.b32.xlu0 %v5255, 8
      %v5697 = vpop.permute.xlu0 %5696
      %5698 = vrot.lane.b32.xlu0 %v5258, 8
      %v5699 = vpop.permute.xlu0 %5698
      %5700 = vrot.lane.b32.xlu0 %v5260, 8
      %v5701 = vpop.permute.xlu0 %5700
      %5702 = vrot.lane.b32.xlu0 %v5263, 8
      %v5703 = vpop.permute.xlu0 %5702
      %5704 = vrot.lane.b32.xlu0 %v5265, 8
      %v5705 = vpop.permute.xlu0 %5704
      %5706 = vrot.lane.b32.xlu0 %v5268, 8
      %v5707 = vpop.permute.xlu0 %5706
      %5708 = vrot.lane.b32.xlu0 %v5270, 8
      %v5709 = vpop.permute.xlu0 %5708
      %5710 = vrot.lane.b32.xlu0 %v5273, 8
      %v5711 = vpop.permute.xlu0 %5710
      %5712 = vrot.lane.b32.xlu0 %v5275, 8
      %v5713 = vpop.permute.xlu0 %5712
      %5714 = vrot.lane.b32.xlu0 %v5278, 8
      %v5715 = vpop.permute.xlu0 %5714
      %5716 = vrot.lane.b32.xlu0 %v5280, 8
      %v5717 = vpop.permute.xlu0 %5716
      %5718 = vrot.lane.b32.xlu0 %v5283, 8
      %v5719 = vpop.permute.xlu0 %5718
      %5720 = vrot.lane.b32.xlu0 %v5285, 8
      %v5721 = vpop.permute.xlu0 %5720
      %5722 = vrot.lane.b32.xlu0 %v5659, 8
      %v5723 = vpop.permute.xlu0 %5722
      %5724 = vrot.lane.b32.xlu0 %v5661, 8
      %v5725 = vpop.permute.xlu0 %5724
      %v5758 = vrot.slane %v5152, 2
      %v5759 = vrot.slane %v5153, 2
      %v5760 = vsel %vm1114, %v5758, %v5759
      %v5761 = vrot.slane %v5154, 2
      %v5762 = vsel %vm1114, %v5759, %v5761
      %5763 = vrot.lane.b32.xlu0 %v5389, 10
      %v5764 = vpop.permute.xlu0 %5763
      %5765 = vrot.lane.b32.xlu0 %v5391, 10
      %v5766 = vpop.permute.xlu0 %5765
      %5767 = vrot.lane.b32.xlu0 %v5394, 10
      %v5768 = vpop.permute.xlu0 %5767
      %5769 = vrot.lane.b32.xlu0 %v5396, 10
      %v5770 = vpop.permute.xlu0 %5769
      %5771 = vrot.lane.b32.xlu0 %v5399, 10
      %v5772 = vpop.permute.xlu0 %5771
      %5773 = vrot.lane.b32.xlu0 %v5401, 10
      %v5774 = vpop.permute.xlu0 %5773
      %5775 = vrot.lane.b32.xlu0 %v5404, 10
      %v5776 = vpop.permute.xlu0 %5775
      %5777 = vrot.lane.b32.xlu0 %v5406, 10
      %v5778 = vpop.permute.xlu0 %5777
      %5779 = vrot.lane.b32.xlu0 %v5409, 10
      %v5780 = vpop.permute.xlu0 %5779
      %5781 = vrot.lane.b32.xlu0 %v5411, 10
      %v5782 = vpop.permute.xlu0 %5781
      %5783 = vrot.lane.b32.xlu0 %v5414, 10
      %v5784 = vpop.permute.xlu0 %5783
      %5785 = vrot.lane.b32.xlu0 %v5416, 10
      %v5786 = vpop.permute.xlu0 %5785
      %5787 = vrot.lane.b32.xlu0 %v5419, 10
      %v5788 = vpop.permute.xlu0 %5787
      %5789 = vrot.lane.b32.xlu0 %v5421, 10
      %v5790 = vpop.permute.xlu0 %5789
      %5791 = vrot.lane.b32.xlu0 %v5424, 10
      %v5792 = vpop.permute.xlu0 %5791
      %5793 = vrot.lane.b32.xlu0 %v5426, 10
      %v5794 = vpop.permute.xlu0 %5793
      %5795 = vrot.lane.b32.xlu0 %v5429, 10
      %v5796 = vpop.permute.xlu0 %5795
      %5797 = vrot.lane.b32.xlu0 %v5431, 10
      %v5798 = vpop.permute.xlu0 %5797
      %5799 = vrot.lane.b32.xlu0 %v5434, 10
      %v5800 = vpop.permute.xlu0 %5799
      %5801 = vrot.lane.b32.xlu0 %v5436, 10
      %v5802 = vpop.permute.xlu0 %5801
      %5803 = vrot.lane.b32.xlu0 %v5439, 10
      %v5804 = vpop.permute.xlu0 %5803
      %5805 = vrot.lane.b32.xlu0 %v5441, 10
      %v5806 = vpop.permute.xlu0 %5805
      %5807 = vrot.lane.b32.xlu0 %v5444, 10
      %v5808 = vpop.permute.xlu0 %5807
      %5809 = vrot.lane.b32.xlu0 %v5446, 10
      %v5810 = vpop.permute.xlu0 %5809
      %5811 = vrot.lane.b32.xlu0 %v5449, 10
      %v5812 = vpop.permute.xlu0 %5811
      %5813 = vrot.lane.b32.xlu0 %v5451, 10
      %v5814 = vpop.permute.xlu0 %5813
      %5815 = vrot.lane.b32.xlu0 %v5454, 10
      %v5816 = vpop.permute.xlu0 %5815
      %5817 = vrot.lane.b32.xlu0 %v5456, 10
      %v5818 = vpop.permute.xlu0 %5817
      %5819 = vrot.lane.b32.xlu0 %v5459, 10
      %v5820 = vpop.permute.xlu0 %5819
      %5821 = vrot.lane.b32.xlu0 %v5461, 10
      %v5822 = vpop.permute.xlu0 %5821
      %5823 = vrot.lane.b32.xlu0 %v5760, 10
      %v5824 = vpop.permute.xlu0 %5823
      %5825 = vrot.lane.b32.xlu0 %v5762, 10
      %v5826 = vpop.permute.xlu0 %5825
      %5861 = vrot.lane.b32.xlu0 %v5110, 12
      %v5862 = vpop.permute.xlu0 %5861
      %5863 = vrot.lane.b32.xlu0 %v5111, 12
      %v5864 = vpop.permute.xlu0 %5863
      %5865 = vrot.lane.b32.xlu0 %v5113, 12
      %v5866 = vpop.permute.xlu0 %5865
      %5867 = vrot.lane.b32.xlu0 %v5114, 12
      %v5868 = vpop.permute.xlu0 %5867
      %5869 = vrot.lane.b32.xlu0 %v5116, 12
      %v5870 = vpop.permute.xlu0 %5869
      %5871 = vrot.lane.b32.xlu0 %v5117, 12
      %v5872 = vpop.permute.xlu0 %5871
      %5873 = vrot.lane.b32.xlu0 %v5119, 12
      %v5874 = vpop.permute.xlu0 %5873
      %5875 = vrot.lane.b32.xlu0 %v5120, 12
      %v5876 = vpop.permute.xlu0 %5875
      %5877 = vrot.lane.b32.xlu0 %v5122, 12
      %v5878 = vpop.permute.xlu0 %5877
      %5879 = vrot.lane.b32.xlu0 %v5123, 12
      %v5880 = vpop.permute.xlu0 %5879
      %5881 = vrot.lane.b32.xlu0 %v5125, 12
      %v5882 = vpop.permute.xlu0 %5881
      %5883 = vrot.lane.b32.xlu0 %v5126, 12
      %v5884 = vpop.permute.xlu0 %5883
      %5885 = vrot.lane.b32.xlu0 %v5128, 12
      %v5886 = vpop.permute.xlu0 %5885
      %5887 = vrot.lane.b32.xlu0 %v5129, 12
      %v5888 = vpop.permute.xlu0 %5887
      %5889 = vrot.lane.b32.xlu0 %v5131, 12
      %v5890 = vpop.permute.xlu0 %5889
      %5891 = vrot.lane.b32.xlu0 %v5132, 12
      %v5892 = vpop.permute.xlu0 %5891
      %5893 = vrot.lane.b32.xlu0 %v5134, 12
      %v5894 = vpop.permute.xlu0 %5893
      %5895 = vrot.lane.b32.xlu0 %v5135, 12
      %v5896 = vpop.permute.xlu0 %5895
      %5897 = vrot.lane.b32.xlu0 %v5137, 12
      %v5898 = vpop.permute.xlu0 %5897
      %5899 = vrot.lane.b32.xlu0 %v5138, 12
      %v5900 = vpop.permute.xlu0 %5899
      %5901 = vrot.lane.b32.xlu0 %v5140, 12
      %v5902 = vpop.permute.xlu0 %5901
      %5903 = vrot.lane.b32.xlu0 %v5141, 12
      %v5904 = vpop.permute.xlu0 %5903
      %5905 = vrot.lane.b32.xlu0 %v5143, 12
      %v5906 = vpop.permute.xlu0 %5905
      %5907 = vrot.lane.b32.xlu0 %v5144, 12
      %v5908 = vpop.permute.xlu0 %5907
      %5909 = vrot.lane.b32.xlu0 %v5146, 12
      %v5910 = vpop.permute.xlu0 %5909
      %5911 = vrot.lane.b32.xlu0 %v5147, 12
      %v5912 = vpop.permute.xlu0 %5911
      %5913 = vrot.lane.b32.xlu0 %v5149, 12
      %v5914 = vpop.permute.xlu0 %5913
      %5915 = vrot.lane.b32.xlu0 %v5150, 12
      %v5916 = vpop.permute.xlu0 %5915
      %5917 = vrot.lane.b32.xlu0 %v5152, 12
      %v5918 = vpop.permute.xlu0 %5917
      %5919 = vrot.lane.b32.xlu0 %v5153, 12
      %v5920 = vpop.permute.xlu0 %5919
      %5921 = vrot.lane.b32.xlu0 %v5155, 12
      %v5922 = vpop.permute.xlu0 %5921
      %5923 = vrot.lane.b32.xlu0 %v5156, 12
      %v5924 = vpop.permute.xlu0 %5923
      %v5958 = vrot.slane %v5155, 1
      %v5959 = vrot.slane %v5156, 1
      %v5960 = vsel %vm937, %v5958, %v5959
      %v5961 = vrot.slane %v5157, 1
      %v5962 = vsel %vm937, %v5959, %v5961
      %5963 = vrot.lane.b32.xlu0 %v5218, 14
      %v5964 = vpop.permute.xlu0 %5963
      %5965 = vrot.lane.b32.xlu0 %v5220, 14
      %v5966 = vpop.permute.xlu0 %5965
      %5967 = vrot.lane.b32.xlu0 %v5223, 14
      %v5968 = vpop.permute.xlu0 %5967
      %5969 = vrot.lane.b32.xlu0 %v5225, 14
      %v5970 = vpop.permute.xlu0 %5969
      %5971 = vrot.lane.b32.xlu0 %v5228, 14
      %v5972 = vpop.permute.xlu0 %5971
      %5973 = vrot.lane.b32.xlu0 %v5230, 14
      %v5974 = vpop.permute.xlu0 %5973
      %5975 = vrot.lane.b32.xlu0 %v5233, 14
      %v5976 = vpop.permute.xlu0 %5975
      %5977 = vrot.lane.b32.xlu0 %v5235, 14
      %v5978 = vpop.permute.xlu0 %5977
      %5979 = vrot.lane.b32.xlu0 %v5238, 14
      %v5980 = vpop.permute.xlu0 %5979
      %5981 = vrot.lane.b32.xlu0 %v5240, 14
      %v5982 = vpop.permute.xlu0 %5981
      %5983 = vrot.lane.b32.xlu0 %v5243, 14
      %v5984 = vpop.permute.xlu0 %5983
      %5985 = vrot.lane.b32.xlu0 %v5245, 14
      %v5986 = vpop.permute.xlu0 %5985
      %5987 = vrot.lane.b32.xlu0 %v5248, 14
      %v5988 = vpop.permute.xlu0 %5987
      %5989 = vrot.lane.b32.xlu0 %v5250, 14
      %v5990 = vpop.permute.xlu0 %5989
      %5991 = vrot.lane.b32.xlu0 %v5253, 14
      %v5992 = vpop.permute.xlu0 %5991
      %5993 = vrot.lane.b32.xlu0 %v5255, 14
      %v5994 = vpop.permute.xlu0 %5993
      %5995 = vrot.lane.b32.xlu0 %v5258, 14
      %v5996 = vpop.permute.xlu0 %5995
      %5997 = vrot.lane.b32.xlu0 %v5260, 14
      %v5998 = vpop.permute.xlu0 %5997
      %5999 = vrot.lane.b32.xlu0 %v5263, 14
      %v6000 = vpop.permute.xlu0 %5999
      %6001 = vrot.lane.b32.xlu0 %v5265, 14
      %v6002 = vpop.permute.xlu0 %6001
      %6003 = vrot.lane.b32.xlu0 %v5268, 14
      %v6004 = vpop.permute.xlu0 %6003
      %6005 = vrot.lane.b32.xlu0 %v5270, 14
      %v6006 = vpop.permute.xlu0 %6005
      %6007 = vrot.lane.b32.xlu0 %v5273, 14
      %v6008 = vpop.permute.xlu0 %6007
      %6009 = vrot.lane.b32.xlu0 %v5275, 14
      %v6010 = vpop.permute.xlu0 %6009
      %6011 = vrot.lane.b32.xlu0 %v5278, 14
      %v6012 = vpop.permute.xlu0 %6011
      %6013 = vrot.lane.b32.xlu0 %v5280, 14
      %v6014 = vpop.permute.xlu0 %6013
      %6015 = vrot.lane.b32.xlu0 %v5283, 14
      %v6016 = vpop.permute.xlu0 %6015
      %6017 = vrot.lane.b32.xlu0 %v5285, 14
      %v6018 = vpop.permute.xlu0 %6017
      %6019 = vrot.lane.b32.xlu0 %v5659, 14
      %v6020 = vpop.permute.xlu0 %6019
      %6021 = vrot.lane.b32.xlu0 %v5661, 14
      %v6022 = vpop.permute.xlu0 %6021
      %6023 = vrot.lane.b32.xlu0 %v5960, 14
      %v6024 = vpop.permute.xlu0 %6023
      %6025 = vrot.lane.b32.xlu0 %v5962, 14
      %v6026 = vpop.permute.xlu0 %6025
      %v6059 = vrot.slane %v5155, 2
      %v6060 = vrot.slane %v5156, 2
      %v6061 = vsel %vm1114, %v6059, %v6060
      %v6062 = vrot.slane %v5157, 2
      %v6063 = vsel %vm1114, %v6060, %v6062
      %6064 = vrot.lane.b32.xlu0 %v5394, 16
      %v6065 = vpop.permute.xlu0 %6064
      %6066 = vrot.lane.b32.xlu0 %v5396, 16
      %v6067 = vpop.permute.xlu0 %6066
      %6068 = vrot.lane.b32.xlu0 %v5399, 16
      %v6069 = vpop.permute.xlu0 %6068
      %6070 = vrot.lane.b32.xlu0 %v5401, 16
      %v6071 = vpop.permute.xlu0 %6070
      %6072 = vrot.lane.b32.xlu0 %v5404, 16
      %v6073 = vpop.permute.xlu0 %6072
      %6074 = vrot.lane.b32.xlu0 %v5406, 16
      %v6075 = vpop.permute.xlu0 %6074
      %6076 = vrot.lane.b32.xlu0 %v5409, 16
      %v6077 = vpop.permute.xlu0 %6076
      %6078 = vrot.lane.b32.xlu0 %v5411, 16
      %v6079 = vpop.permute.xlu0 %6078
      %6080 = vrot.lane.b32.xlu0 %v5414, 16
      %v6081 = vpop.permute.xlu0 %6080
      %6082 = vrot.lane.b32.xlu0 %v5416, 16
      %v6083 = vpop.permute.xlu0 %6082
      %6084 = vrot.lane.b32.xlu0 %v5419, 16
      %v6085 = vpop.permute.xlu0 %6084
      %6086 = vrot.lane.b32.xlu0 %v5421, 16
      %v6087 = vpop.permute.xlu0 %6086
      %6088 = vrot.lane.b32.xlu0 %v5424, 16
      %v6089 = vpop.permute.xlu0 %6088
      %6090 = vrot.lane.b32.xlu0 %v5426, 16
      %v6091 = vpop.permute.xlu0 %6090
      %6092 = vrot.lane.b32.xlu0 %v5429, 16
      %v6093 = vpop.permute.xlu0 %6092
      %6094 = vrot.lane.b32.xlu0 %v5431, 16
      %v6095 = vpop.permute.xlu0 %6094
      %6096 = vrot.lane.b32.xlu0 %v5434, 16
      %v6097 = vpop.permute.xlu0 %6096
      %6098 = vrot.lane.b32.xlu0 %v5436, 16
      %v6099 = vpop.permute.xlu0 %6098
      %6100 = vrot.lane.b32.xlu0 %v5439, 16
      %v6101 = vpop.permute.xlu0 %6100
      %6102 = vrot.lane.b32.xlu0 %v5441, 16
      %v6103 = vpop.permute.xlu0 %6102
      %6104 = vrot.lane.b32.xlu0 %v5444, 16
      %v6105 = vpop.permute.xlu0 %6104
      %6106 = vrot.lane.b32.xlu0 %v5446, 16
      %v6107 = vpop.permute.xlu0 %6106
      %6108 = vrot.lane.b32.xlu0 %v5449, 16
      %v6109 = vpop.permute.xlu0 %6108
      %6110 = vrot.lane.b32.xlu0 %v5451, 16
      %v6111 = vpop.permute.xlu0 %6110
      %6112 = vrot.lane.b32.xlu0 %v5454, 16
      %v6113 = vpop.permute.xlu0 %6112
      %6114 = vrot.lane.b32.xlu0 %v5456, 16
      %v6115 = vpop.permute.xlu0 %6114
      %6116 = vrot.lane.b32.xlu0 %v5459, 16
      %v6117 = vpop.permute.xlu0 %6116
      %6118 = vrot.lane.b32.xlu0 %v5461, 16
      %v6119 = vpop.permute.xlu0 %6118
      %6120 = vrot.lane.b32.xlu0 %v5760, 16
      %v6121 = vpop.permute.xlu0 %6120
      %6122 = vrot.lane.b32.xlu0 %v5762, 16
      %v6123 = vpop.permute.xlu0 %6122
      %6124 = vrot.lane.b32.xlu0 %v6061, 16
      %v6125 = vpop.permute.xlu0 %6124
      %6126 = vrot.lane.b32.xlu0 %v6063, 16
      %v6127 = vpop.permute.xlu0 %6126
      %v6160 = vsel %vm4530, %v5104, %v5287
      %v6161 = vsel %vm4530, %v5105, %v5289
      %v6162 = vsel %vm4530, %v5107, %v5291
      %v6163 = vsel %vm4530, %v5108, %v5293
      %v6164 = vsel %vm4530, %v5110, %v5295
      %v6165 = vsel %vm4530, %v5111, %v5297
      %v6166 = vsel %vm4530, %v5113, %v5299
      %v6167 = vsel %vm4530, %v5114, %v5301
      %v6168 = vsel %vm4530, %v5116, %v5303
      %v6169 = vsel %vm4530, %v5117, %v5305
      %v6170 = vsel %vm4530, %v5119, %v5307
      %v6171 = vsel %vm4530, %v5120, %v5309
      %v6172 = vsel %vm4530, %v5122, %v5311
      %v6173 = vsel %vm4530, %v5123, %v5313
      %v6174 = vsel %vm4530, %v5125, %v5315
      %v6175 = vsel %vm4530, %v5126, %v5317
      %v6176 = vsel %vm4530, %v5128, %v5319
      %v6177 = vsel %vm4530, %v5129, %v5321
      %v6178 = vsel %vm4530, %v5131, %v5323
      %v6179 = vsel %vm4530, %v5132, %v5325
      %v6180 = vsel %vm4530, %v5134, %v5327
      %v6181 = vsel %vm4530, %v5135, %v5329
      %v6182 = vsel %vm4530, %v5137, %v5331
      %v6183 = vsel %vm4530, %v5138, %v5333
      %v6184 = vsel %vm4530, %v5140, %v5335
      %v6185 = vsel %vm4530, %v5141, %v5337
      %v6186 = vsel %vm4530, %v5143, %v5339
      %v6187 = vsel %vm4530, %v5144, %v5341
      %v6188 = vsel %vm4530, %v5146, %v5343
      %v6189 = vsel %vm4530, %v5147, %v5345
      %v6190 = vsel %vm4530, %v5149, %v5347
      %v6191 = vsel %vm4530, %v5150, %v5349
      %v6192 = vsel %vm258, %v6160, %v5463
      %v6193 = vsel %vm258, %v6161, %v5465
      %v6194 = vsel %vm258, %v6162, %v5467
      %v6195 = vsel %vm258, %v6163, %v5469
      %v6196 = vsel %vm258, %v6164, %v5471
      %v6197 = vsel %vm258, %v6165, %v5473
      %v6198 = vsel %vm258, %v6166, %v5475
      %v6199 = vsel %vm258, %v6167, %v5477
      %v6200 = vsel %vm258, %v6168, %v5479
      %v6201 = vsel %vm258, %v6169, %v5481
      %v6202 = vsel %vm258, %v6170, %v5483
      %v6203 = vsel %vm258, %v6171, %v5485
      %v6204 = vsel %vm258, %v6172, %v5487
      %v6205 = vsel %vm258, %v6173, %v5489
      %v6206 = vsel %vm258, %v6174, %v5491
      %v6207 = vsel %vm258, %v6175, %v5493
      %v6208 = vsel %vm258, %v6176, %v5495
      %v6209 = vsel %vm258, %v6177, %v5497
      %v6210 = vsel %vm258, %v6178, %v5499
      %v6211 = vsel %vm258, %v6179, %v5501
      %v6212 = vsel %vm258, %v6180, %v5503
      %v6213 = vsel %vm258, %v6181, %v5505
      %v6214 = vsel %vm258, %v6182, %v5507
      %v6215 = vsel %vm258, %v6183, %v5509
      %v6216 = vsel %vm258, %v6184, %v5511
      %v6217 = vsel %vm258, %v6185, %v5513
      %v6218 = vsel %vm258, %v6186, %v5515
      %v6219 = vsel %vm258, %v6187, %v5517
      %v6220 = vsel %vm258, %v6188, %v5519
      %v6221 = vsel %vm258, %v6189, %v5521
      %v6222 = vsel %vm258, %v6190, %v5523
      %v6223 = vsel %vm258, %v6191, %v5525
      %vm6224 = vcmask 48128
      %v6225 = vsel %vm6224, %v6192, %v5561
      %v6226 = vsel %vm6224, %v6193, %v5563
      %v6227 = vsel %vm6224, %v6194, %v5565
      %v6228 = vsel %vm6224, %v6195, %v5567
      %v6229 = vsel %vm6224, %v6196, %v5569
      %v6230 = vsel %vm6224, %v6197, %v5571
      %v6231 = vsel %vm6224, %v6198, %v5573
      %v6232 = vsel %vm6224, %v6199, %v5575
      %v6233 = vsel %vm6224, %v6200, %v5577
      %v6234 = vsel %vm6224, %v6201, %v5579
      %v6235 = vsel %vm6224, %v6202, %v5581
      %v6236 = vsel %vm6224, %v6203, %v5583
      %v6237 = vsel %vm6224, %v6204, %v5585
      %v6238 = vsel %vm6224, %v6205, %v5587
      %v6239 = vsel %vm6224, %v6206, %v5589
      %v6240 = vsel %vm6224, %v6207, %v5591
      %v6241 = vsel %vm6224, %v6208, %v5593
      %v6242 = vsel %vm6224, %v6209, %v5595
      %v6243 = vsel %vm6224, %v6210, %v5597
      %v6244 = vsel %vm6224, %v6211, %v5599
      %v6245 = vsel %vm6224, %v6212, %v5601
      %v6246 = vsel %vm6224, %v6213, %v5603
      %v6247 = vsel %vm6224, %v6214, %v5605
      %v6248 = vsel %vm6224, %v6215, %v5607
      %v6249 = vsel %vm6224, %v6216, %v5609
      %v6250 = vsel %vm6224, %v6217, %v5611
      %v6251 = vsel %vm6224, %v6218, %v5613
      %v6252 = vsel %vm6224, %v6219, %v5615
      %v6253 = vsel %vm6224, %v6220, %v5617
      %v6254 = vsel %vm6224, %v6221, %v5619
      %v6255 = vsel %vm6224, %v6222, %v5621
      %v6256 = vsel %vm6224, %v6223, %v5623
      %v6257 = vsel %vm1925, %v6225, %v5663
      %v6258 = vsel %vm1925, %v6226, %v5665
      %v6259 = vsel %vm1925, %v6227, %v5667
      %v6260 = vsel %vm1925, %v6228, %v5669
      %v6261 = vsel %vm1925, %v6229, %v5671
      %v6262 = vsel %vm1925, %v6230, %v5673
      %v6263 = vsel %vm1925, %v6231, %v5675
      %v6264 = vsel %vm1925, %v6232, %v5677
      %v6265 = vsel %vm1925, %v6233, %v5679
      %v6266 = vsel %vm1925, %v6234, %v5681
      %v6267 = vsel %vm1925, %v6235, %v5683
      %v6268 = vsel %vm1925, %v6236, %v5685
      %v6269 = vsel %vm1925, %v6237, %v5687
      %v6270 = vsel %vm1925, %v6238, %v5689
      %v6271 = vsel %vm1925, %v6239, %v5691
      %v6272 = vsel %vm1925, %v6240, %v5693
      %v6273 = vsel %vm1925, %v6241, %v5695
      %v6274 = vsel %vm1925, %v6242, %v5697
      %v6275 = vsel %vm1925, %v6243, %v5699
      %v6276 = vsel %vm1925, %v6244, %v5701
      %v6277 = vsel %vm1925, %v6245, %v5703
      %v6278 = vsel %vm1925, %v6246, %v5705
      %v6279 = vsel %vm1925, %v6247, %v5707
      %v6280 = vsel %vm1925, %v6248, %v5709
      %v6281 = vsel %vm1925, %v6249, %v5711
      %v6282 = vsel %vm1925, %v6250, %v5713
      %v6283 = vsel %vm1925, %v6251, %v5715
      %v6284 = vsel %vm1925, %v6252, %v5717
      %v6285 = vsel %vm1925, %v6253, %v5719
      %v6286 = vsel %vm1925, %v6254, %v5721
      %v6287 = vsel %vm1925, %v6255, %v5723
      %v6288 = vsel %vm1925, %v6256, %v5725
      %vm6289 = vcmask 80896
      %v6290 = vsel %vm6289, %v6257, %v5764
      %v6291 = vsel %vm6289, %v6258, %v5766
      %v6292 = vsel %vm6289, %v6259, %v5768
      %v6293 = vsel %vm6289, %v6260, %v5770
      %v6294 = vsel %vm6289, %v6261, %v5772
      %v6295 = vsel %vm6289, %v6262, %v5774
      %v6296 = vsel %vm6289, %v6263, %v5776
      %v6297 = vsel %vm6289, %v6264, %v5778
      %v6298 = vsel %vm6289, %v6265, %v5780
      %v6299 = vsel %vm6289, %v6266, %v5782
      %v6300 = vsel %vm6289, %v6267, %v5784
      %v6301 = vsel %vm6289, %v6268, %v5786
      %v6302 = vsel %vm6289, %v6269, %v5788
      %v6303 = vsel %vm6289, %v6270, %v5790
      %v6304 = vsel %vm6289, %v6271, %v5792
      %v6305 = vsel %vm6289, %v6272, %v5794
      %v6306 = vsel %vm6289, %v6273, %v5796
      %v6307 = vsel %vm6289, %v6274, %v5798
      %v6308 = vsel %vm6289, %v6275, %v5800
      %v6309 = vsel %vm6289, %v6276, %v5802
      %v6310 = vsel %vm6289, %v6277, %v5804
      %v6311 = vsel %vm6289, %v6278, %v5806
      %v6312 = vsel %vm6289, %v6279, %v5808
      %v6313 = vsel %vm6289, %v6280, %v5810
      %v6314 = vsel %vm6289, %v6281, %v5812
      %v6315 = vsel %vm6289, %v6282, %v5814
      %v6316 = vsel %vm6289, %v6283, %v5816
      %v6317 = vsel %vm6289, %v6284, %v5818
      %v6318 = vsel %vm6289, %v6285, %v5820
      %v6319 = vsel %vm6289, %v6286, %v5822
      %v6320 = vsel %vm6289, %v6287, %v5824
      %v6321 = vsel %vm6289, %v6288, %v5826
      %v6322 = vsel %vm1958, %v6290, %v5862
      %v6323 = vsel %vm1958, %v6291, %v5864
      %v6324 = vsel %vm1958, %v6292, %v5866
      %v6325 = vsel %vm1958, %v6293, %v5868
      %v6326 = vsel %vm1958, %v6294, %v5870
      %v6327 = vsel %vm1958, %v6295, %v5872
      %v6328 = vsel %vm1958, %v6296, %v5874
      %v6329 = vsel %vm1958, %v6297, %v5876
      %v6330 = vsel %vm1958, %v6298, %v5878
      %v6331 = vsel %vm1958, %v6299, %v5880
      %v6332 = vsel %vm1958, %v6300, %v5882
      %v6333 = vsel %vm1958, %v6301, %v5884
      %v6334 = vsel %vm1958, %v6302, %v5886
      %v6335 = vsel %vm1958, %v6303, %v5888
      %v6336 = vsel %vm1958, %v6304, %v5890
      %v6337 = vsel %vm1958, %v6305, %v5892
      %v6338 = vsel %vm1958, %v6306, %v5894
      %v6339 = vsel %vm1958, %v6307, %v5896
      %v6340 = vsel %vm1958, %v6308, %v5898
      %v6341 = vsel %vm1958, %v6309, %v5900
      %v6342 = vsel %vm1958, %v6310, %v5902
      %v6343 = vsel %vm1958, %v6311, %v5904
      %v6344 = vsel %vm1958, %v6312, %v5906
      %v6345 = vsel %vm1958, %v6313, %v5908
      %v6346 = vsel %vm1958, %v6314, %v5910
      %v6347 = vsel %vm1958, %v6315, %v5912
      %v6348 = vsel %vm1958, %v6316, %v5914
      %v6349 = vsel %vm1958, %v6317, %v5916
      %v6350 = vsel %vm1958, %v6318, %v5918
      %v6351 = vsel %vm1958, %v6319, %v5920
      %v6352 = vsel %vm1958, %v6320, %v5922
      %v6353 = vsel %vm1958, %v6321, %v5924
      %vm6354 = vcmask 113664
      %v6355 = vsel %vm6354, %v6322, %v5964
      %v6356 = vsel %vm6354, %v6323, %v5966
      %v6357 = vsel %vm6354, %v6324, %v5968
      %v6358 = vsel %vm6354, %v6325, %v5970
      %v6359 = vsel %vm6354, %v6326, %v5972
      %v6360 = vsel %vm6354, %v6327, %v5974
      %v6361 = vsel %vm6354, %v6328, %v5976
      %v6362 = vsel %vm6354, %v6329, %v5978
      %v6363 = vsel %vm6354, %v6330, %v5980
      %v6364 = vsel %vm6354, %v6331, %v5982
      %v6365 = vsel %vm6354, %v6332, %v5984
      %v6366 = vsel %vm6354, %v6333, %v5986
      %v6367 = vsel %vm6354, %v6334, %v5988
      %v6368 = vsel %vm6354, %v6335, %v5990
      %v6369 = vsel %vm6354, %v6336, %v5992
      %v6370 = vsel %vm6354, %v6337, %v5994
      %v6371 = vsel %vm6354, %v6338, %v5996
      %v6372 = vsel %vm6354, %v6339, %v5998
      %v6373 = vsel %vm6354, %v6340, %v6000
      %v6374 = vsel %vm6354, %v6341, %v6002
      %v6375 = vsel %vm6354, %v6342, %v6004
      %v6376 = vsel %vm6354, %v6343, %v6006
      %v6377 = vsel %vm6354, %v6344, %v6008
      %v6378 = vsel %vm6354, %v6345, %v6010
      %v6379 = vsel %vm6354, %v6346, %v6012
      %v6380 = vsel %vm6354, %v6347, %v6014
      %v6381 = vsel %vm6354, %v6348, %v6016
      %v6382 = vsel %vm6354, %v6349, %v6018
      %v6383 = vsel %vm6354, %v6350, %v6020
      %v6384 = vsel %vm6354, %v6351, %v6022
      %v6385 = vsel %vm6354, %v6352, %v6024
      %v6386 = vsel %vm6354, %v6353, %v6026
      %v6387 = vsel %vm1991, %v6355, %v6065
      %v6388 = vsel %vm1991, %v6356, %v6067
      %v6389 = vsel %vm1991, %v6357, %v6069
      %v6390 = vsel %vm1991, %v6358, %v6071
      %v6391 = vsel %vm1991, %v6359, %v6073
      %v6392 = vsel %vm1991, %v6360, %v6075
      %v6393 = vsel %vm1991, %v6361, %v6077
      %v6394 = vsel %vm1991, %v6362, %v6079
      %v6395 = vsel %vm1991, %v6363, %v6081
      %v6396 = vsel %vm1991, %v6364, %v6083
      %v6397 = vsel %vm1991, %v6365, %v6085
      %v6398 = vsel %vm1991, %v6366, %v6087
      %v6399 = vsel %vm1991, %v6367, %v6089
      %v6400 = vsel %vm1991, %v6368, %v6091
      %v6401 = vsel %vm1991, %v6369, %v6093
      %v6402 = vsel %vm1991, %v6370, %v6095
      %v6403 = vsel %vm1991, %v6371, %v6097
      %v6404 = vsel %vm1991, %v6372, %v6099
      %v6405 = vsel %vm1991, %v6373, %v6101
      %v6406 = vsel %vm1991, %v6374, %v6103
      %v6407 = vsel %vm1991, %v6375, %v6105
      %v6408 = vsel %vm1991, %v6376, %v6107
      %v6409 = vsel %vm1991, %v6377, %v6109
      %v6410 = vsel %vm1991, %v6378, %v6111
      %v6411 = vsel %vm1991, %v6379, %v6113
      %v6412 = vsel %vm1991, %v6380, %v6115
      %v6413 = vsel %vm1991, %v6381, %v6117
      %v6414 = vsel %vm1991, %v6382, %v6119
      %v6415 = vsel %vm1991, %v6383, %v6121
      %v6416 = vsel %vm1991, %v6384, %v6123
      %v6417 = vsel %vm1991, %v6385, %v6125
      %v6418 = vsel %vm1991, %v6386, %v6127
      %v6419 = vpack.c.bf16 %v6388, %v6387
      %v6420 = vpack.c.bf16 %v6390, %v6389
      %v6421 = vpack.c.bf16 %v6392, %v6391
      %v6422 = vpack.c.bf16 %v6394, %v6393
      %v6423 = vpack.c.bf16 %v6396, %v6395
      %v6424 = vpack.c.bf16 %v6398, %v6397
      %v6425 = vpack.c.bf16 %v6400, %v6399
      %v6426 = vpack.c.bf16 %v6402, %v6401
      %v6427 = vpack.c.bf16 %v6404, %v6403
      %v6428 = vpack.c.bf16 %v6406, %v6405
      %v6429 = vpack.c.bf16 %v6408, %v6407
      %v6430 = vpack.c.bf16 %v6410, %v6409
      %v6431 = vpack.c.bf16 %v6412, %v6411
      %v6432 = vpack.c.bf16 %v6414, %v6413
      %v6433 = vpack.c.bf16 %v6416, %v6415
      %v6434 = vpack.c.bf16 %v6418, %v6417
      %v6438 = vunpack.c.l.b16 %v5013
      %v6439 = vunpack.c.l.b16 %v5014
      %v6440 = vunpack.c.l.b16 %v5015
      %v6441 = vpack.c.b16 %v6439, %v6438
      %v6442 = vpack.c.b16 %v6440, %v6440
      %vm6444 = vcmask 146432
      %v6446 = vsel %vm6444, %v6419, 0
      %v6449 = vsel %vm6444, %v6420, 0
      %v6452 = vsel %vm6444, %v6421, 0
      %v6455 = vsel %vm6444, %v6422, 0
      %v6458 = vsel %vm6444, %v6423, 0
      %v6461 = vsel %vm6444, %v6424, 0
      %v6464 = vsel %vm6444, %v6425, 0
      %v6467 = vsel %vm6444, %v6426, 0
      %v6470 = vsel %vm6444, %v6427, 0
      %v6473 = vsel %vm6444, %v6428, 0
      %v6476 = vsel %vm6444, %v6429, 0
      %v6479 = vsel %vm6444, %v6430, 0
      %v6482 = vsel %vm6444, %v6431, 0
      %v6485 = vsel %vm6444, %v6432, 0
      %v6488 = vsel %vm6444, %v6433, 0
      %v6491 = vsel %vm6444, %v6434, 0
      %vm6493 = vcmask 1040384
      %v6495 = vsel %vm6493, %v6442, 0
      %6497 = vmatprep.subr.bf16.mxu0 0
      %6498 = vmatpush1.bf16.msra.mxu0 %v6441
      %6499 = vmatprep.subr.bf16.mxu0 0
      %6500 = vmatpush1.bf16.msra.mxu0 %v6495
      %6501 = vmatprep.subr.bf16.mxu0 0
      %6502 = vmatpush1.bf16.msra.mxu0 0
      %6503 = vmatprep.subr.bf16.mxu0 0
      %6504 = vmatpush1.bf16.msra.mxu0 0
      %6505 = vmatprep.subr.bf16.mxu0 0
      %6506 = vmatpush1.bf16.msra.mxu0 0
      %6507 = vmatprep.subr.bf16.mxu0 0
      %6508 = vmatpush1.bf16.msra.mxu0 0
      %6509 = vmatprep.subr.bf16.mxu0 0
      %6510 = vmatpush1.bf16.msra.mxu0 0
      %6511 = vmatprep.subr.bf16.mxu0 0
      %6512 = vmatpush1.bf16.msra.mxu0 0
      %6513 = vmatprep.subr.bf16.mxu0 0
      %6514 = vmatpush1.bf16.msra.mxu0 0
      %6515 = vmatprep.subr.bf16.mxu0 0
      %6516 = vmatpush1.bf16.msra.mxu0 0
      %6517 = vmatprep.subr.bf16.mxu0 0
      %6518 = vmatpush1.bf16.msra.mxu0 0
      %6519 = vmatprep.subr.bf16.mxu0 0
      %6520 = vmatpush1.bf16.msra.mxu0 0
      %6521 = vmatprep.subr.bf16.mxu0 0
      %6522 = vmatpush1.bf16.msra.mxu0 0
      %6523 = vmatprep.subr.bf16.mxu0 0
      %6524 = vmatpush1.bf16.msra.mxu0 0
      %6525 = vmatprep.subr.bf16.mxu0 0
      %6526 = vmatpush1.bf16.msra.mxu0 0
      %6527 = vmatprep.subr.bf16.mxu0 0
      %6528 = vmatpush1.bf16.msra.mxu0 0
      %6529 = vmatprep.mubr.bf16.mxu0 0
      %6530 = vmatmul.mubr.bf16.gmra.mrb[0].mxu0 %v6446
      %v6531 = vpop.f32.mrb[0].mxu0
      %v6532 = vadd.f32 0.0, %v6531
      %v6533 = vpop.f32.mrb[0].mxu0
      %v6534 = vpop.f32.mrb[0].mxu0
      %v6535 = vadd.f32 0.0, %v6534
      %v6536 = vpop.f32.mrb[0].mxu0
      %6537 = vmatprep.mubr.bf16.mxu0 0
      %6538 = vmatmul.mubr.bf16.gmra.mrb[0].mxu0 %v6449
      %v6539 = vpop.f32.mrb[0].mxu0
      %v6540 = vadd.f32 0.0, %v6539
      %v6541 = vpop.f32.mrb[0].mxu0
      %v6542 = vpop.f32.mrb[0].mxu0
      %v6543 = vadd.f32 0.0, %v6542
      %v6544 = vpop.f32.mrb[0].mxu0
      %6545 = vmatprep.mubr.bf16.mxu0 0
      %6546 = vmatmul.mubr.bf16.gmra.mrb[0].mxu0 %v6452
      %v6547 = vpop.f32.mrb[0].mxu0
      %v6548 = vadd.f32 0.0, %v6547
      %v6549 = vpop.f32.mrb[0].mxu0
      %v6550 = vpop.f32.mrb[0].mxu0
      %v6551 = vadd.f32 0.0, %v6550
      %v6552 = vpop.f32.mrb[0].mxu0
      %6553 = vmatprep.mubr.bf16.mxu0 0
      %6554 = vmatmul.mubr.bf16.gmra.mrb[0].mxu0 %v6455
      %v6555 = vpop.f32.mrb[0].mxu0
      %v6556 = vadd.f32 0.0, %v6555
      %v6557 = vpop.f32.mrb[0].mxu0
      %v6558 = vpop.f32.mrb[0].mxu0
      %v6559 = vadd.f32 0.0, %v6558
      %v6560 = vpop.f32.mrb[0].mxu0
      %6561 = vmatprep.mubr.bf16.mxu0 0
      %6562 = vmatmul.mubr.bf16.gmra.mrb[0].mxu0 %v6458
      %v6563 = vpop.f32.mrb[0].mxu0
      %v6564 = vadd.f32 0.0, %v6563
      %v6565 = vpop.f32.mrb[0].mxu0
      %v6566 = vpop.f32.mrb[0].mxu0
      %v6567 = vadd.f32 0.0, %v6566
      %v6568 = vpop.f32.mrb[0].mxu0
      %6569 = vmatprep.mubr.bf16.mxu0 0
      %6570 = vmatmul.mubr.bf16.gmra.mrb[0].mxu0 %v6461
      %v6571 = vpop.f32.mrb[0].mxu0
      %v6572 = vadd.f32 0.0, %v6571
      %v6573 = vpop.f32.mrb[0].mxu0
      %v6574 = vpop.f32.mrb[0].mxu0
      %v6575 = vadd.f32 0.0, %v6574
      %v6576 = vpop.f32.mrb[0].mxu0
      %6577 = vmatprep.mubr.bf16.mxu0 0
      %6578 = vmatmul.mubr.bf16.gmra.mrb[0].mxu0 %v6464
      %v6579 = vpop.f32.mrb[0].mxu0
      %v6580 = vadd.f32 0.0, %v6579
      %v6581 = vpop.f32.mrb[0].mxu0
      %v6582 = vpop.f32.mrb[0].mxu0
      %v6583 = vadd.f32 0.0, %v6582
      %v6584 = vpop.f32.mrb[0].mxu0
      %6585 = vmatprep.mubr.bf16.mxu0 0
      %6586 = vmatmul.mubr.bf16.gmra.mrb[0].mxu0 %v6467
      %v6587 = vpop.f32.mrb[0].mxu0
      %v6588 = vadd.f32 0.0, %v6587
      %v6589 = vpop.f32.mrb[0].mxu0
      %v6590 = vpop.f32.mrb[0].mxu0
      %v6591 = vadd.f32 0.0, %v6590
      %v6592 = vpop.f32.mrb[0].mxu0
      %6593 = vmatprep.mubr.bf16.mxu0 0
      %6594 = vmatmul.mubr.bf16.gmra.mrb[0].mxu0 %v6470
      %v6595 = vpop.f32.mrb[0].mxu0
      %v6596 = vadd.f32 0.0, %v6595
      %v6597 = vpop.f32.mrb[0].mxu0
      %v6598 = vpop.f32.mrb[0].mxu0
      %v6599 = vadd.f32 0.0, %v6598
      %v6600 = vpop.f32.mrb[0].mxu0
      %6601 = vmatprep.mubr.bf16.mxu0 0
      %6602 = vmatmul.mubr.bf16.gmra.mrb[0].mxu0 %v6473
      %v6603 = vpop.f32.mrb[0].mxu0
      %v6604 = vadd.f32 0.0, %v6603
      %v6605 = vpop.f32.mrb[0].mxu0
      %v6606 = vpop.f32.mrb[0].mxu0
      %v6607 = vadd.f32 0.0, %v6606
      %v6608 = vpop.f32.mrb[0].mxu0
      %6609 = vmatprep.mubr.bf16.mxu0 0
      %6610 = vmatmul.mubr.bf16.gmra.mrb[0].mxu0 %v6476
      %v6611 = vpop.f32.mrb[0].mxu0
      %v6612 = vadd.f32 0.0, %v6611
      %v6613 = vpop.f32.mrb[0].mxu0
      %v6614 = vpop.f32.mrb[0].mxu0
      %v6615 = vadd.f32 0.0, %v6614
      %v6616 = vpop.f32.mrb[0].mxu0
      %6617 = vmatprep.mubr.bf16.mxu0 0
      %6618 = vmatmul.mubr.bf16.gmra.mrb[0].mxu0 %v6479
      %v6619 = vpop.f32.mrb[0].mxu0
      %v6620 = vadd.f32 0.0, %v6619
      %v6621 = vpop.f32.mrb[0].mxu0
      %v6622 = vpop.f32.mrb[0].mxu0
      %v6623 = vadd.f32 0.0, %v6622
      %v6624 = vpop.f32.mrb[0].mxu0
      %6625 = vmatprep.mubr.bf16.mxu0 0
      %6626 = vmatmul.mubr.bf16.gmra.mrb[0].mxu0 %v6482
      %v6627 = vpop.f32.mrb[0].mxu0
      %v6628 = vadd.f32 0.0, %v6627
      %v6629 = vpop.f32.mrb[0].mxu0
      %v6630 = vpop.f32.mrb[0].mxu0
      %v6631 = vadd.f32 0.0, %v6630
      %v6632 = vpop.f32.mrb[0].mxu0
      %6633 = vmatprep.mubr.bf16.mxu0 0
      %6634 = vmatmul.mubr.bf16.gmra.mrb[0].mxu0 %v6485
      %v6635 = vpop.f32.mrb[0].mxu0
      %v6636 = vadd.f32 0.0, %v6635
      %v6637 = vpop.f32.mrb[0].mxu0
      %v6638 = vpop.f32.mrb[0].mxu0
      %v6639 = vadd.f32 0.0, %v6638
      %v6640 = vpop.f32.mrb[0].mxu0
      %6641 = vmatprep.mubr.bf16.mxu0 0
      %6642 = vmatmul.mubr.bf16.gmra.mrb[0].mxu0 %v6488
      %v6643 = vpop.f32.mrb[0].mxu0
      %v6644 = vadd.f32 0.0, %v6643
      %v6645 = vpop.f32.mrb[0].mxu0
      %v6646 = vpop.f32.mrb[0].mxu0
      %v6647 = vadd.f32 0.0, %v6646
      %v6648 = vpop.f32.mrb[0].mxu0
      %6649 = vmatprep.mubr.bf16.mxu0 0
      %6650 = vmatmul.mubr.bf16.gmra.mrb[0].mxu0 %v6491
      %v6651 = vpop.f32.mrb[0].mxu0
      %v6652 = vadd.f32 0.0, %v6651
      %v6653 = vpop.f32.mrb[0].mxu0
      %v6654 = vpop.f32.mrb[0].mxu0
      %v6655 = vadd.f32 0.0, %v6654
      %v6656 = vpop.f32.mrb[0].mxu0
      %6657 = vdwg.mxu0
      %6690 = vrot.lane.b32.xlu0 %v4404, 4
      %v6691 = vpop.permute.xlu0 %6690
      %6692 = vrot.lane.b32.xlu0 %v4407, 4
      %v6693 = vpop.permute.xlu0 %6692
      %6694 = vrot.lane.b32.xlu0 %v4412, 4
      %v6695 = vpop.permute.xlu0 %6694
      %6696 = vrot.lane.b32.xlu0 %v4415, 4
      %v6697 = vpop.permute.xlu0 %6696
      %6698 = vrot.lane.b32.xlu0 %v4420, 4
      %v6699 = vpop.permute.xlu0 %6698
      %6700 = vrot.lane.b32.xlu0 %v4423, 4
      %v6701 = vpop.permute.xlu0 %6700
      %6702 = vrot.lane.b32.xlu0 %v4428, 4
      %v6703 = vpop.permute.xlu0 %6702
      %6704 = vrot.lane.b32.xlu0 %v4431, 4
      %v6705 = vpop.permute.xlu0 %6704
      %6706 = vrot.lane.b32.xlu0 %v4436, 4
      %v6707 = vpop.permute.xlu0 %6706
      %6708 = vrot.lane.b32.xlu0 %v4439, 4
      %v6709 = vpop.permute.xlu0 %6708
      %6710 = vrot.lane.b32.xlu0 %v4444, 4
      %v6711 = vpop.permute.xlu0 %6710
      %6712 = vrot.lane.b32.xlu0 %v4447, 4
      %v6713 = vpop.permute.xlu0 %6712
      %6714 = vrot.lane.b32.xlu0 %v4452, 4
      %v6715 = vpop.permute.xlu0 %6714
      %6716 = vrot.lane.b32.xlu0 %v4455, 4
      %v6717 = vpop.permute.xlu0 %6716
      %6718 = vrot.lane.b32.xlu0 %v4460, 4
      %v6719 = vpop.permute.xlu0 %6718
      %6720 = vrot.lane.b32.xlu0 %v4463, 4
      %v6721 = vpop.permute.xlu0 %6720
      %6722 = vrot.lane.b32.xlu0 %v4468, 4
      %v6723 = vpop.permute.xlu0 %6722
      %6724 = vrot.lane.b32.xlu0 %v4471, 4
      %v6725 = vpop.permute.xlu0 %6724
      %6726 = vrot.lane.b32.xlu0 %v4476, 4
      %v6727 = vpop.permute.xlu0 %6726
      %6728 = vrot.lane.b32.xlu0 %v4479, 4
      %v6729 = vpop.permute.xlu0 %6728
      %6730 = vrot.lane.b32.xlu0 %v4484, 4
      %v6731 = vpop.permute.xlu0 %6730
      %6732 = vrot.lane.b32.xlu0 %v4487, 4
      %v6733 = vpop.permute.xlu0 %6732
      %6734 = vrot.lane.b32.xlu0 %v4492, 4
      %v6735 = vpop.permute.xlu0 %6734
      %6736 = vrot.lane.b32.xlu0 %v4495, 4
      %v6737 = vpop.permute.xlu0 %6736
      %6738 = vrot.lane.b32.xlu0 %v4500, 4
      %v6739 = vpop.permute.xlu0 %6738
      %6740 = vrot.lane.b32.xlu0 %v4503, 4
      %v6741 = vpop.permute.xlu0 %6740
      %6742 = vrot.lane.b32.xlu0 %v4508, 4
      %v6743 = vpop.permute.xlu0 %6742
      %6744 = vrot.lane.b32.xlu0 %v4511, 4
      %v6745 = vpop.permute.xlu0 %6744
      %6746 = vrot.lane.b32.xlu0 %v4516, 4
      %v6747 = vpop.permute.xlu0 %6746
      %6748 = vrot.lane.b32.xlu0 %v4519, 4
      %v6749 = vpop.permute.xlu0 %6748
      %6750 = vrot.lane.b32.xlu0 %v4524, 4
      %v6751 = vpop.permute.xlu0 %6750
      %6752 = vrot.lane.b32.xlu0 %v4527, 4
      %v6753 = vpop.permute.xlu0 %6752
      %6818 = vrot.lane.b32.xlu0 %v6532, 6
      %v6819 = vpop.permute.xlu0 %6818
      %6820 = vrot.lane.b32.xlu0 %v6535, 6
      %v6821 = vpop.permute.xlu0 %6820
      %6822 = vrot.lane.b32.xlu0 %v6540, 6
      %v6823 = vpop.permute.xlu0 %6822
      %6824 = vrot.lane.b32.xlu0 %v6543, 6
      %v6825 = vpop.permute.xlu0 %6824
      %6826 = vrot.lane.b32.xlu0 %v6548, 6
      %v6827 = vpop.permute.xlu0 %6826
      %6828 = vrot.lane.b32.xlu0 %v6551, 6
      %v6829 = vpop.permute.xlu0 %6828
      %6830 = vrot.lane.b32.xlu0 %v6556, 6
      %v6831 = vpop.permute.xlu0 %6830
      %6832 = vrot.lane.b32.xlu0 %v6559, 6
      %v6833 = vpop.permute.xlu0 %6832
      %6834 = vrot.lane.b32.xlu0 %v6564, 6
      %v6835 = vpop.permute.xlu0 %6834
      %6836 = vrot.lane.b32.xlu0 %v6567, 6
      %v6837 = vpop.permute.xlu0 %6836
      %6838 = vrot.lane.b32.xlu0 %v6572, 6
      %v6839 = vpop.permute.xlu0 %6838
      %6840 = vrot.lane.b32.xlu0 %v6575, 6
      %v6841 = vpop.permute.xlu0 %6840
      %6842 = vrot.lane.b32.xlu0 %v6580, 6
      %v6843 = vpop.permute.xlu0 %6842
      %6844 = vrot.lane.b32.xlu0 %v6583, 6
      %v6845 = vpop.permute.xlu0 %6844
      %6846 = vrot.lane.b32.xlu0 %v6588, 6
      %v6847 = vpop.permute.xlu0 %6846
      %6848 = vrot.lane.b32.xlu0 %v6591, 6
      %v6849 = vpop.permute.xlu0 %6848
      %6850 = vrot.lane.b32.xlu0 %v6596, 6
      %v6851 = vpop.permute.xlu0 %6850
      %6852 = vrot.lane.b32.xlu0 %v6599, 6
      %v6853 = vpop.permute.xlu0 %6852
      %6854 = vrot.lane.b32.xlu0 %v6604, 6
      %v6855 = vpop.permute.xlu0 %6854
      %6856 = vrot.lane.b32.xlu0 %v6607, 6
      %v6857 = vpop.permute.xlu0 %6856
      %6858 = vrot.lane.b32.xlu0 %v6612, 6
      %v6859 = vpop.permute.xlu0 %6858
      %6860 = vrot.lane.b32.xlu0 %v6615, 6
      %v6861 = vpop.permute.xlu0 %6860
      %6862 = vrot.lane.b32.xlu0 %v6620, 6
      %v6863 = vpop.permute.xlu0 %6862
      %6864 = vrot.lane.b32.xlu0 %v6623, 6
      %v6865 = vpop.permute.xlu0 %6864
      %6866 = vrot.lane.b32.xlu0 %v6628, 6
      %v6867 = vpop.permute.xlu0 %6866
      %6868 = vrot.lane.b32.xlu0 %v6631, 6
      %v6869 = vpop.permute.xlu0 %6868
      %6870 = vrot.lane.b32.xlu0 %v6636, 6
      %v6871 = vpop.permute.xlu0 %6870
      %6872 = vrot.lane.b32.xlu0 %v6639, 6
      %v6873 = vpop.permute.xlu0 %6872
      %6874 = vrot.lane.b32.xlu0 %v6644, 6
      %v6875 = vpop.permute.xlu0 %6874
      %6876 = vrot.lane.b32.xlu0 %v6647, 6
      %v6877 = vpop.permute.xlu0 %6876
      %6878 = vrot.lane.b32.xlu0 %v6652, 6
      %v6879 = vpop.permute.xlu0 %6878
      %6880 = vrot.lane.b32.xlu0 %v6655, 6
      %v6881 = vpop.permute.xlu0 %6880
      %v6914 = vsel %vm258, %v2275, %v6691
      %v6915 = vsel %vm258, %v2278, %v6693
      %v6916 = vsel %vm258, %v2283, %v6695
      %v6917 = vsel %vm258, %v2286, %v6697
      %v6918 = vsel %vm258, %v2291, %v6699
      %v6919 = vsel %vm258, %v2294, %v6701
      %v6920 = vsel %vm258, %v2299, %v6703
      %v6921 = vsel %vm258, %v2302, %v6705
      %v6922 = vsel %vm258, %v2307, %v6707
      %v6923 = vsel %vm258, %v2310, %v6709
      %v6924 = vsel %vm258, %v2315, %v6711
      %v6925 = vsel %vm258, %v2318, %v6713
      %v6926 = vsel %vm258, %v2323, %v6715
      %v6927 = vsel %vm258, %v2326, %v6717
      %v6928 = vsel %vm258, %v2331, %v6719
      %v6929 = vsel %vm258, %v2334, %v6721
      %v6930 = vsel %vm258, %v2339, %v6723
      %v6931 = vsel %vm258, %v2342, %v6725
      %v6932 = vsel %vm258, %v2347, %v6727
      %v6933 = vsel %vm258, %v2350, %v6729
      %v6934 = vsel %vm258, %v2355, %v6731
      %v6935 = vsel %vm258, %v2358, %v6733
      %v6936 = vsel %vm258, %v2363, %v6735
      %v6937 = vsel %vm258, %v2366, %v6737
      %v6938 = vsel %vm258, %v2371, %v6739
      %v6939 = vsel %vm258, %v2374, %v6741
      %v6940 = vsel %vm258, %v2379, %v6743
      %v6941 = vsel %vm258, %v2382, %v6745
      %v6942 = vsel %vm258, %v2387, %v6747
      %v6943 = vsel %vm258, %v2390, %v6749
      %v6944 = vsel %vm258, %v2395, %v6751
      %v6945 = vsel %vm258, %v2398, %v6753
      %v6946 = vsel %vm6224, %v6914, %v6819
      %v6947 = vsel %vm6224, %v6915, %v6821
      %v6948 = vsel %vm6224, %v6916, %v6823
      %v6949 = vsel %vm6224, %v6917, %v6825
      %v6950 = vsel %vm6224, %v6918, %v6827
      %v6951 = vsel %vm6224, %v6919, %v6829
      %v6952 = vsel %vm6224, %v6920, %v6831
      %v6953 = vsel %vm6224, %v6921, %v6833
      %v6954 = vsel %vm6224, %v6922, %v6835
      %v6955 = vsel %vm6224, %v6923, %v6837
      %v6956 = vsel %vm6224, %v6924, %v6839
      %v6957 = vsel %vm6224, %v6925, %v6841
      %v6958 = vsel %vm6224, %v6926, %v6843
      %v6959 = vsel %vm6224, %v6927, %v6845
      %v6960 = vsel %vm6224, %v6928, %v6847
      %v6961 = vsel %vm6224, %v6929, %v6849
      %v6962 = vsel %vm6224, %v6930, %v6851
      %v6963 = vsel %vm6224, %v6931, %v6853
      %v6964 = vsel %vm6224, %v6932, %v6855
      %v6965 = vsel %vm6224, %v6933, %v6857
      %v6966 = vsel %vm6224, %v6934, %v6859
      %v6967 = vsel %vm6224, %v6935, %v6861
      %v6968 = vsel %vm6224, %v6936, %v6863
      %v6969 = vsel %vm6224, %v6937, %v6865
      %v6970 = vsel %vm6224, %v6938, %v6867
      %v6971 = vsel %vm6224, %v6939, %v6869
      %v6972 = vsel %vm6224, %v6940, %v6871
      %v6973 = vsel %vm6224, %v6941, %v6873
      %v6974 = vsel %vm6224, %v6942, %v6875
      %v6975 = vsel %vm6224, %v6943, %v6877
      %v6976 = vsel %vm6224, %v6944, %v6879
      %v6977 = vsel %vm6224, %v6945, %v6881
      %v6978 = vpack.c.bf16 %v711, %v710
      %v6979 = vpack.c.bf16 %v713, %v712
      %v6980 = vpack.c.bf16 %v715, %v714
      %v6981 = vpack.c.bf16 %v717, %v716
      %v6982 = vpack.c.bf16 %v719, %v718
      %v6983 = vpack.c.bf16 %v721, %v720
      %v6984 = vpack.c.bf16 %v723, %v722
      %v6985 = vpack.c.bf16 %v725, %v724
      %v6986 = vpack.c.bf16 %v727, %v726
      %v6987 = vpack.c.bf16 %v729, %v728
      %v6988 = vpack.c.bf16 %v731, %v730
      %v6989 = vpack.c.bf16 %v733, %v732
      %v6990 = vpack.c.bf16 %v735, %v734
      %v6991 = vpack.c.bf16 %v737, %v736
      %v6992 = vpack.c.bf16 %v739, %v738
      %v6993 = vpack.c.bf16 %v741, %v740
      %v6994 = vld [vmem:[%s4] sm:$0x3]
      %v6996 = vsel %vm258, %v6978, 0
      %v6999 = vsel %vm258, %v6979, 0
      %v7002 = vsel %vm258, %v6980, 0
      %v7005 = vsel %vm258, %v6981, 0
      %v7008 = vsel %vm258, %v6982, 0
      %v7011 = vsel %vm258, %v6983, 0
      %v7014 = vsel %vm258, %v6984, 0
      %v7017 = vsel %vm258, %v6985, 0
      %v7020 = vsel %vm258, %v6986, 0
      %v7023 = vsel %vm258, %v6987, 0
      %v7026 = vsel %vm258, %v6988, 0
      %v7029 = vsel %vm258, %v6989, 0
      %v7032 = vsel %vm258, %v6990, 0
      %v7035 = vsel %vm258, %v6991, 0
      %v7038 = vsel %vm258, %v6992, 0
      %v7041 = vsel %vm258, %v6993, 0
      %v7044 = vsel %vm2236, %v6994, 0
      %7046 = vmatprep.subr.bf16.mxu0 0
      %7047 = vmatpush1.bf16.msra.mxu0 %v7044
      %7048 = vmatprep.subr.bf16.mxu0 0
      %7049 = vmatpush1.bf16.msra.mxu0 0
      %7050 = vmatprep.subr.bf16.mxu0 0
      %7051 = vmatpush1.bf16.msra.mxu0 0
      %7052 = vmatprep.subr.bf16.mxu0 0
      %7053 = vmatpush1.bf16.msra.mxu0 0
      %7054 = vmatprep.subr.bf16.mxu0 0
      %7055 = vmatpush1.bf16.msra.mxu0 0
      %7056 = vmatprep.subr.bf16.mxu0 0
      %7057 = vmatpush1.bf16.msra.mxu0 0
      %7058 = vmatprep.subr.bf16.mxu0 0
      %7059 = vmatpush1.bf16.msra.mxu0 0
      %7060 = vmatprep.subr.bf16.mxu0 0
      %7061 = vmatpush1.bf16.msra.mxu0 0
      %7062 = vmatprep.subr.bf16.mxu0 0
      %7063 = vmatpush1.bf16.msra.mxu0 0
      %7064 = vmatprep.subr.bf16.mxu0 0
      %7065 = vmatpush1.bf16.msra.mxu0 0
      %7066 = vmatprep.subr.bf16.mxu0 0
      %7067 = vmatpush1.bf16.msra.mxu0 0
      %7068 = vmatprep.subr.bf16.mxu0 0
      %7069 = vmatpush1.bf16.msra.mxu0 0
      %7070 = vmatprep.subr.bf16.mxu0 0
      %7071 = vmatpush1.bf16.msra.mxu0 0
      %7072 = vmatprep.subr.bf16.mxu0 0
      %7073 = vmatpush1.bf16.msra.mxu0 0
      %7074 = vmatprep.subr.bf16.mxu0 0
      %7075 = vmatpush1.bf16.msra.mxu0 0
      %7076 = vmatprep.subr.bf16.mxu0 0
      %7077 = vmatpush1.bf16.msra.mxu0 0
      %7078 = vmatprep.mubr.bf16.mxu0 0
      %7079 = vmatmul.mubr.bf16.gmra.mrb[0].mxu0 %v6996
      %v7080 = vpop.f32.mrb[0].mxu0
      %v7081 = vadd.f32 0.0, %v7080
      %v7082 = vpop.f32.mrb[0].mxu0
      %v7083 = vpop.f32.mrb[0].mxu0
      %v7084 = vadd.f32 0.0, %v7083
      %v7085 = vpop.f32.mrb[0].mxu0
      %7086 = vmatprep.mubr.bf16.mxu0 0
      %7087 = vmatmul.mubr.bf16.gmra.mrb[0].mxu0 %v6999
      %v7088 = vpop.f32.mrb[0].mxu0
      %v7089 = vadd.f32 0.0, %v7088
      %v7090 = vpop.f32.mrb[0].mxu0
      %v7091 = vpop.f32.mrb[0].mxu0
      %v7092 = vadd.f32 0.0, %v7091
      %v7093 = vpop.f32.mrb[0].mxu0
      %7094 = vmatprep.mubr.bf16.mxu0 0
      %7095 = vmatmul.mubr.bf16.gmra.mrb[0].mxu0 %v7002
      %v7096 = vpop.f32.mrb[0].mxu0
      %v7097 = vadd.f32 0.0, %v7096
      %v7098 = vpop.f32.mrb[0].mxu0
      %v7099 = vpop.f32.mrb[0].mxu0
      %v7100 = vadd.f32 0.0, %v7099
      %v7101 = vpop.f32.mrb[0].mxu0
      %7102 = vmatprep.mubr.bf16.mxu0 0
      %7103 = vmatmul.mubr.bf16.gmra.mrb[0].mxu0 %v7005
      %v7104 = vpop.f32.mrb[0].mxu0
      %v7105 = vadd.f32 0.0, %v7104
      %v7106 = vpop.f32.mrb[0].mxu0
      %v7107 = vpop.f32.mrb[0].mxu0
      %v7108 = vadd.f32 0.0, %v7107
      %v7109 = vpop.f32.mrb[0].mxu0
      %7110 = vmatprep.mubr.bf16.mxu0 0
      %7111 = vmatmul.mubr.bf16.gmra.mrb[0].mxu0 %v7008
      %v7112 = vpop.f32.mrb[0].mxu0
      %v7113 = vadd.f32 0.0, %v7112
      %v7114 = vpop.f32.mrb[0].mxu0
      %v7115 = vpop.f32.mrb[0].mxu0
      %v7116 = vadd.f32 0.0, %v7115
      %v7117 = vpop.f32.mrb[0].mxu0
      %7118 = vmatprep.mubr.bf16.mxu0 0
      %7119 = vmatmul.mubr.bf16.gmra.mrb[0].mxu0 %v7011
      %v7120 = vpop.f32.mrb[0].mxu0
      %v7121 = vadd.f32 0.0, %v7120
      %v7122 = vpop.f32.mrb[0].mxu0
      %v7123 = vpop.f32.mrb[0].mxu0
      %v7124 = vadd.f32 0.0, %v7123
      %v7125 = vpop.f32.mrb[0].mxu0
      %7126 = vmatprep.mubr.bf16.mxu0 0
      %7127 = vmatmul.mubr.bf16.gmra.mrb[0].mxu0 %v7014
      %v7128 = vpop.f32.mrb[0].mxu0
      %v7129 = vadd.f32 0.0, %v7128
      %v7130 = vpop.f32.mrb[0].mxu0
      %v7131 = vpop.f32.mrb[0].mxu0
      %v7132 = vadd.f32 0.0, %v7131
      %v7133 = vpop.f32.mrb[0].mxu0
      %7134 = vmatprep.mubr.bf16.mxu0 0
      %7135 = vmatmul.mubr.bf16.gmra.mrb[0].mxu0 %v7017
      %v7136 = vpop.f32.mrb[0].mxu0
      %v7137 = vadd.f32 0.0, %v7136
      %v7138 = vpop.f32.mrb[0].mxu0
      %v7139 = vpop.f32.mrb[0].mxu0
      %v7140 = vadd.f32 0.0, %v7139
      %v7141 = vpop.f32.mrb[0].mxu0
      %7142 = vmatprep.mubr.bf16.mxu0 0
      %7143 = vmatmul.mubr.bf16.gmra.mrb[0].mxu0 %v7020
      %v7144 = vpop.f32.mrb[0].mxu0
      %v7145 = vadd.f32 0.0, %v7144
      %v7146 = vpop.f32.mrb[0].mxu0
      %v7147 = vpop.f32.mrb[0].mxu0
      %v7148 = vadd.f32 0.0, %v7147
      %v7149 = vpop.f32.mrb[0].mxu0
      %7150 = vmatprep.mubr.bf16.mxu0 0
      %7151 = vmatmul.mubr.bf16.gmra.mrb[0].mxu0 %v7023
      %v7152 = vpop.f32.mrb[0].mxu0
      %v7153 = vadd.f32 0.0, %v7152
      %v7154 = vpop.f32.mrb[0].mxu0
      %v7155 = vpop.f32.mrb[0].mxu0
      %v7156 = vadd.f32 0.0, %v7155
      %v7157 = vpop.f32.mrb[0].mxu0
      %7158 = vmatprep.mubr.bf16.mxu0 0
      %7159 = vmatmul.mubr.bf16.gmra.mrb[0].mxu0 %v7026
      %v7160 = vpop.f32.mrb[0].mxu0
      %v7161 = vadd.f32 0.0, %v7160
      %v7162 = vpop.f32.mrb[0].mxu0
      %v7163 = vpop.f32.mrb[0].mxu0
      %v7164 = vadd.f32 0.0, %v7163
      %v7165 = vpop.f32.mrb[0].mxu0
      %7166 = vmatprep.mubr.bf16.mxu0 0
      %7167 = vmatmul.mubr.bf16.gmra.mrb[0].mxu0 %v7029
      %v7168 = vpop.f32.mrb[0].mxu0
      %v7169 = vadd.f32 0.0, %v7168
      %v7170 = vpop.f32.mrb[0].mxu0
      %v7171 = vpop.f32.mrb[0].mxu0
      %v7172 = vadd.f32 0.0, %v7171
      %v7173 = vpop.f32.mrb[0].mxu0
      %7174 = vmatprep.mubr.bf16.mxu0 0
      %7175 = vmatmul.mubr.bf16.gmra.mrb[0].mxu0 %v7032
      %v7176 = vpop.f32.mrb[0].mxu0
      %v7177 = vadd.f32 0.0, %v7176
      %v7178 = vpop.f32.mrb[0].mxu0
      %v7179 = vpop.f32.mrb[0].mxu0
      %v7180 = vadd.f32 0.0, %v7179
      %v7181 = vpop.f32.mrb[0].mxu0
      %7182 = vmatprep.mubr.bf16.mxu0 0
      %7183 = vmatmul.mubr.bf16.gmra.mrb[0].mxu0 %v7035
      %v7184 = vpop.f32.mrb[0].mxu0
      %v7185 = vadd.f32 0.0, %v7184
      %v7186 = vpop.f32.mrb[0].mxu0
      %v7187 = vpop.f32.mrb[0].mxu0
      %v7188 = vadd.f32 0.0, %v7187
      %v7189 = vpop.f32.mrb[0].mxu0
      %7190 = vmatprep.mubr.bf16.mxu0 0
      %7191 = vmatmul.mubr.bf16.gmra.mrb[0].mxu0 %v7038
      %v7192 = vpop.f32.mrb[0].mxu0
      %v7193 = vadd.f32 0.0, %v7192
      %v7194 = vpop.f32.mrb[0].mxu0
      %v7195 = vpop.f32.mrb[0].mxu0
      %v7196 = vadd.f32 0.0, %v7195
      %v7197 = vpop.f32.mrb[0].mxu0
      %7198 = vmatprep.mubr.bf16.mxu0 0
      %7199 = vmatmul.mubr.bf16.gmra.mrb[0].mxu0 %v7041
      %v7200 = vpop.f32.mrb[0].mxu0
      %v7201 = vadd.f32 0.0, %v7200
      %v7202 = vpop.f32.mrb[0].mxu0
      %v7203 = vpop.f32.mrb[0].mxu0
      %v7204 = vadd.f32 0.0, %v7203
      %v7205 = vpop.f32.mrb[0].mxu0
      %7206 = vdwg.mxu0
      %v7207 = vadd.f32 %v6946, %v7081
      %v7208 = vadd.f32 %v6947, %v7084
      %v7209 = vadd.f32 %v6948, %v7089
      %v7210 = vadd.f32 %v6949, %v7092
      %v7211 = vadd.f32 %v6950, %v7097
      %v7212 = vadd.f32 %v6951, %v7100
      %v7213 = vadd.f32 %v6952, %v7105
      %v7214 = vadd.f32 %v6953, %v7108
      %v7215 = vadd.f32 %v6954, %v7113
      %v7216 = vadd.f32 %v6955, %v7116
      %v7217 = vadd.f32 %v6956, %v7121
      %v7218 = vadd.f32 %v6957, %v7124
      %v7219 = vadd.f32 %v6958, %v7129
      %v7220 = vadd.f32 %v6959, %v7132
      %v7221 = vadd.f32 %v6960, %v7137
      %v7222 = vadd.f32 %v6961, %v7140
      %v7223 = vadd.f32 %v6962, %v7145
      %v7224 = vadd.f32 %v6963, %v7148
      %v7225 = vadd.f32 %v6964, %v7153
      %v7226 = vadd.f32 %v6965, %v7156
      %v7227 = vadd.f32 %v6966, %v7161
      %v7228 = vadd.f32 %v6967, %v7164
      %v7229 = vadd.f32 %v6968, %v7169
      %v7230 = vadd.f32 %v6969, %v7172
      %v7231 = vadd.f32 %v6970, %v7177
      %v7232 = vadd.f32 %v6971, %v7180
      %v7233 = vadd.f32 %v6972, %v7185
      %v7234 = vadd.f32 %v6973, %v7188
      %v7235 = vadd.f32 %v6974, %v7193
      %v7236 = vadd.f32 %v6975, %v7196
      %v7237 = vadd.f32 %v6976, %v7201
      %v7238 = vadd.f32 %v6977, %v7204
      %7239 = vst.msk [vmem:[%s224] sm:$0xff] %vm1925, %v7207
      %7240 = vst.msk [vmem:[%s224 + $0x8] sm:$0xff] %vm1925, %v7208
      %7241 = vst.msk [vmem:[%s224 + $0x10] sm:$0xff] %vm1925, %v7209
      %7242 = vst.msk [vmem:[%s224 + $0x18] sm:$0xff] %vm1925, %v7210
      %7243 = vst.msk [vmem:[%s224 + $0x20] sm:$0xff] %vm1925, %v7211
      %7244 = vst.msk [vmem:[%s224 + $0x28] sm:$0xff] %vm1925, %v7212
      %7245 = vst.msk [vmem:[%s224 + $0x30] sm:$0xff] %vm1925, %v7213
      %7246 = vst.msk [vmem:[%s224 + $0x38] sm:$0xff] %vm1925, %v7214
      %7247 = vst.msk [vmem:[%s224 + $0x40] sm:$0xff] %vm1925, %v7215
      %7248 = vst.msk [vmem:[%s224 + $0x48] sm:$0xff] %vm1925, %v7216
      %7249 = vst.msk [vmem:[%s224 + $0x50] sm:$0xff] %vm1925, %v7217
      %7250 = vst.msk [vmem:[%s224 + $0x58] sm:$0xff] %vm1925, %v7218
      %7251 = vst.msk [vmem:[%s224 + $0x60] sm:$0xff] %vm1925, %v7219
      %7252 = vst.msk [vmem:[%s224 + $0x68] sm:$0xff] %vm1925, %v7220
      %7253 = vst.msk [vmem:[%s224 + $0x70] sm:$0xff] %vm1925, %v7221
      %7254 = vst.msk [vmem:[%s224 + $0x78] sm:$0xff] %vm1925, %v7222
      %7255 = vst.msk [vmem:[%s224 + $0x80] sm:$0xff] %vm1925, %v7223
      %7256 = vst.msk [vmem:[%s224 + $0x88] sm:$0xff] %vm1925, %v7224
      %7257 = vst.msk [vmem:[%s224 + $0x90] sm:$0xff] %vm1925, %v7225
      %7258 = vst.msk [vmem:[%s224 + $0x98] sm:$0xff] %vm1925, %v7226
      %7259 = vst.msk [vmem:[%s224 + $0xa0] sm:$0xff] %vm1925, %v7227
      %7260 = vst.msk [vmem:[%s224 + $0xa8] sm:$0xff] %vm1925, %v7228
      %7261 = vst.msk [vmem:[%s224 + $0xb0] sm:$0xff] %vm1925, %v7229
      %7262 = vst.msk [vmem:[%s224 + $0xb8] sm:$0xff] %vm1925, %v7230
      %7263 = vst.msk [vmem:[%s224 + $0xc0] sm:$0xff] %vm1925, %v7231
      %7264 = vst.msk [vmem:[%s224 + $0xc8] sm:$0xff] %vm1925, %v7232
      %7265 = vst.msk [vmem:[%s224 + $0xd0] sm:$0xff] %vm1925, %v7233
      %7266 = vst.msk [vmem:[%s224 + $0xd8] sm:$0xff] %vm1925, %v7234
      %7267 = vst.msk [vmem:[%s224 + $0xe0] sm:$0xff] %vm1925, %v7235
      %7268 = vst.msk [vmem:[%s224 + $0xe8] sm:$0xff] %vm1925, %v7236
      %7269 = vst.msk [vmem:[%s224 + $0xf0] sm:$0xff] %vm1925, %v7237
      %7270 = vst.msk [vmem:[%s224 + $0xf8] sm:$0xff] %vm1925, %v7238
      %p7271 = scmp.lt.s32.totalorder %s16, 1
      %s7272 = scalar_select %p7271, %s16, 1
      %s7273 = smul.addr %s7272, 32
      %s7274 = smul.addr %s7273, 8
      %s7275 = scalar_lea.vmem %s5, %s7274
      // Predicated region
      $region41: #{conv_block_forward.1} parent=39 // pred_check
        %p7276 = pneg %p144
      $region42: #{conv_block_forward.1} parent=39 // pred_check_branch
        %7278 = sbr.rel (%p7276) target = $region44
      $region43: #{conv_block_forward.1} parent=39 // pred_region
        _
      $region44: #{conv_block_forward.1} parent=39 // pred_fallthru
        _
    $region40: #{conv_block_forward.1} parent=5 // pred_fallthru
      _
    %p7279 = scmp.le.s32.totalorder 2, %s11
    // Predicated region
    $region45: #{conv_block_forward.1} parent=5 // pred_check
      %p7280 = pneg %p7279
    $region46: #{conv_block_forward.1} parent=5 // pred_check_branch
      %7282 = sbr.rel (%p7280) target = $region48
    $region47: #{conv_block_forward.1} parent=5 // pred_region
      %s7283 = ssub.s32 %s11, 2
      // Predicated region
      $region49: #{conv_block_forward.1} parent=47 // pred_check
        %p7284 = pneg %p150
      $region50: #{conv_block_forward.1} parent=47 // pred_check_branch
        %7286 = sbr.rel (%p7284) target = $region52
      $region51: #{conv_block_forward.1} parent=47 // pred_region
        %p7287 = scmp.lt.s32.totalorder %s17, 1
        %s7288 = scalar_select %p7287, %s17, 1
        %s7289 = smul.addr %s7288, 32
        %s7290 = smul.addr %s7289, 8
        %s7291 = scalar_lea.vmem %s5, %s7290
      $region52: #{conv_block_forward.1} parent=47 // pred_fallthru
        _
    $region48: #{conv_block_forward.1} parent=5 // pred_fallthru
      _
  $region6: #{conv_block_forward.1} parent=0 // loop_footer
    %s15 = sadd.s32 1, %s11
  $region7: #{conv_block_forward.1} parent=0 // loop_footer_branch
    %10 = sbr.rel target = $region3
  $region8: #{conv_block_forward.1} parent=0 // loop_exit
    _

</llo_original>
